<compile_context>
chip_gen: v7x
topology: tpu7x:2x2x1
jax: 0.10.0
libtpu: 0.0.40
codegen_flags: <defaults>
</compile_context>

<pallas_src>
import functools

import numpy as np
import jax
import jax.numpy as jnp
from jax import lax
from jax.experimental import pallas as pl
from jax.experimental.pallas import tpu as pltpu


# =============================================================================
# Fused kernel: ConvBNAct(3x3) + NB x NonBottleneck1D + 2x bilinear up + add
# =============================================================================
def _decoder_fused_kernel(NB, H, W, P,
                          x_ref, w3_ref, s0_ref, sh0_ref,
                          w31a_ref, b31a_ref, w13a_ref, s1_ref, sh1_ref,
                          w31b_ref, b31b_ref, w13b_ref, s2_ref, sh2_ref,
                          enc_ref,
                          out_ref, feat_ref,
                          bufx_ref, bufh_ref, ident_ref):
    Cin = x_ref.shape[-1]
    Cd = out_ref.shape[-1]
    HW = H * W
    H2 = 2 * H

    # ---- zero ONLY the halo rows of the flat scratch buffers (once) --------
    bufx_ref[0:P, :] = jnp.zeros((P, Cin), bufx_ref.dtype)
    bufx_ref[P + HW:P + HW + P, :] = jnp.zeros((P, Cin), bufx_ref.dtype)
    bufh_ref[0:P, :] = jnp.zeros((P, Cd), bufh_ref.dtype)
    bufh_ref[P + HW:P + HW + P, :] = jnp.zeros((P, Cd), bufh_ref.dtype)

    # Column index (within an image row of width W) of every flattened pixel;
    # used to kill the horizontal wrap of the +-1 taps (zero "same" padding)
    # and for the edge clamp of the bilinear upsample.
    col = lax.broadcasted_iota(jnp.int32, (HW, 1), 0) % W
    not_first = col != 0
    not_last = col != (W - 1)

    def conv_w3(buf_ref, base, w2):
        # 3-tap conv along W (taps w-1, w, w+1) as ONE K=3*C matmul.
        left = jnp.where(not_first, buf_ref[base - 1:base - 1 + HW, :], 0.0)
        mid = buf_ref[base:base + HW, :]
        right = jnp.where(not_last, buf_ref[base + 1:base + 1 + HW, :], 0.0)
        win = jnp.concatenate([left, mid, right], axis=-1)        # (HW, 3C)
        return jnp.dot(win, w2, preferred_element_type=jnp.float32)

    def conv_h3(buf_ref, w2):
        # 3-tap conv along H (taps h-1, h, h+1): aligned flat reads at +-W.
        win = jnp.concatenate([buf_ref[P - W:P - W + HW, :],
                               buf_ref[P:P + HW, :],
                               buf_ref[P + W:P + W + HW, :]], axis=-1)
        return jnp.dot(win, w2, preferred_element_type=jnp.float32)

    # ---- ConvBNAct: 3x3 conv (no bias) -> BN(eps=1e-5) -> ReLU --------------
    bufx_ref[P:P + HW, :] = x_ref[0].reshape(HW, Cin)
    acc = conv_w3(bufx_ref, P - W, w3_ref[0])            # kh = 0 (init, no add)
    acc = acc + conv_w3(bufx_ref, P, w3_ref[1])          # kh = 1
    acc = acc + conv_w3(bufx_ref, P + W, w3_ref[2])      # kh = 2
    cur = jnp.maximum(acc * s0_ref[...] + sh0_ref[...], 0.0)     # (HW, Cd) f32

    # ---- NonBottleneck1D blocks; intermediates never leave VMEM -------------
    for i in range(NB):
        ident_ref[...] = cur                              # f32 residual scratch
        bufh_ref[P:P + HW, :] = cur.astype(bufh_ref.dtype)
        cur = jnp.maximum(conv_h3(bufh_ref, w31a_ref[i]) + b31a_ref[i], 0.0)
        bufh_ref[P:P + HW, :] = cur.astype(bufh_ref.dtype)
        cur = jnp.maximum(conv_w3(bufh_ref, P, w13a_ref[i]) * s1_ref[i]
                          + sh1_ref[i], 0.0)
        bufh_ref[P:P + HW, :] = cur.astype(bufh_ref.dtype)
        cur = jnp.maximum(conv_h3(bufh_ref, w31b_ref[i]) + b31b_ref[i], 0.0)
        bufh_ref[P:P + HW, :] = cur.astype(bufh_ref.dtype)
        cur = jnp.maximum(conv_w3(bufh_ref, P, w13b_ref[i]) * s2_ref[i]
                          + sh2_ref[i] + ident_ref[...], 0.0)

    # Pre-upsample features (used by the training-only side_output branch).
    feat_ref[0] = cur.reshape(H, W, Cd)

    # ---- 2x bilinear upsample (align_corners=False) + encoder add ----------
    # Separable, W direction first:
    #   col 2w   = 0.75*x[w] + 0.25*x[w-1]   (edge clamp at w=0)
    #   col 2w+1 = 0.75*x[w] + 0.25*x[w+1]   (edge clamp at w=W-1)
    # The +-1 column taps reuse the bf16 conv scratch (the 0.75 centre tap
    # stays f32), so no dedicated f32 upsample scratch is needed.
    bufh_ref[P:P + HW, :] = cur.astype(bufh_ref.dtype)
    prev_w = jnp.where(not_first, bufh_ref[P - 1:P - 1 + HW, :], cur)
    next_w = jnp.where(not_last, bufh_ref[P + 1:P + 1 + HW, :], cur)
    even_w = 0.75 * cur + 0.25 * prev_w                   # output columns 2w
    odd_w = 0.75 * cur + 0.25 * next_w                    # output columns 2w+1

    def up_h(y, enc):
        # rows 2h = 0.75*y[h] + 0.25*y[h-1] ; rows 2h+1 = 0.75*y[h] + 0.25*y[h+1]
        y3 = y.reshape(H, W, Cd)
        prv = jnp.concatenate([y3[:1], y3[:-1]], axis=0)
        nxt = jnp.concatenate([y3[1:], y3[-1:]], axis=0)
        ev = 0.75 * y3 + 0.25 * prv
        od = 0.75 * y3 + 0.25 * nxt
        t = jnp.stack([ev, od], axis=1).reshape(H2, W, Cd)
        return t + enc

    out_ref[0, 0] = up_h(even_w, enc_ref[0, 0])
    out_ref[0, 1] = up_h(odd_w, enc_ref[0, 1])


def _bn_fold(bnp, eps, conv_bias=None):
    """Fold eval-mode BatchNorm (+ preceding conv bias) into scale/shift."""
    s = bnp['gamma'] * jax.lax.rsqrt(bnp['var'] + eps)
    bias = 0.0 if conv_bias is None else conv_bias
    shift = bnp['beta'] + (bias - bnp['mean']) * s
    return s, shift


# =============================================================================
# Training-only side_output 1x1 conv (num_classes lanes; not on the hot path)
# =============================================================================
def _side_kernel(x_ref, w_ref, b_ref, o_ref):
    H, W, Cd = x_ref.shape[1:]
    NC = o_ref.shape[-1]
    y = jnp.dot(x_ref[0].reshape(H * W, Cd), w_ref[...],
                preferred_element_type=jnp.float32) + b_ref[...]
    o_ref[0] = y.reshape(H, W, NC)


def side_output_1x1(x_nhwc, w_hwio, bias):
    B, H, W, Cd = x_nhwc.shape
    NC = w_hwio.shape[-1]
    w2 = w_hwio.reshape(Cd, NC).astype(jnp.float32)
    b2 = bias.reshape(1, NC).astype(jnp.float32)
    out = pl.pallas_call(
        _side_kernel,
        out_shape=jax.ShapeDtypeStruct((B, H, W, NC), jnp.float32),
        grid=(B,),
        in_specs=[pl.BlockSpec((1, H, W, Cd), lambda b: (b, 0, 0, 0)),
                  pl.BlockSpec((Cd, NC), lambda b: (0, 0)),
                  pl.BlockSpec((1, NC), lambda b: (0, 0))],
        out_specs=pl.BlockSpec((1, H, W, NC), lambda b: (b, 0, 0, 0)),
        compiler_params=pltpu.CompilerParams(
            dimension_semantics=("parallel",)),
    )(x_nhwc, w2, b2)
    return jnp.transpose(out, (0, 3, 1, 2))


# =============================================================================
# DecoderModule.forward
# =============================================================================
def decoder_module_forward(params, decoder_features, encoder_features,
                           training=False):
    """decoder_features: NCHW (B, Cin, H, W); encoder_features: NCHW (B, Cd, 2H, 2W)."""
    B, Cin, H, W = decoder_features.shape
    w3 = params['conv3x3_w']
    Cd = w3.shape[-1]
    H2, W2 = 2 * H, 2 * W
    HW = H * W
    P = W + 8                     # top/bottom zero-halo rows of the flat image

    # ---- weights / folded eval BN (host side, tiny) -------------------------
    w3r = w3.astype(jnp.bfloat16).reshape(3, 3 * Cin, Cd)       # kh, kw*Cin, Cd
    s0, sh0 = _bn_fold(params['conv3x3_bn'], 1e-5)
    s0 = s0.reshape(1, Cd).astype(jnp.float32)
    sh0 = sh0.reshape(1, Cd).astype(jnp.float32)

    blocks = params['blocks']
    NB = len(blocks)
    w31a = jnp.stack([bp['w31_1'].reshape(3 * Cd, Cd) for bp in blocks]
                     ).astype(jnp.bfloat16)
    w13a = jnp.stack([bp['w13_1'].reshape(3 * Cd, Cd) for bp in blocks]
                     ).astype(jnp.bfloat16)
    w31b = jnp.stack([bp['w31_2'].reshape(3 * Cd, Cd) for bp in blocks]
                     ).astype(jnp.bfloat16)
    w13b = jnp.stack([bp['w13_2'].reshape(3 * Cd, Cd) for bp in blocks]
                     ).astype(jnp.bfloat16)
    b31a = jnp.stack([bp['b31_1'] for bp in blocks]
                     ).reshape(NB, 1, Cd).astype(jnp.float32)
    b31b = jnp.stack([bp['b31_2'] for bp in blocks]
                     ).reshape(NB, 1, Cd).astype(jnp.float32)
    f1 = [_bn_fold(bp['bn1'], 1e-3, bp['b13_1']) for bp in blocks]
    f2 = [_bn_fold(bp['bn2'], 1e-3, bp['b13_2']) for bp in blocks]
    s1 = jnp.stack([f[0] for f in f1]).reshape(NB, 1, Cd).astype(jnp.float32)
    sh1 = jnp.stack([f[1] for f in f1]).reshape(NB, 1, Cd).astype(jnp.float32)
    s2 = jnp.stack([f[0] for f in f2]).reshape(NB, 1, Cd).astype(jnp.float32)
    sh2 = jnp.stack([f[1] for f in f2]).reshape(NB, 1, Cd).astype(jnp.float32)

    # ---- layouts: exactly one copy each for x, encoder and the output ------
    xb = jnp.transpose(decoder_features, (0, 2, 3, 1)).astype(jnp.bfloat16)
    enc = encoder_features.astype(jnp.float32).reshape(B, Cd, H2, W, 2)
    enc_r = jnp.transpose(enc, (0, 4, 2, 3, 1))           # (B, 2, 2H, W, Cd)

    def full(shape):
        nd = len(shape)
        return pl.BlockSpec(shape, lambda b, _nd=nd: (0,) * _nd)

    flops = int(B * (2 * HW * 9 * Cin * Cd
                     + NB * 4 * 2 * HW * 3 * Cd * Cd
                     + 16 * HW * Cd))
    bytes_accessed = int(B * (HW * Cin * 2 + HW * Cd * 4
                              + 2 * H2 * W2 * Cd * 4)
                         + (9 * Cin * Cd + NB * 12 * Cd * Cd) * 2
                         + (2 + 6 * NB) * Cd * 4)

    kernel = functools.partial(_decoder_fused_kernel, NB, H, W, P)
    out_r, feat = pl.pallas_call(
        kernel,
        out_shape=(jax.ShapeDtypeStruct((B, 2, H2, W, Cd), jnp.float32),
                   jax.ShapeDtypeStruct((B, H, W, Cd), jnp.float32)),
        grid=(B,),
        in_specs=[
            pl.BlockSpec((1, H, W, Cin), lambda b: (b, 0, 0, 0)),
            full((3, 3 * Cin, Cd)), full((1, Cd)), full((1, Cd)),
            full((NB, 3 * Cd, Cd)), full((NB, 1, Cd)),
            full((NB, 3 * Cd, Cd)), full((NB, 1, Cd)), full((NB, 1, Cd)),
            full((NB, 3 * Cd, Cd)), full((NB, 1, Cd)),
            full((NB, 3 * Cd, Cd)), full((NB, 1, Cd)), full((NB, 1, Cd)),
            pl.BlockSpec((1, 2, H2, W, Cd), lambda b: (b, 0, 0, 0, 0)),
        ],
        out_specs=[
            pl.BlockSpec((1, 2, H2, W, Cd), lambda b: (b, 0, 0, 0, 0)),
            pl.BlockSpec((1, H, W, Cd), lambda b: (b, 0, 0, 0)),
        ],
        scratch_shapes=[
            pltpu.VMEM((HW + 2 * P, Cin), jnp.bfloat16),   # flat padded input
            pltpu.VMEM((HW + 2 * P, Cd), jnp.bfloat16),    # flat padded hidden
            pltpu.VMEM((HW, Cd), jnp.float32),             # f32 residual
        ],
        compiler_params=pltpu.CompilerParams(
            dimension_semantics=("parallel",)),
        cost_estimate=pl.CostEstimate(flops=flops, transcendentals=0,
                                      bytes_accessed=bytes_accessed),
    )(xb, w3r, s0, sh0, w31a, b31a, w13a, s1, sh1, w31b, b31b, w13b, s2, sh2,
      enc_r)

    if training:
        out_side = side_output_1x1(feat, params['side_w'], params['side_b'])
    else:
        out_side = None                                   # eval mode

    # (B, 2, 2H, W, Cd) -> NCHW (B, Cd, 2H, 2W): one transpose + free reshape.
    out = jnp.transpose(out_r, (0, 4, 2, 3, 1)).reshape(B, Cd, H2, W2)
    return out, out_side


# =============================================================================
# Pure-JAX f32 reference (for a tolerance check against the bf16-MXU kernel)
# =============================================================================
def reference_forward(params, decoder_features, encoder_features):
    def conv(x, w_hwio):
        return lax.conv_general_dilated(
            x, w_hwio, (1, 1), 'SAME',
            dimension_numbers=('NCHW', 'HWIO', 'NCHW'))

    def bn(x, bnp, eps):
        s = bnp['gamma'] * jax.lax.rsqrt(bnp['var'] + eps)
        sh = bnp['beta'] - bnp['mean'] * s
        return x * s[None, :, None, None] + sh[None, :, None, None]

    def cbias(b):
        return b[None, :, None, None]

    out = jax.nn.relu(bn(conv(decoder_features, params['conv3x3_w']),
                         params['conv3x3_bn'], 1e-5))
    for bp in params['blocks']:
        ident = out
        h = jax.nn.relu(conv(out, bp['w31_1']) + cbias(bp['b31_1']))
        h = jax.nn.relu(bn(conv(h, bp['w13_1']) + cbias(bp['b13_1']),
                           bp['bn1'], 1e-3))
        h = jax.nn.relu(conv(h, bp['w31_2']) + cbias(bp['b31_2']))
        h = bn(conv(h, bp['w13_2']) + cbias(bp['b13_2']), bp['bn2'], 1e-3)
        out = jax.nn.relu(h + ident)

    def up2(x):   # bilinear 2x, align_corners=False, edge clamp (NCHW)
        B_, C_, Hh, Ww = x.shape
        prev = jnp.concatenate([x[..., :1], x[..., :-1]], axis=-1)
        nxt = jnp.concatenate([x[..., 1:], x[..., -1:]], axis=-1)
        xw = jnp.stack([0.75 * x + 0.25 * prev, 0.75 * x + 0.25 * nxt],
                       axis=-1).reshape(B_, C_, Hh, 2 * Ww)
        prev = jnp.concatenate([xw[..., :1, :], xw[..., :-1, :]], axis=-2)
        nxt = jnp.concatenate([xw[..., 1:, :], xw[..., -1:, :]], axis=-2)
        return jnp.stack([0.75 * xw + 0.25 * prev, 0.75 * xw + 0.25 * nxt],
                         axis=-2).reshape(B_, C_, 2 * Hh, 2 * Ww)

    return up2(out) + encoder_features


# =============================================================================
# Parameters (deterministic synthetic init, shapes from the module __init__)
# =============================================================================
def init_decoder_params(key, channels_in, channels_dec, num_classes,
                        nr_decoder_blocks=1):
    keys = iter(jax.random.split(key, 64))

    def uni(shape, fan_in):
        bound = 1.0 / np.sqrt(fan_in)
        return jax.random.uniform(next(keys), shape, jnp.float32, -bound, bound)

    def bn(c):
        return dict(
            gamma=1.0 + 0.1 * jax.random.normal(next(keys), (c,), jnp.float32),
            beta=0.1 * jax.random.normal(next(keys), (c,), jnp.float32),
            mean=0.1 * jax.random.normal(next(keys), (c,), jnp.float32),
            var=jnp.abs(1.0 + 0.1 * jax.random.normal(next(keys), (c,),
                                                      jnp.float32)),
        )

    cd = channels_dec
    params = {
        'conv3x3_w': uni((3, 3, channels_in, cd), 9 * channels_in),  # no bias
        'conv3x3_bn': bn(cd),
        'blocks': [],
        'side_w': uni((1, 1, cd, num_classes), cd),
        'side_b': uni((num_classes,), cd),
    }
    for _ in range(nr_decoder_blocks):                        # NonBottleneck1D
        params['blocks'].append(dict(
            w31_1=uni((3, 1, cd, cd), 3 * cd), b31_1=uni((cd,), 3 * cd),
            w13_1=uni((1, 3, cd, cd), 3 * cd), b13_1=uni((cd,), 3 * cd),
            bn1=bn(cd),
            w31_2=uni((3, 1, cd, cd), 3 * cd), b31_2=uni((cd,), 3 * cd),
            w13_2=uni((1, 3, cd, cd), 3 * cd), b13_2=uni((cd,), 3 * cd),
            bn2=bn(cd),
        ))
    return params


# -----------------------------------------------------------------------------
if __name__ == "__main__":
    key = jax.random.PRNGKey(0)
    kx, ke, kp = jax.random.split(key, 3)

    # Production ESANet channel width (channels_decoder = 128), small spatial.
    B, C_IN, C_DEC, H, W, NUM_CLASSES = 2, 128, 128, 16, 16, 37
    decoder_features = jax.random.normal(kx, (B, C_IN, H, W), jnp.float32)
    encoder_features = jax.random.normal(ke, (B, C_DEC, 2 * H, 2 * W),
                                         jnp.float32)
    params = init_decoder_params(kp, C_IN, C_DEC, NUM_CLASSES,
                                 nr_decoder_blocks=1)

    out, out_side = decoder_module_forward(params, decoder_features,
                                           encoder_features, training=False)
    out = jax.block_until_ready(out)

    assert out.shape == (B, C_DEC, 2 * H, 2 * W)
    assert out_side is None                 # eval mode, as in the torch module
    assert not bool(jnp.isnan(out).any())   # mirrors the torch.isnan checks

    # Tolerance check against a pure-JAX f32 reference (bf16 MXU inputs /
    # f32 accumulation in the kernel -> expect <~1% relative deviation).
    ref = jax.block_until_ready(
        reference_forward(params, decoder_features, encoder_features))
    max_err = float(jnp.max(jnp.abs(out - ref)))
    scale = float(jnp.max(jnp.abs(ref))) + 1e-6
    assert max_err <= 0.05 * scale, (max_err, scale)

    print("KERNEL_OK")
</pallas_src>

<mosaic_0001>
module attributes {stable_mosaic.version = 11 : i64} {
  func.func @_decoder_fused_kernel(%arg0: i32, %arg1: memref<1x16x16x128xbf16, #tpu.memory_space<vmem>>, %arg2: memref<3x384x128xbf16, #tpu.memory_space<vmem>>, %arg3: memref<1x128xf32, #tpu.memory_space<vmem>>, %arg4: memref<1x128xf32, #tpu.memory_space<vmem>>, %arg5: memref<1x384x128xbf16, #tpu.memory_space<vmem>>, %arg6: memref<1x1x128xf32, #tpu.memory_space<vmem>>, %arg7: memref<1x384x128xbf16, #tpu.memory_space<vmem>>, %arg8: memref<1x1x128xf32, #tpu.memory_space<vmem>>, %arg9: memref<1x1x128xf32, #tpu.memory_space<vmem>>, %arg10: memref<1x384x128xbf16, #tpu.memory_space<vmem>>, %arg11: memref<1x1x128xf32, #tpu.memory_space<vmem>>, %arg12: memref<1x384x128xbf16, #tpu.memory_space<vmem>>, %arg13: memref<1x1x128xf32, #tpu.memory_space<vmem>>, %arg14: memref<1x1x128xf32, #tpu.memory_space<vmem>>, %arg15: memref<1x2x32x16x128xf32, #tpu.memory_space<vmem>>, %arg16: memref<1x2x32x16x128xf32, #tpu.memory_space<vmem>>, %arg17: memref<1x16x16x128xf32, #tpu.memory_space<vmem>>, %arg18: memref<304x128xbf16, #tpu.memory_space<vmem>>, %arg19: memref<304x128xbf16, #tpu.memory_space<vmem>>, %arg20: memref<256x128xf32, #tpu.memory_space<vmem>>) attributes {dimension_semantics = [#tpu.dimension_semantics<parallel>], iteration_bounds = array<i64: 2>, scalar_prefetch = 0 : i64, scratch_operands = 3 : i64, tpu.core_type = #tpu.core_type<tc>, window_params = [{transform_indices = @transform_0, window_bounds = array<i64: 1, 16, 16, 128>}, {pipeline_mode = #tpu.pipeline_mode<synchronous>, transform_indices = @transform_1, window_bounds = array<i64: 3, 384, 128>}, {pipeline_mode = #tpu.pipeline_mode<synchronous>, transform_indices = @transform_2, window_bounds = array<i64: 1, 128>}, {pipeline_mode = #tpu.pipeline_mode<synchronous>, transform_indices = @transform_3, window_bounds = array<i64: 1, 128>}, {pipeline_mode = #tpu.pipeline_mode<synchronous>, transform_indices = @transform_4, window_bounds = array<i64: 1, 384, 128>}, {pipeline_mode = #tpu.pipeline_mode<synchronous>, transform_indices = @transform_5, window_bounds = array<i64: 1, 1, 128>}, {pipeline_mode = #tpu.pipeline_mode<synchronous>, transform_indices = @transform_6, window_bounds = array<i64: 1, 384, 128>}, {pipeline_mode = #tpu.pipeline_mode<synchronous>, transform_indices = @transform_7, window_bounds = array<i64: 1, 1, 128>}, {pipeline_mode = #tpu.pipeline_mode<synchronous>, transform_indices = @transform_8, window_bounds = array<i64: 1, 1, 128>}, {pipeline_mode = #tpu.pipeline_mode<synchronous>, transform_indices = @transform_9, window_bounds = array<i64: 1, 384, 128>}, {pipeline_mode = #tpu.pipeline_mode<synchronous>, transform_indices = @transform_10, window_bounds = array<i64: 1, 1, 128>}, {pipeline_mode = #tpu.pipeline_mode<synchronous>, transform_indices = @transform_11, window_bounds = array<i64: 1, 384, 128>}, {pipeline_mode = #tpu.pipeline_mode<synchronous>, transform_indices = @transform_12, window_bounds = array<i64: 1, 1, 128>}, {pipeline_mode = #tpu.pipeline_mode<synchronous>, transform_indices = @transform_13, window_bounds = array<i64: 1, 1, 128>}, {transform_indices = @transform_14, window_bounds = array<i64: 1, 2, 32, 16, 128>}, {transform_indices = @transform_15, window_bounds = array<i64: 1, 2, 32, 16, 128>}, {transform_indices = @transform_16, window_bounds = array<i64: 1, 16, 16, 128>}]} {
    %cst = arith.constant 0.000000e+00 : bf16
    %0 = vector.broadcast %cst : bf16 to vector<24x128xbf16>
    %c0 = arith.constant 0 : index
    %c0_0 = arith.constant 0 : index
    %1 = vector.load %arg18[%c0, %c0_0] : memref<304x128xbf16, #tpu.memory_space<vmem>>, vector<24x128xbf16>
    tpu.vector_store %arg18[%c0, %c0_0], %0 {strides = array<i32>} : memref<304x128xbf16, #tpu.memory_space<vmem>>, vector<24x128xbf16>,
    %cst_1 = arith.constant 0.000000e+00 : bf16
    %2 = vector.broadcast %cst_1 : bf16 to vector<24x128xbf16>
    %c280 = arith.constant 280 : index
    %c0_2 = arith.constant 0 : index
    %3 = vector.load %arg18[%c280, %c0_2] : memref<304x128xbf16, #tpu.memory_space<vmem>>, vector<24x128xbf16>
    tpu.vector_store %arg18[%c280, %c0_2], %2 {strides = array<i32>} : memref<304x128xbf16, #tpu.memory_space<vmem>>, vector<24x128xbf16>,
    %cst_3 = arith.constant 0.000000e+00 : bf16
    %4 = vector.broadcast %cst_3 : bf16 to vector<24x128xbf16>
    %c0_4 = arith.constant 0 : index
    %c0_5 = arith.constant 0 : index
    %5 = vector.load %arg19[%c0_4, %c0_5] : memref<304x128xbf16, #tpu.memory_space<vmem>>, vector<24x128xbf16>
    tpu.vector_store %arg19[%c0_4, %c0_5], %4 {strides = array<i32>} : memref<304x128xbf16, #tpu.memory_space<vmem>>, vector<24x128xbf16>,
    %cst_6 = arith.constant 0.000000e+00 : bf16
    %6 = vector.broadcast %cst_6 : bf16 to vector<24x128xbf16>
    %c280_7 = arith.constant 280 : index
    %c0_8 = arith.constant 0 : index
    %7 = vector.load %arg19[%c280_7, %c0_8] : memref<304x128xbf16, #tpu.memory_space<vmem>>, vector<24x128xbf16>
    tpu.vector_store %arg19[%c280_7, %c0_8], %6 {strides = array<i32>} : memref<304x128xbf16, #tpu.memory_space<vmem>>, vector<24x128xbf16>,
    %8 = tpu.iota {dimensions = array<i32: 0>} : vector<256x1xi32>
    %c16_i32 = arith.constant 16 : i32
    %c0_i32 = arith.constant 0 : i32
    %9 = arith.cmpi eq, %c16_i32, %c0_i32 : i32
    %c1_i32 = arith.constant 1 : i32
    %10 = arith.select %9, %c1_i32, %c16_i32 : i32
    %11 = vector.broadcast %10 : i32 to vector<256x1xi32>
    %12 = arith.remsi %8, %11 : vector<256x1xi32>
    %c0_i32_9 = arith.constant 0 : i32
    %13 = vector.broadcast %c0_i32_9 : i32 to vector<256x1xi32>
    %14 = arith.cmpi ne, %12, %13 : vector<256x1xi32>
    %c0_i32_10 = arith.constant 0 : i32
    %15 = vector.broadcast %c0_i32_10 : i32 to vector<256x1xi32>
    %16 = arith.cmpi slt, %12, %15 : vector<256x1xi32>
    %c0_i32_11 = arith.constant 0 : i32
    %17 = arith.cmpi slt, %10, %c0_i32_11 : i32
    %18 = vector.broadcast %17 : i1 to vector<256x1xi1>
    %19 = vector.broadcast %18 : vector<256x1xi1> to vector<256x1xi1>
    %20 = arith.xori %16, %19 : vector<256x1xi1>
    %21 = arith.andi %20, %14 : vector<256x1xi1>
    %22 = vector.broadcast %10 : i32 to vector<256x1xi32>
    %23 = arith.addi %12, %22 : vector<256x1xi32>
    %24 = arith.select %21, %23, %12 : vector<256x1xi1>, vector<256x1xi32>
    %c0_i32_12 = arith.constant 0 : i32
    %25 = vector.broadcast %c0_i32_12 : i32 to vector<256x1xi32>
    %26 = arith.cmpi ne, %24, %25 : vector<256x1xi32>
    %c15_i32 = arith.constant 15 : i32
    %27 = vector.broadcast %c15_i32 : i32 to vector<256x1xi32>
    %28 = arith.cmpi ne, %24, %27 : vector<256x1xi32>
    %c0_13 = arith.constant 0 : index
    %c0_14 = arith.constant 0 : index
    %c0_15 = arith.constant 0 : index
    %c0_16 = arith.constant 0 : index
    %29 = vector.load %arg1[%c0_13, %c0_14, %c0_15, %c0_16] : memref<1x16x16x128xbf16, #tpu.memory_space<vmem>>, vector<1x16x16x128xbf16>
    %30 = vector.shape_cast %29 : vector<1x16x16x128xbf16> to vector<16x16x128xbf16>
    %31 = vector.shape_cast %30 : vector<16x16x128xbf16> to vector<256x128xbf16>
    %c24 = arith.constant 24 : index
    %c0_17 = arith.constant 0 : index
    %32 = vector.load %arg18[%c24, %c0_17] : memref<304x128xbf16, #tpu.memory_space<vmem>>, vector<256x128xbf16>
    tpu.vector_store %arg18[%c24, %c0_17], %31 {strides = array<i32>} : memref<304x128xbf16, #tpu.memory_space<vmem>>, vector<256x128xbf16>,
    %c0_18 = arith.constant 0 : index
    %c0_19 = arith.constant 0 : index
    %c0_20 = arith.constant 0 : index
    %33 = vector.load %arg2[%c0_18, %c0_19, %c0_20] : memref<3x384x128xbf16, #tpu.memory_space<vmem>>, vector<1x384x128xbf16>
    %34 = vector.shape_cast %33 : vector<1x384x128xbf16> to vector<384x128xbf16>
    %c7 = arith.constant 7 : index
    %c0_21 = arith.constant 0 : index
    %35 = vector.load %arg18[%c7, %c0_21] : memref<304x128xbf16, #tpu.memory_space<vmem>>, vector<256x128xbf16>
    %cst_22 = arith.constant 0.000000e+00 : f32
    %36 = arith.truncf %cst_22 : f32 to bf16
    %37 = vector.shape_cast %26 : vector<256x1xi1> to vector<256x1xi1>
    %38 = vector.broadcast %37 : vector<256x1xi1> to vector<256x128xi1>
    %39 = vector.broadcast %36 : bf16 to vector<256x128xbf16>
    %40 = arith.select %38, %35, %39 : vector<256x128xi1>, vector<256x128xbf16>
    %c8 = arith.constant 8 : index
    %c0_23 = arith.constant 0 : index
    %41 = vector.load %arg18[%c8, %c0_23] : memref<304x128xbf16, #tpu.memory_space<vmem>>, vector<256x128xbf16>
    %c9 = arith.constant 9 : index
    %c0_24 = arith.constant 0 : index
    %42 = vector.load %arg18[%c9, %c0_24] : memref<304x128xbf16, #tpu.memory_space<vmem>>, vector<256x128xbf16>
    %cst_25 = arith.constant 0.000000e+00 : f32
    %43 = arith.truncf %cst_25 : f32 to bf16
    %44 = vector.shape_cast %28 : vector<256x1xi1> to vector<256x1xi1>
    %45 = vector.broadcast %44 : vector<256x1xi1> to vector<256x128xi1>
    %46 = vector.broadcast %43 : bf16 to vector<256x128xbf16>
    %47 = arith.select %45, %42, %46 : vector<256x128xi1>, vector<256x128xbf16>
    %48 = tpu.concatenate %40, %41, %47 in 1 : vector<256x128xbf16>, vector<256x128xbf16>, vector<256x128xbf16> -> vector<256x384xbf16>
    %cst_26 = arith.constant dense<0.000000e+00> : vector<256x128xf32>
    %49 = tpu.matmul %48, %34, %cst_26 {dimension_numbers = #tpu.dot_dimension_numbers<[1], [0], [0], [1], [0, 0, 1, 1], [], []>} : vector<256x384xbf16>, vector<384x128xbf16>, vector<256x128xf32> -> vector<256x128xf32>
    %c1 = arith.constant 1 : index
    %c0_27 = arith.constant 0 : index
    %c0_28 = arith.constant 0 : index
    %50 = vector.load %arg2[%c1, %c0_27, %c0_28] : memref<3x384x128xbf16, #tpu.memory_space<vmem>>, vector<1x384x128xbf16>
    %51 = vector.shape_cast %50 : vector<1x384x128xbf16> to vector<384x128xbf16>
    %c23 = arith.constant 23 : index
    %c0_29 = arith.constant 0 : index
    %52 = vector.load %arg18[%c23, %c0_29] : memref<304x128xbf16, #tpu.memory_space<vmem>>, vector<256x128xbf16>
    %cst_30 = arith.constant 0.000000e+00 : f32
    %53 = arith.truncf %cst_30 : f32 to bf16
    %54 = vector.shape_cast %26 : vector<256x1xi1> to vector<256x1xi1>
    %55 = vector.broadcast %54 : vector<256x1xi1> to vector<256x128xi1>
    %56 = vector.broadcast %53 : bf16 to vector<256x128xbf16>
    %57 = arith.select %55, %52, %56 : vector<256x128xi1>, vector<256x128xbf16>
    %c24_31 = arith.constant 24 : index
    %c0_32 = arith.constant 0 : index
    %58 = vector.load %arg18[%c24_31, %c0_32] : memref<304x128xbf16, #tpu.memory_space<vmem>>, vector<256x128xbf16>
    %c25 = arith.constant 25 : index
    %c0_33 = arith.constant 0 : index
    %59 = vector.load %arg18[%c25, %c0_33] : memref<304x128xbf16, #tpu.memory_space<vmem>>, vector<256x128xbf16>
    %cst_34 = arith.constant 0.000000e+00 : f32
    %60 = arith.truncf %cst_34 : f32 to bf16
    %61 = vector.shape_cast %28 : vector<256x1xi1> to vector<256x1xi1>
    %62 = vector.broadcast %61 : vector<256x1xi1> to vector<256x128xi1>
    %63 = vector.broadcast %60 : bf16 to vector<256x128xbf16>
    %64 = arith.select %62, %59, %63 : vector<256x128xi1>, vector<256x128xbf16>
    %65 = tpu.concatenate %57, %58, %64 in 1 : vector<256x128xbf16>, vector<256x128xbf16>, vector<256x128xbf16> -> vector<256x384xbf16>
    %cst_35 = arith.constant dense<0.000000e+00> : vector<256x128xf32>
    %66 = tpu.matmul %65, %51, %cst_35 {dimension_numbers = #tpu.dot_dimension_numbers<[1], [0], [0], [1], [0, 0, 1, 1], [], []>} : vector<256x384xbf16>, vector<384x128xbf16>, vector<256x128xf32> -> vector<256x128xf32>
    %67 = arith.addf %49, %66 : vector<256x128xf32>
    %c2 = arith.constant 2 : index
    %c0_36 = arith.constant 0 : index
    %c0_37 = arith.constant 0 : index
    %68 = vector.load %arg2[%c2, %c0_36, %c0_37] : memref<3x384x128xbf16, #tpu.memory_space<vmem>>, vector<1x384x128xbf16>
    %69 = vector.shape_cast %68 : vector<1x384x128xbf16> to vector<384x128xbf16>
    %c39 = arith.constant 39 : index
    %c0_38 = arith.constant 0 : index
    %70 = vector.load %arg18[%c39, %c0_38] : memref<304x128xbf16, #tpu.memory_space<vmem>>, vector<256x128xbf16>
    %cst_39 = arith.constant 0.000000e+00 : f32
    %71 = arith.truncf %cst_39 : f32 to bf16
    %72 = vector.shape_cast %26 : vector<256x1xi1> to vector<256x1xi1>
    %73 = vector.broadcast %72 : vector<256x1xi1> to vector<256x128xi1>
    %74 = vector.broadcast %71 : bf16 to vector<256x128xbf16>
    %75 = arith.select %73, %70, %74 : vector<256x128xi1>, vector<256x128xbf16>
    %c40 = arith.constant 40 : index
    %c0_40 = arith.constant 0 : index
    %76 = vector.load %arg18[%c40, %c0_40] : memref<304x128xbf16, #tpu.memory_space<vmem>>, vector<256x128xbf16>
    %c41 = arith.constant 41 : index
    %c0_41 = arith.constant 0 : index
    %77 = vector.load %arg18[%c41, %c0_41] : memref<304x128xbf16, #tpu.memory_space<vmem>>, vector<256x128xbf16>
    %cst_42 = arith.constant 0.000000e+00 : f32
    %78 = arith.truncf %cst_42 : f32 to bf16
    %79 = vector.shape_cast %28 : vector<256x1xi1> to vector<256x1xi1>
    %80 = vector.broadcast %79 : vector<256x1xi1> to vector<256x128xi1>
    %81 = vector.broadcast %78 : bf16 to vector<256x128xbf16>
    %82 = arith.select %80, %77, %81 : vector<256x128xi1>, vector<256x128xbf16>
    %83 = tpu.concatenate %75, %76, %82 in 1 : vector<256x128xbf16>, vector<256x128xbf16>, vector<256x128xbf16> -> vector<256x384xbf16>
    %cst_43 = arith.constant dense<0.000000e+00> : vector<256x128xf32>
    %84 = tpu.matmul %83, %69, %cst_43 {dimension_numbers = #tpu.dot_dimension_numbers<[1], [0], [0], [1], [0, 0, 1, 1], [], []>} : vector<256x384xbf16>, vector<384x128xbf16>, vector<256x128xf32> -> vector<256x128xf32>
    %85 = arith.addf %67, %84 : vector<256x128xf32>
    %c0_44 = arith.constant 0 : index
    %c0_45 = arith.constant 0 : index
    %86 = vector.load %arg3[%c0_44, %c0_45] : memref<1x128xf32, #tpu.memory_space<vmem>>, vector<1x128xf32>
    %87 = vector.broadcast %86 : vector<1x128xf32> to vector<256x128xf32>
    %88 = arith.mulf %85, %87 : vector<256x128xf32>
    %c0_46 = arith.constant 0 : index
    %c0_47 = arith.constant 0 : index
    %89 = vector.load %arg4[%c0_46, %c0_47] : memref<1x128xf32, #tpu.memory_space<vmem>>, vector<1x128xf32>
    %90 = vector.broadcast %89 : vector<1x128xf32> to vector<256x128xf32>
    %91 = arith.addf %88, %90 : vector<256x128xf32>
    %cst_48 = arith.constant 0.000000e+00 : f32
    %92 = vector.broadcast %cst_48 : f32 to vector<256x128xf32>
    %93 = arith.maximumf %91, %92 : vector<256x128xf32>
    %c0_49 = arith.constant 0 : index
    %c0_50 = arith.constant 0 : index
    %94 = vector.load %arg20[%c0_49, %c0_50] : memref<256x128xf32, #tpu.memory_space<vmem>>, vector<256x128xf32>
    tpu.vector_store %arg20[%c0_49, %c0_50], %93 {strides = array<i32>} : memref<256x128xf32, #tpu.memory_space<vmem>>, vector<256x128xf32>,
    %95 = arith.truncf %93 : vector<256x128xf32> to vector<256x128xbf16>
    %c24_51 = arith.constant 24 : index
    %c0_52 = arith.constant 0 : index
    %96 = vector.load %arg19[%c24_51, %c0_52] : memref<304x128xbf16, #tpu.memory_space<vmem>>, vector<256x128xbf16>
    tpu.vector_store %arg19[%c24_51, %c0_52], %95 {strides = array<i32>} : memref<304x128xbf16, #tpu.memory_space<vmem>>, vector<256x128xbf16>,
    %c0_53 = arith.constant 0 : index
    %c0_54 = arith.constant 0 : index
    %c0_55 = arith.constant 0 : index
    %97 = vector.load %arg5[%c0_53, %c0_54, %c0_55] : memref<1x384x128xbf16, #tpu.memory_space<vmem>>, vector<1x384x128xbf16>
    %98 = vector.shape_cast %97 : vector<1x384x128xbf16> to vector<384x128xbf16>
    %c8_56 = arith.constant 8 : index
    %c0_57 = arith.constant 0 : index
    %99 = vector.load %arg19[%c8_56, %c0_57] : memref<304x128xbf16, #tpu.memory_space<vmem>>, vector<256x128xbf16>
    %c24_58 = arith.constant 24 : index
    %c0_59 = arith.constant 0 : index
    %100 = vector.load %arg19[%c24_58, %c0_59] : memref<304x128xbf16, #tpu.memory_space<vmem>>, vector<256x128xbf16>
    %c40_60 = arith.constant 40 : index
    %c0_61 = arith.constant 0 : index
    %101 = vector.load %arg19[%c40_60, %c0_61] : memref<304x128xbf16, #tpu.memory_space<vmem>>, vector<256x128xbf16>
    %102 = tpu.concatenate %99, %100, %101 in 1 : vector<256x128xbf16>, vector<256x128xbf16>, vector<256x128xbf16> -> vector<256x384xbf16>
    %cst_62 = arith.constant dense<0.000000e+00> : vector<256x128xf32>
    %103 = tpu.matmul %102, %98, %cst_62 {dimension_numbers = #tpu.dot_dimension_numbers<[1], [0], [0], [1], [0, 0, 1, 1], [], []>} : vector<256x384xbf16>, vector<384x128xbf16>, vector<256x128xf32> -> vector<256x128xf32>
    %c0_63 = arith.constant 0 : index
    %c0_64 = arith.constant 0 : index
    %c0_65 = arith.constant 0 : index
    %104 = vector.load %arg6[%c0_63, %c0_64, %c0_65] : memref<1x1x128xf32, #tpu.memory_space<vmem>>, vector<1x1x128xf32>
    %105 = vector.shape_cast %104 : vector<1x1x128xf32> to vector<1x128xf32>
    %106 = vector.broadcast %105 : vector<1x128xf32> to vector<256x128xf32>
    %107 = arith.addf %103, %106 : vector<256x128xf32>
    %cst_66 = arith.constant 0.000000e+00 : f32
    %108 = vector.broadcast %cst_66 : f32 to vector<256x128xf32>
    %109 = arith.maximumf %107, %108 : vector<256x128xf32>
    %110 = arith.truncf %109 : vector<256x128xf32> to vector<256x128xbf16>
    %c24_67 = arith.constant 24 : index
    %c0_68 = arith.constant 0 : index
    %111 = vector.load %arg19[%c24_67, %c0_68] : memref<304x128xbf16, #tpu.memory_space<vmem>>, vector<256x128xbf16>
    tpu.vector_store %arg19[%c24_67, %c0_68], %110 {strides = array<i32>} : memref<304x128xbf16, #tpu.memory_space<vmem>>, vector<256x128xbf16>,
    %c0_69 = arith.constant 0 : index
    %c0_70 = arith.constant 0 : index
    %c0_71 = arith.constant 0 : index
    %112 = vector.load %arg7[%c0_69, %c0_70, %c0_71] : memref<1x384x128xbf16, #tpu.memory_space<vmem>>, vector<1x384x128xbf16>
    %113 = vector.shape_cast %112 : vector<1x384x128xbf16> to vector<384x128xbf16>
    %c23_72 = arith.constant 23 : index
    %c0_73 = arith.constant 0 : index
    %114 = vector.load %arg19[%c23_72, %c0_73] : memref<304x128xbf16, #tpu.memory_space<vmem>>, vector<256x128xbf16>
    %cst_74 = arith.constant 0.000000e+00 : f32
    %115 = arith.truncf %cst_74 : f32 to bf16
    %116 = vector.shape_cast %26 : vector<256x1xi1> to vector<256x1xi1>
    %117 = vector.broadcast %116 : vector<256x1xi1> to vector<256x128xi1>
    %118 = vector.broadcast %115 : bf16 to vector<256x128xbf16>
    %119 = arith.select %117, %114, %118 : vector<256x128xi1>, vector<256x128xbf16>
    %c24_75 = arith.constant 24 : index
    %c0_76 = arith.constant 0 : index
    %120 = vector.load %arg19[%c24_75, %c0_76] : memref<304x128xbf16, #tpu.memory_space<vmem>>, vector<256x128xbf16>
    %c25_77 = arith.constant 25 : index
    %c0_78 = arith.constant 0 : index
    %121 = vector.load %arg19[%c25_77, %c0_78] : memref<304x128xbf16, #tpu.memory_space<vmem>>, vector<256x128xbf16>
    %cst_79 = arith.constant 0.000000e+00 : f32
    %122 = arith.truncf %cst_79 : f32 to bf16
    %123 = vector.shape_cast %28 : vector<256x1xi1> to vector<256x1xi1>
    %124 = vector.broadcast %123 : vector<256x1xi1> to vector<256x128xi1>
    %125 = vector.broadcast %122 : bf16 to vector<256x128xbf16>
    %126 = arith.select %124, %121, %125 : vector<256x128xi1>, vector<256x128xbf16>
    %127 = tpu.concatenate %119, %120, %126 in 1 : vector<256x128xbf16>, vector<256x128xbf16>, vector<256x128xbf16> -> vector<256x384xbf16>
    %cst_80 = arith.constant dense<0.000000e+00> : vector<256x128xf32>
    %128 = tpu.matmul %127, %113, %cst_80 {dimension_numbers = #tpu.dot_dimension_numbers<[1], [0], [0], [1], [0, 0, 1, 1], [], []>} : vector<256x384xbf16>, vector<384x128xbf16>, vector<256x128xf32> -> vector<256x128xf32>
    %c0_81 = arith.constant 0 : index
    %c0_82 = arith.constant 0 : index
    %c0_83 = arith.constant 0 : index
    %129 = vector.load %arg8[%c0_81, %c0_82, %c0_83] : memref<1x1x128xf32, #tpu.memory_space<vmem>>, vector<1x1x128xf32>
    %130 = vector.shape_cast %129 : vector<1x1x128xf32> to vector<1x128xf32>
    %131 = vector.broadcast %130 : vector<1x128xf32> to vector<256x128xf32>
    %132 = arith.mulf %128, %131 : vector<256x128xf32>
    %c0_84 = arith.constant 0 : index
    %c0_85 = arith.constant 0 : index
    %c0_86 = arith.constant 0 : index
    %133 = vector.load %arg9[%c0_84, %c0_85, %c0_86] : memref<1x1x128xf32, #tpu.memory_space<vmem>>, vector<1x1x128xf32>
    %134 = vector.shape_cast %133 : vector<1x1x128xf32> to vector<1x128xf32>
    %135 = vector.broadcast %134 : vector<1x128xf32> to vector<256x128xf32>
    %136 = arith.addf %132, %135 : vector<256x128xf32>
    %cst_87 = arith.constant 0.000000e+00 : f32
    %137 = vector.broadcast %cst_87 : f32 to vector<256x128xf32>
    %138 = arith.maximumf %136, %137 : vector<256x128xf32>
    %139 = arith.truncf %138 : vector<256x128xf32> to vector<256x128xbf16>
    %c24_88 = arith.constant 24 : index
    %c0_89 = arith.constant 0 : index
    %140 = vector.load %arg19[%c24_88, %c0_89] : memref<304x128xbf16, #tpu.memory_space<vmem>>, vector<256x128xbf16>
    tpu.vector_store %arg19[%c24_88, %c0_89], %139 {strides = array<i32>} : memref<304x128xbf16, #tpu.memory_space<vmem>>, vector<256x128xbf16>,
    %c0_90 = arith.constant 0 : index
    %c0_91 = arith.constant 0 : index
    %c0_92 = arith.constant 0 : index
    %141 = vector.load %arg10[%c0_90, %c0_91, %c0_92] : memref<1x384x128xbf16, #tpu.memory_space<vmem>>, vector<1x384x128xbf16>
    %142 = vector.shape_cast %141 : vector<1x384x128xbf16> to vector<384x128xbf16>
    %c8_93 = arith.constant 8 : index
    %c0_94 = arith.constant 0 : index
    %143 = vector.load %arg19[%c8_93, %c0_94] : memref<304x128xbf16, #tpu.memory_space<vmem>>, vector<256x128xbf16>
    %c24_95 = arith.constant 24 : index
    %c0_96 = arith.constant 0 : index
    %144 = vector.load %arg19[%c24_95, %c0_96] : memref<304x128xbf16, #tpu.memory_space<vmem>>, vector<256x128xbf16>
    %c40_97 = arith.constant 40 : index
    %c0_98 = arith.constant 0 : index
    %145 = vector.load %arg19[%c40_97, %c0_98] : memref<304x128xbf16, #tpu.memory_space<vmem>>, vector<256x128xbf16>
    %146 = tpu.concatenate %143, %144, %145 in 1 : vector<256x128xbf16>, vector<256x128xbf16>, vector<256x128xbf16> -> vector<256x384xbf16>
    %cst_99 = arith.constant dense<0.000000e+00> : vector<256x128xf32>
    %147 = tpu.matmul %146, %142, %cst_99 {dimension_numbers = #tpu.dot_dimension_numbers<[1], [0], [0], [1], [0, 0, 1, 1], [], []>} : vector<256x384xbf16>, vector<384x128xbf16>, vector<256x128xf32> -> vector<256x128xf32>
    %c0_100 = arith.constant 0 : index
    %c0_101 = arith.constant 0 : index
    %c0_102 = arith.constant 0 : index
    %148 = vector.load %arg11[%c0_100, %c0_101, %c0_102] : memref<1x1x128xf32, #tpu.memory_space<vmem>>, vector<1x1x128xf32>
    %149 = vector.shape_cast %148 : vector<1x1x128xf32> to vector<1x128xf32>
    %150 = vector.broadcast %149 : vector<1x128xf32> to vector<256x128xf32>
    %151 = arith.addf %147, %150 : vector<256x128xf32>
    %cst_103 = arith.constant 0.000000e+00 : f32
    %152 = vector.broadcast %cst_103 : f32 to vector<256x128xf32>
    %153 = arith.maximumf %151, %152 : vector<256x128xf32>
    %154 = arith.truncf %153 : vector<256x128xf32> to vector<256x128xbf16>
    %c24_104 = arith.constant 24 : index
    %c0_105 = arith.constant 0 : index
    %155 = vector.load %arg19[%c24_104, %c0_105] : memref<304x128xbf16, #tpu.memory_space<vmem>>, vector<256x128xbf16>
    tpu.vector_store %arg19[%c24_104, %c0_105], %154 {strides = array<i32>} : memref<304x128xbf16, #tpu.memory_space<vmem>>, vector<256x128xbf16>,
    %c0_106 = arith.constant 0 : index
    %c0_107 = arith.constant 0 : index
    %c0_108 = arith.constant 0 : index
    %156 = vector.load %arg12[%c0_106, %c0_107, %c0_108] : memref<1x384x128xbf16, #tpu.memory_space<vmem>>, vector<1x384x128xbf16>
    %157 = vector.shape_cast %156 : vector<1x384x128xbf16> to vector<384x128xbf16>
    %c23_109 = arith.constant 23 : index
    %c0_110 = arith.constant 0 : index
    %158 = vector.load %arg19[%c23_109, %c0_110] : memref<304x128xbf16, #tpu.memory_space<vmem>>, vector<256x128xbf16>
    %cst_111 = arith.constant 0.000000e+00 : f32
    %159 = arith.truncf %cst_111 : f32 to bf16
    %160 = vector.shape_cast %26 : vector<256x1xi1> to vector<256x1xi1>
    %161 = vector.broadcast %160 : vector<256x1xi1> to vector<256x128xi1>
    %162 = vector.broadcast %159 : bf16 to vector<256x128xbf16>
    %163 = arith.select %161, %158, %162 : vector<256x128xi1>, vector<256x128xbf16>
    %c24_112 = arith.constant 24 : index
    %c0_113 = arith.constant 0 : index
    %164 = vector.load %arg19[%c24_112, %c0_113] : memref<304x128xbf16, #tpu.memory_space<vmem>>, vector<256x128xbf16>
    %c25_114 = arith.constant 25 : index
    %c0_115 = arith.constant 0 : index
    %165 = vector.load %arg19[%c25_114, %c0_115] : memref<304x128xbf16, #tpu.memory_space<vmem>>, vector<256x128xbf16>
    %cst_116 = arith.constant 0.000000e+00 : f32
    %166 = arith.truncf %cst_116 : f32 to bf16
    %167 = vector.shape_cast %28 : vector<256x1xi1> to vector<256x1xi1>
    %168 = vector.broadcast %167 : vector<256x1xi1> to vector<256x128xi1>
    %169 = vector.broadcast %166 : bf16 to vector<256x128xbf16>
    %170 = arith.select %168, %165, %169 : vector<256x128xi1>, vector<256x128xbf16>
    %171 = tpu.concatenate %163, %164, %170 in 1 : vector<256x128xbf16>, vector<256x128xbf16>, vector<256x128xbf16> -> vector<256x384xbf16>
    %cst_117 = arith.constant dense<0.000000e+00> : vector<256x128xf32>
    %172 = tpu.matmul %171, %157, %cst_117 {dimension_numbers = #tpu.dot_dimension_numbers<[1], [0], [0], [1], [0, 0, 1, 1], [], []>} : vector<256x384xbf16>, vector<384x128xbf16>, vector<256x128xf32> -> vector<256x128xf32>
    %c0_118 = arith.constant 0 : index
    %c0_119 = arith.constant 0 : index
    %c0_120 = arith.constant 0 : index
    %173 = vector.load %arg13[%c0_118, %c0_119, %c0_120] : memref<1x1x128xf32, #tpu.memory_space<vmem>>, vector<1x1x128xf32>
    %174 = vector.shape_cast %173 : vector<1x1x128xf32> to vector<1x128xf32>
    %175 = vector.broadcast %174 : vector<1x128xf32> to vector<256x128xf32>
    %176 = arith.mulf %172, %175 : vector<256x128xf32>
    %c0_121 = arith.constant 0 : index
    %c0_122 = arith.constant 0 : index
    %c0_123 = arith.constant 0 : index
    %177 = vector.load %arg14[%c0_121, %c0_122, %c0_123] : memref<1x1x128xf32, #tpu.memory_space<vmem>>, vector<1x1x128xf32>
    %178 = vector.shape_cast %177 : vector<1x1x128xf32> to vector<1x128xf32>
    %179 = vector.broadcast %178 : vector<1x128xf32> to vector<256x128xf32>
    %180 = arith.addf %176, %179 : vector<256x128xf32>
    %c0_124 = arith.constant 0 : index
    %c0_125 = arith.constant 0 : index
    %181 = vector.load %arg20[%c0_124, %c0_125] : memref<256x128xf32, #tpu.memory_space<vmem>>, vector<256x128xf32>
    %182 = arith.addf %180, %181 : vector<256x128xf32>
    %cst_126 = arith.constant 0.000000e+00 : f32
    %183 = vector.broadcast %cst_126 : f32 to vector<256x128xf32>
    %184 = arith.maximumf %182, %183 : vector<256x128xf32>
    %185 = vector.shape_cast %184 : vector<256x128xf32> to vector<16x16x128xf32>
    %c0_127 = arith.constant 0 : index
    %c0_128 = arith.constant 0 : index
    %c0_129 = arith.constant 0 : index
    %c0_130 = arith.constant 0 : index
    %186 = vector.load %arg17[%c0_127, %c0_128, %c0_129, %c0_130] : memref<1x16x16x128xf32, #tpu.memory_space<vmem>>, vector<1x16x16x128xf32>
    %187 = vector.shape_cast %186 : vector<1x16x16x128xf32> to vector<16x16x128xf32>
    %188 = vector.shape_cast %185 : vector<16x16x128xf32> to vector<1x16x16x128xf32>
    tpu.vector_store %arg17[%c0_127, %c0_128, %c0_129, %c0_130], %188 {strides = array<i32>} : memref<1x16x16x128xf32, #tpu.memory_space<vmem>>, vector<1x16x16x128xf32>,
    %189 = arith.truncf %184 : vector<256x128xf32> to vector<256x128xbf16>
    %c24_131 = arith.constant 24 : index
    %c0_132 = arith.constant 0 : index
    %190 = vector.load %arg19[%c24_131, %c0_132] : memref<304x128xbf16, #tpu.memory_space<vmem>>, vector<256x128xbf16>
    tpu.vector_store %arg19[%c24_131, %c0_132], %189 {strides = array<i32>} : memref<304x128xbf16, #tpu.memory_space<vmem>>, vector<256x128xbf16>,
    %c23_133 = arith.constant 23 : index
    %c0_134 = arith.constant 0 : index
    %191 = vector.load %arg19[%c23_133, %c0_134] : memref<304x128xbf16, #tpu.memory_space<vmem>>, vector<256x128xbf16>
    %192 = arith.extf %191 : vector<256x128xbf16> to vector<256x128xf32>
    %193 = vector.shape_cast %26 : vector<256x1xi1> to vector<256x1xi1>
    %194 = vector.broadcast %193 : vector<256x1xi1> to vector<256x128xi1>
    %195 = arith.select %194, %192, %184 : vector<256x128xi1>, vector<256x128xf32>
    %c25_135 = arith.constant 25 : index
    %c0_136 = arith.constant 0 : index
    %196 = vector.load %arg19[%c25_135, %c0_136] : memref<304x128xbf16, #tpu.memory_space<vmem>>, vector<256x128xbf16>
    %197 = arith.extf %196 : vector<256x128xbf16> to vector<256x128xf32>
    %198 = vector.shape_cast %28 : vector<256x1xi1> to vector<256x1xi1>
    %199 = vector.broadcast %198 : vector<256x1xi1> to vector<256x128xi1>
    %200 = arith.select %199, %197, %184 : vector<256x128xi1>, vector<256x128xf32>
    %cst_137 = arith.constant 7.500000e-01 : f32
    %201 = vector.broadcast %cst_137 : f32 to vector<256x128xf32>
    %202 = arith.mulf %201, %184 : vector<256x128xf32>
    %cst_138 = arith.constant 2.500000e-01 : f32
    %203 = vector.broadcast %cst_138 : f32 to vector<256x128xf32>
    %204 = arith.mulf %203, %195 : vector<256x128xf32>
    %205 = arith.addf %202, %204 : vector<256x128xf32>
    %cst_139 = arith.constant 7.500000e-01 : f32
    %206 = vector.broadcast %cst_139 : f32 to vector<256x128xf32>
    %207 = arith.mulf %206, %184 : vector<256x128xf32>
    %cst_140 = arith.constant 2.500000e-01 : f32
    %208 = vector.broadcast %cst_140 : f32 to vector<256x128xf32>
    %209 = arith.mulf %208, %200 : vector<256x128xf32>
    %210 = arith.addf %207, %209 : vector<256x128xf32>
    %c0_141 = arith.constant 0 : index
    %c0_142 = arith.constant 0 : index
    %c0_143 = arith.constant 0 : index
    %c0_144 = arith.constant 0 : index
    %c0_145 = arith.constant 0 : index
    %211 = vector.load %arg15[%c0_141, %c0_142, %c0_143, %c0_144, %c0_145] : memref<1x2x32x16x128xf32, #tpu.memory_space<vmem>>, vector<1x1x32x16x128xf32>
    %212 = vector.shape_cast %211 : vector<1x1x32x16x128xf32> to vector<32x16x128xf32>
    %213 = vector.shape_cast %205 : vector<256x128xf32> to vector<16x16x128xf32>
    %214 = vector.extract_strided_slice %213 {offsets = [0, 0, 0], sizes = [1, 16, 128], strides = [1, 1, 1]} : vector<16x16x128xf32> to vector<1x16x128xf32>
    %215 = vector.extract_strided_slice %213 {offsets = [0, 0, 0], sizes = [15, 16, 128], strides = [1, 1, 1]} : vector<16x16x128xf32> to vector<15x16x128xf32>
    %216 = tpu.concatenate %214, %215 in 0 : vector<1x16x128xf32>, vector<15x16x128xf32> -> vector<16x16x128xf32>
    %217 = vector.extract_strided_slice %213 {offsets = [1, 0, 0], sizes = [15, 16, 128], strides = [1, 1, 1]} : vector<16x16x128xf32> to vector<15x16x128xf32>
    %218 = vector.extract_strided_slice %213 {offsets = [15, 0, 0], sizes = [1, 16, 128], strides = [1, 1, 1]} : vector<16x16x128xf32> to vector<1x16x128xf32>
    %219 = tpu.concatenate %217, %218 in 0 : vector<15x16x128xf32>, vector<1x16x128xf32> -> vector<16x16x128xf32>
    %cst_146 = arith.constant 7.500000e-01 : f32
    %220 = vector.broadcast %cst_146 : f32 to vector<16x16x128xf32>
    %221 = arith.mulf %220, %213 : vector<16x16x128xf32>
    %cst_147 = arith.constant 2.500000e-01 : f32
    %222 = vector.broadcast %cst_147 : f32 to vector<16x16x128xf32>
    %223 = arith.mulf %222, %216 : vector<16x16x128xf32>
    %224 = arith.addf %221, %223 : vector<16x16x128xf32>
    %cst_148 = arith.constant 7.500000e-01 : f32
    %225 = vector.broadcast %cst_148 : f32 to vector<16x16x128xf32>
    %226 = arith.mulf %225, %213 : vector<16x16x128xf32>
    %cst_149 = arith.constant 2.500000e-01 : f32
    %227 = vector.broadcast %cst_149 : f32 to vector<16x16x128xf32>
    %228 = arith.mulf %227, %219 : vector<16x16x128xf32>
    %229 = arith.addf %226, %228 : vector<16x16x128xf32>
    %230 = vector.shape_cast %224 : vector<16x16x128xf32> to vector<16x1x16x128xf32>
    %231 = vector.shape_cast %229 : vector<16x16x128xf32> to vector<16x1x16x128xf32>
    %232 = tpu.concatenate %230, %231 in 1 : vector<16x1x16x128xf32>, vector<16x1x16x128xf32> -> vector<16x2x16x128xf32>
    %233 = vector.shape_cast %232 : vector<16x2x16x128xf32> to vector<32x16x128xf32>
    %234 = arith.addf %233, %212 : vector<32x16x128xf32>
    %c0_150 = arith.constant 0 : index
    %c0_151 = arith.constant 0 : index
    %c0_152 = arith.constant 0 : index
    %c0_153 = arith.constant 0 : index
    %c0_154 = arith.constant 0 : index
    %235 = vector.load %arg16[%c0_150, %c0_151, %c0_152, %c0_153, %c0_154] : memref<1x2x32x16x128xf32, #tpu.memory_space<vmem>>, vector<1x1x32x16x128xf32>
    %236 = vector.shape_cast %235 : vector<1x1x32x16x128xf32> to vector<32x16x128xf32>
    %237 = vector.shape_cast %234 : vector<32x16x128xf32> to vector<1x1x32x16x128xf32>
    tpu.vector_store %arg16[%c0_150, %c0_151, %c0_152, %c0_153, %c0_154], %237 {strides = array<i32>} : memref<1x2x32x16x128xf32, #tpu.memory_space<vmem>>, vector<1x1x32x16x128xf32>,
    %c0_155 = arith.constant 0 : index
    %c1_156 = arith.constant 1 : index
    %c0_157 = arith.constant 0 : index
    %c0_158 = arith.constant 0 : index
    %c0_159 = arith.constant 0 : index
    %238 = vector.load %arg15[%c0_155, %c1_156, %c0_157, %c0_158, %c0_159] : memref<1x2x32x16x128xf32, #tpu.memory_space<vmem>>, vector<1x1x32x16x128xf32>
    %239 = vector.shape_cast %238 : vector<1x1x32x16x128xf32> to vector<32x16x128xf32>
    %240 = vector.shape_cast %210 : vector<256x128xf32> to vector<16x16x128xf32>
    %241 = vector.extract_strided_slice %240 {offsets = [0, 0, 0], sizes = [1, 16, 128], strides = [1, 1, 1]} : vector<16x16x128xf32> to vector<1x16x128xf32>
    %242 = vector.extract_strided_slice %240 {offsets = [0, 0, 0], sizes = [15, 16, 128], strides = [1, 1, 1]} : vector<16x16x128xf32> to vector<15x16x128xf32>
    %243 = tpu.concatenate %241, %242 in 0 : vector<1x16x128xf32>, vector<15x16x128xf32> -> vector<16x16x128xf32>
    %244 = vector.extract_strided_slice %240 {offsets = [1, 0, 0], sizes = [15, 16, 128], strides = [1, 1, 1]} : vector<16x16x128xf32> to vector<15x16x128xf32>
    %245 = vector.extract_strided_slice %240 {offsets = [15, 0, 0], sizes = [1, 16, 128], strides = [1, 1, 1]} : vector<16x16x128xf32> to vector<1x16x128xf32>
    %246 = tpu.concatenate %244, %245 in 0 : vector<15x16x128xf32>, vector<1x16x128xf32> -> vector<16x16x128xf32>
    %cst_160 = arith.constant 7.500000e-01 : f32
    %247 = vector.broadcast %cst_160 : f32 to vector<16x16x128xf32>
    %248 = arith.mulf %247, %240 : vector<16x16x128xf32>
    %cst_161 = arith.constant 2.500000e-01 : f32
    %249 = vector.broadcast %cst_161 : f32 to vector<16x16x128xf32>
    %250 = arith.mulf %249, %243 : vector<16x16x128xf32>
    %251 = arith.addf %248, %250 : vector<16x16x128xf32>
    %cst_162 = arith.constant 7.500000e-01 : f32
    %252 = vector.broadcast %cst_162 : f32 to vector<16x16x128xf32>
    %253 = arith.mulf %252, %240 : vector<16x16x128xf32>
    %cst_163 = arith.constant 2.500000e-01 : f32
    %254 = vector.broadcast %cst_163 : f32 to vector<16x16x128xf32>
    %255 = arith.mulf %254, %246 : vector<16x16x128xf32>
    %256 = arith.addf %253, %255 : vector<16x16x128xf32>
    %257 = vector.shape_cast %251 : vector<16x16x128xf32> to vector<16x1x16x128xf32>
    %258 = vector.shape_cast %256 : vector<16x16x128xf32> to vector<16x1x16x128xf32>
    %259 = tpu.concatenate %257, %258 in 1 : vector<16x1x16x128xf32>, vector<16x1x16x128xf32> -> vector<16x2x16x128xf32>
    %260 = vector.shape_cast %259 : vector<16x2x16x128xf32> to vector<32x16x128xf32>
    %261 = arith.addf %260, %239 : vector<32x16x128xf32>
    %c0_164 = arith.constant 0 : index
    %c1_165 = arith.constant 1 : index
    %c0_166 = arith.constant 0 : index
    %c0_167 = arith.constant 0 : index
    %c0_168 = arith.constant 0 : index
    %262 = vector.load %arg16[%c0_164, %c1_165, %c0_166, %c0_167, %c0_168] : memref<1x2x32x16x128xf32, #tpu.memory_space<vmem>>, vector<1x1x32x16x128xf32>
    %263 = vector.shape_cast %262 : vector<1x1x32x16x128xf32> to vector<32x16x128xf32>
    %264 = vector.shape_cast %261 : vector<32x16x128xf32> to vector<1x1x32x16x128xf32>
    tpu.vector_store %arg16[%c0_164, %c1_165, %c0_166, %c0_167, %c0_168], %264 {strides = array<i32>} : memref<1x2x32x16x128xf32, #tpu.memory_space<vmem>>, vector<1x1x32x16x128xf32>,
    return
  }
  func.func @transform_0(%arg0: i32) -> (i32, i32, i32, i32) {
    %c0_i32 = arith.constant 0 : i32
    %c0_i32_0 = arith.constant 0 : i32
    %c0_i32_1 = arith.constant 0 : i32
    %c0_i32_2 = arith.constant 0 : i32
    return %arg0, %c0_i32, %c0_i32_0, %c0_i32_1 : i32, i32, i32, i32
  }
  func.func @transform_1(%arg0: i32) -> (i32, i32, i32) {
    %c0_i32 = arith.constant 0 : i32
    %c0_i32_0 = arith.constant 0 : i32
    %c0_i32_1 = arith.constant 0 : i32
    %c0_i32_2 = arith.constant 0 : i32
    return %c0_i32, %c0_i32_0, %c0_i32_1 : i32, i32, i32
  }
  func.func @transform_2(%arg0: i32) -> (i32, i32) {
    %c0_i32 = arith.constant 0 : i32
    %c0_i32_0 = arith.constant 0 : i32
    %c0_i32_1 = arith.constant 0 : i32
    return %c0_i32, %c0_i32_0 : i32, i32
  }
  func.func @transform_3(%arg0: i32) -> (i32, i32) {
    %c0_i32 = arith.constant 0 : i32
    %c0_i32_0 = arith.constant 0 : i32
    %c0_i32_1 = arith.constant 0 : i32
    return %c0_i32, %c0_i32_0 : i32, i32
  }
  func.func @transform_4(%arg0: i32) -> (i32, i32, i32) {
    %c0_i32 = arith.constant 0 : i32
    %c0_i32_0 = arith.constant 0 : i32
    %c0_i32_1 = arith.constant 0 : i32
    %c0_i32_2 = arith.constant 0 : i32
    return %c0_i32, %c0_i32_0, %c0_i32_1 : i32, i32, i32
  }
  func.func @transform_5(%arg0: i32) -> (i32, i32, i32) {
    %c0_i32 = arith.constant 0 : i32
    %c0_i32_0 = arith.constant 0 : i32
    %c0_i32_1 = arith.constant 0 : i32
    %c0_i32_2 = arith.constant 0 : i32
    return %c0_i32, %c0_i32_0, %c0_i32_1 : i32, i32, i32
  }
  func.func @transform_6(%arg0: i32) -> (i32, i32, i32) {
    %c0_i32 = arith.constant 0 : i32
    %c0_i32_0 = arith.constant 0 : i32
    %c0_i32_1 = arith.constant 0 : i32
    %c0_i32_2 = arith.constant 0 : i32
    return %c0_i32, %c0_i32_0, %c0_i32_1 : i32, i32, i32
  }
  func.func @transform_7(%arg0: i32) -> (i32, i32, i32) {
    %c0_i32 = arith.constant 0 : i32
    %c0_i32_0 = arith.constant 0 : i32
    %c0_i32_1 = arith.constant 0 : i32
    %c0_i32_2 = arith.constant 0 : i32
    return %c0_i32, %c0_i32_0, %c0_i32_1 : i32, i32, i32
  }
  func.func @transform_8(%arg0: i32) -> (i32, i32, i32) {
    %c0_i32 = arith.constant 0 : i32
    %c0_i32_0 = arith.constant 0 : i32
    %c0_i32_1 = arith.constant 0 : i32
    %c0_i32_2 = arith.constant 0 : i32
    return %c0_i32, %c0_i32_0, %c0_i32_1 : i32, i32, i32
  }
  func.func @transform_9(%arg0: i32) -> (i32, i32, i32) {
    %c0_i32 = arith.constant 0 : i32
    %c0_i32_0 = arith.constant 0 : i32
    %c0_i32_1 = arith.constant 0 : i32
    %c0_i32_2 = arith.constant 0 : i32
    return %c0_i32, %c0_i32_0, %c0_i32_1 : i32, i32, i32
  }
  func.func @transform_10(%arg0: i32) -> (i32, i32, i32) {
    %c0_i32 = arith.constant 0 : i32
    %c0_i32_0 = arith.constant 0 : i32
    %c0_i32_1 = arith.constant 0 : i32
    %c0_i32_2 = arith.constant 0 : i32
    return %c0_i32, %c0_i32_0, %c0_i32_1 : i32, i32, i32
  }
  func.func @transform_11(%arg0: i32) -> (i32, i32, i32) {
    %c0_i32 = arith.constant 0 : i32
    %c0_i32_0 = arith.constant 0 : i32
    %c0_i32_1 = arith.constant 0 : i32
    %c0_i32_2 = arith.constant 0 : i32
    return %c0_i32, %c0_i32_0, %c0_i32_1 : i32, i32, i32
  }
  func.func @transform_12(%arg0: i32) -> (i32, i32, i32) {
    %c0_i32 = arith.constant 0 : i32
    %c0_i32_0 = arith.constant 0 : i32
    %c0_i32_1 = arith.constant 0 : i32
    %c0_i32_2 = arith.constant 0 : i32
    return %c0_i32, %c0_i32_0, %c0_i32_1 : i32, i32, i32
  }
  func.func @transform_13(%arg0: i32) -> (i32, i32, i32) {
    %c0_i32 = arith.constant 0 : i32
    %c0_i32_0 = arith.constant 0 : i32
    %c0_i32_1 = arith.constant 0 : i32
    %c0_i32_2 = arith.constant 0 : i32
    return %c0_i32, %c0_i32_0, %c0_i32_1 : i32, i32, i32
  }
  func.func @transform_14(%arg0: i32) -> (i32, i32, i32, i32, i32) {
    %c0_i32 = arith.constant 0 : i32
    %c0_i32_0 = arith.constant 0 : i32
    %c0_i32_1 = arith.constant 0 : i32
    %c0_i32_2 = arith.constant 0 : i32
    %c0_i32_3 = arith.constant 0 : i32
    return %arg0, %c0_i32, %c0_i32_0, %c0_i32_1, %c0_i32_2 : i32, i32, i32, i32, i32
  }
  func.func @transform_15(%arg0: i32) -> (i32, i32, i32, i32, i32) {
    %c0_i32 = arith.constant 0 : i32
    %c0_i32_0 = arith.constant 0 : i32
    %c0_i32_1 = arith.constant 0 : i32
    %c0_i32_2 = arith.constant 0 : i32
    %c0_i32_3 = arith.constant 0 : i32
    return %arg0, %c0_i32, %c0_i32_0, %c0_i32_1, %c0_i32_2 : i32, i32, i32, i32, i32
  }
  func.func @transform_16(%arg0: i32) -> (i32, i32, i32, i32) {
    %c0_i32 = arith.constant 0 : i32
    %c0_i32_0 = arith.constant 0 : i32
    %c0_i32_1 = arith.constant 0 : i32
    %c0_i32_2 = arith.constant 0 : i32
    return %arg0, %c0_i32, %c0_i32_0, %c0_i32_1 : i32, i32, i32, i32
  }
}

</mosaic_0001>

<llo_original>
// kernel: tpu_custom_call.1
$region0: #{tpu_custom_call.1}
  #allocation0 [shape = 'u32[]', space=smem, size = 0x4, offset = 0x4, fixed_abs, tag = 'smem constant byte address 0x4 - core index']
  #allocation1 [shape = 'u32[144,128]{1,0:T(1,128)}', space=vmem, size = 0x12000, scoped, tag = 'internal scratch']
  #allocation2 [shape = 'bf16[304,128]{1,0:T(16,128)(2,1)}', space=vmem, size = 0x13000, scoped, tag = 'scratch operand']
  #allocation3 [shape = 'bf16[304,128]{1,0:T(16,128)(2,1)}', space=vmem, size = 0x13000, scoped, tag = 'scratch operand']
  #allocation4 [shape = 'f32[256,128]{1,0:T(8,128)}', space=vmem, size = 0x20000, scoped, tag = 'scratch operand']
  %s0 = inlined_call_operand.hbm [shape: bf16[2,16,16,128], index: 0, kind: input, shape index: {}]
  %s1 = inlined_call_operand.hbm [shape: bf16[3,384,128], index: 1, kind: input, shape index: {}]
  %s2 = inlined_call_operand.vmem [shape: f32[1,128], index: 2, kind: input, shape index: {}]
  %s3 = inlined_call_operand.vmem [shape: f32[1,128], index: 3, kind: input, shape index: {}]
  %s4 = inlined_call_operand.hbm [shape: bf16[1,384,128], index: 4, kind: input, shape index: {}]
  %s5 = inlined_call_operand.vmem [shape: f32[1,1,128], index: 5, kind: input, shape index: {}]
  %s6 = inlined_call_operand.hbm [shape: bf16[1,384,128], index: 6, kind: input, shape index: {}]
  %s7 = inlined_call_operand.vmem [shape: f32[1,1,128], index: 7, kind: input, shape index: {}]
  %s8 = inlined_call_operand.vmem [shape: f32[1,1,128], index: 8, kind: input, shape index: {}]
  %s9 = inlined_call_operand.hbm [shape: bf16[1,384,128], index: 9, kind: input, shape index: {}]
  %s10 = inlined_call_operand.vmem [shape: f32[1,1,128], index: 10, kind: input, shape index: {}]
  %s11 = inlined_call_operand.hbm [shape: bf16[1,384,128], index: 11, kind: input, shape index: {}]
  %s12 = inlined_call_operand.vmem [shape: f32[1,1,128], index: 12, kind: input, shape index: {}]
  %s13 = inlined_call_operand.vmem [shape: f32[1,1,128], index: 13, kind: input, shape index: {}]
  %s14 = inlined_call_operand.hbm [shape: f32[2,2,32,16,128], index: 14, kind: input, shape index: {}]
  %s15 = inlined_call_operand.hbm [shape: f32[2,2,32,16,128], index: 15, kind: output, shape index: {0}]
  %s16 = inlined_call_operand.hbm [shape: f32[2,16,16,128], index: 16, kind: output, shape index: {1}]
  %17 = xla_tuple %s15, %s16
  %s18 = sld [smem:[#allocation0]]
  $region129: #{tpu_custom_call.1} parent=0
    _
  %s20 = ssub.s32 1, %s18
  %s21 = scalar_select 0, %s20, %s18
  $region1: #{tpu_custom_call.1} parent=0
    #allocation5 [shape = 'u8[131072]{0}', space=vmem, size = 0x20000, scoped, tag = 'input window, operand 0']
    #allocation6 [shape = 's32[2]{0}', space=sflag, size = 0x8, scoped, tag = 'scoped memory for tpu_custom_call.1']
    #allocation7 [shape = 's32[2]{0}', space=sflag, size = 0x8, scoped, tag = 'scoped memory for tpu_custom_call.1']
    #allocation8 [shape = 'u8[294912]{0}', space=vmem, size = 0x48000, scoped, tag = 'input window, operand 1, single buffered']
    #allocation9 [shape = 's32[1]{0}', space=sflag, size = 0x4, scoped, tag = 'scoped memory for tpu_custom_call.1']
    #allocation10 [shape = 'u8[98304]{0}', space=vmem, size = 0x18000, scoped, tag = 'input window, operand 4, single buffered']
    #allocation11 [shape = 'u8[98304]{0}', space=vmem, size = 0x18000, scoped, tag = 'input window, operand 6, single buffered']
    #allocation12 [shape = 's32[1]{0}', space=sflag, size = 0x4, scoped, tag = 'scoped memory for tpu_custom_call.1']
    #allocation13 [shape = 'u8[98304]{0}', space=vmem, size = 0x18000, scoped, tag = 'input window, operand 9, single buffered']
    #allocation14 [shape = 'u8[98304]{0}', space=vmem, size = 0x18000, scoped, tag = 'input window, operand 11, single buffered']
    #allocation15 [shape = 's32[1]{0}', space=sflag, size = 0x4, scoped, tag = 'scoped memory for tpu_custom_call.1']
    #allocation16 [shape = 'u8[1048576]{0}', space=vmem, size = 0x100000, scoped, tag = 'input window, operand 14']
    #allocation17 [shape = 'u8[1048576]{0}', space=vmem, size = 0x100000, scoped, tag = 'output window, operand 0']
    #allocation18 [shape = 'u8[262144]{0}', space=vmem, size = 0x40000, scoped, tag = 'output window, operand 1']
    #allocation19 [shape = 's32[2]{0}', space=sflag, size = 0x8, scoped, tag = 'scoped memory for tpu_custom_call.1']
    %22 = vsyncpa [#allocation6], 0
    %s23 = scalar_lea.sflag [#allocation6], 1
    %24 = vsyncpa %s23, 0
    %25 = vsyncpa [#allocation9], 0
    %26 = vsyncpa [#allocation12], 0
    %27 = vsyncpa [#allocation15], 0
    %28 = vsyncpa [#allocation7], 0
    %s29 = scalar_lea.sflag [#allocation7], 1
    %30 = vsyncpa %s29, 0
    %31 = vsyncpa [#allocation19], 0
    %s32 = scalar_lea.sflag [#allocation19], 1
    %33 = vsyncpa %s32, 0
    loop: start=0, step=1, limit=4
    $region2: #{tpu_custom_call.1} parent=1 // loop_pre_header
      _
    $region3: #{tpu_custom_call.1} parent=1 // loop_header
      %s35 = sphi 0, %s39
      %p36 = scmp.ge.s32.totalorder %s35, 4
      %s45 = sphi 0, %s47
      %s48 = sphi 0, %s45
      %s49 = sphi 0, %s48
      %s65 = sphi 0, %s49
      %s69 = sphi 0, %s69
      %s71 = sphi 0, %s69
      %s72 = sphi 0, %s71
      %s86 = sphi 0, %s72
      %s90 = sphi 0, %s90
      %s92 = sphi 0, %s90
      %s93 = sphi 0, %s92
      %s107 = sphi 0, %s93
      %s111 = sphi 0, %s111
      %s113 = sphi 0, %s111
      %s114 = sphi 0, %s113
      %s128 = sphi 0, %s114
      %s132 = sphi 0, %s132
      %s134 = sphi 0, %s132
      %s135 = sphi 0, %s134
      %s149 = sphi 0, %s135
      %s153 = sphi 0, %s153
      %s155 = sphi 0, %s153
      %s156 = sphi 0, %s155
      %s170 = sphi 0, %s156
      %s174 = sphi 0, %s174
      %s176 = sphi 0, %s174
      %s177 = sphi 0, %s176
      %s191 = sphi 0, %s177
      %s195 = sphi 0, %s195
      %s197 = sphi 0, %s195
      %s198 = sphi 0, %s197
      %s212 = sphi 0, %s198
      %s216 = sphi 0, %s216
      %s218 = sphi 0, %s216
      %s219 = sphi 0, %s218
      %s233 = sphi 0, %s219
      %s237 = sphi 0, %s237
      %s239 = sphi 0, %s237
      %s240 = sphi 0, %s239
      %s254 = sphi 0, %s240
      %s258 = sphi 0, %s258
      %s260 = sphi 0, %s258
      %s261 = sphi 0, %s260
      %s275 = sphi 0, %s261
      %s279 = sphi 0, %s279
      %s281 = sphi 0, %s279
      %s282 = sphi 0, %s281
      %s296 = sphi 0, %s282
      %s300 = sphi 0, %s300
      %s302 = sphi 0, %s300
      %s303 = sphi 0, %s302
      %s317 = sphi 0, %s303
      %s321 = sphi 0, %s321
      %s323 = sphi 0, %s321
      %s324 = sphi 0, %s323
      %s338 = sphi 0, %s324
      %s344 = sphi 0, %s346
      %s347 = sphi 0, %s344
      %s348 = sphi 0, %s347
      %s364 = sphi 0, %s348
      %s370 = sphi 0, %s372
      %s373 = sphi 0, %s370
      %s374 = sphi 0, %s373
      %s390 = sphi 0, %s374
      %s396 = sphi 0, %s398
      %s399 = sphi 0, %s396
      %s400 = sphi 0, %s399
      %s416 = sphi 0, %s400
    $region4: #{tpu_custom_call.1} parent=1 // loop_header_branch
      %38 = sbr.rel (%p36) target = $region8
    $region5: #{tpu_custom_call.1} parent=1 // loop_body
      %s40 = ssub.s32 %s35, 1
      %s41 = ssub.s32 %s35, 2
      %s42 = sadd.s32 %s35, 1
      %s43 = ssub.s32 %s35, %s42
      %p44 = scmp.eq.s32.totalorder %s43, 0
      %s46 = sadd.s32 %s45, 1
      %s47 = scalar_select %p44, %s45, %s46
      %p50 = pneg %p44
      %p51 = scmp.eq.s32.totalorder %s35, 1
      %p52 = por %p50, %p51
      %p53 = scmp.ne.s32.totalorder %s45, %s48
      %p54 = scmp.eq.s32.totalorder %s35, 0
      %p55 = por %p53, %p54
      %p56 = scmp.ne.s32.totalorder %s45, %s48
      %p57 = scmp.eq.s32.totalorder %s40, 1
      %p58 = por %p56, %p57
      %p59 = scmp.ne.s32.totalorder %s48, %s49
      %p60 = scmp.eq.s32.totalorder %s40, 0
      %p61 = por %p59, %p60
      %p62 = scmp.ne.s32.totalorder %s48, %s49
      %p63 = scmp.eq.s32.totalorder %s41, 1
      %p64 = por %p62, %p63
      %p66 = scmp.ne.s32.totalorder %s49, %s65
      %p67 = scmp.eq.s32.totalorder %s41, 0
      %p68 = por %p66, %p67
      %s70 = sadd.s32 %s69, 1
      %p73 = scmp.eq.s32.totalorder %s35, 1
      %p74 = scmp.ne.s32.totalorder %s69, %s71
      %p75 = scmp.eq.s32.totalorder %s35, 0
      %p76 = por %p74, %p75
      %p77 = scmp.ne.s32.totalorder %s69, %s71
      %p78 = scmp.eq.s32.totalorder %s40, 1
      %p79 = por %p77, %p78
      %p80 = scmp.ne.s32.totalorder %s71, %s72
      %p81 = scmp.eq.s32.totalorder %s40, 0
      %p82 = por %p80, %p81
      %p83 = scmp.ne.s32.totalorder %s71, %s72
      %p84 = scmp.eq.s32.totalorder %s41, 1
      %p85 = por %p83, %p84
      %p87 = scmp.ne.s32.totalorder %s72, %s86
      %p88 = scmp.eq.s32.totalorder %s41, 0
      %p89 = por %p87, %p88
      %s91 = sadd.s32 %s90, 1
      %p94 = scmp.eq.s32.totalorder %s35, 1
      %p95 = scmp.ne.s32.totalorder %s90, %s92
      %p96 = scmp.eq.s32.totalorder %s35, 0
      %p97 = por %p95, %p96
      %p98 = scmp.ne.s32.totalorder %s90, %s92
      %p99 = scmp.eq.s32.totalorder %s40, 1
      %p100 = por %p98, %p99
      %p101 = scmp.ne.s32.totalorder %s92, %s93
      %p102 = scmp.eq.s32.totalorder %s40, 0
      %p103 = por %p101, %p102
      %p104 = scmp.ne.s32.totalorder %s92, %s93
      %p105 = scmp.eq.s32.totalorder %s41, 1
      %p106 = por %p104, %p105
      %p108 = scmp.ne.s32.totalorder %s93, %s107
      %p109 = scmp.eq.s32.totalorder %s41, 0
      %p110 = por %p108, %p109
      %s112 = sadd.s32 %s111, 1
      %p115 = scmp.eq.s32.totalorder %s35, 1
      %p116 = scmp.ne.s32.totalorder %s111, %s113
      %p117 = scmp.eq.s32.totalorder %s35, 0
      %p118 = por %p116, %p117
      %p119 = scmp.ne.s32.totalorder %s111, %s113
      %p120 = scmp.eq.s32.totalorder %s40, 1
      %p121 = por %p119, %p120
      %p122 = scmp.ne.s32.totalorder %s113, %s114
      %p123 = scmp.eq.s32.totalorder %s40, 0
      %p124 = por %p122, %p123
      %p125 = scmp.ne.s32.totalorder %s113, %s114
      %p126 = scmp.eq.s32.totalorder %s41, 1
      %p127 = por %p125, %p126
      %p129 = scmp.ne.s32.totalorder %s114, %s128
      %p130 = scmp.eq.s32.totalorder %s41, 0
      %p131 = por %p129, %p130
      %s133 = sadd.s32 %s132, 1
      %p136 = scmp.eq.s32.totalorder %s35, 1
      %p137 = scmp.ne.s32.totalorder %s132, %s134
      %p138 = scmp.eq.s32.totalorder %s35, 0
      %p139 = por %p137, %p138
      %p140 = scmp.ne.s32.totalorder %s132, %s134
      %p141 = scmp.eq.s32.totalorder %s40, 1
      %p142 = por %p140, %p141
      %p143 = scmp.ne.s32.totalorder %s134, %s135
      %p144 = scmp.eq.s32.totalorder %s40, 0
      %p145 = por %p143, %p144
      %p146 = scmp.ne.s32.totalorder %s134, %s135
      %p147 = scmp.eq.s32.totalorder %s41, 1
      %p148 = por %p146, %p147
      %p150 = scmp.ne.s32.totalorder %s135, %s149
      %p151 = scmp.eq.s32.totalorder %s41, 0
      %p152 = por %p150, %p151
      %s154 = sadd.s32 %s153, 1
      %p157 = scmp.eq.s32.totalorder %s35, 1
      %p158 = scmp.ne.s32.totalorder %s153, %s155
      %p159 = scmp.eq.s32.totalorder %s35, 0
      %p160 = por %p158, %p159
      %p161 = scmp.ne.s32.totalorder %s153, %s155
      %p162 = scmp.eq.s32.totalorder %s40, 1
      %p163 = por %p161, %p162
      %p164 = scmp.ne.s32.totalorder %s155, %s156
      %p165 = scmp.eq.s32.totalorder %s40, 0
      %p166 = por %p164, %p165
      %p167 = scmp.ne.s32.totalorder %s155, %s156
      %p168 = scmp.eq.s32.totalorder %s41, 1
      %p169 = por %p167, %p168
      %p171 = scmp.ne.s32.totalorder %s156, %s170
      %p172 = scmp.eq.s32.totalorder %s41, 0
      %p173 = por %p171, %p172
      %s175 = sadd.s32 %s174, 1
      %p178 = scmp.eq.s32.totalorder %s35, 1
      %p179 = scmp.ne.s32.totalorder %s174, %s176
      %p180 = scmp.eq.s32.totalorder %s35, 0
      %p181 = por %p179, %p180
      %p182 = scmp.ne.s32.totalorder %s174, %s176
      %p183 = scmp.eq.s32.totalorder %s40, 1
      %p184 = por %p182, %p183
      %p185 = scmp.ne.s32.totalorder %s176, %s177
      %p186 = scmp.eq.s32.totalorder %s40, 0
      %p187 = por %p185, %p186
      %p188 = scmp.ne.s32.totalorder %s176, %s177
      %p189 = scmp.eq.s32.totalorder %s41, 1
      %p190 = por %p188, %p189
      %p192 = scmp.ne.s32.totalorder %s177, %s191
      %p193 = scmp.eq.s32.totalorder %s41, 0
      %p194 = por %p192, %p193
      %s196 = sadd.s32 %s195, 1
      %p199 = scmp.eq.s32.totalorder %s35, 1
      %p200 = scmp.ne.s32.totalorder %s195, %s197
      %p201 = scmp.eq.s32.totalorder %s35, 0
      %p202 = por %p200, %p201
      %p203 = scmp.ne.s32.totalorder %s195, %s197
      %p204 = scmp.eq.s32.totalorder %s40, 1
      %p205 = por %p203, %p204
      %p206 = scmp.ne.s32.totalorder %s197, %s198
      %p207 = scmp.eq.s32.totalorder %s40, 0
      %p208 = por %p206, %p207
      %p209 = scmp.ne.s32.totalorder %s197, %s198
      %p210 = scmp.eq.s32.totalorder %s41, 1
      %p211 = por %p209, %p210
      %p213 = scmp.ne.s32.totalorder %s198, %s212
      %p214 = scmp.eq.s32.totalorder %s41, 0
      %p215 = por %p213, %p214
      %s217 = sadd.s32 %s216, 1
      %p220 = scmp.eq.s32.totalorder %s35, 1
      %p221 = scmp.ne.s32.totalorder %s216, %s218
      %p222 = scmp.eq.s32.totalorder %s35, 0
      %p223 = por %p221, %p222
      %p224 = scmp.ne.s32.totalorder %s216, %s218
      %p225 = scmp.eq.s32.totalorder %s40, 1
      %p226 = por %p224, %p225
      %p227 = scmp.ne.s32.totalorder %s218, %s219
      %p228 = scmp.eq.s32.totalorder %s40, 0
      %p229 = por %p227, %p228
      %p230 = scmp.ne.s32.totalorder %s218, %s219
      %p231 = scmp.eq.s32.totalorder %s41, 1
      %p232 = por %p230, %p231
      %p234 = scmp.ne.s32.totalorder %s219, %s233
      %p235 = scmp.eq.s32.totalorder %s41, 0
      %p236 = por %p234, %p235
      %s238 = sadd.s32 %s237, 1
      %p241 = scmp.eq.s32.totalorder %s35, 1
      %p242 = scmp.ne.s32.totalorder %s237, %s239
      %p243 = scmp.eq.s32.totalorder %s35, 0
      %p244 = por %p242, %p243
      %p245 = scmp.ne.s32.totalorder %s237, %s239
      %p246 = scmp.eq.s32.totalorder %s40, 1
      %p247 = por %p245, %p246
      %p248 = scmp.ne.s32.totalorder %s239, %s240
      %p249 = scmp.eq.s32.totalorder %s40, 0
      %p250 = por %p248, %p249
      %p251 = scmp.ne.s32.totalorder %s239, %s240
      %p252 = scmp.eq.s32.totalorder %s41, 1
      %p253 = por %p251, %p252
      %p255 = scmp.ne.s32.totalorder %s240, %s254
      %p256 = scmp.eq.s32.totalorder %s41, 0
      %p257 = por %p255, %p256
      %s259 = sadd.s32 %s258, 1
      %p262 = scmp.eq.s32.totalorder %s35, 1
      %p263 = scmp.ne.s32.totalorder %s258, %s260
      %p264 = scmp.eq.s32.totalorder %s35, 0
      %p265 = por %p263, %p264
      %p266 = scmp.ne.s32.totalorder %s258, %s260
      %p267 = scmp.eq.s32.totalorder %s40, 1
      %p268 = por %p266, %p267
      %p269 = scmp.ne.s32.totalorder %s260, %s261
      %p270 = scmp.eq.s32.totalorder %s40, 0
      %p271 = por %p269, %p270
      %p272 = scmp.ne.s32.totalorder %s260, %s261
      %p273 = scmp.eq.s32.totalorder %s41, 1
      %p274 = por %p272, %p273
      %p276 = scmp.ne.s32.totalorder %s261, %s275
      %p277 = scmp.eq.s32.totalorder %s41, 0
      %p278 = por %p276, %p277
      %s280 = sadd.s32 %s279, 1
      %p283 = scmp.eq.s32.totalorder %s35, 1
      %p284 = scmp.ne.s32.totalorder %s279, %s281
      %p285 = scmp.eq.s32.totalorder %s35, 0
      %p286 = por %p284, %p285
      %p287 = scmp.ne.s32.totalorder %s279, %s281
      %p288 = scmp.eq.s32.totalorder %s40, 1
      %p289 = por %p287, %p288
      %p290 = scmp.ne.s32.totalorder %s281, %s282
      %p291 = scmp.eq.s32.totalorder %s40, 0
      %p292 = por %p290, %p291
      %p293 = scmp.ne.s32.totalorder %s281, %s282
      %p294 = scmp.eq.s32.totalorder %s41, 1
      %p295 = por %p293, %p294
      %p297 = scmp.ne.s32.totalorder %s282, %s296
      %p298 = scmp.eq.s32.totalorder %s41, 0
      %p299 = por %p297, %p298
      %s301 = sadd.s32 %s300, 1
      %p304 = scmp.eq.s32.totalorder %s35, 1
      %p305 = scmp.ne.s32.totalorder %s300, %s302
      %p306 = scmp.eq.s32.totalorder %s35, 0
      %p307 = por %p305, %p306
      %p308 = scmp.ne.s32.totalorder %s300, %s302
      %p309 = scmp.eq.s32.totalorder %s40, 1
      %p310 = por %p308, %p309
      %p311 = scmp.ne.s32.totalorder %s302, %s303
      %p312 = scmp.eq.s32.totalorder %s40, 0
      %p313 = por %p311, %p312
      %p314 = scmp.ne.s32.totalorder %s302, %s303
      %p315 = scmp.eq.s32.totalorder %s41, 1
      %p316 = por %p314, %p315
      %p318 = scmp.ne.s32.totalorder %s303, %s317
      %p319 = scmp.eq.s32.totalorder %s41, 0
      %p320 = por %p318, %p319
      %s322 = sadd.s32 %s321, 1
      %p325 = scmp.eq.s32.totalorder %s35, 1
      %p326 = scmp.ne.s32.totalorder %s321, %s323
      %p327 = scmp.eq.s32.totalorder %s35, 0
      %p328 = por %p326, %p327
      %p329 = scmp.ne.s32.totalorder %s321, %s323
      %p330 = scmp.eq.s32.totalorder %s40, 1
      %p331 = por %p329, %p330
      %p332 = scmp.ne.s32.totalorder %s323, %s324
      %p333 = scmp.eq.s32.totalorder %s40, 0
      %p334 = por %p332, %p333
      %p335 = scmp.ne.s32.totalorder %s323, %s324
      %p336 = scmp.eq.s32.totalorder %s41, 1
      %p337 = por %p335, %p336
      %p339 = scmp.ne.s32.totalorder %s324, %s338
      %p340 = scmp.eq.s32.totalorder %s41, 0
      %p341 = por %p339, %p340
      %s342 = ssub.s32 %s35, %s42
      %p343 = scmp.eq.s32.totalorder %s342, 0
      %s345 = sadd.s32 %s344, 1
      %s346 = scalar_select %p343, %s344, %s345
      %p349 = pneg %p343
      %p350 = scmp.eq.s32.totalorder %s35, 1
      %p351 = por %p349, %p350
      %p352 = scmp.ne.s32.totalorder %s344, %s347
      %p353 = scmp.eq.s32.totalorder %s35, 0
      %p354 = por %p352, %p353
      %p355 = scmp.ne.s32.totalorder %s344, %s347
      %p356 = scmp.eq.s32.totalorder %s40, 1
      %p357 = por %p355, %p356
      %p358 = scmp.ne.s32.totalorder %s347, %s348
      %p359 = scmp.eq.s32.totalorder %s40, 0
      %p360 = por %p358, %p359
      %p361 = scmp.ne.s32.totalorder %s347, %s348
      %p362 = scmp.eq.s32.totalorder %s41, 1
      %p363 = por %p361, %p362
      %p365 = scmp.ne.s32.totalorder %s348, %s364
      %p366 = scmp.eq.s32.totalorder %s41, 0
      %p367 = por %p365, %p366
      %s368 = ssub.s32 %s35, %s42
      %p369 = scmp.eq.s32.totalorder %s368, 0
      %s371 = sadd.s32 %s370, 1
      %s372 = scalar_select %p369, %s370, %s371
      %p375 = pneg %p369
      %p376 = scmp.eq.s32.totalorder %s35, 1
      %p377 = por %p375, %p376
      %p378 = scmp.ne.s32.totalorder %s370, %s373
      %p379 = scmp.eq.s32.totalorder %s35, 0
      %p380 = por %p378, %p379
      %p381 = scmp.ne.s32.totalorder %s370, %s373
      %p382 = scmp.eq.s32.totalorder %s40, 1
      %p383 = por %p381, %p382
      %p384 = scmp.ne.s32.totalorder %s373, %s374
      %p385 = scmp.eq.s32.totalorder %s40, 0
      %p386 = por %p384, %p385
      %p387 = scmp.ne.s32.totalorder %s373, %s374
      %p388 = scmp.eq.s32.totalorder %s41, 1
      %p389 = por %p387, %p388
      %p391 = scmp.ne.s32.totalorder %s374, %s390
      %p392 = scmp.eq.s32.totalorder %s41, 0
      %p393 = por %p391, %p392
      %s394 = ssub.s32 %s35, %s42
      %p395 = scmp.eq.s32.totalorder %s394, 0
      %s397 = sadd.s32 %s396, 1
      %s398 = scalar_select %p395, %s396, %s397
      %p401 = pneg %p395
      %p402 = scmp.eq.s32.totalorder %s35, 1
      %p403 = por %p401, %p402
      %p404 = scmp.ne.s32.totalorder %s396, %s399
      %p405 = scmp.eq.s32.totalorder %s35, 0
      %p406 = por %p404, %p405
      %p407 = scmp.ne.s32.totalorder %s396, %s399
      %p408 = scmp.eq.s32.totalorder %s40, 1
      %p409 = por %p407, %p408
      %p410 = scmp.ne.s32.totalorder %s399, %s400
      %p411 = scmp.eq.s32.totalorder %s40, 0
      %p412 = por %p410, %p411
      %p413 = scmp.ne.s32.totalorder %s399, %s400
      %p414 = scmp.eq.s32.totalorder %s41, 1
      %p415 = por %p413, %p414
      %p417 = scmp.ne.s32.totalorder %s400, %s416
      %p418 = scmp.eq.s32.totalorder %s41, 0
      %p419 = por %p417, %p418
      %p420 = scmp.le.s32.totalorder 1, %s35
      %p421 = scmp.lt.s32.totalorder %s35, 3
      %p422 = pnand %p420, %p421
      %p423 = pneg %p422
      // Predicated region
      $region9: #{tpu_custom_call.1} parent=5 // pred_check
        _
      $region10: #{tpu_custom_call.1} parent=5 // pred_check_branch
        %425 = sbr.rel (%p422) target = $region12
      $region11: #{tpu_custom_call.1} parent=5 // pred_region
        %s426 = ssub.s32 %s35, 1
        // Predicated region
        $region13: #{tpu_custom_call.1} parent=11 // pred_check
          %p427 = pneg %p82
        $region14: #{tpu_custom_call.1} parent=11 // pred_check_branch
          %429 = sbr.rel (%p427) target = $region16
        $region15: #{tpu_custom_call.1} parent=11 // pred_region
          %s431 = ssub.s32 9216, 9216
          %432 = vsyncadd [#allocation9], %s431
          %s433 = sshll.u32 [#allocation8], 4
          %s434 = int_to_ptr.vmem [resolvable:$true] %s433
          %439 = dma.hbm_to_vmem [thread:$0]  %s1, 9216, %s434, [#allocation9], 64, 64, 4
        $region16: #{tpu_custom_call.1} parent=11 // pred_fallthru
          _
        // Predicated region
        $region17: #{tpu_custom_call.1} parent=11 // pred_check
          %p440 = pneg %p103
        $region18: #{tpu_custom_call.1} parent=11 // pred_check_branch
          %442 = sbr.rel (%p440) target = $region20
        $region19: #{tpu_custom_call.1} parent=11 // pred_region
          _
        $region20: #{tpu_custom_call.1} parent=11 // pred_fallthru
          _
        // Predicated region
        $region21: #{tpu_custom_call.1} parent=11 // pred_check
          %p443 = pneg %p124
        $region22: #{tpu_custom_call.1} parent=11 // pred_check_branch
          %445 = sbr.rel (%p443) target = $region24
        $region23: #{tpu_custom_call.1} parent=11 // pred_region
          _
        $region24: #{tpu_custom_call.1} parent=11 // pred_fallthru
          _
        // Predicated region
        $region25: #{tpu_custom_call.1} parent=11 // pred_check
          %p446 = pneg %p145
        $region26: #{tpu_custom_call.1} parent=11 // pred_check_branch
          %448 = sbr.rel (%p446) target = $region28
        $region27: #{tpu_custom_call.1} parent=11 // pred_region
          %s450 = ssub.s32 3072, 3072
          %451 = vsyncadd [#allocation9], %s450
          %s452 = sshll.u32 [#allocation10], 4
          %s453 = int_to_ptr.vmem [resolvable:$true] %s452
          %458 = dma.hbm_to_vmem [thread:$0]  %s4, 3072, %s453, [#allocation9], 64, 64, 4
        $region28: #{tpu_custom_call.1} parent=11 // pred_fallthru
          _
        // Predicated region
        $region29: #{tpu_custom_call.1} parent=11 // pred_check
          %p459 = pneg %p166
        $region30: #{tpu_custom_call.1} parent=11 // pred_check_branch
          %461 = sbr.rel (%p459) target = $region32
        $region31: #{tpu_custom_call.1} parent=11 // pred_region
          _
        $region32: #{tpu_custom_call.1} parent=11 // pred_fallthru
          _
        // Predicated region
        $region33: #{tpu_custom_call.1} parent=11 // pred_check
          %p462 = pneg %p187
        $region34: #{tpu_custom_call.1} parent=11 // pred_check_branch
          %464 = sbr.rel (%p462) target = $region36
        $region35: #{tpu_custom_call.1} parent=11 // pred_region
          %s466 = ssub.s32 3072, 3072
          %467 = vsyncadd [#allocation12], %s466
          %s468 = sshll.u32 [#allocation11], 4
          %s469 = int_to_ptr.vmem [resolvable:$true] %s468
          %474 = dma.hbm_to_vmem [thread:$0]  %s6, 3072, %s469, [#allocation12], 64, 64, 4
        $region36: #{tpu_custom_call.1} parent=11 // pred_fallthru
          _
        // Predicated region
        $region37: #{tpu_custom_call.1} parent=11 // pred_check
          %p475 = pneg %p208
        $region38: #{tpu_custom_call.1} parent=11 // pred_check_branch
          %477 = sbr.rel (%p475) target = $region40
        $region39: #{tpu_custom_call.1} parent=11 // pred_region
          _
        $region40: #{tpu_custom_call.1} parent=11 // pred_fallthru
          _
        // Predicated region
        $region41: #{tpu_custom_call.1} parent=11 // pred_check
          %p478 = pneg %p229
        $region42: #{tpu_custom_call.1} parent=11 // pred_check_branch
          %480 = sbr.rel (%p478) target = $region44
        $region43: #{tpu_custom_call.1} parent=11 // pred_region
          _
        $region44: #{tpu_custom_call.1} parent=11 // pred_fallthru
          _
        // Predicated region
        $region45: #{tpu_custom_call.1} parent=11 // pred_check
          %p481 = pneg %p250
        $region46: #{tpu_custom_call.1} parent=11 // pred_check_branch
          %483 = sbr.rel (%p481) target = $region48
        $region47: #{tpu_custom_call.1} parent=11 // pred_region
          %s485 = ssub.s32 3072, 3072
          %486 = vsyncadd [#allocation12], %s485
          %s487 = sshll.u32 [#allocation13], 4
          %s488 = int_to_ptr.vmem [resolvable:$true] %s487
          %493 = dma.hbm_to_vmem [thread:$0]  %s9, 3072, %s488, [#allocation12], 64, 64, 4
        $region48: #{tpu_custom_call.1} parent=11 // pred_fallthru
          _
        // Predicated region
        $region49: #{tpu_custom_call.1} parent=11 // pred_check
          %p494 = pneg %p271
        $region50: #{tpu_custom_call.1} parent=11 // pred_check_branch
          %496 = sbr.rel (%p494) target = $region52
        $region51: #{tpu_custom_call.1} parent=11 // pred_region
          _
        $region52: #{tpu_custom_call.1} parent=11 // pred_fallthru
          _
        // Predicated region
        $region53: #{tpu_custom_call.1} parent=11 // pred_check
          %p497 = pneg %p292
        $region54: #{tpu_custom_call.1} parent=11 // pred_check_branch
          %499 = sbr.rel (%p497) target = $region56
        $region55: #{tpu_custom_call.1} parent=11 // pred_region
          %s501 = ssub.s32 3072, 3072
          %502 = vsyncadd [#allocation15], %s501
          %s503 = sshll.u32 [#allocation14], 4
          %s504 = int_to_ptr.vmem [resolvable:$true] %s503
          %509 = dma.hbm_to_vmem [thread:$0]  %s11, 3072, %s504, [#allocation15], 64, 64, 4
        $region56: #{tpu_custom_call.1} parent=11 // pred_fallthru
          _
        // Predicated region
        $region57: #{tpu_custom_call.1} parent=11 // pred_check
          %p510 = pneg %p313
        $region58: #{tpu_custom_call.1} parent=11 // pred_check_branch
          %512 = sbr.rel (%p510) target = $region60
        $region59: #{tpu_custom_call.1} parent=11 // pred_region
          _
        $region60: #{tpu_custom_call.1} parent=11 // pred_fallthru
          _
        // Predicated region
        $region61: #{tpu_custom_call.1} parent=11 // pred_check
          %p513 = pneg %p334
        $region62: #{tpu_custom_call.1} parent=11 // pred_check_branch
          %515 = sbr.rel (%p513) target = $region64
        $region63: #{tpu_custom_call.1} parent=11 // pred_region
          _
        $region64: #{tpu_custom_call.1} parent=11 // pred_fallthru
          _
      $region12: #{tpu_custom_call.1} parent=5 // pred_fallthru
        _
      %p516 = scmp.lt.s32.totalorder %s35, 2
      // Predicated region
      $region65: #{tpu_custom_call.1} parent=5 // pred_check
        %p517 = pneg %p516
      $region66: #{tpu_custom_call.1} parent=5 // pred_check_branch
        %519 = sbr.rel (%p517) target = $region68
      $region67: #{tpu_custom_call.1} parent=5 // pred_region
        // Predicated region
        $region69: #{tpu_custom_call.1} parent=67 // pred_check
          %p520 = pneg %p55
        $region70: #{tpu_custom_call.1} parent=67 // pred_check_branch
          %522 = sbr.rel (%p520) target = $region72
        $region71: #{tpu_custom_call.1} parent=67 // pred_region
          %s523 = sand.u32 %s35, 1
          %s524 = scalar_lea.sflag [#allocation6], %s523
          %s525 = sand.u32 %s45, 1
          %s526 = smul.addr %s525, 128
          %s527 = scalar_lea.vmem [#allocation5], %s526
          %s529 = ssub.s32 2048, 2048
          %530 = vsyncadd %s524, %s529
          %s531 = smul.addr %s35, 32
          %s532 = smul.addr %s531, 64
          %s533 = scalar_lea.hbm %s0, %s532
          %s534 = sshll.u32 %s527, 4
          %s535 = int_to_ptr.vmem [resolvable:$true] %s534
          %540 = dma.hbm_to_vmem [thread:$0]  %s533, 2048, %s535, %s524, 64, 64, 4
        $region72: #{tpu_custom_call.1} parent=67 // pred_fallthru
          _
        // Predicated region
        $region73: #{tpu_custom_call.1} parent=67 // pred_check
          %p541 = pneg %p354
        $region74: #{tpu_custom_call.1} parent=67 // pred_check_branch
          %543 = sbr.rel (%p541) target = $region76
        $region75: #{tpu_custom_call.1} parent=67 // pred_region
          %s544 = sand.u32 %s35, 1
          %s545 = scalar_lea.sflag [#allocation6], %s544
          %s546 = sand.u32 %s344, 1
          %s547 = smul.addr %s546, 1024
          %s548 = scalar_lea.vmem [#allocation16], %s547
          %s550 = ssub.s32 16384, 16384
          %551 = vsyncadd %s545, %s550
          %s552 = smul.addr %s35, 128
          %s553 = smul.addr %s552, 128
          %s554 = scalar_lea.hbm %s14, %s553
          %s555 = sshll.u32 %s548, 4
          %s556 = int_to_ptr.vmem [resolvable:$true] %s555
          %561 = dma.hbm_to_vmem [thread:$0]  %s554, 16384, %s556, %s545, 128, 128, 8
        $region76: #{tpu_custom_call.1} parent=67 // pred_fallthru
          _
      $region68: #{tpu_custom_call.1} parent=5 // pred_fallthru
        _
      %p562 = scmp.le.s32.totalorder 1, %s35
      %p563 = scmp.lt.s32.totalorder %s35, 3
      %p564 = pnand %p562, %p563
      %p565 = pneg %p564
      // Predicated region
      $region77: #{tpu_custom_call.1} parent=5 // pred_check
        _
      $region78: #{tpu_custom_call.1} parent=5 // pred_check_branch
        %567 = sbr.rel (%p564) target = $region80
      $region79: #{tpu_custom_call.1} parent=5 // pred_region
        %s568 = ssub.s32 %s35, 1
        %s569 = sand.u32 %s40, 1
        %s570 = scalar_lea.sflag [#allocation6], %s569
        %s571 = sand.u32 %s48, 1
        %s572 = smul.addr %s571, 128
        %s573 = scalar_lea.vmem [#allocation5], %s572
        // Predicated region
        $region81: #{tpu_custom_call.1} parent=79 // pred_check
          %p574 = pneg %p61
        $region82: #{tpu_custom_call.1} parent=79 // pred_check_branch
          %576 = sbr.rel (%p574) target = $region84
        $region83: #{tpu_custom_call.1} parent=79 // pred_region
          %577 = dma.done %s570, 2048
        $region84: #{tpu_custom_call.1} parent=79 // pred_fallthru
          _
        // Predicated region
        $region85: #{tpu_custom_call.1} parent=79 // pred_check
          %p578 = pneg %p82
        $region86: #{tpu_custom_call.1} parent=79 // pred_check_branch
          %580 = sbr.rel (%p578) target = $region88
        $region87: #{tpu_custom_call.1} parent=79 // pred_region
          %581 = dma.done [#allocation9], 9216
        $region88: #{tpu_custom_call.1} parent=79 // pred_fallthru
          _
        // Predicated region
        $region89: #{tpu_custom_call.1} parent=79 // pred_check
          %p582 = pneg %p145
        $region90: #{tpu_custom_call.1} parent=79 // pred_check_branch
          %584 = sbr.rel (%p582) target = $region92
        $region91: #{tpu_custom_call.1} parent=79 // pred_region
          %585 = dma.done [#allocation9], 3072
        $region92: #{tpu_custom_call.1} parent=79 // pred_fallthru
          _
        // Predicated region
        $region93: #{tpu_custom_call.1} parent=79 // pred_check
          %p586 = pneg %p187
        $region94: #{tpu_custom_call.1} parent=79 // pred_check_branch
          %588 = sbr.rel (%p586) target = $region96
        $region95: #{tpu_custom_call.1} parent=79 // pred_region
          %589 = dma.done [#allocation12], 3072
        $region96: #{tpu_custom_call.1} parent=79 // pred_fallthru
          _
        // Predicated region
        $region97: #{tpu_custom_call.1} parent=79 // pred_check
          %p590 = pneg %p250
        $region98: #{tpu_custom_call.1} parent=79 // pred_check_branch
          %592 = sbr.rel (%p590) target = $region100
        $region99: #{tpu_custom_call.1} parent=79 // pred_region
          %593 = dma.done [#allocation12], 3072
        $region100: #{tpu_custom_call.1} parent=79 // pred_fallthru
          _
        // Predicated region
        $region101: #{tpu_custom_call.1} parent=79 // pred_check
          %p594 = pneg %p292
        $region102: #{tpu_custom_call.1} parent=79 // pred_check_branch
          %596 = sbr.rel (%p594) target = $region104
        $region103: #{tpu_custom_call.1} parent=79 // pred_region
          %597 = dma.done [#allocation15], 3072
        $region104: #{tpu_custom_call.1} parent=79 // pred_fallthru
          _
        %s598 = sand.u32 %s40, 1
        %s599 = scalar_lea.sflag [#allocation6], %s598
        %s600 = sand.u32 %s347, 1
        %s601 = smul.addr %s600, 1024
        %s602 = scalar_lea.vmem [#allocation16], %s601
        // Predicated region
        $region105: #{tpu_custom_call.1} parent=79 // pred_check
          %p603 = pneg %p360
        $region106: #{tpu_custom_call.1} parent=79 // pred_check_branch
          %605 = sbr.rel (%p603) target = $region108
        $region107: #{tpu_custom_call.1} parent=79 // pred_region
          %606 = dma.done %s599, 16384
        $region108: #{tpu_custom_call.1} parent=79 // pred_fallthru
          _
        %s607 = sand.u32 %s40, 1
        %s608 = scalar_lea.sflag [#allocation6], %s607
        %s609 = sand.u32 %s48, 1
        %s610 = smul.addr %s609, 128
        %s611 = scalar_lea.vmem [#allocation5], %s610
        %p612 = pneg %p61
        %p613 = pneg %p58
        %p614 = pneg %p82
        %p615 = pneg %p79
        %p616 = pneg %p103
        %p617 = pneg %p100
        %p618 = pneg %p124
        %p619 = pneg %p121
        %p620 = pneg %p145
        %p621 = pneg %p142
        %p622 = pneg %p166
        %p623 = pneg %p163
        %p624 = pneg %p187
        %p625 = pneg %p184
        %p626 = pneg %p208
        %p627 = pneg %p205
        %p628 = pneg %p229
        %p629 = pneg %p226
        %p630 = pneg %p250
        %p631 = pneg %p247
        %p632 = pneg %p271
        %p633 = pneg %p268
        %p634 = pneg %p292
        %p635 = pneg %p289
        %p636 = pneg %p313
        %p637 = pneg %p310
        %p638 = pneg %p334
        %p639 = pneg %p331
        %s640 = sand.u32 %s40, 1
        %s641 = scalar_lea.sflag [#allocation6], %s640
        %s642 = sand.u32 %s347, 1
        %s643 = smul.addr %s642, 1024
        %s644 = scalar_lea.vmem [#allocation16], %s643
        %p645 = pneg %p360
        %p646 = pneg %p357
        %p647 = pneg %p386
        %p648 = pneg %p383
        %s649 = sand.u32 %s373, 1
        %s650 = scalar_lea.sflag [#allocation7], %s649
        %s651 = sand.u32 %s373, 1
        %s652 = smul.addr %s651, 1024
        %s653 = scalar_lea.vmem [#allocation17], %s652
        %p654 = pneg %p412
        %p655 = pneg %p409
        %s656 = sand.u32 %s399, 1
        %s657 = scalar_lea.sflag [#allocation19], %s656
        %s658 = sand.u32 %s399, 1
        %s659 = smul.addr %s658, 256
        %s660 = scalar_lea.vmem [#allocation18], %s659
        %664 = vst [vmem:[#allocation2] sm:$0xff] 0
        %665 = vst [vmem:[#allocation2 + $0x8] sm:$0xf] 0
        %666 = vst [vmem:[#allocation2 + $0x88] sm:$0xf0] 0
        %667 = vst [vmem:[#allocation2 + $0x90] sm:$0xff] 0
        %668 = vst [vmem:[#allocation3] sm:$0xff] 0
        %669 = vst [vmem:[#allocation3 + $0x8] sm:$0xf] 0
        %670 = vst [vmem:[#allocation3 + $0x88] sm:$0xf0] 0
        %671 = vst [vmem:[#allocation3 + $0x90] sm:$0xff] 0
        %v672 = vlaneseq
        %v673 = vshrl.u32 %v672, 7
        %v674 = vadd.s32 %v673, 8
        %v675 = vadd.s32 %v673, 16
        %v676 = vadd.s32 %v673, 24
        %v677 = vadd.s32 %v673, 32
        %v678 = vadd.s32 %v673, 40
        %v679 = vadd.s32 %v673, 48
        %v680 = vadd.s32 %v673, 56
        %v681 = vadd.s32 %v673, 64
        %v682 = vadd.s32 %v673, 72
        %v683 = vadd.s32 %v673, 80
        %v684 = vadd.s32 %v673, 88
        %v685 = vadd.s32 %v673, 96
        %v686 = vadd.s32 %v673, 104
        %v687 = vadd.s32 %v673, 112
        %v688 = vadd.s32 %v673, 120
        %v689 = vadd.s32 %v673, 128
        %v690 = vadd.s32 %v673, 136
        %v691 = vadd.s32 %v673, 144
        %v692 = vadd.s32 %v673, 152
        %v693 = vadd.s32 %v673, 160
        %v694 = vadd.s32 %v673, 168
        %v695 = vadd.s32 %v673, 176
        %v696 = vadd.s32 %v673, 184
        %v697 = vadd.s32 %v673, 192
        %v698 = vadd.s32 %v673, 200
        %v699 = vadd.s32 %v673, 208
        %v700 = vadd.s32 %v673, 216
        %v701 = vadd.s32 %v673, 224
        %v702 = vadd.s32 %v673, 232
        %v703 = vadd.s32 %v673, 240
        %v704 = vadd.s32 %v673, 248
        %vm705 = vcmp.lt.s32.totalorder %v673, 0
        %v706 = vsub.s32 0, %v673
        %v707 = vsel %vm705, %v706, %v673
        %v708 = vshrl.u32 %v707, 4
        %v709 = vand.u32 %v707, 15
        %v710 = vsub.s32 0, %v709
        %v711 = vsel %vm705, %v710, %v709
        %vm712 = vcmp.lt.s32.totalorder %v674, 0
        %v713 = vsub.s32 0, %v674
        %v714 = vsel %vm712, %v713, %v674
        %v715 = vshrl.u32 %v714, 4
        %v716 = vand.u32 %v714, 15
        %v717 = vsub.s32 0, %v716
        %v718 = vsel %vm712, %v717, %v716
        %vm719 = vcmp.lt.s32.totalorder %v675, 0
        %v720 = vsub.s32 0, %v675
        %v721 = vsel %vm719, %v720, %v675
        %v722 = vshrl.u32 %v721, 4
        %v723 = vand.u32 %v721, 15
        %v724 = vsub.s32 0, %v723
        %v725 = vsel %vm719, %v724, %v723
        %vm726 = vcmp.lt.s32.totalorder %v676, 0
        %v727 = vsub.s32 0, %v676
        %v728 = vsel %vm726, %v727, %v676
        %v729 = vshrl.u32 %v728, 4
        %v730 = vand.u32 %v728, 15
        %v731 = vsub.s32 0, %v730
        %v732 = vsel %vm726, %v731, %v730
        %vm733 = vcmp.lt.s32.totalorder %v677, 0
        %v734 = vsub.s32 0, %v677
        %v735 = vsel %vm733, %v734, %v677
        %v736 = vshrl.u32 %v735, 4
        %v737 = vand.u32 %v735, 15
        %v738 = vsub.s32 0, %v737
        %v739 = vsel %vm733, %v738, %v737
        %vm740 = vcmp.lt.s32.totalorder %v678, 0
        %v741 = vsub.s32 0, %v678
        %v742 = vsel %vm740, %v741, %v678
        %v743 = vshrl.u32 %v742, 4
        %v744 = vand.u32 %v742, 15
        %v745 = vsub.s32 0, %v744
        %v746 = vsel %vm740, %v745, %v744
        %vm747 = vcmp.lt.s32.totalorder %v679, 0
        %v748 = vsub.s32 0, %v679
        %v749 = vsel %vm747, %v748, %v679
        %v750 = vshrl.u32 %v749, 4
        %v751 = vand.u32 %v749, 15
        %v752 = vsub.s32 0, %v751
        %v753 = vsel %vm747, %v752, %v751
        %vm754 = vcmp.lt.s32.totalorder %v680, 0
        %v755 = vsub.s32 0, %v680
        %v756 = vsel %vm754, %v755, %v680
        %v757 = vshrl.u32 %v756, 4
        %v758 = vand.u32 %v756, 15
        %v759 = vsub.s32 0, %v758
        %v760 = vsel %vm754, %v759, %v758
        %vm761 = vcmp.lt.s32.totalorder %v681, 0
        %v762 = vsub.s32 0, %v681
        %v763 = vsel %vm761, %v762, %v681
        %v764 = vshrl.u32 %v763, 4
        %v765 = vand.u32 %v763, 15
        %v766 = vsub.s32 0, %v765
        %v767 = vsel %vm761, %v766, %v765
        %vm768 = vcmp.lt.s32.totalorder %v682, 0
        %v769 = vsub.s32 0, %v682
        %v770 = vsel %vm768, %v769, %v682
        %v771 = vshrl.u32 %v770, 4
        %v772 = vand.u32 %v770, 15
        %v773 = vsub.s32 0, %v772
        %v774 = vsel %vm768, %v773, %v772
        %vm775 = vcmp.lt.s32.totalorder %v683, 0
        %v776 = vsub.s32 0, %v683
        %v777 = vsel %vm775, %v776, %v683
        %v778 = vshrl.u32 %v777, 4
        %v779 = vand.u32 %v777, 15
        %v780 = vsub.s32 0, %v779
        %v781 = vsel %vm775, %v780, %v779
        %vm782 = vcmp.lt.s32.totalorder %v684, 0
        %v783 = vsub.s32 0, %v684
        %v784 = vsel %vm782, %v783, %v684
        %v785 = vshrl.u32 %v784, 4
        %v786 = vand.u32 %v784, 15
        %v787 = vsub.s32 0, %v786
        %v788 = vsel %vm782, %v787, %v786
        %vm789 = vcmp.lt.s32.totalorder %v685, 0
        %v790 = vsub.s32 0, %v685
        %v791 = vsel %vm789, %v790, %v685
        %v792 = vshrl.u32 %v791, 4
        %v793 = vand.u32 %v791, 15
        %v794 = vsub.s32 0, %v793
        %v795 = vsel %vm789, %v794, %v793
        %vm796 = vcmp.lt.s32.totalorder %v686, 0
        %v797 = vsub.s32 0, %v686
        %v798 = vsel %vm796, %v797, %v686
        %v799 = vshrl.u32 %v798, 4
        %v800 = vand.u32 %v798, 15
        %v801 = vsub.s32 0, %v800
        %v802 = vsel %vm796, %v801, %v800
        %vm803 = vcmp.lt.s32.totalorder %v687, 0
        %v804 = vsub.s32 0, %v687
        %v805 = vsel %vm803, %v804, %v687
        %v806 = vshrl.u32 %v805, 4
        %v807 = vand.u32 %v805, 15
        %v808 = vsub.s32 0, %v807
        %v809 = vsel %vm803, %v808, %v807
        %vm810 = vcmp.lt.s32.totalorder %v688, 0
        %v811 = vsub.s32 0, %v688
        %v812 = vsel %vm810, %v811, %v688
        %v813 = vshrl.u32 %v812, 4
        %v814 = vand.u32 %v812, 15
        %v815 = vsub.s32 0, %v814
        %v816 = vsel %vm810, %v815, %v814
        %vm817 = vcmp.lt.s32.totalorder %v689, 0
        %v818 = vsub.s32 0, %v689
        %v819 = vsel %vm817, %v818, %v689
        %v820 = vshrl.u32 %v819, 4
        %v821 = vand.u32 %v819, 15
        %v822 = vsub.s32 0, %v821
        %v823 = vsel %vm817, %v822, %v821
        %vm824 = vcmp.lt.s32.totalorder %v690, 0
        %v825 = vsub.s32 0, %v690
        %v826 = vsel %vm824, %v825, %v690
        %v827 = vshrl.u32 %v826, 4
        %v828 = vand.u32 %v826, 15
        %v829 = vsub.s32 0, %v828
        %v830 = vsel %vm824, %v829, %v828
        %vm831 = vcmp.lt.s32.totalorder %v691, 0
        %v832 = vsub.s32 0, %v691
        %v833 = vsel %vm831, %v832, %v691
        %v834 = vshrl.u32 %v833, 4
        %v835 = vand.u32 %v833, 15
        %v836 = vsub.s32 0, %v835
        %v837 = vsel %vm831, %v836, %v835
        %vm838 = vcmp.lt.s32.totalorder %v692, 0
        %v839 = vsub.s32 0, %v692
        %v840 = vsel %vm838, %v839, %v692
        %v841 = vshrl.u32 %v840, 4
        %v842 = vand.u32 %v840, 15
        %v843 = vsub.s32 0, %v842
        %v844 = vsel %vm838, %v843, %v842
        %vm845 = vcmp.lt.s32.totalorder %v693, 0
        %v846 = vsub.s32 0, %v693
        %v847 = vsel %vm845, %v846, %v693
        %v848 = vshrl.u32 %v847, 4
        %v849 = vand.u32 %v847, 15
        %v850 = vsub.s32 0, %v849
        %v851 = vsel %vm845, %v850, %v849
        %vm852 = vcmp.lt.s32.totalorder %v694, 0
        %v853 = vsub.s32 0, %v694
        %v854 = vsel %vm852, %v853, %v694
        %v855 = vshrl.u32 %v854, 4
        %v856 = vand.u32 %v854, 15
        %v857 = vsub.s32 0, %v856
        %v858 = vsel %vm852, %v857, %v856
        %vm859 = vcmp.lt.s32.totalorder %v695, 0
        %v860 = vsub.s32 0, %v695
        %v861 = vsel %vm859, %v860, %v695
        %v862 = vshrl.u32 %v861, 4
        %v863 = vand.u32 %v861, 15
        %v864 = vsub.s32 0, %v863
        %v865 = vsel %vm859, %v864, %v863
        %vm866 = vcmp.lt.s32.totalorder %v696, 0
        %v867 = vsub.s32 0, %v696
        %v868 = vsel %vm866, %v867, %v696
        %v869 = vshrl.u32 %v868, 4
        %v870 = vand.u32 %v868, 15
        %v871 = vsub.s32 0, %v870
        %v872 = vsel %vm866, %v871, %v870
        %vm873 = vcmp.lt.s32.totalorder %v697, 0
        %v874 = vsub.s32 0, %v697
        %v875 = vsel %vm873, %v874, %v697
        %v876 = vshrl.u32 %v875, 4
        %v877 = vand.u32 %v875, 15
        %v878 = vsub.s32 0, %v877
        %v879 = vsel %vm873, %v878, %v877
        %vm880 = vcmp.lt.s32.totalorder %v698, 0
        %v881 = vsub.s32 0, %v698
        %v882 = vsel %vm880, %v881, %v698
        %v883 = vshrl.u32 %v882, 4
        %v884 = vand.u32 %v882, 15
        %v885 = vsub.s32 0, %v884
        %v886 = vsel %vm880, %v885, %v884
        %vm887 = vcmp.lt.s32.totalorder %v699, 0
        %v888 = vsub.s32 0, %v699
        %v889 = vsel %vm887, %v888, %v699
        %v890 = vshrl.u32 %v889, 4
        %v891 = vand.u32 %v889, 15
        %v892 = vsub.s32 0, %v891
        %v893 = vsel %vm887, %v892, %v891
        %vm894 = vcmp.lt.s32.totalorder %v700, 0
        %v895 = vsub.s32 0, %v700
        %v896 = vsel %vm894, %v895, %v700
        %v897 = vshrl.u32 %v896, 4
        %v898 = vand.u32 %v896, 15
        %v899 = vsub.s32 0, %v898
        %v900 = vsel %vm894, %v899, %v898
        %vm901 = vcmp.lt.s32.totalorder %v701, 0
        %v902 = vsub.s32 0, %v701
        %v903 = vsel %vm901, %v902, %v701
        %v904 = vshrl.u32 %v903, 4
        %v905 = vand.u32 %v903, 15
        %v906 = vsub.s32 0, %v905
        %v907 = vsel %vm901, %v906, %v905
        %vm908 = vcmp.lt.s32.totalorder %v702, 0
        %v909 = vsub.s32 0, %v702
        %v910 = vsel %vm908, %v909, %v702
        %v911 = vshrl.u32 %v910, 4
        %v912 = vand.u32 %v910, 15
        %v913 = vsub.s32 0, %v912
        %v914 = vsel %vm908, %v913, %v912
        %vm915 = vcmp.lt.s32.totalorder %v703, 0
        %v916 = vsub.s32 0, %v703
        %v917 = vsel %vm915, %v916, %v703
        %v918 = vshrl.u32 %v917, 4
        %v919 = vand.u32 %v917, 15
        %v920 = vsub.s32 0, %v919
        %v921 = vsel %vm915, %v920, %v919
        %vm922 = vcmp.lt.s32.totalorder %v704, 0
        %v923 = vsub.s32 0, %v704
        %v924 = vsel %vm922, %v923, %v704
        %v925 = vshrl.u32 %v924, 4
        %v926 = vand.u32 %v924, 15
        %v927 = vsub.s32 0, %v926
        %v928 = vsel %vm922, %v927, %v926
        %vm929 = vcmp.ne.s32.totalorder %v711, 0
        %vm930 = vcmp.ne.s32.totalorder %v718, 0
        %vm931 = vcmp.ne.s32.totalorder %v725, 0
        %vm932 = vcmp.ne.s32.totalorder %v732, 0
        %vm933 = vcmp.ne.s32.totalorder %v739, 0
        %vm934 = vcmp.ne.s32.totalorder %v746, 0
        %vm935 = vcmp.ne.s32.totalorder %v753, 0
        %vm936 = vcmp.ne.s32.totalorder %v760, 0
        %vm937 = vcmp.ne.s32.totalorder %v767, 0
        %vm938 = vcmp.ne.s32.totalorder %v774, 0
        %vm939 = vcmp.ne.s32.totalorder %v781, 0
        %vm940 = vcmp.ne.s32.totalorder %v788, 0
        %vm941 = vcmp.ne.s32.totalorder %v795, 0
        %vm942 = vcmp.ne.s32.totalorder %v802, 0
        %vm943 = vcmp.ne.s32.totalorder %v809, 0
        %vm944 = vcmp.ne.s32.totalorder %v816, 0
        %vm945 = vcmp.ne.s32.totalorder %v823, 0
        %vm946 = vcmp.ne.s32.totalorder %v830, 0
        %vm947 = vcmp.ne.s32.totalorder %v837, 0
        %vm948 = vcmp.ne.s32.totalorder %v844, 0
        %vm949 = vcmp.ne.s32.totalorder %v851, 0
        %vm950 = vcmp.ne.s32.totalorder %v858, 0
        %vm951 = vcmp.ne.s32.totalorder %v865, 0
        %vm952 = vcmp.ne.s32.totalorder %v872, 0
        %vm953 = vcmp.ne.s32.totalorder %v879, 0
        %vm954 = vcmp.ne.s32.totalorder %v886, 0
        %vm955 = vcmp.ne.s32.totalorder %v893, 0
        %vm956 = vcmp.ne.s32.totalorder %v900, 0
        %vm957 = vcmp.ne.s32.totalorder %v907, 0
        %vm958 = vcmp.ne.s32.totalorder %v914, 0
        %vm959 = vcmp.ne.s32.totalorder %v921, 0
        %vm960 = vcmp.ne.s32.totalorder %v928, 0
        %vm961 = vcmp.lt.s32.totalorder %v711, 0
        %vm962 = vcmp.lt.s32.totalorder %v718, 0
        %vm963 = vcmp.lt.s32.totalorder %v725, 0
        %vm964 = vcmp.lt.s32.totalorder %v732, 0
        %vm965 = vcmp.lt.s32.totalorder %v739, 0
        %vm966 = vcmp.lt.s32.totalorder %v746, 0
        %vm967 = vcmp.lt.s32.totalorder %v753, 0
        %vm968 = vcmp.lt.s32.totalorder %v760, 0
        %vm969 = vcmp.lt.s32.totalorder %v767, 0
        %vm970 = vcmp.lt.s32.totalorder %v774, 0
        %vm971 = vcmp.lt.s32.totalorder %v781, 0
        %vm972 = vcmp.lt.s32.totalorder %v788, 0
        %vm973 = vcmp.lt.s32.totalorder %v795, 0
        %vm974 = vcmp.lt.s32.totalorder %v802, 0
        %vm975 = vcmp.lt.s32.totalorder %v809, 0
        %vm976 = vcmp.lt.s32.totalorder %v816, 0
        %vm977 = vcmp.lt.s32.totalorder %v823, 0
        %vm978 = vcmp.lt.s32.totalorder %v830, 0
        %vm979 = vcmp.lt.s32.totalorder %v837, 0
        %vm980 = vcmp.lt.s32.totalorder %v844, 0
        %vm981 = vcmp.lt.s32.totalorder %v851, 0
        %vm982 = vcmp.lt.s32.totalorder %v858, 0
        %vm983 = vcmp.lt.s32.totalorder %v865, 0
        %vm984 = vcmp.lt.s32.totalorder %v872, 0
        %vm985 = vcmp.lt.s32.totalorder %v879, 0
        %vm986 = vcmp.lt.s32.totalorder %v886, 0
        %vm987 = vcmp.lt.s32.totalorder %v893, 0
        %vm988 = vcmp.lt.s32.totalorder %v900, 0
        %vm989 = vcmp.lt.s32.totalorder %v907, 0
        %vm990 = vcmp.lt.s32.totalorder %v914, 0
        %vm991 = vcmp.lt.s32.totalorder %v921, 0
        %vm992 = vcmp.lt.s32.totalorder %v928, 0
        %vm993 = vmand %vm961, %vm929
        %vm994 = vmand %vm962, %vm930
        %vm995 = vmand %vm963, %vm931
        %vm996 = vmand %vm964, %vm932
        %vm997 = vmand %vm965, %vm933
        %vm998 = vmand %vm966, %vm934
        %vm999 = vmand %vm967, %vm935
        %vm1000 = vmand %vm968, %vm936
        %vm1001 = vmand %vm969, %vm937
        %vm1002 = vmand %vm970, %vm938
        %vm1003 = vmand %vm971, %vm939
        %vm1004 = vmand %vm972, %vm940
        %vm1005 = vmand %vm973, %vm941
        %vm1006 = vmand %vm974, %vm942
        %vm1007 = vmand %vm975, %vm943
        %vm1008 = vmand %vm976, %vm944
        %vm1009 = vmand %vm977, %vm945
        %vm1010 = vmand %vm978, %vm946
        %vm1011 = vmand %vm979, %vm947
        %vm1012 = vmand %vm980, %vm948
        %vm1013 = vmand %vm981, %vm949
        %vm1014 = vmand %vm982, %vm950
        %vm1015 = vmand %vm983, %vm951
        %vm1016 = vmand %vm984, %vm952
        %vm1017 = vmand %vm985, %vm953
        %vm1018 = vmand %vm986, %vm954
        %vm1019 = vmand %vm987, %vm955
        %vm1020 = vmand %vm988, %vm956
        %vm1021 = vmand %vm989, %vm957
        %vm1022 = vmand %vm990, %vm958
        %vm1023 = vmand %vm991, %vm959
        %vm1024 = vmand %vm992, %vm960
        %v1025 = vadd.s32 %v711, 16
        %v1026 = vadd.s32 %v718, 16
        %v1027 = vadd.s32 %v725, 16
        %v1028 = vadd.s32 %v732, 16
        %v1029 = vadd.s32 %v739, 16
        %v1030 = vadd.s32 %v746, 16
        %v1031 = vadd.s32 %v753, 16
        %v1032 = vadd.s32 %v760, 16
        %v1033 = vadd.s32 %v767, 16
        %v1034 = vadd.s32 %v774, 16
        %v1035 = vadd.s32 %v781, 16
        %v1036 = vadd.s32 %v788, 16
        %v1037 = vadd.s32 %v795, 16
        %v1038 = vadd.s32 %v802, 16
        %v1039 = vadd.s32 %v809, 16
        %v1040 = vadd.s32 %v816, 16
        %v1041 = vadd.s32 %v823, 16
        %v1042 = vadd.s32 %v830, 16
        %v1043 = vadd.s32 %v837, 16
        %v1044 = vadd.s32 %v844, 16
        %v1045 = vadd.s32 %v851, 16
        %v1046 = vadd.s32 %v858, 16
        %v1047 = vadd.s32 %v865, 16
        %v1048 = vadd.s32 %v872, 16
        %v1049 = vadd.s32 %v879, 16
        %v1050 = vadd.s32 %v886, 16
        %v1051 = vadd.s32 %v893, 16
        %v1052 = vadd.s32 %v900, 16
        %v1053 = vadd.s32 %v907, 16
        %v1054 = vadd.s32 %v914, 16
        %v1055 = vadd.s32 %v921, 16
        %v1056 = vadd.s32 %v928, 16
        %v1057 = vsel %vm993, %v1025, %v711
        %v1058 = vsel %vm994, %v1026, %v718
        %v1059 = vsel %vm995, %v1027, %v725
        %v1060 = vsel %vm996, %v1028, %v732
        %v1061 = vsel %vm997, %v1029, %v739
        %v1062 = vsel %vm998, %v1030, %v746
        %v1063 = vsel %vm999, %v1031, %v753
        %v1064 = vsel %vm1000, %v1032, %v760
        %v1065 = vsel %vm1001, %v1033, %v767
        %v1066 = vsel %vm1002, %v1034, %v774
        %v1067 = vsel %vm1003, %v1035, %v781
        %v1068 = vsel %vm1004, %v1036, %v788
        %v1069 = vsel %vm1005, %v1037, %v795
        %v1070 = vsel %vm1006, %v1038, %v802
        %v1071 = vsel %vm1007, %v1039, %v809
        %v1072 = vsel %vm1008, %v1040, %v816
        %v1073 = vsel %vm1009, %v1041, %v823
        %v1074 = vsel %vm1010, %v1042, %v830
        %v1075 = vsel %vm1011, %v1043, %v837
        %v1076 = vsel %vm1012, %v1044, %v844
        %v1077 = vsel %vm1013, %v1045, %v851
        %v1078 = vsel %vm1014, %v1046, %v858
        %v1079 = vsel %vm1015, %v1047, %v865
        %v1080 = vsel %vm1016, %v1048, %v872
        %v1081 = vsel %vm1017, %v1049, %v879
        %v1082 = vsel %vm1018, %v1050, %v886
        %v1083 = vsel %vm1019, %v1051, %v893
        %v1084 = vsel %vm1020, %v1052, %v900
        %v1085 = vsel %vm1021, %v1053, %v907
        %v1086 = vsel %vm1022, %v1054, %v914
        %v1087 = vsel %vm1023, %v1055, %v921
        %v1088 = vsel %vm1024, %v1056, %v928
        %vm1089 = vcmp.ne.s32.totalorder %v1057, 0
        %vm1090 = vcmp.ne.s32.totalorder %v1058, 0
        %vm1091 = vcmp.ne.s32.totalorder %v1059, 0
        %vm1092 = vcmp.ne.s32.totalorder %v1060, 0
        %vm1093 = vcmp.ne.s32.totalorder %v1061, 0
        %vm1094 = vcmp.ne.s32.totalorder %v1062, 0
        %vm1095 = vcmp.ne.s32.totalorder %v1063, 0
        %vm1096 = vcmp.ne.s32.totalorder %v1064, 0
        %vm1097 = vcmp.ne.s32.totalorder %v1065, 0
        %vm1098 = vcmp.ne.s32.totalorder %v1066, 0
        %vm1099 = vcmp.ne.s32.totalorder %v1067, 0
        %vm1100 = vcmp.ne.s32.totalorder %v1068, 0
        %vm1101 = vcmp.ne.s32.totalorder %v1069, 0
        %vm1102 = vcmp.ne.s32.totalorder %v1070, 0
        %vm1103 = vcmp.ne.s32.totalorder %v1071, 0
        %vm1104 = vcmp.ne.s32.totalorder %v1072, 0
        %vm1105 = vcmp.ne.s32.totalorder %v1073, 0
        %vm1106 = vcmp.ne.s32.totalorder %v1074, 0
        %vm1107 = vcmp.ne.s32.totalorder %v1075, 0
        %vm1108 = vcmp.ne.s32.totalorder %v1076, 0
        %vm1109 = vcmp.ne.s32.totalorder %v1077, 0
        %vm1110 = vcmp.ne.s32.totalorder %v1078, 0
        %vm1111 = vcmp.ne.s32.totalorder %v1079, 0
        %vm1112 = vcmp.ne.s32.totalorder %v1080, 0
        %vm1113 = vcmp.ne.s32.totalorder %v1081, 0
        %vm1114 = vcmp.ne.s32.totalorder %v1082, 0
        %vm1115 = vcmp.ne.s32.totalorder %v1083, 0
        %vm1116 = vcmp.ne.s32.totalorder %v1084, 0
        %vm1117 = vcmp.ne.s32.totalorder %v1085, 0
        %vm1118 = vcmp.ne.s32.totalorder %v1086, 0
        %vm1119 = vcmp.ne.s32.totalorder %v1087, 0
        %vm1120 = vcmp.ne.s32.totalorder %v1088, 0
        %vm1121 = vcmp.ne.s32.totalorder %v1057, 15
        %vm1122 = vcmp.ne.s32.totalorder %v1058, 15
        %vm1123 = vcmp.ne.s32.totalorder %v1059, 15
        %vm1124 = vcmp.ne.s32.totalorder %v1060, 15
        %vm1125 = vcmp.ne.s32.totalorder %v1061, 15
        %vm1126 = vcmp.ne.s32.totalorder %v1062, 15
        %vm1127 = vcmp.ne.s32.totalorder %v1063, 15
        %vm1128 = vcmp.ne.s32.totalorder %v1064, 15
        %vm1129 = vcmp.ne.s32.totalorder %v1065, 15
        %vm1130 = vcmp.ne.s32.totalorder %v1066, 15
        %vm1131 = vcmp.ne.s32.totalorder %v1067, 15
        %vm1132 = vcmp.ne.s32.totalorder %v1068, 15
        %vm1133 = vcmp.ne.s32.totalorder %v1069, 15
        %vm1134 = vcmp.ne.s32.totalorder %v1070, 15
        %vm1135 = vcmp.ne.s32.totalorder %v1071, 15
        %vm1136 = vcmp.ne.s32.totalorder %v1072, 15
        %vm1137 = vcmp.ne.s32.totalorder %v1073, 15
        %vm1138 = vcmp.ne.s32.totalorder %v1074, 15
        %vm1139 = vcmp.ne.s32.totalorder %v1075, 15
        %vm1140 = vcmp.ne.s32.totalorder %v1076, 15
        %vm1141 = vcmp.ne.s32.totalorder %v1077, 15
        %vm1142 = vcmp.ne.s32.totalorder %v1078, 15
        %vm1143 = vcmp.ne.s32.totalorder %v1079, 15
        %vm1144 = vcmp.ne.s32.totalorder %v1080, 15
        %vm1145 = vcmp.ne.s32.totalorder %v1081, 15
        %vm1146 = vcmp.ne.s32.totalorder %v1082, 15
        %vm1147 = vcmp.ne.s32.totalorder %v1083, 15
        %vm1148 = vcmp.ne.s32.totalorder %v1084, 15
        %vm1149 = vcmp.ne.s32.totalorder %v1085, 15
        %vm1150 = vcmp.ne.s32.totalorder %v1086, 15
        %vm1151 = vcmp.ne.s32.totalorder %v1087, 15
        %vm1152 = vcmp.ne.s32.totalorder %v1088, 15
        %v1153 = vld [vmem:[%s573] sm:$0xf]
        %v1154 = vld [vmem:[%s573 + $0x4] sm:$0xf]
        %v1155 = vld [vmem:[%s573 + $0x8] sm:$0xf]
        %v1156 = vld [vmem:[%s573 + $0xc] sm:$0xf]
        %v1157 = vld [vmem:[%s573 + $0x10] sm:$0xf]
        %v1158 = vld [vmem:[%s573 + $0x14] sm:$0xf]
        %v1159 = vld [vmem:[%s573 + $0x18] sm:$0xf]
        %v1160 = vld [vmem:[%s573 + $0x1c] sm:$0xf]
        %v1161 = vld [vmem:[%s573 + $0x20] sm:$0xf]
        %v1162 = vld [vmem:[%s573 + $0x24] sm:$0xf]
        %v1163 = vld [vmem:[%s573 + $0x28] sm:$0xf]
        %v1164 = vld [vmem:[%s573 + $0x2c] sm:$0xf]
        %v1165 = vld [vmem:[%s573 + $0x30] sm:$0xf]
        %v1166 = vld [vmem:[%s573 + $0x34] sm:$0xf]
        %v1167 = vld [vmem:[%s573 + $0x38] sm:$0xf]
        %v1168 = vld [vmem:[%s573 + $0x3c] sm:$0xf]
        %v1169 = vld [vmem:[%s573 + $0x40] sm:$0xf]
        %v1170 = vld [vmem:[%s573 + $0x44] sm:$0xf]
        %v1171 = vld [vmem:[%s573 + $0x48] sm:$0xf]
        %v1172 = vld [vmem:[%s573 + $0x4c] sm:$0xf]
        %v1173 = vld [vmem:[%s573 + $0x50] sm:$0xf]
        %v1174 = vld [vmem:[%s573 + $0x54] sm:$0xf]
        %v1175 = vld [vmem:[%s573 + $0x58] sm:$0xf]
        %v1176 = vld [vmem:[%s573 + $0x5c] sm:$0xf]
        %v1177 = vld [vmem:[%s573 + $0x60] sm:$0xf]
        %v1178 = vld [vmem:[%s573 + $0x64] sm:$0xf]
        %v1179 = vld [vmem:[%s573 + $0x68] sm:$0xf]
        %v1180 = vld [vmem:[%s573 + $0x6c] sm:$0xf]
        %v1181 = vld [vmem:[%s573 + $0x70] sm:$0xf]
        %v1182 = vld [vmem:[%s573 + $0x74] sm:$0xf]
        %v1183 = vld [vmem:[%s573 + $0x78] sm:$0xf]
        %v1184 = vld [vmem:[%s573 + $0x7c] sm:$0xf]
        %v1217 = vunpack.c.l.b16 %v1153
        %v1218 = vunpack.c.l.b16 %v1154
        %v1219 = vunpack.c.l.b16 %v1155
        %v1220 = vunpack.c.l.b16 %v1156
        %v1221 = vunpack.c.l.b16 %v1157
        %v1222 = vunpack.c.l.b16 %v1158
        %v1223 = vunpack.c.l.b16 %v1159
        %v1224 = vunpack.c.l.b16 %v1160
        %v1225 = vunpack.c.l.b16 %v1161
        %v1226 = vunpack.c.l.b16 %v1162
        %v1227 = vunpack.c.l.b16 %v1163
        %v1228 = vunpack.c.l.b16 %v1164
        %v1229 = vunpack.c.l.b16 %v1165
        %v1230 = vunpack.c.l.b16 %v1166
        %v1231 = vunpack.c.l.b16 %v1167
        %v1232 = vunpack.c.l.b16 %v1168
        %v1233 = vunpack.c.l.b16 %v1169
        %v1234 = vunpack.c.l.b16 %v1170
        %v1235 = vunpack.c.l.b16 %v1171
        %v1236 = vunpack.c.l.b16 %v1172
        %v1237 = vunpack.c.l.b16 %v1173
        %v1238 = vunpack.c.l.b16 %v1174
        %v1239 = vunpack.c.l.b16 %v1175
        %v1240 = vunpack.c.l.b16 %v1176
        %v1241 = vunpack.c.l.b16 %v1177
        %v1242 = vunpack.c.l.b16 %v1178
        %v1243 = vunpack.c.l.b16 %v1179
        %v1244 = vunpack.c.l.b16 %v1180
        %v1245 = vunpack.c.l.b16 %v1181
        %v1246 = vunpack.c.l.b16 %v1182
        %v1247 = vunpack.c.l.b16 %v1183
        %v1248 = vunpack.c.l.b16 %v1184
        %v1249 = vpack.c.b16 %v1217, %v1217
        %v1250 = vpack.c.b16 %v1219, %v1218
        %v1251 = vpack.c.b16 %v1221, %v1220
        %v1252 = vpack.c.b16 %v1223, %v1222
        %v1253 = vpack.c.b16 %v1225, %v1224
        %v1254 = vpack.c.b16 %v1227, %v1226
        %v1255 = vpack.c.b16 %v1229, %v1228
        %v1256 = vpack.c.b16 %v1231, %v1230
        %v1257 = vpack.c.b16 %v1233, %v1232
        %v1258 = vpack.c.b16 %v1235, %v1234
        %v1259 = vpack.c.b16 %v1237, %v1236
        %v1260 = vpack.c.b16 %v1239, %v1238
        %v1261 = vpack.c.b16 %v1241, %v1240
        %v1262 = vpack.c.b16 %v1243, %v1242
        %v1263 = vpack.c.b16 %v1245, %v1244
        %v1264 = vpack.c.b16 %v1247, %v1246
        %v1265 = vpack.c.b16 %v1248, %v1248
        %1283 = vst [vmem:[#allocation2 + $0x8] sm:$0xf0] %v1249
        %1284 = vst [vmem:[#allocation2 + $0x10] sm:$0xff] %v1250
        %1285 = vst [vmem:[#allocation2 + $0x18] sm:$0xff] %v1251
        %1286 = vst [vmem:[#allocation2 + $0x20] sm:$0xff] %v1252
        %1287 = vst [vmem:[#allocation2 + $0x28] sm:$0xff] %v1253
        %1288 = vst [vmem:[#allocation2 + $0x30] sm:$0xff] %v1254
        %1289 = vst [vmem:[#allocation2 + $0x38] sm:$0xff] %v1255
        %1290 = vst [vmem:[#allocation2 + $0x40] sm:$0xff] %v1256
        %1291 = vst [vmem:[#allocation2 + $0x48] sm:$0xff] %v1257
        %1292 = vst [vmem:[#allocation2 + $0x50] sm:$0xff] %v1258
        %1293 = vst [vmem:[#allocation2 + $0x58] sm:$0xff] %v1259
        %1294 = vst [vmem:[#allocation2 + $0x60] sm:$0xff] %v1260
        %1295 = vst [vmem:[#allocation2 + $0x68] sm:$0xff] %v1261
        %1296 = vst [vmem:[#allocation2 + $0x70] sm:$0xff] %v1262
        %1297 = vst [vmem:[#allocation2 + $0x78] sm:$0xff] %v1263
        %1298 = vst [vmem:[#allocation2 + $0x80] sm:$0xff] %v1264
        %1299 = vst [vmem:[#allocation2 + $0x88] sm:$0xf] %v1265
        %v1300 = vld [vmem:[#allocation8] sm:$0xf]
        %v1301 = vld [vmem:[#allocation8 + $0x4] sm:$0xf]
        %v1302 = vld [vmem:[#allocation8 + $0x8] sm:$0xf]
        %v1303 = vld [vmem:[#allocation8 + $0xc] sm:$0xf]
        %v1304 = vld [vmem:[#allocation8 + $0x10] sm:$0xf]
        %v1305 = vld [vmem:[#allocation8 + $0x14] sm:$0xf]
        %v1306 = vld [vmem:[#allocation8 + $0x18] sm:$0xf]
        %v1307 = vld [vmem:[#allocation8 + $0x1c] sm:$0xf]
        %v1308 = vld [vmem:[#allocation8 + $0x20] sm:$0xf]
        %v1309 = vld [vmem:[#allocation8 + $0x24] sm:$0xf]
        %v1310 = vld [vmem:[#allocation8 + $0x28] sm:$0xf]
        %v1311 = vld [vmem:[#allocation8 + $0x2c] sm:$0xf]
        %v1312 = vld [vmem:[#allocation8 + $0x30] sm:$0xf]
        %v1313 = vld [vmem:[#allocation8 + $0x34] sm:$0xf]
        %v1314 = vld [vmem:[#allocation8 + $0x38] sm:$0xf]
        %v1315 = vld [vmem:[#allocation8 + $0x3c] sm:$0xf]
        %v1316 = vld [vmem:[#allocation8 + $0x40] sm:$0xf]
        %v1317 = vld [vmem:[#allocation8 + $0x44] sm:$0xf]
        %v1318 = vld [vmem:[#allocation8 + $0x48] sm:$0xf]
        %v1319 = vld [vmem:[#allocation8 + $0x4c] sm:$0xf]
        %v1320 = vld [vmem:[#allocation8 + $0x50] sm:$0xf]
        %v1321 = vld [vmem:[#allocation8 + $0x54] sm:$0xf]
        %v1322 = vld [vmem:[#allocation8 + $0x58] sm:$0xf]
        %v1323 = vld [vmem:[#allocation8 + $0x5c] sm:$0xf]
        %v1324 = vld [vmem:[#allocation8 + $0x60] sm:$0xf]
        %v1325 = vld [vmem:[#allocation8 + $0x64] sm:$0xf]
        %v1326 = vld [vmem:[#allocation8 + $0x68] sm:$0xf]
        %v1327 = vld [vmem:[#allocation8 + $0x6c] sm:$0xf]
        %v1328 = vld [vmem:[#allocation8 + $0x70] sm:$0xf]
        %v1329 = vld [vmem:[#allocation8 + $0x74] sm:$0xf]
        %v1330 = vld [vmem:[#allocation8 + $0x78] sm:$0xf]
        %v1331 = vld [vmem:[#allocation8 + $0x7c] sm:$0xf]
        %v1332 = vld [vmem:[#allocation8 + $0x80] sm:$0xf]
        %v1333 = vld [vmem:[#allocation8 + $0x84] sm:$0xf]
        %v1334 = vld [vmem:[#allocation8 + $0x88] sm:$0xf]
        %v1335 = vld [vmem:[#allocation8 + $0x8c] sm:$0xf]
        %v1336 = vld [vmem:[#allocation8 + $0x90] sm:$0xf]
        %v1337 = vld [vmem:[#allocation8 + $0x94] sm:$0xf]
        %v1338 = vld [vmem:[#allocation8 + $0x98] sm:$0xf]
        %v1339 = vld [vmem:[#allocation8 + $0x9c] sm:$0xf]
        %v1340 = vld [vmem:[#allocation8 + $0xa0] sm:$0xf]
        %v1341 = vld [vmem:[#allocation8 + $0xa4] sm:$0xf]
        %v1342 = vld [vmem:[#allocation8 + $0xa8] sm:$0xf]
        %v1343 = vld [vmem:[#allocation8 + $0xac] sm:$0xf]
        %v1344 = vld [vmem:[#allocation8 + $0xb0] sm:$0xf]
        %v1345 = vld [vmem:[#allocation8 + $0xb4] sm:$0xf]
        %v1346 = vld [vmem:[#allocation8 + $0xb8] sm:$0xf]
        %v1347 = vld [vmem:[#allocation8 + $0xbc] sm:$0xf]
        %v1348 = vld [vmem:[#allocation2] sm:$0xf8]
        %v1349 = vld [vmem:[#allocation2 + $0x8] sm:$0xff]
        %v1350 = vld [vmem:[#allocation2 + $0x10] sm:$0xff]
        %v1351 = vld [vmem:[#allocation2 + $0x18] sm:$0xff]
        %v1352 = vld [vmem:[#allocation2 + $0x20] sm:$0xff]
        %v1353 = vld [vmem:[#allocation2 + $0x28] sm:$0xff]
        %v1354 = vld [vmem:[#allocation2 + $0x30] sm:$0xff]
        %v1355 = vld [vmem:[#allocation2 + $0x38] sm:$0xff]
        %v1356 = vld [vmem:[#allocation2 + $0x40] sm:$0xff]
        %v1357 = vld [vmem:[#allocation2 + $0x48] sm:$0xff]
        %v1358 = vld [vmem:[#allocation2 + $0x50] sm:$0xff]
        %v1359 = vld [vmem:[#allocation2 + $0x58] sm:$0xff]
        %v1360 = vld [vmem:[#allocation2 + $0x60] sm:$0xff]
        %v1361 = vld [vmem:[#allocation2 + $0x68] sm:$0xff]
        %v1362 = vld [vmem:[#allocation2 + $0x70] sm:$0xff]
        %v1363 = vld [vmem:[#allocation2 + $0x78] sm:$0xff]
        %v1364 = vld [vmem:[#allocation2 + $0x80] sm:$0xf]
        %v1365 = vsel %vm1089, 1, 0
        %v1366 = vsel %vm1090, 1, 0
        %v1367 = vsel %vm1091, 1, 0
        %v1368 = vsel %vm1092, 1, 0
        %v1369 = vsel %vm1093, 1, 0
        %v1370 = vsel %vm1094, 1, 0
        %v1371 = vsel %vm1095, 1, 0
        %v1372 = vsel %vm1096, 1, 0
        %v1373 = vsel %vm1097, 1, 0
        %v1374 = vsel %vm1098, 1, 0
        %v1375 = vsel %vm1099, 1, 0
        %v1376 = vsel %vm1100, 1, 0
        %v1377 = vsel %vm1101, 1, 0
        %v1378 = vsel %vm1102, 1, 0
        %v1379 = vsel %vm1103, 1, 0
        %v1380 = vsel %vm1104, 1, 0
        %v1381 = vsel %vm1105, 1, 0
        %v1382 = vsel %vm1106, 1, 0
        %v1383 = vsel %vm1107, 1, 0
        %v1384 = vsel %vm1108, 1, 0
        %v1385 = vsel %vm1109, 1, 0
        %v1386 = vsel %vm1110, 1, 0
        %v1387 = vsel %vm1111, 1, 0
        %v1388 = vsel %vm1112, 1, 0
        %v1389 = vsel %vm1113, 1, 0
        %v1390 = vsel %vm1114, 1, 0
        %v1391 = vsel %vm1115, 1, 0
        %v1392 = vsel %vm1116, 1, 0
        %v1393 = vsel %vm1117, 1, 0
        %v1394 = vsel %vm1118, 1, 0
        %v1395 = vsel %vm1119, 1, 0
        %v1396 = vsel %vm1120, 1, 0
        %vm1397 = vcmp.eq.s32.totalorder %v1365, 1
        %vm1398 = vcmp.eq.s32.totalorder %v1366, 1
        %vm1399 = vcmp.eq.s32.totalorder %v1367, 1
        %vm1400 = vcmp.eq.s32.totalorder %v1368, 1
        %vm1401 = vcmp.eq.s32.totalorder %v1369, 1
        %vm1402 = vcmp.eq.s32.totalorder %v1370, 1
        %vm1403 = vcmp.eq.s32.totalorder %v1371, 1
        %vm1404 = vcmp.eq.s32.totalorder %v1372, 1
        %vm1405 = vcmp.eq.s32.totalorder %v1373, 1
        %vm1406 = vcmp.eq.s32.totalorder %v1374, 1
        %vm1407 = vcmp.eq.s32.totalorder %v1375, 1
        %vm1408 = vcmp.eq.s32.totalorder %v1376, 1
        %vm1409 = vcmp.eq.s32.totalorder %v1377, 1
        %vm1410 = vcmp.eq.s32.totalorder %v1378, 1
        %vm1411 = vcmp.eq.s32.totalorder %v1379, 1
        %vm1412 = vcmp.eq.s32.totalorder %v1380, 1
        %vm1413 = vcmp.eq.s32.totalorder %v1381, 1
        %vm1414 = vcmp.eq.s32.totalorder %v1382, 1
        %vm1415 = vcmp.eq.s32.totalorder %v1383, 1
        %vm1416 = vcmp.eq.s32.totalorder %v1384, 1
        %vm1417 = vcmp.eq.s32.totalorder %v1385, 1
        %vm1418 = vcmp.eq.s32.totalorder %v1386, 1
        %vm1419 = vcmp.eq.s32.totalorder %v1387, 1
        %vm1420 = vcmp.eq.s32.totalorder %v1388, 1
        %vm1421 = vcmp.eq.s32.totalorder %v1389, 1
        %vm1422 = vcmp.eq.s32.totalorder %v1390, 1
        %vm1423 = vcmp.eq.s32.totalorder %v1391, 1
        %vm1424 = vcmp.eq.s32.totalorder %v1392, 1
        %vm1425 = vcmp.eq.s32.totalorder %v1393, 1
        %vm1426 = vcmp.eq.s32.totalorder %v1394, 1
        %vm1427 = vcmp.eq.s32.totalorder %v1395, 1
        %vm1428 = vcmp.eq.s32.totalorder %v1396, 1
        %vm1429 = vmpackc.low %vm1397, %vm1397
        %vm1430 = vmpackc.low %vm1398, %vm1398
        %vm1431 = vmpackc.low %vm1399, %vm1399
        %vm1432 = vmpackc.low %vm1400, %vm1400
        %vm1433 = vmpackc.low %vm1401, %vm1401
        %vm1434 = vmpackc.low %vm1402, %vm1402
        %vm1435 = vmpackc.low %vm1403, %vm1403
        %vm1436 = vmpackc.low %vm1404, %vm1404
        %vm1437 = vmpackc.low %vm1405, %vm1405
        %vm1438 = vmpackc.low %vm1406, %vm1406
        %vm1439 = vmpackc.low %vm1407, %vm1407
        %vm1440 = vmpackc.low %vm1408, %vm1408
        %vm1441 = vmpackc.low %vm1409, %vm1409
        %vm1442 = vmpackc.low %vm1410, %vm1410
        %vm1443 = vmpackc.low %vm1411, %vm1411
        %vm1444 = vmpackc.low %vm1412, %vm1412
        %vm1445 = vmpackc.low %vm1413, %vm1413
        %vm1446 = vmpackc.low %vm1414, %vm1414
        %vm1447 = vmpackc.low %vm1415, %vm1415
        %vm1448 = vmpackc.low %vm1416, %vm1416
        %vm1449 = vmpackc.low %vm1417, %vm1417
        %vm1450 = vmpackc.low %vm1418, %vm1418
        %vm1451 = vmpackc.low %vm1419, %vm1419
        %vm1452 = vmpackc.low %vm1420, %vm1420
        %vm1453 = vmpackc.low %vm1421, %vm1421
        %vm1454 = vmpackc.low %vm1422, %vm1422
        %vm1455 = vmpackc.low %vm1423, %vm1423
        %vm1456 = vmpackc.low %vm1424, %vm1424
        %vm1457 = vmpackc.low %vm1425, %vm1425
        %vm1458 = vmpackc.low %vm1426, %vm1426
        %vm1459 = vmpackc.low %vm1427, %vm1427
        %vm1460 = vmpackc.low %vm1428, %vm1428
        %v1461 = vsel %vm1429, 65537, 0
        %v1462 = vsel %vm1430, 65537, 0
        %v1463 = vsel %vm1431, 65537, 0
        %v1464 = vsel %vm1432, 65537, 0
        %v1465 = vsel %vm1433, 65537, 0
        %v1466 = vsel %vm1434, 65537, 0
        %v1467 = vsel %vm1435, 65537, 0
        %v1468 = vsel %vm1436, 65537, 0
        %v1469 = vsel %vm1437, 65537, 0
        %v1470 = vsel %vm1438, 65537, 0
        %v1471 = vsel %vm1439, 65537, 0
        %v1472 = vsel %vm1440, 65537, 0
        %v1473 = vsel %vm1441, 65537, 0
        %v1474 = vsel %vm1442, 65537, 0
        %v1475 = vsel %vm1443, 65537, 0
        %v1476 = vsel %vm1444, 65537, 0
        %v1477 = vsel %vm1445, 65537, 0
        %v1478 = vsel %vm1446, 65537, 0
        %v1479 = vsel %vm1447, 65537, 0
        %v1480 = vsel %vm1448, 65537, 0
        %v1481 = vsel %vm1449, 65537, 0
        %v1482 = vsel %vm1450, 65537, 0
        %v1483 = vsel %vm1451, 65537, 0
        %v1484 = vsel %vm1452, 65537, 0
        %v1485 = vsel %vm1453, 65537, 0
        %v1486 = vsel %vm1454, 65537, 0
        %v1487 = vsel %vm1455, 65537, 0
        %v1488 = vsel %vm1456, 65537, 0
        %v1489 = vsel %vm1457, 65537, 0
        %v1490 = vsel %vm1458, 65537, 0
        %v1491 = vsel %vm1459, 65537, 0
        %v1492 = vsel %vm1460, 65537, 0
        %v1493 = vunpack.c.l.b16 %v1461
        %v1494 = vunpack.c.l.b16 %v1462
        %v1495 = vunpack.c.l.b16 %v1463
        %v1496 = vunpack.c.l.b16 %v1464
        %v1497 = vunpack.c.l.b16 %v1465
        %v1498 = vunpack.c.l.b16 %v1466
        %v1499 = vunpack.c.l.b16 %v1467
        %v1500 = vunpack.c.l.b16 %v1468
        %v1501 = vunpack.c.l.b16 %v1469
        %v1502 = vunpack.c.l.b16 %v1470
        %v1503 = vunpack.c.l.b16 %v1471
        %v1504 = vunpack.c.l.b16 %v1472
        %v1505 = vunpack.c.l.b16 %v1473
        %v1506 = vunpack.c.l.b16 %v1474
        %v1507 = vunpack.c.l.b16 %v1475
        %v1508 = vunpack.c.l.b16 %v1476
        %v1509 = vunpack.c.l.b16 %v1477
        %v1510 = vunpack.c.l.b16 %v1478
        %v1511 = vunpack.c.l.b16 %v1479
        %v1512 = vunpack.c.l.b16 %v1480
        %v1513 = vunpack.c.l.b16 %v1481
        %v1514 = vunpack.c.l.b16 %v1482
        %v1515 = vunpack.c.l.b16 %v1483
        %v1516 = vunpack.c.l.b16 %v1484
        %v1517 = vunpack.c.l.b16 %v1485
        %v1518 = vunpack.c.l.b16 %v1486
        %v1519 = vunpack.c.l.b16 %v1487
        %v1520 = vunpack.c.l.b16 %v1488
        %v1521 = vunpack.c.l.b16 %v1489
        %v1522 = vunpack.c.l.b16 %v1490
        %v1523 = vunpack.c.l.b16 %v1491
        %v1524 = vunpack.c.l.b16 %v1492
        %v1525 = vpack.c.b16 %v1494, %v1493
        %v1526 = vpack.c.b16 %v1496, %v1495
        %v1527 = vpack.c.b16 %v1498, %v1497
        %v1528 = vpack.c.b16 %v1500, %v1499
        %v1529 = vpack.c.b16 %v1502, %v1501
        %v1530 = vpack.c.b16 %v1504, %v1503
        %v1531 = vpack.c.b16 %v1506, %v1505
        %v1532 = vpack.c.b16 %v1508, %v1507
        %v1533 = vpack.c.b16 %v1510, %v1509
        %v1534 = vpack.c.b16 %v1512, %v1511
        %v1535 = vpack.c.b16 %v1514, %v1513
        %v1536 = vpack.c.b16 %v1516, %v1515
        %v1537 = vpack.c.b16 %v1518, %v1517
        %v1538 = vpack.c.b16 %v1520, %v1519
        %v1539 = vpack.c.b16 %v1522, %v1521
        %v1540 = vpack.c.b16 %v1524, %v1523
        %vm1541 = vsmask.f32 3328
        %v1543 = vshrl.u32 %v1525, 16
        %v1545 = vrot.slane %v1543, 4
        %v1546 = vshll.u32 %v1525, 16
        %v1548 = vrot.slane %v1546, 5
        %v1549 = vor.u32 %v1545, %v1548
        %v1551 = vshrl.u32 %v1526, 16
        %v1553 = vrot.slane %v1551, 4
        %v1554 = vshll.u32 %v1526, 16
        %v1556 = vrot.slane %v1554, 5
        %v1557 = vor.u32 %v1553, %v1556
        %v1558 = vsel %vm1541, %v1549, %v1557
        %v1560 = vshrl.u32 %v1527, 16
        %v1562 = vrot.slane %v1560, 4
        %v1563 = vshll.u32 %v1527, 16
        %v1565 = vrot.slane %v1563, 5
        %v1566 = vor.u32 %v1562, %v1565
        %v1567 = vsel %vm1541, %v1557, %v1566
        %v1569 = vshrl.u32 %v1528, 16
        %v1571 = vrot.slane %v1569, 4
        %v1572 = vshll.u32 %v1528, 16
        %v1574 = vrot.slane %v1572, 5
        %v1575 = vor.u32 %v1571, %v1574
        %v1576 = vsel %vm1541, %v1566, %v1575
        %v1578 = vshrl.u32 %v1529, 16
        %v1580 = vrot.slane %v1578, 4
        %v1581 = vshll.u32 %v1529, 16
        %v1583 = vrot.slane %v1581, 5
        %v1584 = vor.u32 %v1580, %v1583
        %v1585 = vsel %vm1541, %v1575, %v1584
        %v1587 = vshrl.u32 %v1530, 16
        %v1589 = vrot.slane %v1587, 4
        %v1590 = vshll.u32 %v1530, 16
        %v1592 = vrot.slane %v1590, 5
        %v1593 = vor.u32 %v1589, %v1592
        %v1594 = vsel %vm1541, %v1584, %v1593
        %v1596 = vshrl.u32 %v1531, 16
        %v1598 = vrot.slane %v1596, 4
        %v1599 = vshll.u32 %v1531, 16
        %v1601 = vrot.slane %v1599, 5
        %v1602 = vor.u32 %v1598, %v1601
        %v1603 = vsel %vm1541, %v1593, %v1602
        %v1605 = vshrl.u32 %v1532, 16
        %v1607 = vrot.slane %v1605, 4
        %v1608 = vshll.u32 %v1532, 16
        %v1610 = vrot.slane %v1608, 5
        %v1611 = vor.u32 %v1607, %v1610
        %v1612 = vsel %vm1541, %v1602, %v1611
        %v1614 = vshrl.u32 %v1533, 16
        %v1616 = vrot.slane %v1614, 4
        %v1617 = vshll.u32 %v1533, 16
        %v1619 = vrot.slane %v1617, 5
        %v1620 = vor.u32 %v1616, %v1619
        %v1621 = vsel %vm1541, %v1611, %v1620
        %v1623 = vshrl.u32 %v1534, 16
        %v1625 = vrot.slane %v1623, 4
        %v1626 = vshll.u32 %v1534, 16
        %v1628 = vrot.slane %v1626, 5
        %v1629 = vor.u32 %v1625, %v1628
        %v1630 = vsel %vm1541, %v1620, %v1629
        %v1632 = vshrl.u32 %v1535, 16
        %v1634 = vrot.slane %v1632, 4
        %v1635 = vshll.u32 %v1535, 16
        %v1637 = vrot.slane %v1635, 5
        %v1638 = vor.u32 %v1634, %v1637
        %v1639 = vsel %vm1541, %v1629, %v1638
        %v1641 = vshrl.u32 %v1536, 16
        %v1643 = vrot.slane %v1641, 4
        %v1644 = vshll.u32 %v1536, 16
        %v1646 = vrot.slane %v1644, 5
        %v1647 = vor.u32 %v1643, %v1646
        %v1648 = vsel %vm1541, %v1638, %v1647
        %v1650 = vshrl.u32 %v1537, 16
        %v1652 = vrot.slane %v1650, 4
        %v1653 = vshll.u32 %v1537, 16
        %v1655 = vrot.slane %v1653, 5
        %v1656 = vor.u32 %v1652, %v1655
        %v1657 = vsel %vm1541, %v1647, %v1656
        %v1659 = vshrl.u32 %v1538, 16
        %v1661 = vrot.slane %v1659, 4
        %v1662 = vshll.u32 %v1538, 16
        %v1664 = vrot.slane %v1662, 5
        %v1665 = vor.u32 %v1661, %v1664
        %v1666 = vsel %vm1541, %v1656, %v1665
        %v1668 = vshrl.u32 %v1539, 16
        %v1670 = vrot.slane %v1668, 4
        %v1671 = vshll.u32 %v1539, 16
        %v1673 = vrot.slane %v1671, 5
        %v1674 = vor.u32 %v1670, %v1673
        %v1675 = vsel %vm1541, %v1665, %v1674
        %v1677 = vshrl.u32 %v1540, 16
        %v1679 = vrot.slane %v1677, 4
        %v1680 = vshll.u32 %v1540, 16
        %v1682 = vrot.slane %v1680, 5
        %v1683 = vor.u32 %v1679, %v1682
        %v1684 = vsel %vm1541, %v1674, %v1683
        %vm1685 = vcmp.ne.s16.totalorder %v1549, 0
        %vm1686 = vcmp.ne.s16.totalorder %v1558, 0
        %vm1687 = vcmp.ne.s16.totalorder %v1567, 0
        %vm1688 = vcmp.ne.s16.totalorder %v1576, 0
        %vm1689 = vcmp.ne.s16.totalorder %v1585, 0
        %vm1690 = vcmp.ne.s16.totalorder %v1594, 0
        %vm1691 = vcmp.ne.s16.totalorder %v1603, 0
        %vm1692 = vcmp.ne.s16.totalorder %v1612, 0
        %vm1693 = vcmp.ne.s16.totalorder %v1621, 0
        %vm1694 = vcmp.ne.s16.totalorder %v1630, 0
        %vm1695 = vcmp.ne.s16.totalorder %v1639, 0
        %vm1696 = vcmp.ne.s16.totalorder %v1648, 0
        %vm1697 = vcmp.ne.s16.totalorder %v1657, 0
        %vm1698 = vcmp.ne.s16.totalorder %v1666, 0
        %vm1699 = vcmp.ne.s16.totalorder %v1675, 0
        %vm1700 = vcmp.ne.s16.totalorder %v1684, 0
        %vm1701 = vcmp.ne.s16.totalorder %v1683, 0
        %v1702 = vsel %vm1685, %v1348, 0
        %v1703 = vsel %vm1686, %v1349, 0
        %v1704 = vsel %vm1687, %v1350, 0
        %v1705 = vsel %vm1688, %v1351, 0
        %v1706 = vsel %vm1689, %v1352, 0
        %v1707 = vsel %vm1690, %v1353, 0
        %v1708 = vsel %vm1691, %v1354, 0
        %v1709 = vsel %vm1692, %v1355, 0
        %v1710 = vsel %vm1693, %v1356, 0
        %v1711 = vsel %vm1694, %v1357, 0
        %v1712 = vsel %vm1695, %v1358, 0
        %v1713 = vsel %vm1696, %v1359, 0
        %v1714 = vsel %vm1697, %v1360, 0
        %v1715 = vsel %vm1698, %v1361, 0
        %v1716 = vsel %vm1699, %v1362, 0
        %v1717 = vsel %vm1700, %v1363, 0
        %v1718 = vsel %vm1701, %v1364, 0
        %v1719 = vld [vmem:[#allocation2] sm:$0xf0]
        %v1720 = vld [vmem:[#allocation2 + $0x80] sm:$0x1f]
        %v1721 = vsel %vm1121, 1, 0
        %v1722 = vsel %vm1122, 1, 0
        %v1723 = vsel %vm1123, 1, 0
        %v1724 = vsel %vm1124, 1, 0
        %v1725 = vsel %vm1125, 1, 0
        %v1726 = vsel %vm1126, 1, 0
        %v1727 = vsel %vm1127, 1, 0
        %v1728 = vsel %vm1128, 1, 0
        %v1729 = vsel %vm1129, 1, 0
        %v1730 = vsel %vm1130, 1, 0
        %v1731 = vsel %vm1131, 1, 0
        %v1732 = vsel %vm1132, 1, 0
        %v1733 = vsel %vm1133, 1, 0
        %v1734 = vsel %vm1134, 1, 0
        %v1735 = vsel %vm1135, 1, 0
        %v1736 = vsel %vm1136, 1, 0
        %v1737 = vsel %vm1137, 1, 0
        %v1738 = vsel %vm1138, 1, 0
        %v1739 = vsel %vm1139, 1, 0
        %v1740 = vsel %vm1140, 1, 0
        %v1741 = vsel %vm1141, 1, 0
        %v1742 = vsel %vm1142, 1, 0
        %v1743 = vsel %vm1143, 1, 0
        %v1744 = vsel %vm1144, 1, 0
        %v1745 = vsel %vm1145, 1, 0
        %v1746 = vsel %vm1146, 1, 0
        %v1747 = vsel %vm1147, 1, 0
        %v1748 = vsel %vm1148, 1, 0
        %v1749 = vsel %vm1149, 1, 0
        %v1750 = vsel %vm1150, 1, 0
        %v1751 = vsel %vm1151, 1, 0
        %v1752 = vsel %vm1152, 1, 0
        %vm1753 = vcmp.eq.s32.totalorder %v1721, 1
        %vm1754 = vcmp.eq.s32.totalorder %v1722, 1
        %vm1755 = vcmp.eq.s32.totalorder %v1723, 1
        %vm1756 = vcmp.eq.s32.totalorder %v1724, 1
        %vm1757 = vcmp.eq.s32.totalorder %v1725, 1
        %vm1758 = vcmp.eq.s32.totalorder %v1726, 1
        %vm1759 = vcmp.eq.s32.totalorder %v1727, 1
        %vm1760 = vcmp.eq.s32.totalorder %v1728, 1
        %vm1761 = vcmp.eq.s32.totalorder %v1729, 1
        %vm1762 = vcmp.eq.s32.totalorder %v1730, 1
        %vm1763 = vcmp.eq.s32.totalorder %v1731, 1
        %vm1764 = vcmp.eq.s32.totalorder %v1732, 1
        %vm1765 = vcmp.eq.s32.totalorder %v1733, 1
        %vm1766 = vcmp.eq.s32.totalorder %v1734, 1
        %vm1767 = vcmp.eq.s32.totalorder %v1735, 1
        %vm1768 = vcmp.eq.s32.totalorder %v1736, 1
        %vm1769 = vcmp.eq.s32.totalorder %v1737, 1
        %vm1770 = vcmp.eq.s32.totalorder %v1738, 1
        %vm1771 = vcmp.eq.s32.totalorder %v1739, 1
        %vm1772 = vcmp.eq.s32.totalorder %v1740, 1
        %vm1773 = vcmp.eq.s32.totalorder %v1741, 1
        %vm1774 = vcmp.eq.s32.totalorder %v1742, 1
        %vm1775 = vcmp.eq.s32.totalorder %v1743, 1
        %vm1776 = vcmp.eq.s32.totalorder %v1744, 1
        %vm1777 = vcmp.eq.s32.totalorder %v1745, 1
        %vm1778 = vcmp.eq.s32.totalorder %v1746, 1
        %vm1779 = vcmp.eq.s32.totalorder %v1747, 1
        %vm1780 = vcmp.eq.s32.totalorder %v1748, 1
        %vm1781 = vcmp.eq.s32.totalorder %v1749, 1
        %vm1782 = vcmp.eq.s32.totalorder %v1750, 1
        %vm1783 = vcmp.eq.s32.totalorder %v1751, 1
        %vm1784 = vcmp.eq.s32.totalorder %v1752, 1
        %vm1785 = vmpackc.low %vm1753, %vm1753
        %vm1786 = vmpackc.low %vm1754, %vm1754
        %vm1787 = vmpackc.low %vm1755, %vm1755
        %vm1788 = vmpackc.low %vm1756, %vm1756
        %vm1789 = vmpackc.low %vm1757, %vm1757
        %vm1790 = vmpackc.low %vm1758, %vm1758
        %vm1791 = vmpackc.low %vm1759, %vm1759
        %vm1792 = vmpackc.low %vm1760, %vm1760
        %vm1793 = vmpackc.low %vm1761, %vm1761
        %vm1794 = vmpackc.low %vm1762, %vm1762
        %vm1795 = vmpackc.low %vm1763, %vm1763
        %vm1796 = vmpackc.low %vm1764, %vm1764
        %vm1797 = vmpackc.low %vm1765, %vm1765
        %vm1798 = vmpackc.low %vm1766, %vm1766
        %vm1799 = vmpackc.low %vm1767, %vm1767
        %vm1800 = vmpackc.low %vm1768, %vm1768
        %vm1801 = vmpackc.low %vm1769, %vm1769
        %vm1802 = vmpackc.low %vm1770, %vm1770
        %vm1803 = vmpackc.low %vm1771, %vm1771
        %vm1804 = vmpackc.low %vm1772, %vm1772
        %vm1805 = vmpackc.low %vm1773, %vm1773
        %vm1806 = vmpackc.low %vm1774, %vm1774
        %vm1807 = vmpackc.low %vm1775, %vm1775
        %vm1808 = vmpackc.low %vm1776, %vm1776
        %vm1809 = vmpackc.low %vm1777, %vm1777
        %vm1810 = vmpackc.low %vm1778, %vm1778
        %vm1811 = vmpackc.low %vm1779, %vm1779
        %vm1812 = vmpackc.low %vm1780, %vm1780
        %vm1813 = vmpackc.low %vm1781, %vm1781
        %vm1814 = vmpackc.low %vm1782, %vm1782
        %vm1815 = vmpackc.low %vm1783, %vm1783
        %vm1816 = vmpackc.low %vm1784, %vm1784
        %v1817 = vsel %vm1785, 65537, 0
        %v1818 = vsel %vm1786, 65537, 0
        %v1819 = vsel %vm1787, 65537, 0
        %v1820 = vsel %vm1788, 65537, 0
        %v1821 = vsel %vm1789, 65537, 0
        %v1822 = vsel %vm1790, 65537, 0
        %v1823 = vsel %vm1791, 65537, 0
        %v1824 = vsel %vm1792, 65537, 0
        %v1825 = vsel %vm1793, 65537, 0
        %v1826 = vsel %vm1794, 65537, 0
        %v1827 = vsel %vm1795, 65537, 0
        %v1828 = vsel %vm1796, 65537, 0
        %v1829 = vsel %vm1797, 65537, 0
        %v1830 = vsel %vm1798, 65537, 0
        %v1831 = vsel %vm1799, 65537, 0
        %v1832 = vsel %vm1800, 65537, 0
        %v1833 = vsel %vm1801, 65537, 0
        %v1834 = vsel %vm1802, 65537, 0
        %v1835 = vsel %vm1803, 65537, 0
        %v1836 = vsel %vm1804, 65537, 0
        %v1837 = vsel %vm1805, 65537, 0
        %v1838 = vsel %vm1806, 65537, 0
        %v1839 = vsel %vm1807, 65537, 0
        %v1840 = vsel %vm1808, 65537, 0
        %v1841 = vsel %vm1809, 65537, 0
        %v1842 = vsel %vm1810, 65537, 0
        %v1843 = vsel %vm1811, 65537, 0
        %v1844 = vsel %vm1812, 65537, 0
        %v1845 = vsel %vm1813, 65537, 0
        %v1846 = vsel %vm1814, 65537, 0
        %v1847 = vsel %vm1815, 65537, 0
        %v1848 = vsel %vm1816, 65537, 0
        %v1849 = vunpack.c.l.b16 %v1817
        %v1850 = vunpack.c.l.b16 %v1818
        %v1851 = vunpack.c.l.b16 %v1819
        %v1852 = vunpack.c.l.b16 %v1820
        %v1853 = vunpack.c.l.b16 %v1821
        %v1854 = vunpack.c.l.b16 %v1822
        %v1855 = vunpack.c.l.b16 %v1823
        %v1856 = vunpack.c.l.b16 %v1824
        %v1857 = vunpack.c.l.b16 %v1825
        %v1858 = vunpack.c.l.b16 %v1826
        %v1859 = vunpack.c.l.b16 %v1827
        %v1860 = vunpack.c.l.b16 %v1828
        %v1861 = vunpack.c.l.b16 %v1829
        %v1862 = vunpack.c.l.b16 %v1830
        %v1863 = vunpack.c.l.b16 %v1831
        %v1864 = vunpack.c.l.b16 %v1832
        %v1865 = vunpack.c.l.b16 %v1833
        %v1866 = vunpack.c.l.b16 %v1834
        %v1867 = vunpack.c.l.b16 %v1835
        %v1868 = vunpack.c.l.b16 %v1836
        %v1869 = vunpack.c.l.b16 %v1837
        %v1870 = vunpack.c.l.b16 %v1838
        %v1871 = vunpack.c.l.b16 %v1839
        %v1872 = vunpack.c.l.b16 %v1840
        %v1873 = vunpack.c.l.b16 %v1841
        %v1874 = vunpack.c.l.b16 %v1842
        %v1875 = vunpack.c.l.b16 %v1843
        %v1876 = vunpack.c.l.b16 %v1844
        %v1877 = vunpack.c.l.b16 %v1845
        %v1878 = vunpack.c.l.b16 %v1846
        %v1879 = vunpack.c.l.b16 %v1847
        %v1880 = vunpack.c.l.b16 %v1848
        %v1881 = vpack.c.b16 %v1850, %v1849
        %v1882 = vpack.c.b16 %v1852, %v1851
        %v1883 = vpack.c.b16 %v1854, %v1853
        %v1884 = vpack.c.b16 %v1856, %v1855
        %v1885 = vpack.c.b16 %v1858, %v1857
        %v1886 = vpack.c.b16 %v1860, %v1859
        %v1887 = vpack.c.b16 %v1862, %v1861
        %v1888 = vpack.c.b16 %v1864, %v1863
        %v1889 = vpack.c.b16 %v1866, %v1865
        %v1890 = vpack.c.b16 %v1868, %v1867
        %v1891 = vpack.c.b16 %v1870, %v1869
        %v1892 = vpack.c.b16 %v1872, %v1871
        %v1893 = vpack.c.b16 %v1874, %v1873
        %v1894 = vpack.c.b16 %v1876, %v1875
        %v1895 = vpack.c.b16 %v1878, %v1877
        %v1896 = vpack.c.b16 %v1880, %v1879
        %vm1897 = vsmask.f32 4352
        %v1899 = vshrl.u32 %v1881, 16
        %v1901 = vrot.slane %v1899, 3
        %v1902 = vshll.u32 %v1881, 16
        %v1904 = vrot.slane %v1902, 4
        %v1905 = vor.u32 %v1901, %v1904
        %v1907 = vshrl.u32 %v1882, 16
        %v1909 = vrot.slane %v1907, 3
        %v1910 = vshll.u32 %v1882, 16
        %v1912 = vrot.slane %v1910, 4
        %v1913 = vor.u32 %v1909, %v1912
        %v1914 = vsel %vm1897, %v1905, %v1913
        %v1916 = vshrl.u32 %v1883, 16
        %v1918 = vrot.slane %v1916, 3
        %v1919 = vshll.u32 %v1883, 16
        %v1921 = vrot.slane %v1919, 4
        %v1922 = vor.u32 %v1918, %v1921
        %v1923 = vsel %vm1897, %v1913, %v1922
        %v1925 = vshrl.u32 %v1884, 16
        %v1927 = vrot.slane %v1925, 3
        %v1928 = vshll.u32 %v1884, 16
        %v1930 = vrot.slane %v1928, 4
        %v1931 = vor.u32 %v1927, %v1930
        %v1932 = vsel %vm1897, %v1922, %v1931
        %v1934 = vshrl.u32 %v1885, 16
        %v1936 = vrot.slane %v1934, 3
        %v1937 = vshll.u32 %v1885, 16
        %v1939 = vrot.slane %v1937, 4
        %v1940 = vor.u32 %v1936, %v1939
        %v1941 = vsel %vm1897, %v1931, %v1940
        %v1943 = vshrl.u32 %v1886, 16
        %v1945 = vrot.slane %v1943, 3
        %v1946 = vshll.u32 %v1886, 16
        %v1948 = vrot.slane %v1946, 4
        %v1949 = vor.u32 %v1945, %v1948
        %v1950 = vsel %vm1897, %v1940, %v1949
        %v1952 = vshrl.u32 %v1887, 16
        %v1954 = vrot.slane %v1952, 3
        %v1955 = vshll.u32 %v1887, 16
        %v1957 = vrot.slane %v1955, 4
        %v1958 = vor.u32 %v1954, %v1957
        %v1959 = vsel %vm1897, %v1949, %v1958
        %v1961 = vshrl.u32 %v1888, 16
        %v1963 = vrot.slane %v1961, 3
        %v1964 = vshll.u32 %v1888, 16
        %v1966 = vrot.slane %v1964, 4
        %v1967 = vor.u32 %v1963, %v1966
        %v1968 = vsel %vm1897, %v1958, %v1967
        %v1970 = vshrl.u32 %v1889, 16
        %v1972 = vrot.slane %v1970, 3
        %v1973 = vshll.u32 %v1889, 16
        %v1975 = vrot.slane %v1973, 4
        %v1976 = vor.u32 %v1972, %v1975
        %v1977 = vsel %vm1897, %v1967, %v1976
        %v1979 = vshrl.u32 %v1890, 16
        %v1981 = vrot.slane %v1979, 3
        %v1982 = vshll.u32 %v1890, 16
        %v1984 = vrot.slane %v1982, 4
        %v1985 = vor.u32 %v1981, %v1984
        %v1986 = vsel %vm1897, %v1976, %v1985
        %v1988 = vshrl.u32 %v1891, 16
        %v1990 = vrot.slane %v1988, 3
        %v1991 = vshll.u32 %v1891, 16
        %v1993 = vrot.slane %v1991, 4
        %v1994 = vor.u32 %v1990, %v1993
        %v1995 = vsel %vm1897, %v1985, %v1994
        %v1997 = vshrl.u32 %v1892, 16
        %v1999 = vrot.slane %v1997, 3
        %v2000 = vshll.u32 %v1892, 16
        %v2002 = vrot.slane %v2000, 4
        %v2003 = vor.u32 %v1999, %v2002
        %v2004 = vsel %vm1897, %v1994, %v2003
        %v2006 = vshrl.u32 %v1893, 16
        %v2008 = vrot.slane %v2006, 3
        %v2009 = vshll.u32 %v1893, 16
        %v2011 = vrot.slane %v2009, 4
        %v2012 = vor.u32 %v2008, %v2011
        %v2013 = vsel %vm1897, %v2003, %v2012
        %v2015 = vshrl.u32 %v1894, 16
        %v2017 = vrot.slane %v2015, 3
        %v2018 = vshll.u32 %v1894, 16
        %v2020 = vrot.slane %v2018, 4
        %v2021 = vor.u32 %v2017, %v2020
        %v2022 = vsel %vm1897, %v2012, %v2021
        %v2024 = vshrl.u32 %v1895, 16
        %v2026 = vrot.slane %v2024, 3
        %v2027 = vshll.u32 %v1895, 16
        %v2029 = vrot.slane %v2027, 4
        %v2030 = vor.u32 %v2026, %v2029
        %v2031 = vsel %vm1897, %v2021, %v2030
        %v2033 = vshrl.u32 %v1896, 16
        %v2035 = vrot.slane %v2033, 3
        %v2036 = vshll.u32 %v1896, 16
        %v2038 = vrot.slane %v2036, 4
        %v2039 = vor.u32 %v2035, %v2038
        %v2040 = vsel %vm1897, %v2030, %v2039
        %vm2041 = vcmp.ne.s16.totalorder %v1905, 0
        %vm2042 = vcmp.ne.s16.totalorder %v1914, 0
        %vm2043 = vcmp.ne.s16.totalorder %v1923, 0
        %vm2044 = vcmp.ne.s16.totalorder %v1932, 0
        %vm2045 = vcmp.ne.s16.totalorder %v1941, 0
        %vm2046 = vcmp.ne.s16.totalorder %v1950, 0
        %vm2047 = vcmp.ne.s16.totalorder %v1959, 0
        %vm2048 = vcmp.ne.s16.totalorder %v1968, 0
        %vm2049 = vcmp.ne.s16.totalorder %v1977, 0
        %vm2050 = vcmp.ne.s16.totalorder %v1986, 0
        %vm2051 = vcmp.ne.s16.totalorder %v1995, 0
        %vm2052 = vcmp.ne.s16.totalorder %v2004, 0
        %vm2053 = vcmp.ne.s16.totalorder %v2013, 0
        %vm2054 = vcmp.ne.s16.totalorder %v2022, 0
        %vm2055 = vcmp.ne.s16.totalorder %v2031, 0
        %vm2056 = vcmp.ne.s16.totalorder %v2040, 0
        %vm2057 = vcmp.ne.s16.totalorder %v2039, 0
        %v2058 = vsel %vm2041, %v1719, 0
        %v2059 = vsel %vm2042, %v1349, 0
        %v2060 = vsel %vm2043, %v1350, 0
        %v2061 = vsel %vm2044, %v1351, 0
        %v2062 = vsel %vm2045, %v1352, 0
        %v2063 = vsel %vm2046, %v1353, 0
        %v2064 = vsel %vm2047, %v1354, 0
        %v2065 = vsel %vm2048, %v1355, 0
        %v2066 = vsel %vm2049, %v1356, 0
        %v2067 = vsel %vm2050, %v1357, 0
        %v2068 = vsel %vm2051, %v1358, 0
        %v2069 = vsel %vm2052, %v1359, 0
        %v2070 = vsel %vm2053, %v1360, 0
        %v2071 = vsel %vm2054, %v1361, 0
        %v2072 = vsel %vm2055, %v1362, 0
        %v2073 = vsel %vm2056, %v1363, 0
        %v2074 = vsel %vm2057, %v1720, 0
        %vm2075 = vsmask.f32 7424
        %v2077 = vshrl.u32 %v1719, 16
        %v2079 = vshll.u32 %v1719, 16
        %v2081 = vrot.slane %v2079, 1
        %v2082 = vor.u32 %v2077, %v2081
        %v2084 = vshll.u32 %v1349, 16
        %v2086 = vrot.slane %v2084, 1
        %v2087 = vsel %vm2075, %v2082, %v2086
        %v2088 = vshrl.u32 %v1349, 16
        %v2090 = vor.u32 %v2088, %v2086
        %v2092 = vshll.u32 %v1350, 16
        %v2094 = vrot.slane %v2092, 1
        %v2095 = vsel %vm2075, %v2090, %v2094
        %v2096 = vshrl.u32 %v1350, 16
        %v2098 = vor.u32 %v2096, %v2094
        %v2100 = vshll.u32 %v1351, 16
        %v2102 = vrot.slane %v2100, 1
        %v2103 = vsel %vm2075, %v2098, %v2102
        %v2104 = vshrl.u32 %v1351, 16
        %v2106 = vor.u32 %v2104, %v2102
        %v2108 = vshll.u32 %v1352, 16
        %v2110 = vrot.slane %v2108, 1
        %v2111 = vsel %vm2075, %v2106, %v2110
        %v2112 = vshrl.u32 %v1352, 16
        %v2114 = vor.u32 %v2112, %v2110
        %v2116 = vshll.u32 %v1353, 16
        %v2118 = vrot.slane %v2116, 1
        %v2119 = vsel %vm2075, %v2114, %v2118
        %v2120 = vshrl.u32 %v1353, 16
        %v2122 = vor.u32 %v2120, %v2118
        %v2124 = vshll.u32 %v1354, 16
        %v2126 = vrot.slane %v2124, 1
        %v2127 = vsel %vm2075, %v2122, %v2126
        %v2128 = vshrl.u32 %v1354, 16
        %v2130 = vor.u32 %v2128, %v2126
        %v2132 = vshll.u32 %v1355, 16
        %v2134 = vrot.slane %v2132, 1
        %v2135 = vsel %vm2075, %v2130, %v2134
        %v2136 = vshrl.u32 %v1355, 16
        %v2138 = vor.u32 %v2136, %v2134
        %v2140 = vshll.u32 %v1356, 16
        %v2142 = vrot.slane %v2140, 1
        %v2143 = vsel %vm2075, %v2138, %v2142
        %v2144 = vshrl.u32 %v1356, 16
        %v2146 = vor.u32 %v2144, %v2142
        %v2148 = vshll.u32 %v1357, 16
        %v2150 = vrot.slane %v2148, 1
        %v2151 = vsel %vm2075, %v2146, %v2150
        %v2152 = vshrl.u32 %v1357, 16
        %v2154 = vor.u32 %v2152, %v2150
        %v2156 = vshll.u32 %v1358, 16
        %v2158 = vrot.slane %v2156, 1
        %v2159 = vsel %vm2075, %v2154, %v2158
        %v2160 = vshrl.u32 %v1358, 16
        %v2162 = vor.u32 %v2160, %v2158
        %v2164 = vshll.u32 %v1359, 16
        %v2166 = vrot.slane %v2164, 1
        %v2167 = vsel %vm2075, %v2162, %v2166
        %v2168 = vshrl.u32 %v1359, 16
        %v2170 = vor.u32 %v2168, %v2166
        %v2172 = vshll.u32 %v1360, 16
        %v2174 = vrot.slane %v2172, 1
        %v2175 = vsel %vm2075, %v2170, %v2174
        %v2176 = vshrl.u32 %v1360, 16
        %v2178 = vor.u32 %v2176, %v2174
        %v2180 = vshll.u32 %v1361, 16
        %v2182 = vrot.slane %v2180, 1
        %v2183 = vsel %vm2075, %v2178, %v2182
        %v2184 = vshrl.u32 %v1361, 16
        %v2186 = vor.u32 %v2184, %v2182
        %v2188 = vshll.u32 %v1362, 16
        %v2190 = vrot.slane %v2188, 1
        %v2191 = vsel %vm2075, %v2186, %v2190
        %v2192 = vshrl.u32 %v1362, 16
        %v2194 = vor.u32 %v2192, %v2190
        %v2196 = vshll.u32 %v1363, 16
        %v2198 = vrot.slane %v2196, 1
        %v2199 = vsel %vm2075, %v2194, %v2198
        %v2200 = vshrl.u32 %v1363, 16
        %v2202 = vor.u32 %v2200, %v2198
        %v2204 = vshll.u32 %v1364, 16
        %v2206 = vrot.slane %v2204, 1
        %v2207 = vsel %vm2075, %v2202, %v2206
        %v2208 = vshrl.u32 %v1364, 16
        %v2210 = vor.u32 %v2208, %v2206
        %vm2228 = vcmask 1046528
        %v2229 = vrot.slane %v2058, 1
        %v2230 = vrot.slane %v2059, 1
        %v2231 = vsel %vm2228, %v2229, %v2230
        %v2232 = vrot.slane %v2060, 1
        %v2233 = vsel %vm2228, %v2230, %v2232
        %v2234 = vrot.slane %v2061, 1
        %v2235 = vsel %vm2228, %v2232, %v2234
        %v2236 = vrot.slane %v2062, 1
        %v2237 = vsel %vm2228, %v2234, %v2236
        %v2238 = vrot.slane %v2063, 1
        %v2239 = vsel %vm2228, %v2236, %v2238
        %v2240 = vrot.slane %v2064, 1
        %v2241 = vsel %vm2228, %v2238, %v2240
        %v2242 = vrot.slane %v2065, 1
        %v2243 = vsel %vm2228, %v2240, %v2242
        %v2244 = vrot.slane %v2066, 1
        %v2245 = vsel %vm2228, %v2242, %v2244
        %v2246 = vrot.slane %v2067, 1
        %v2247 = vsel %vm2228, %v2244, %v2246
        %v2248 = vrot.slane %v2068, 1
        %v2249 = vsel %vm2228, %v2246, %v2248
        %v2250 = vrot.slane %v2069, 1
        %v2251 = vsel %vm2228, %v2248, %v2250
        %v2252 = vrot.slane %v2070, 1
        %v2253 = vsel %vm2228, %v2250, %v2252
        %v2254 = vrot.slane %v2071, 1
        %v2255 = vsel %vm2228, %v2252, %v2254
        %v2256 = vrot.slane %v2072, 1
        %v2257 = vsel %vm2228, %v2254, %v2256
        %v2258 = vrot.slane %v2073, 1
        %v2259 = vsel %vm2228, %v2256, %v2258
        %v2260 = vrot.slane %v2074, 1
        %v2261 = vsel %vm2228, %v2258, %v2260
        %s2262 = scalar_lea.vmem [#allocation8], 192
        %v2263 = vld [vmem:[%s2262] sm:$0xf]
        %v2264 = vld [vmem:[%s2262 + $0x4] sm:$0xf]
        %v2265 = vld [vmem:[%s2262 + $0x8] sm:$0xf]
        %v2266 = vld [vmem:[%s2262 + $0xc] sm:$0xf]
        %v2267 = vld [vmem:[%s2262 + $0x10] sm:$0xf]
        %v2268 = vld [vmem:[%s2262 + $0x14] sm:$0xf]
        %v2269 = vld [vmem:[%s2262 + $0x18] sm:$0xf]
        %v2270 = vld [vmem:[%s2262 + $0x1c] sm:$0xf]
        %v2271 = vld [vmem:[%s2262 + $0x20] sm:$0xf]
        %v2272 = vld [vmem:[%s2262 + $0x24] sm:$0xf]
        %v2273 = vld [vmem:[%s2262 + $0x28] sm:$0xf]
        %v2274 = vld [vmem:[%s2262 + $0x2c] sm:$0xf]
        %v2275 = vld [vmem:[%s2262 + $0x30] sm:$0xf]
        %v2276 = vld [vmem:[%s2262 + $0x34] sm:$0xf]
        %v2277 = vld [vmem:[%s2262 + $0x38] sm:$0xf]
        %v2278 = vld [vmem:[%s2262 + $0x3c] sm:$0xf]
        %v2279 = vld [vmem:[%s2262 + $0x40] sm:$0xf]
        %v2280 = vld [vmem:[%s2262 + $0x44] sm:$0xf]
        %v2281 = vld [vmem:[%s2262 + $0x48] sm:$0xf]
        %v2282 = vld [vmem:[%s2262 + $0x4c] sm:$0xf]
        %v2283 = vld [vmem:[%s2262 + $0x50] sm:$0xf]
        %v2284 = vld [vmem:[%s2262 + $0x54] sm:$0xf]
        %v2285 = vld [vmem:[%s2262 + $0x58] sm:$0xf]
        %v2286 = vld [vmem:[%s2262 + $0x5c] sm:$0xf]
        %v2287 = vld [vmem:[%s2262 + $0x60] sm:$0xf]
        %v2288 = vld [vmem:[%s2262 + $0x64] sm:$0xf]
        %v2289 = vld [vmem:[%s2262 + $0x68] sm:$0xf]
        %v2290 = vld [vmem:[%s2262 + $0x6c] sm:$0xf]
        %v2291 = vld [vmem:[%s2262 + $0x70] sm:$0xf]
        %v2292 = vld [vmem:[%s2262 + $0x74] sm:$0xf]
        %v2293 = vld [vmem:[%s2262 + $0x78] sm:$0xf]
        %v2294 = vld [vmem:[%s2262 + $0x7c] sm:$0xf]
        %v2295 = vld [vmem:[%s2262 + $0x80] sm:$0xf]
        %v2296 = vld [vmem:[%s2262 + $0x84] sm:$0xf]
        %v2297 = vld [vmem:[%s2262 + $0x88] sm:$0xf]
        %v2298 = vld [vmem:[%s2262 + $0x8c] sm:$0xf]
        %v2299 = vld [vmem:[%s2262 + $0x90] sm:$0xf]
        %v2300 = vld [vmem:[%s2262 + $0x94] sm:$0xf]
        %v2301 = vld [vmem:[%s2262 + $0x98] sm:$0xf]
        %v2302 = vld [vmem:[%s2262 + $0x9c] sm:$0xf]
        %v2303 = vld [vmem:[%s2262 + $0xa0] sm:$0xf]
        %v2304 = vld [vmem:[%s2262 + $0xa4] sm:$0xf]
        %v2305 = vld [vmem:[%s2262 + $0xa8] sm:$0xf]
        %v2306 = vld [vmem:[%s2262 + $0xac] sm:$0xf]
        %v2307 = vld [vmem:[%s2262 + $0xb0] sm:$0xf]
        %v2308 = vld [vmem:[%s2262 + $0xb4] sm:$0xf]
        %v2309 = vld [vmem:[%s2262 + $0xb8] sm:$0xf]
        %v2310 = vld [vmem:[%s2262 + $0xbc] sm:$0xf]
        %v2311 = vld [vmem:[#allocation2 + $0x8] sm:$0xf8]
        %v2312 = vld [vmem:[#allocation2 + $0x80] sm:$0xff]
        %v2313 = vld [vmem:[#allocation2 + $0x88] sm:$0xf]
        %v2314 = vsel %vm1685, %v2311, 0
        %v2315 = vsel %vm1686, %v1350, 0
        %v2316 = vsel %vm1687, %v1351, 0
        %v2317 = vsel %vm1688, %v1352, 0
        %v2318 = vsel %vm1689, %v1353, 0
        %v2319 = vsel %vm1690, %v1354, 0
        %v2320 = vsel %vm1691, %v1355, 0
        %v2321 = vsel %vm1692, %v1356, 0
        %v2322 = vsel %vm1693, %v1357, 0
        %v2323 = vsel %vm1694, %v1358, 0
        %v2324 = vsel %vm1695, %v1359, 0
        %v2325 = vsel %vm1696, %v1360, 0
        %v2326 = vsel %vm1697, %v1361, 0
        %v2327 = vsel %vm1698, %v1362, 0
        %v2328 = vsel %vm1699, %v1363, 0
        %v2329 = vsel %vm1700, %v2312, 0
        %v2330 = vsel %vm1701, %v2313, 0
        %v2331 = vld [vmem:[#allocation2 + $0x8] sm:$0xf0]
        %v2332 = vld [vmem:[#allocation2 + $0x88] sm:$0x1f]
        %v2333 = vsel %vm2041, %v2331, 0
        %v2334 = vsel %vm2042, %v1350, 0
        %v2335 = vsel %vm2043, %v1351, 0
        %v2336 = vsel %vm2044, %v1352, 0
        %v2337 = vsel %vm2045, %v1353, 0
        %v2338 = vsel %vm2046, %v1354, 0
        %v2339 = vsel %vm2047, %v1355, 0
        %v2340 = vsel %vm2048, %v1356, 0
        %v2341 = vsel %vm2049, %v1357, 0
        %v2342 = vsel %vm2050, %v1358, 0
        %v2343 = vsel %vm2051, %v1359, 0
        %v2344 = vsel %vm2052, %v1360, 0
        %v2345 = vsel %vm2053, %v1361, 0
        %v2346 = vsel %vm2054, %v1362, 0
        %v2347 = vsel %vm2055, %v1363, 0
        %v2348 = vsel %vm2056, %v2312, 0
        %v2349 = vsel %vm2057, %v2332, 0
        %v2351 = vshrl.u32 %v2331, 16
        %v2353 = vshll.u32 %v2331, 16
        %v2355 = vrot.slane %v2353, 1
        %v2356 = vor.u32 %v2351, %v2355
        %v2357 = vsel %vm2075, %v2356, %v2094
        %v2359 = vshll.u32 %v2312, 16
        %v2361 = vrot.slane %v2359, 1
        %v2362 = vsel %vm2075, %v2202, %v2361
        %v2363 = vshrl.u32 %v2312, 16
        %v2365 = vor.u32 %v2363, %v2361
        %v2367 = vshll.u32 %v2313, 16
        %v2369 = vrot.slane %v2367, 1
        %v2370 = vsel %vm2075, %v2365, %v2369
        %v2371 = vshrl.u32 %v2313, 16
        %v2373 = vor.u32 %v2371, %v2369
        %v2391 = vrot.slane %v2333, 1
        %v2392 = vrot.slane %v2334, 1
        %v2393 = vsel %vm2228, %v2391, %v2392
        %v2394 = vrot.slane %v2335, 1
        %v2395 = vsel %vm2228, %v2392, %v2394
        %v2396 = vrot.slane %v2336, 1
        %v2397 = vsel %vm2228, %v2394, %v2396
        %v2398 = vrot.slane %v2337, 1
        %v2399 = vsel %vm2228, %v2396, %v2398
        %v2400 = vrot.slane %v2338, 1
        %v2401 = vsel %vm2228, %v2398, %v2400
        %v2402 = vrot.slane %v2339, 1
        %v2403 = vsel %vm2228, %v2400, %v2402
        %v2404 = vrot.slane %v2340, 1
        %v2405 = vsel %vm2228, %v2402, %v2404
        %v2406 = vrot.slane %v2341, 1
        %v2407 = vsel %vm2228, %v2404, %v2406
        %v2408 = vrot.slane %v2342, 1
        %v2409 = vsel %vm2228, %v2406, %v2408
        %v2410 = vrot.slane %v2343, 1
        %v2411 = vsel %vm2228, %v2408, %v2410
        %v2412 = vrot.slane %v2344, 1
        %v2413 = vsel %vm2228, %v2410, %v2412
        %v2414 = vrot.slane %v2345, 1
        %v2415 = vsel %vm2228, %v2412, %v2414
        %v2416 = vrot.slane %v2346, 1
        %v2417 = vsel %vm2228, %v2414, %v2416
        %v2418 = vrot.slane %v2347, 1
        %v2419 = vsel %vm2228, %v2416, %v2418
        %v2420 = vrot.slane %v2348, 1
        %v2421 = vsel %vm2228, %v2418, %v2420
        %v2422 = vrot.slane %v2349, 1
        %v2423 = vsel %vm2228, %v2420, %v2422
        %v2425 = vshrl.u32 %v2314, 16
        %v2427 = vrot.slane %v2425, 3
        %v2428 = vshll.u32 %v2314, 16
        %v2430 = vrot.slane %v2428, 4
        %v2431 = vor.u32 %v2427, %v2430
        %v2433 = vshrl.u32 %v2315, 16
        %v2435 = vrot.slane %v2433, 3
        %v2436 = vshll.u32 %v2315, 16
        %v2438 = vrot.slane %v2436, 4
        %v2439 = vor.u32 %v2435, %v2438
        %v2440 = vsel %vm1897, %v2431, %v2439
        %v2442 = vshrl.u32 %v2357, 16
        %v2444 = vrot.slane %v2442, 3
        %v2445 = vshll.u32 %v2357, 16
        %v2447 = vrot.slane %v2445, 4
        %v2448 = vor.u32 %v2444, %v2447
        %v2450 = vshrl.u32 %v2103, 16
        %v2452 = vrot.slane %v2450, 3
        %v2453 = vshll.u32 %v2103, 16
        %v2455 = vrot.slane %v2453, 4
        %v2456 = vor.u32 %v2452, %v2455
        %v2457 = vsel %vm1897, %v2448, %v2456
        %v2459 = vshrl.u32 %v2393, 16
        %v2461 = vrot.slane %v2459, 3
        %v2462 = vshll.u32 %v2393, 16
        %v2464 = vrot.slane %v2462, 4
        %v2465 = vor.u32 %v2461, %v2464
        %v2467 = vshrl.u32 %v2395, 16
        %v2469 = vrot.slane %v2467, 3
        %v2470 = vshll.u32 %v2395, 16
        %v2472 = vrot.slane %v2470, 4
        %v2473 = vor.u32 %v2469, %v2472
        %v2474 = vsel %vm1897, %v2465, %v2473
        %v2476 = vshrl.u32 %v2316, 16
        %v2478 = vrot.slane %v2476, 3
        %v2479 = vshll.u32 %v2316, 16
        %v2481 = vrot.slane %v2479, 4
        %v2482 = vor.u32 %v2478, %v2481
        %v2483 = vsel %vm1897, %v2439, %v2482
        %v2485 = vshrl.u32 %v2111, 16
        %v2487 = vrot.slane %v2485, 3
        %v2488 = vshll.u32 %v2111, 16
        %v2490 = vrot.slane %v2488, 4
        %v2491 = vor.u32 %v2487, %v2490
        %v2492 = vsel %vm1897, %v2456, %v2491
        %v2494 = vshrl.u32 %v2397, 16
        %v2496 = vrot.slane %v2494, 3
        %v2497 = vshll.u32 %v2397, 16
        %v2499 = vrot.slane %v2497, 4
        %v2500 = vor.u32 %v2496, %v2499
        %v2501 = vsel %vm1897, %v2473, %v2500
        %v2503 = vshrl.u32 %v2317, 16
        %v2505 = vrot.slane %v2503, 3
        %v2506 = vshll.u32 %v2317, 16
        %v2508 = vrot.slane %v2506, 4
        %v2509 = vor.u32 %v2505, %v2508
        %v2510 = vsel %vm1897, %v2482, %v2509
        %v2512 = vshrl.u32 %v2119, 16
        %v2514 = vrot.slane %v2512, 3
        %v2515 = vshll.u32 %v2119, 16
        %v2517 = vrot.slane %v2515, 4
        %v2518 = vor.u32 %v2514, %v2517
        %v2519 = vsel %vm1897, %v2491, %v2518
        %v2521 = vshrl.u32 %v2399, 16
        %v2523 = vrot.slane %v2521, 3
        %v2524 = vshll.u32 %v2399, 16
        %v2526 = vrot.slane %v2524, 4
        %v2527 = vor.u32 %v2523, %v2526
        %v2528 = vsel %vm1897, %v2500, %v2527
        %v2530 = vshrl.u32 %v2318, 16
        %v2532 = vrot.slane %v2530, 3
        %v2533 = vshll.u32 %v2318, 16
        %v2535 = vrot.slane %v2533, 4
        %v2536 = vor.u32 %v2532, %v2535
        %v2537 = vsel %vm1897, %v2509, %v2536
        %v2539 = vshrl.u32 %v2127, 16
        %v2541 = vrot.slane %v2539, 3
        %v2542 = vshll.u32 %v2127, 16
        %v2544 = vrot.slane %v2542, 4
        %v2545 = vor.u32 %v2541, %v2544
        %v2546 = vsel %vm1897, %v2518, %v2545
        %v2548 = vshrl.u32 %v2401, 16
        %v2550 = vrot.slane %v2548, 3
        %v2551 = vshll.u32 %v2401, 16
        %v2553 = vrot.slane %v2551, 4
        %v2554 = vor.u32 %v2550, %v2553
        %v2555 = vsel %vm1897, %v2527, %v2554
        %v2557 = vshrl.u32 %v2319, 16
        %v2559 = vrot.slane %v2557, 3
        %v2560 = vshll.u32 %v2319, 16
        %v2562 = vrot.slane %v2560, 4
        %v2563 = vor.u32 %v2559, %v2562
        %v2564 = vsel %vm1897, %v2536, %v2563
        %v2566 = vshrl.u32 %v2135, 16
        %v2568 = vrot.slane %v2566, 3
        %v2569 = vshll.u32 %v2135, 16
        %v2571 = vrot.slane %v2569, 4
        %v2572 = vor.u32 %v2568, %v2571
        %v2573 = vsel %vm1897, %v2545, %v2572
        %v2575 = vshrl.u32 %v2403, 16
        %v2577 = vrot.slane %v2575, 3
        %v2578 = vshll.u32 %v2403, 16
        %v2580 = vrot.slane %v2578, 4
        %v2581 = vor.u32 %v2577, %v2580
        %v2582 = vsel %vm1897, %v2554, %v2581
        %v2584 = vshrl.u32 %v2320, 16
        %v2586 = vrot.slane %v2584, 3
        %v2587 = vshll.u32 %v2320, 16
        %v2589 = vrot.slane %v2587, 4
        %v2590 = vor.u32 %v2586, %v2589
        %v2591 = vsel %vm1897, %v2563, %v2590
        %v2593 = vshrl.u32 %v2143, 16
        %v2595 = vrot.slane %v2593, 3
        %v2596 = vshll.u32 %v2143, 16
        %v2598 = vrot.slane %v2596, 4
        %v2599 = vor.u32 %v2595, %v2598
        %v2600 = vsel %vm1897, %v2572, %v2599
        %v2602 = vshrl.u32 %v2405, 16
        %v2604 = vrot.slane %v2602, 3
        %v2605 = vshll.u32 %v2405, 16
        %v2607 = vrot.slane %v2605, 4
        %v2608 = vor.u32 %v2604, %v2607
        %v2609 = vsel %vm1897, %v2581, %v2608
        %v2611 = vshrl.u32 %v2321, 16
        %v2613 = vrot.slane %v2611, 3
        %v2614 = vshll.u32 %v2321, 16
        %v2616 = vrot.slane %v2614, 4
        %v2617 = vor.u32 %v2613, %v2616
        %v2618 = vsel %vm1897, %v2590, %v2617
        %v2620 = vshrl.u32 %v2151, 16
        %v2622 = vrot.slane %v2620, 3
        %v2623 = vshll.u32 %v2151, 16
        %v2625 = vrot.slane %v2623, 4
        %v2626 = vor.u32 %v2622, %v2625
        %v2627 = vsel %vm1897, %v2599, %v2626
        %v2629 = vshrl.u32 %v2407, 16
        %v2631 = vrot.slane %v2629, 3
        %v2632 = vshll.u32 %v2407, 16
        %v2634 = vrot.slane %v2632, 4
        %v2635 = vor.u32 %v2631, %v2634
        %v2636 = vsel %vm1897, %v2608, %v2635
        %v2638 = vshrl.u32 %v2322, 16
        %v2640 = vrot.slane %v2638, 3
        %v2641 = vshll.u32 %v2322, 16
        %v2643 = vrot.slane %v2641, 4
        %v2644 = vor.u32 %v2640, %v2643
        %v2645 = vsel %vm1897, %v2617, %v2644
        %v2647 = vshrl.u32 %v2159, 16
        %v2649 = vrot.slane %v2647, 3
        %v2650 = vshll.u32 %v2159, 16
        %v2652 = vrot.slane %v2650, 4
        %v2653 = vor.u32 %v2649, %v2652
        %v2654 = vsel %vm1897, %v2626, %v2653
        %v2656 = vshrl.u32 %v2409, 16
        %v2658 = vrot.slane %v2656, 3
        %v2659 = vshll.u32 %v2409, 16
        %v2661 = vrot.slane %v2659, 4
        %v2662 = vor.u32 %v2658, %v2661
        %v2663 = vsel %vm1897, %v2635, %v2662
        %v2665 = vshrl.u32 %v2323, 16
        %v2667 = vrot.slane %v2665, 3
        %v2668 = vshll.u32 %v2323, 16
        %v2670 = vrot.slane %v2668, 4
        %v2671 = vor.u32 %v2667, %v2670
        %v2672 = vsel %vm1897, %v2644, %v2671
        %v2674 = vshrl.u32 %v2167, 16
        %v2676 = vrot.slane %v2674, 3
        %v2677 = vshll.u32 %v2167, 16
        %v2679 = vrot.slane %v2677, 4
        %v2680 = vor.u32 %v2676, %v2679
        %v2681 = vsel %vm1897, %v2653, %v2680
        %v2683 = vshrl.u32 %v2411, 16
        %v2685 = vrot.slane %v2683, 3
        %v2686 = vshll.u32 %v2411, 16
        %v2688 = vrot.slane %v2686, 4
        %v2689 = vor.u32 %v2685, %v2688
        %v2690 = vsel %vm1897, %v2662, %v2689
        %v2692 = vshrl.u32 %v2324, 16
        %v2694 = vrot.slane %v2692, 3
        %v2695 = vshll.u32 %v2324, 16
        %v2697 = vrot.slane %v2695, 4
        %v2698 = vor.u32 %v2694, %v2697
        %v2699 = vsel %vm1897, %v2671, %v2698
        %v2701 = vshrl.u32 %v2175, 16
        %v2703 = vrot.slane %v2701, 3
        %v2704 = vshll.u32 %v2175, 16
        %v2706 = vrot.slane %v2704, 4
        %v2707 = vor.u32 %v2703, %v2706
        %v2708 = vsel %vm1897, %v2680, %v2707
        %v2710 = vshrl.u32 %v2413, 16
        %v2712 = vrot.slane %v2710, 3
        %v2713 = vshll.u32 %v2413, 16
        %v2715 = vrot.slane %v2713, 4
        %v2716 = vor.u32 %v2712, %v2715
        %v2717 = vsel %vm1897, %v2689, %v2716
        %v2719 = vshrl.u32 %v2325, 16
        %v2721 = vrot.slane %v2719, 3
        %v2722 = vshll.u32 %v2325, 16
        %v2724 = vrot.slane %v2722, 4
        %v2725 = vor.u32 %v2721, %v2724
        %v2726 = vsel %vm1897, %v2698, %v2725
        %v2728 = vshrl.u32 %v2183, 16
        %v2730 = vrot.slane %v2728, 3
        %v2731 = vshll.u32 %v2183, 16
        %v2733 = vrot.slane %v2731, 4
        %v2734 = vor.u32 %v2730, %v2733
        %v2735 = vsel %vm1897, %v2707, %v2734
        %v2737 = vshrl.u32 %v2415, 16
        %v2739 = vrot.slane %v2737, 3
        %v2740 = vshll.u32 %v2415, 16
        %v2742 = vrot.slane %v2740, 4
        %v2743 = vor.u32 %v2739, %v2742
        %v2744 = vsel %vm1897, %v2716, %v2743
        %v2746 = vshrl.u32 %v2326, 16
        %v2748 = vrot.slane %v2746, 3
        %v2749 = vshll.u32 %v2326, 16
        %v2751 = vrot.slane %v2749, 4
        %v2752 = vor.u32 %v2748, %v2751
        %v2753 = vsel %vm1897, %v2725, %v2752
        %v2755 = vshrl.u32 %v2191, 16
        %v2757 = vrot.slane %v2755, 3
        %v2758 = vshll.u32 %v2191, 16
        %v2760 = vrot.slane %v2758, 4
        %v2761 = vor.u32 %v2757, %v2760
        %v2762 = vsel %vm1897, %v2734, %v2761
        %v2764 = vshrl.u32 %v2417, 16
        %v2766 = vrot.slane %v2764, 3
        %v2767 = vshll.u32 %v2417, 16
        %v2769 = vrot.slane %v2767, 4
        %v2770 = vor.u32 %v2766, %v2769
        %v2771 = vsel %vm1897, %v2743, %v2770
        %v2773 = vshrl.u32 %v2327, 16
        %v2775 = vrot.slane %v2773, 3
        %v2776 = vshll.u32 %v2327, 16
        %v2778 = vrot.slane %v2776, 4
        %v2779 = vor.u32 %v2775, %v2778
        %v2780 = vsel %vm1897, %v2752, %v2779
        %v2782 = vshrl.u32 %v2199, 16
        %v2784 = vrot.slane %v2782, 3
        %v2785 = vshll.u32 %v2199, 16
        %v2787 = vrot.slane %v2785, 4
        %v2788 = vor.u32 %v2784, %v2787
        %v2789 = vsel %vm1897, %v2761, %v2788
        %v2791 = vshrl.u32 %v2419, 16
        %v2793 = vrot.slane %v2791, 3
        %v2794 = vshll.u32 %v2419, 16
        %v2796 = vrot.slane %v2794, 4
        %v2797 = vor.u32 %v2793, %v2796
        %v2798 = vsel %vm1897, %v2770, %v2797
        %v2800 = vshrl.u32 %v2328, 16
        %v2802 = vrot.slane %v2800, 3
        %v2803 = vshll.u32 %v2328, 16
        %v2805 = vrot.slane %v2803, 4
        %v2806 = vor.u32 %v2802, %v2805
        %v2807 = vsel %vm1897, %v2779, %v2806
        %v2809 = vshrl.u32 %v2362, 16
        %v2811 = vrot.slane %v2809, 3
        %v2812 = vshll.u32 %v2362, 16
        %v2814 = vrot.slane %v2812, 4
        %v2815 = vor.u32 %v2811, %v2814
        %v2816 = vsel %vm1897, %v2788, %v2815
        %v2818 = vshrl.u32 %v2421, 16
        %v2820 = vrot.slane %v2818, 3
        %v2821 = vshll.u32 %v2421, 16
        %v2823 = vrot.slane %v2821, 4
        %v2824 = vor.u32 %v2820, %v2823
        %v2825 = vsel %vm1897, %v2797, %v2824
        %v2827 = vshrl.u32 %v2329, 16
        %v2829 = vrot.slane %v2827, 3
        %v2830 = vshll.u32 %v2329, 16
        %v2832 = vrot.slane %v2830, 4
        %v2833 = vor.u32 %v2829, %v2832
        %v2834 = vsel %vm1897, %v2806, %v2833
        %v2836 = vshrl.u32 %v2370, 16
        %v2838 = vrot.slane %v2836, 3
        %v2839 = vshll.u32 %v2370, 16
        %v2841 = vrot.slane %v2839, 4
        %v2842 = vor.u32 %v2838, %v2841
        %v2843 = vsel %vm1897, %v2815, %v2842
        %v2845 = vshrl.u32 %v2423, 16
        %v2847 = vrot.slane %v2845, 3
        %v2848 = vshll.u32 %v2423, 16
        %v2850 = vrot.slane %v2848, 4
        %v2851 = vor.u32 %v2847, %v2850
        %v2852 = vsel %vm1897, %v2824, %v2851
        %v2854 = vshrl.u32 %v2330, 16
        %v2856 = vrot.slane %v2854, 3
        %v2857 = vshll.u32 %v2330, 16
        %v2859 = vrot.slane %v2857, 4
        %v2860 = vor.u32 %v2856, %v2859
        %v2861 = vsel %vm1897, %v2833, %v2860
        %v2863 = vshrl.u32 %v2373, 16
        %v2865 = vrot.slane %v2863, 3
        %v2866 = vshll.u32 %v2373, 16
        %v2868 = vrot.slane %v2866, 4
        %v2869 = vor.u32 %v2865, %v2868
        %v2870 = vsel %vm1897, %v2842, %v2869
        %v2872 = vshrl.u32 %v2422, 16
        %v2874 = vrot.slane %v2872, 3
        %v2875 = vshll.u32 %v2422, 16
        %v2877 = vrot.slane %v2875, 4
        %v2878 = vor.u32 %v2874, %v2877
        %v2879 = vsel %vm1897, %v2851, %v2878
        %v2976 = vunpack.c.l.b16 %v2263
        %v2977 = vunpack.c.l.b16 %v2264
        %v2978 = vunpack.c.l.b16 %v2265
        %v2979 = vunpack.c.l.b16 %v2266
        %v2980 = vunpack.c.l.b16 %v2267
        %v2981 = vunpack.c.l.b16 %v2268
        %v2982 = vunpack.c.l.b16 %v2269
        %v2983 = vunpack.c.l.b16 %v2270
        %v2984 = vunpack.c.l.b16 %v2271
        %v2985 = vunpack.c.l.b16 %v2272
        %v2986 = vunpack.c.l.b16 %v2273
        %v2987 = vunpack.c.l.b16 %v2274
        %v2988 = vunpack.c.l.b16 %v2275
        %v2989 = vunpack.c.l.b16 %v2276
        %v2990 = vunpack.c.l.b16 %v2277
        %v2991 = vunpack.c.l.b16 %v2278
        %v2992 = vunpack.c.l.b16 %v2279
        %v2993 = vunpack.c.l.b16 %v2280
        %v2994 = vunpack.c.l.b16 %v2281
        %v2995 = vunpack.c.l.b16 %v2282
        %v2996 = vunpack.c.l.b16 %v2283
        %v2997 = vunpack.c.l.b16 %v2284
        %v2998 = vunpack.c.l.b16 %v2285
        %v2999 = vunpack.c.l.b16 %v2286
        %v3000 = vunpack.c.l.b16 %v2287
        %v3001 = vunpack.c.l.b16 %v2288
        %v3002 = vunpack.c.l.b16 %v2289
        %v3003 = vunpack.c.l.b16 %v2290
        %v3004 = vunpack.c.l.b16 %v2291
        %v3005 = vunpack.c.l.b16 %v2292
        %v3006 = vunpack.c.l.b16 %v2293
        %v3007 = vunpack.c.l.b16 %v2294
        %v3008 = vunpack.c.l.b16 %v2295
        %v3009 = vunpack.c.l.b16 %v2296
        %v3010 = vunpack.c.l.b16 %v2297
        %v3011 = vunpack.c.l.b16 %v2298
        %v3012 = vunpack.c.l.b16 %v2299
        %v3013 = vunpack.c.l.b16 %v2300
        %v3014 = vunpack.c.l.b16 %v2301
        %v3015 = vunpack.c.l.b16 %v2302
        %v3016 = vunpack.c.l.b16 %v2303
        %v3017 = vunpack.c.l.b16 %v2304
        %v3018 = vunpack.c.l.b16 %v2305
        %v3019 = vunpack.c.l.b16 %v2306
        %v3020 = vunpack.c.l.b16 %v2307
        %v3021 = vunpack.c.l.b16 %v2308
        %v3022 = vunpack.c.l.b16 %v2309
        %v3023 = vunpack.c.l.b16 %v2310
        %v3024 = vpack.c.b16 %v2977, %v2976
        %v3025 = vpack.c.b16 %v2979, %v2978
        %v3026 = vpack.c.b16 %v2981, %v2980
        %v3027 = vpack.c.b16 %v2983, %v2982
        %v3028 = vpack.c.b16 %v2985, %v2984
        %v3029 = vpack.c.b16 %v2987, %v2986
        %v3030 = vpack.c.b16 %v2989, %v2988
        %v3031 = vpack.c.b16 %v2991, %v2990
        %v3032 = vpack.c.b16 %v2993, %v2992
        %v3033 = vpack.c.b16 %v2995, %v2994
        %v3034 = vpack.c.b16 %v2997, %v2996
        %v3035 = vpack.c.b16 %v2999, %v2998
        %v3036 = vpack.c.b16 %v3001, %v3000
        %v3037 = vpack.c.b16 %v3003, %v3002
        %v3038 = vpack.c.b16 %v3005, %v3004
        %v3039 = vpack.c.b16 %v3007, %v3006
        %v3040 = vpack.c.b16 %v3009, %v3008
        %v3041 = vpack.c.b16 %v3011, %v3010
        %v3042 = vpack.c.b16 %v3013, %v3012
        %v3043 = vpack.c.b16 %v3015, %v3014
        %v3044 = vpack.c.b16 %v3017, %v3016
        %v3045 = vpack.c.b16 %v3019, %v3018
        %v3046 = vpack.c.b16 %v3021, %v3020
        %v3047 = vpack.c.b16 %v3023, %v3022
        %3072 = vmatprep.subr.bf16.mxu0 0
        %3073 = vmatpush1.bf16.msra.mxu0 %v3024
        %3074 = vmatprep.subr.bf16.mxu0 0
        %3075 = vmatpush1.bf16.msra.mxu0 %v3025
        %3076 = vmatprep.subr.bf16.mxu0 0
        %3077 = vmatpush1.bf16.msra.mxu0 %v3026
        %3078 = vmatprep.subr.bf16.mxu0 0
        %3079 = vmatpush1.bf16.msra.mxu0 %v3027
        %3080 = vmatprep.subr.bf16.mxu0 0
        %3081 = vmatpush1.bf16.msra.mxu0 %v3028
        %3082 = vmatprep.subr.bf16.mxu0 0
        %3083 = vmatpush1.bf16.msra.mxu0 %v3029
        %3084 = vmatprep.subr.bf16.mxu0 0
        %3085 = vmatpush1.bf16.msra.mxu0 %v3030
        %3086 = vmatprep.subr.bf16.mxu0 0
        %3087 = vmatpush1.bf16.msra.mxu0 %v3031
        %3088 = vmatprep.subr.bf16.mxu0 0
        %3089 = vmatpush1.bf16.msra.mxu0 %v3032
        %3090 = vmatprep.subr.bf16.mxu0 0
        %3091 = vmatpush1.bf16.msra.mxu0 %v3033
        %3092 = vmatprep.subr.bf16.mxu0 0
        %3093 = vmatpush1.bf16.msra.mxu0 %v3034
        %3094 = vmatprep.subr.bf16.mxu0 0
        %3095 = vmatpush1.bf16.msra.mxu0 %v3035
        %3096 = vmatprep.subr.bf16.mxu0 0
        %3097 = vmatpush1.bf16.msra.mxu0 %v3036
        %3098 = vmatprep.subr.bf16.mxu0 0
        %3099 = vmatpush1.bf16.msra.mxu0 %v3037
        %3100 = vmatprep.subr.bf16.mxu0 0
        %3101 = vmatpush1.bf16.msra.mxu0 %v3038
        %3102 = vmatprep.subr.bf16.mxu0 0
        %3103 = vmatpush1.bf16.msra.mxu0 %v3039
        %3104 = vmatprep.mubr.bf16.mxu0 %v2457
        %3105 = vmatmul.mubr.bf16.gmra.mrb[0].mxu0 %v2440
        %v3106 = vpop.f32.mrb[0].mxu0
        %v3107 = vadd.f32 0.0, %v3106
        %v3108 = vpop.f32.mrb[0].mxu0
        %v3109 = vpop.f32.mrb[0].mxu0
        %v3110 = vadd.f32 0.0, %v3109
        %v3111 = vpop.f32.mrb[0].mxu0
        %3112 = vmatprep.mubr.bf16.mxu0 %v2492
        %3113 = vmatmul.mubr.bf16.gmra.mrb[0].mxu0 %v2483
        %v3114 = vpop.f32.mrb[0].mxu0
        %v3115 = vadd.f32 0.0, %v3114
        %v3116 = vpop.f32.mrb[0].mxu0
        %v3117 = vpop.f32.mrb[0].mxu0
        %v3118 = vadd.f32 0.0, %v3117
        %v3119 = vpop.f32.mrb[0].mxu0
        %3120 = vmatprep.mubr.bf16.mxu0 %v2519
        %3121 = vmatmul.mubr.bf16.gmra.mrb[0].mxu0 %v2510
        %v3122 = vpop.f32.mrb[0].mxu0
        %v3123 = vadd.f32 0.0, %v3122
        %v3124 = vpop.f32.mrb[0].mxu0
        %v3125 = vpop.f32.mrb[0].mxu0
        %v3126 = vadd.f32 0.0, %v3125
        %v3127 = vpop.f32.mrb[0].mxu0
        %3128 = vmatprep.mubr.bf16.mxu0 %v2546
        %3129 = vmatmul.mubr.bf16.gmra.mrb[0].mxu0 %v2537
        %v3130 = vpop.f32.mrb[0].mxu0
        %v3131 = vadd.f32 0.0, %v3130
        %v3132 = vpop.f32.mrb[0].mxu0
        %v3133 = vpop.f32.mrb[0].mxu0
        %v3134 = vadd.f32 0.0, %v3133
        %v3135 = vpop.f32.mrb[0].mxu0
        %3136 = vmatprep.mubr.bf16.mxu0 %v2573
        %3137 = vmatmul.mubr.bf16.gmra.mrb[0].mxu0 %v2564
        %v3138 = vpop.f32.mrb[0].mxu0
        %v3139 = vadd.f32 0.0, %v3138
        %v3140 = vpop.f32.mrb[0].mxu0
        %v3141 = vpop.f32.mrb[0].mxu0
        %v3142 = vadd.f32 0.0, %v3141
        %v3143 = vpop.f32.mrb[0].mxu0
        %3144 = vmatprep.mubr.bf16.mxu0 %v2600
        %3145 = vmatmul.mubr.bf16.gmra.mrb[0].mxu0 %v2591
        %v3146 = vpop.f32.mrb[0].mxu0
        %v3147 = vadd.f32 0.0, %v3146
        %v3148 = vpop.f32.mrb[0].mxu0
        %v3149 = vpop.f32.mrb[0].mxu0
        %v3150 = vadd.f32 0.0, %v3149
        %v3151 = vpop.f32.mrb[0].mxu0
        %3152 = vmatprep.mubr.bf16.mxu0 %v2627
        %3153 = vmatmul.mubr.bf16.gmra.mrb[0].mxu0 %v2618
        %v3154 = vpop.f32.mrb[0].mxu0
        %v3155 = vadd.f32 0.0, %v3154
        %v3156 = vpop.f32.mrb[0].mxu0
        %v3157 = vpop.f32.mrb[0].mxu0
        %v3158 = vadd.f32 0.0, %v3157
        %v3159 = vpop.f32.mrb[0].mxu0
        %3160 = vmatprep.mubr.bf16.mxu0 %v2654
        %3161 = vmatmul.mubr.bf16.gmra.mrb[0].mxu0 %v2645
        %v3162 = vpop.f32.mrb[0].mxu0
        %v3163 = vadd.f32 0.0, %v3162
        %v3164 = vpop.f32.mrb[0].mxu0
        %v3165 = vpop.f32.mrb[0].mxu0
        %v3166 = vadd.f32 0.0, %v3165
        %v3167 = vpop.f32.mrb[0].mxu0
        %3168 = vmatprep.mubr.bf16.mxu0 %v2681
        %3169 = vmatmul.mubr.bf16.gmra.mrb[0].mxu0 %v2672
        %v3170 = vpop.f32.mrb[0].mxu0
        %v3171 = vadd.f32 0.0, %v3170
        %v3172 = vpop.f32.mrb[0].mxu0
        %v3173 = vpop.f32.mrb[0].mxu0
        %v3174 = vadd.f32 0.0, %v3173
        %v3175 = vpop.f32.mrb[0].mxu0
        %3176 = vmatprep.mubr.bf16.mxu0 %v2708
        %3177 = vmatmul.mubr.bf16.gmra.mrb[0].mxu0 %v2699
        %v3178 = vpop.f32.mrb[0].mxu0
        %v3179 = vadd.f32 0.0, %v3178
        %v3180 = vpop.f32.mrb[0].mxu0
        %v3181 = vpop.f32.mrb[0].mxu0
        %v3182 = vadd.f32 0.0, %v3181
        %v3183 = vpop.f32.mrb[0].mxu0
        %3184 = vmatprep.mubr.bf16.mxu0 %v2735
        %3185 = vmatmul.mubr.bf16.gmra.mrb[0].mxu0 %v2726
        %v3186 = vpop.f32.mrb[0].mxu0
        %v3187 = vadd.f32 0.0, %v3186
        %v3188 = vpop.f32.mrb[0].mxu0
        %v3189 = vpop.f32.mrb[0].mxu0
        %v3190 = vadd.f32 0.0, %v3189
        %v3191 = vpop.f32.mrb[0].mxu0
        %3192 = vmatprep.mubr.bf16.mxu0 %v2762
        %3193 = vmatmul.mubr.bf16.gmra.mrb[0].mxu0 %v2753
        %v3194 = vpop.f32.mrb[0].mxu0
        %v3195 = vadd.f32 0.0, %v3194
        %v3196 = vpop.f32.mrb[0].mxu0
        %v3197 = vpop.f32.mrb[0].mxu0
        %v3198 = vadd.f32 0.0, %v3197
        %v3199 = vpop.f32.mrb[0].mxu0
        %3200 = vmatprep.mubr.bf16.mxu0 %v2789
        %3201 = vmatmul.mubr.bf16.gmra.mrb[0].mxu0 %v2780
        %v3202 = vpop.f32.mrb[0].mxu0
        %v3203 = vadd.f32 0.0, %v3202
        %v3204 = vpop.f32.mrb[0].mxu0
        %v3205 = vpop.f32.mrb[0].mxu0
        %v3206 = vadd.f32 0.0, %v3205
        %v3207 = vpop.f32.mrb[0].mxu0
        %3208 = vmatprep.mubr.bf16.mxu0 %v2816
        %3209 = vmatmul.mubr.bf16.gmra.mrb[0].mxu0 %v2807
        %v3210 = vpop.f32.mrb[0].mxu0
        %v3211 = vadd.f32 0.0, %v3210
        %v3212 = vpop.f32.mrb[0].mxu0
        %v3213 = vpop.f32.mrb[0].mxu0
        %v3214 = vadd.f32 0.0, %v3213
        %v3215 = vpop.f32.mrb[0].mxu0
        %3216 = vmatprep.mubr.bf16.mxu0 %v2843
        %3217 = vmatmul.mubr.bf16.gmra.mrb[0].mxu0 %v2834
        %v3218 = vpop.f32.mrb[0].mxu0
        %v3219 = vadd.f32 0.0, %v3218
        %v3220 = vpop.f32.mrb[0].mxu0
        %v3221 = vpop.f32.mrb[0].mxu0
        %v3222 = vadd.f32 0.0, %v3221
        %v3223 = vpop.f32.mrb[0].mxu0
        %3224 = vmatprep.mubr.bf16.mxu0 %v2870
        %3225 = vmatmul.mubr.bf16.gmra.mrb[0].mxu0 %v2861
        %v3226 = vpop.f32.mrb[0].mxu0
        %v3227 = vadd.f32 0.0, %v3226
        %v3228 = vpop.f32.mrb[0].mxu0
        %v3229 = vpop.f32.mrb[0].mxu0
        %v3230 = vadd.f32 0.0, %v3229
        %v3231 = vpop.f32.mrb[0].mxu0
        %3232 = vdwg.mxu0
        %3233 = vmatprep.subr.bf16.mxu0 0
        %3234 = vmatpush1.bf16.msra.mxu0 %v3040
        %3235 = vmatprep.subr.bf16.mxu0 0
        %3236 = vmatpush1.bf16.msra.mxu0 %v3041
        %3237 = vmatprep.subr.bf16.mxu0 0
        %3238 = vmatpush1.bf16.msra.mxu0 %v3042
        %3239 = vmatprep.subr.bf16.mxu0 0
        %3240 = vmatpush1.bf16.msra.mxu0 %v3043
        %3241 = vmatprep.subr.bf16.mxu0 0
        %3242 = vmatpush1.bf16.msra.mxu0 %v3044
        %3243 = vmatprep.subr.bf16.mxu0 0
        %3244 = vmatpush1.bf16.msra.mxu0 %v3045
        %3245 = vmatprep.subr.bf16.mxu0 0
        %3246 = vmatpush1.bf16.msra.mxu0 %v3046
        %3247 = vmatprep.subr.bf16.mxu0 0
        %3248 = vmatpush1.bf16.msra.mxu0 %v3047
        %3249 = vmatprep.subr.bf16.mxu0 0
        %3250 = vmatpush1.bf16.msra.mxu0 0
        %3251 = vmatprep.subr.bf16.mxu0 0
        %3252 = vmatpush1.bf16.msra.mxu0 0
        %3253 = vmatprep.subr.bf16.mxu0 0
        %3254 = vmatpush1.bf16.msra.mxu0 0
        %3255 = vmatprep.subr.bf16.mxu0 0
        %3256 = vmatpush1.bf16.msra.mxu0 0
        %3257 = vmatprep.subr.bf16.mxu0 0
        %3258 = vmatpush1.bf16.msra.mxu0 0
        %3259 = vmatprep.subr.bf16.mxu0 0
        %3260 = vmatpush1.bf16.msra.mxu0 0
        %3261 = vmatprep.subr.bf16.mxu0 0
        %3262 = vmatpush1.bf16.msra.mxu0 0
        %3263 = vmatprep.subr.bf16.mxu0 0
        %3264 = vmatpush1.bf16.msra.mxu0 0
        %3265 = vmatprep.mubr.bf16.mxu0 0
        %3266 = vmatmul.mubr.bf16.gmra.mrb[0].mxu0 %v2474
        %v3267 = vpop.f32.mrb[0].mxu0
        %v3268 = vadd.f32 %v3107, %v3267
        %v3269 = vpop.f32.mrb[0].mxu0
        %v3270 = vpop.f32.mrb[0].mxu0
        %v3271 = vadd.f32 %v3110, %v3270
        %v3272 = vpop.f32.mrb[0].mxu0
        %3273 = vmatprep.mubr.bf16.mxu0 0
        %3274 = vmatmul.mubr.bf16.gmra.mrb[0].mxu0 %v2501
        %v3275 = vpop.f32.mrb[0].mxu0
        %v3276 = vadd.f32 %v3115, %v3275
        %v3277 = vpop.f32.mrb[0].mxu0
        %v3278 = vpop.f32.mrb[0].mxu0
        %v3279 = vadd.f32 %v3118, %v3278
        %v3280 = vpop.f32.mrb[0].mxu0
        %3281 = vmatprep.mubr.bf16.mxu0 0
        %3282 = vmatmul.mubr.bf16.gmra.mrb[0].mxu0 %v2528
        %v3283 = vpop.f32.mrb[0].mxu0
        %v3284 = vadd.f32 %v3123, %v3283
        %v3285 = vpop.f32.mrb[0].mxu0
        %v3286 = vpop.f32.mrb[0].mxu0
        %v3287 = vadd.f32 %v3126, %v3286
        %v3288 = vpop.f32.mrb[0].mxu0
        %3289 = vmatprep.mubr.bf16.mxu0 0
        %3290 = vmatmul.mubr.bf16.gmra.mrb[0].mxu0 %v2555
        %v3291 = vpop.f32.mrb[0].mxu0
        %v3292 = vadd.f32 %v3131, %v3291
        %v3293 = vpop.f32.mrb[0].mxu0
        %v3294 = vpop.f32.mrb[0].mxu0
        %v3295 = vadd.f32 %v3134, %v3294
        %v3296 = vpop.f32.mrb[0].mxu0
        %3297 = vmatprep.mubr.bf16.mxu0 0
        %3298 = vmatmul.mubr.bf16.gmra.mrb[0].mxu0 %v2582
        %v3299 = vpop.f32.mrb[0].mxu0
        %v3300 = vadd.f32 %v3139, %v3299
        %v3301 = vpop.f32.mrb[0].mxu0
        %v3302 = vpop.f32.mrb[0].mxu0
        %v3303 = vadd.f32 %v3142, %v3302
        %v3304 = vpop.f32.mrb[0].mxu0
        %3305 = vmatprep.mubr.bf16.mxu0 0
        %3306 = vmatmul.mubr.bf16.gmra.mrb[0].mxu0 %v2609
        %v3307 = vpop.f32.mrb[0].mxu0
        %v3308 = vadd.f32 %v3147, %v3307
        %v3309 = vpop.f32.mrb[0].mxu0
        %v3310 = vpop.f32.mrb[0].mxu0
        %v3311 = vadd.f32 %v3150, %v3310
        %v3312 = vpop.f32.mrb[0].mxu0
        %3313 = vmatprep.mubr.bf16.mxu0 0
        %3314 = vmatmul.mubr.bf16.gmra.mrb[0].mxu0 %v2636
        %v3315 = vpop.f32.mrb[0].mxu0
        %v3316 = vadd.f32 %v3155, %v3315
        %v3317 = vpop.f32.mrb[0].mxu0
        %v3318 = vpop.f32.mrb[0].mxu0
        %v3319 = vadd.f32 %v3158, %v3318
        %v3320 = vpop.f32.mrb[0].mxu0
        %3321 = vmatprep.mubr.bf16.mxu0 0
        %3322 = vmatmul.mubr.bf16.gmra.mrb[0].mxu0 %v2663
        %v3323 = vpop.f32.mrb[0].mxu0
        %v3324 = vadd.f32 %v3163, %v3323
        %v3325 = vpop.f32.mrb[0].mxu0
        %v3326 = vpop.f32.mrb[0].mxu0
        %v3327 = vadd.f32 %v3166, %v3326
        %v3328 = vpop.f32.mrb[0].mxu0
        %3329 = vmatprep.mubr.bf16.mxu0 0
        %3330 = vmatmul.mubr.bf16.gmra.mrb[0].mxu0 %v2690
        %v3331 = vpop.f32.mrb[0].mxu0
        %v3332 = vadd.f32 %v3171, %v3331
        %v3333 = vpop.f32.mrb[0].mxu0
        %v3334 = vpop.f32.mrb[0].mxu0
        %v3335 = vadd.f32 %v3174, %v3334
        %v3336 = vpop.f32.mrb[0].mxu0
        %3337 = vmatprep.mubr.bf16.mxu0 0
        %3338 = vmatmul.mubr.bf16.gmra.mrb[0].mxu0 %v2717
        %v3339 = vpop.f32.mrb[0].mxu0
        %v3340 = vadd.f32 %v3179, %v3339
        %v3341 = vpop.f32.mrb[0].mxu0
        %v3342 = vpop.f32.mrb[0].mxu0
        %v3343 = vadd.f32 %v3182, %v3342
        %v3344 = vpop.f32.mrb[0].mxu0
        %3345 = vmatprep.mubr.bf16.mxu0 0
        %3346 = vmatmul.mubr.bf16.gmra.mrb[0].mxu0 %v2744
        %v3347 = vpop.f32.mrb[0].mxu0
        %v3348 = vadd.f32 %v3187, %v3347
        %v3349 = vpop.f32.mrb[0].mxu0
        %v3350 = vpop.f32.mrb[0].mxu0
        %v3351 = vadd.f32 %v3190, %v3350
        %v3352 = vpop.f32.mrb[0].mxu0
        %3353 = vmatprep.mubr.bf16.mxu0 0
        %3354 = vmatmul.mubr.bf16.gmra.mrb[0].mxu0 %v2771
        %v3355 = vpop.f32.mrb[0].mxu0
        %v3356 = vadd.f32 %v3195, %v3355
        %v3357 = vpop.f32.mrb[0].mxu0
        %v3358 = vpop.f32.mrb[0].mxu0
        %v3359 = vadd.f32 %v3198, %v3358
        %v3360 = vpop.f32.mrb[0].mxu0
        %3361 = vmatprep.mubr.bf16.mxu0 0
        %3362 = vmatmul.mubr.bf16.gmra.mrb[0].mxu0 %v2798
        %v3363 = vpop.f32.mrb[0].mxu0
        %v3364 = vadd.f32 %v3203, %v3363
        %v3365 = vpop.f32.mrb[0].mxu0
        %v3366 = vpop.f32.mrb[0].mxu0
        %v3367 = vadd.f32 %v3206, %v3366
        %v3368 = vpop.f32.mrb[0].mxu0
        %3369 = vmatprep.mubr.bf16.mxu0 0
        %3370 = vmatmul.mubr.bf16.gmra.mrb[0].mxu0 %v2825
        %v3371 = vpop.f32.mrb[0].mxu0
        %v3372 = vadd.f32 %v3211, %v3371
        %v3373 = vpop.f32.mrb[0].mxu0
        %v3374 = vpop.f32.mrb[0].mxu0
        %v3375 = vadd.f32 %v3214, %v3374
        %v3376 = vpop.f32.mrb[0].mxu0
        %3377 = vmatprep.mubr.bf16.mxu0 0
        %3378 = vmatmul.mubr.bf16.gmra.mrb[0].mxu0 %v2852
        %v3379 = vpop.f32.mrb[0].mxu0
        %v3380 = vadd.f32 %v3219, %v3379
        %v3381 = vpop.f32.mrb[0].mxu0
        %v3382 = vpop.f32.mrb[0].mxu0
        %v3383 = vadd.f32 %v3222, %v3382
        %v3384 = vpop.f32.mrb[0].mxu0
        %3385 = vmatprep.mubr.bf16.mxu0 0
        %3386 = vmatmul.mubr.bf16.gmra.mrb[0].mxu0 %v2879
        %v3387 = vpop.f32.mrb[0].mxu0
        %v3388 = vadd.f32 %v3227, %v3387
        %v3389 = vpop.f32.mrb[0].mxu0
        %v3390 = vpop.f32.mrb[0].mxu0
        %v3391 = vadd.f32 %v3230, %v3390
        %v3392 = vpop.f32.mrb[0].mxu0
        %3393 = vdwg.mxu0
        %v3395 = vshrl.u32 %v1702, 16
        %v3397 = vrot.slane %v3395, 3
        %v3398 = vshll.u32 %v1702, 16
        %v3400 = vrot.slane %v3398, 4
        %v3401 = vor.u32 %v3397, %v3400
        %v3403 = vshrl.u32 %v1703, 16
        %v3405 = vrot.slane %v3403, 3
        %v3406 = vshll.u32 %v1703, 16
        %v3408 = vrot.slane %v3406, 4
        %v3409 = vor.u32 %v3405, %v3408
        %v3410 = vsel %vm1897, %v3401, %v3409
        %v3412 = vshrl.u32 %v2087, 16
        %v3414 = vrot.slane %v3412, 3
        %v3415 = vshll.u32 %v2087, 16
        %v3417 = vrot.slane %v3415, 4
        %v3418 = vor.u32 %v3414, %v3417
        %v3420 = vshrl.u32 %v2095, 16
        %v3422 = vrot.slane %v3420, 3
        %v3423 = vshll.u32 %v2095, 16
        %v3425 = vrot.slane %v3423, 4
        %v3426 = vor.u32 %v3422, %v3425
        %v3427 = vsel %vm1897, %v3418, %v3426
        %v3429 = vshrl.u32 %v2231, 16
        %v3431 = vrot.slane %v3429, 3
        %v3432 = vshll.u32 %v2231, 16
        %v3434 = vrot.slane %v3432, 4
        %v3435 = vor.u32 %v3431, %v3434
        %v3437 = vshrl.u32 %v2233, 16
        %v3439 = vrot.slane %v3437, 3
        %v3440 = vshll.u32 %v2233, 16
        %v3442 = vrot.slane %v3440, 4
        %v3443 = vor.u32 %v3439, %v3442
        %v3444 = vsel %vm1897, %v3435, %v3443
        %v3446 = vshrl.u32 %v1704, 16
        %v3448 = vrot.slane %v3446, 3
        %v3449 = vshll.u32 %v1704, 16
        %v3451 = vrot.slane %v3449, 4
        %v3452 = vor.u32 %v3448, %v3451
        %v3453 = vsel %vm1897, %v3409, %v3452
        %v3454 = vsel %vm1897, %v3426, %v2456
        %v3456 = vshrl.u32 %v2235, 16
        %v3458 = vrot.slane %v3456, 3
        %v3459 = vshll.u32 %v2235, 16
        %v3461 = vrot.slane %v3459, 4
        %v3462 = vor.u32 %v3458, %v3461
        %v3463 = vsel %vm1897, %v3443, %v3462
        %v3465 = vshrl.u32 %v1705, 16
        %v3467 = vrot.slane %v3465, 3
        %v3468 = vshll.u32 %v1705, 16
        %v3470 = vrot.slane %v3468, 4
        %v3471 = vor.u32 %v3467, %v3470
        %v3472 = vsel %vm1897, %v3452, %v3471
        %v3474 = vshrl.u32 %v2237, 16
        %v3476 = vrot.slane %v3474, 3
        %v3477 = vshll.u32 %v2237, 16
        %v3479 = vrot.slane %v3477, 4
        %v3480 = vor.u32 %v3476, %v3479
        %v3481 = vsel %vm1897, %v3462, %v3480
        %v3483 = vshrl.u32 %v1706, 16
        %v3485 = vrot.slane %v3483, 3
        %v3486 = vshll.u32 %v1706, 16
        %v3488 = vrot.slane %v3486, 4
        %v3489 = vor.u32 %v3485, %v3488
        %v3490 = vsel %vm1897, %v3471, %v3489
        %v3492 = vshrl.u32 %v2239, 16
        %v3494 = vrot.slane %v3492, 3
        %v3495 = vshll.u32 %v2239, 16
        %v3497 = vrot.slane %v3495, 4
        %v3498 = vor.u32 %v3494, %v3497
        %v3499 = vsel %vm1897, %v3480, %v3498
        %v3501 = vshrl.u32 %v1707, 16
        %v3503 = vrot.slane %v3501, 3
        %v3504 = vshll.u32 %v1707, 16
        %v3506 = vrot.slane %v3504, 4
        %v3507 = vor.u32 %v3503, %v3506
        %v3508 = vsel %vm1897, %v3489, %v3507
        %v3510 = vshrl.u32 %v2241, 16
        %v3512 = vrot.slane %v3510, 3
        %v3513 = vshll.u32 %v2241, 16
        %v3515 = vrot.slane %v3513, 4
        %v3516 = vor.u32 %v3512, %v3515
        %v3517 = vsel %vm1897, %v3498, %v3516
        %v3519 = vshrl.u32 %v1708, 16
        %v3521 = vrot.slane %v3519, 3
        %v3522 = vshll.u32 %v1708, 16
        %v3524 = vrot.slane %v3522, 4
        %v3525 = vor.u32 %v3521, %v3524
        %v3526 = vsel %vm1897, %v3507, %v3525
        %v3528 = vshrl.u32 %v2243, 16
        %v3530 = vrot.slane %v3528, 3
        %v3531 = vshll.u32 %v2243, 16
        %v3533 = vrot.slane %v3531, 4
        %v3534 = vor.u32 %v3530, %v3533
        %v3535 = vsel %vm1897, %v3516, %v3534
        %v3537 = vshrl.u32 %v1709, 16
        %v3539 = vrot.slane %v3537, 3
        %v3540 = vshll.u32 %v1709, 16
        %v3542 = vrot.slane %v3540, 4
        %v3543 = vor.u32 %v3539, %v3542
        %v3544 = vsel %vm1897, %v3525, %v3543
        %v3546 = vshrl.u32 %v2245, 16
        %v3548 = vrot.slane %v3546, 3
        %v3549 = vshll.u32 %v2245, 16
        %v3551 = vrot.slane %v3549, 4
        %v3552 = vor.u32 %v3548, %v3551
        %v3553 = vsel %vm1897, %v3534, %v3552
        %v3555 = vshrl.u32 %v1710, 16
        %v3557 = vrot.slane %v3555, 3
        %v3558 = vshll.u32 %v1710, 16
        %v3560 = vrot.slane %v3558, 4
        %v3561 = vor.u32 %v3557, %v3560
        %v3562 = vsel %vm1897, %v3543, %v3561
        %v3564 = vshrl.u32 %v2247, 16
        %v3566 = vrot.slane %v3564, 3
        %v3567 = vshll.u32 %v2247, 16
        %v3569 = vrot.slane %v3567, 4
        %v3570 = vor.u32 %v3566, %v3569
        %v3571 = vsel %vm1897, %v3552, %v3570
        %v3573 = vshrl.u32 %v1711, 16
        %v3575 = vrot.slane %v3573, 3
        %v3576 = vshll.u32 %v1711, 16
        %v3578 = vrot.slane %v3576, 4
        %v3579 = vor.u32 %v3575, %v3578
        %v3580 = vsel %vm1897, %v3561, %v3579
        %v3582 = vshrl.u32 %v2249, 16
        %v3584 = vrot.slane %v3582, 3
        %v3585 = vshll.u32 %v2249, 16
        %v3587 = vrot.slane %v3585, 4
        %v3588 = vor.u32 %v3584, %v3587
        %v3589 = vsel %vm1897, %v3570, %v3588
        %v3591 = vshrl.u32 %v1712, 16
        %v3593 = vrot.slane %v3591, 3
        %v3594 = vshll.u32 %v1712, 16
        %v3596 = vrot.slane %v3594, 4
        %v3597 = vor.u32 %v3593, %v3596
        %v3598 = vsel %vm1897, %v3579, %v3597
        %v3600 = vshrl.u32 %v2251, 16
        %v3602 = vrot.slane %v3600, 3
        %v3603 = vshll.u32 %v2251, 16
        %v3605 = vrot.slane %v3603, 4
        %v3606 = vor.u32 %v3602, %v3605
        %v3607 = vsel %vm1897, %v3588, %v3606
        %v3609 = vshrl.u32 %v1713, 16
        %v3611 = vrot.slane %v3609, 3
        %v3612 = vshll.u32 %v1713, 16
        %v3614 = vrot.slane %v3612, 4
        %v3615 = vor.u32 %v3611, %v3614
        %v3616 = vsel %vm1897, %v3597, %v3615
        %v3618 = vshrl.u32 %v2253, 16
        %v3620 = vrot.slane %v3618, 3
        %v3621 = vshll.u32 %v2253, 16
        %v3623 = vrot.slane %v3621, 4
        %v3624 = vor.u32 %v3620, %v3623
        %v3625 = vsel %vm1897, %v3606, %v3624
        %v3627 = vshrl.u32 %v1714, 16
        %v3629 = vrot.slane %v3627, 3
        %v3630 = vshll.u32 %v1714, 16
        %v3632 = vrot.slane %v3630, 4
        %v3633 = vor.u32 %v3629, %v3632
        %v3634 = vsel %vm1897, %v3615, %v3633
        %v3636 = vshrl.u32 %v2255, 16
        %v3638 = vrot.slane %v3636, 3
        %v3639 = vshll.u32 %v2255, 16
        %v3641 = vrot.slane %v3639, 4
        %v3642 = vor.u32 %v3638, %v3641
        %v3643 = vsel %vm1897, %v3624, %v3642
        %v3645 = vshrl.u32 %v1715, 16
        %v3647 = vrot.slane %v3645, 3
        %v3648 = vshll.u32 %v1715, 16
        %v3650 = vrot.slane %v3648, 4
        %v3651 = vor.u32 %v3647, %v3650
        %v3652 = vsel %vm1897, %v3633, %v3651
        %v3654 = vshrl.u32 %v2257, 16
        %v3656 = vrot.slane %v3654, 3
        %v3657 = vshll.u32 %v2257, 16
        %v3659 = vrot.slane %v3657, 4
        %v3660 = vor.u32 %v3656, %v3659
        %v3661 = vsel %vm1897, %v3642, %v3660
        %v3663 = vshrl.u32 %v1716, 16
        %v3665 = vrot.slane %v3663, 3
        %v3666 = vshll.u32 %v1716, 16
        %v3668 = vrot.slane %v3666, 4
        %v3669 = vor.u32 %v3665, %v3668
        %v3670 = vsel %vm1897, %v3651, %v3669
        %v3672 = vshrl.u32 %v2259, 16
        %v3674 = vrot.slane %v3672, 3
        %v3675 = vshll.u32 %v2259, 16
        %v3677 = vrot.slane %v3675, 4
        %v3678 = vor.u32 %v3674, %v3677
        %v3679 = vsel %vm1897, %v3660, %v3678
        %v3681 = vshrl.u32 %v1717, 16
        %v3683 = vrot.slane %v3681, 3
        %v3684 = vshll.u32 %v1717, 16
        %v3686 = vrot.slane %v3684, 4
        %v3687 = vor.u32 %v3683, %v3686
        %v3688 = vsel %vm1897, %v3669, %v3687
        %v3690 = vshrl.u32 %v2207, 16
        %v3692 = vrot.slane %v3690, 3
        %v3693 = vshll.u32 %v2207, 16
        %v3695 = vrot.slane %v3693, 4
        %v3696 = vor.u32 %v3692, %v3695
        %v3697 = vsel %vm1897, %v2788, %v3696
        %v3699 = vshrl.u32 %v2261, 16
        %v3701 = vrot.slane %v3699, 3
        %v3702 = vshll.u32 %v2261, 16
        %v3704 = vrot.slane %v3702, 4
        %v3705 = vor.u32 %v3701, %v3704
        %v3706 = vsel %vm1897, %v3678, %v3705
        %v3708 = vshrl.u32 %v1718, 16
        %v3710 = vrot.slane %v3708, 3
        %v3711 = vshll.u32 %v1718, 16
        %v3713 = vrot.slane %v3711, 4
        %v3714 = vor.u32 %v3710, %v3713
        %v3715 = vsel %vm1897, %v3687, %v3714
        %v3717 = vshrl.u32 %v2210, 16
        %v3719 = vrot.slane %v3717, 3
        %v3720 = vshll.u32 %v2210, 16
        %v3722 = vrot.slane %v3720, 4
        %v3723 = vor.u32 %v3719, %v3722
        %v3724 = vsel %vm1897, %v3696, %v3723
        %v3726 = vshrl.u32 %v2260, 16
        %v3728 = vrot.slane %v3726, 3
        %v3729 = vshll.u32 %v2260, 16
        %v3731 = vrot.slane %v3729, 4
        %v3732 = vor.u32 %v3728, %v3731
        %v3733 = vsel %vm1897, %v3705, %v3732
        %v3818 = vunpack.c.l.b16 %v1300
        %v3819 = vunpack.c.l.b16 %v1301
        %v3820 = vunpack.c.l.b16 %v1302
        %v3821 = vunpack.c.l.b16 %v1303
        %v3822 = vunpack.c.l.b16 %v1304
        %v3823 = vunpack.c.l.b16 %v1305
        %v3824 = vunpack.c.l.b16 %v1306
        %v3825 = vunpack.c.l.b16 %v1307
        %v3826 = vunpack.c.l.b16 %v1308
        %v3827 = vunpack.c.l.b16 %v1309
        %v3828 = vunpack.c.l.b16 %v1310
        %v3829 = vunpack.c.l.b16 %v1311
        %v3830 = vunpack.c.l.b16 %v1312
        %v3831 = vunpack.c.l.b16 %v1313
        %v3832 = vunpack.c.l.b16 %v1314
        %v3833 = vunpack.c.l.b16 %v1315
        %v3834 = vunpack.c.l.b16 %v1316
        %v3835 = vunpack.c.l.b16 %v1317
        %v3836 = vunpack.c.l.b16 %v1318
        %v3837 = vunpack.c.l.b16 %v1319
        %v3838 = vunpack.c.l.b16 %v1320
        %v3839 = vunpack.c.l.b16 %v1321
        %v3840 = vunpack.c.l.b16 %v1322
        %v3841 = vunpack.c.l.b16 %v1323
        %v3842 = vunpack.c.l.b16 %v1324
        %v3843 = vunpack.c.l.b16 %v1325
        %v3844 = vunpack.c.l.b16 %v1326
        %v3845 = vunpack.c.l.b16 %v1327
        %v3846 = vunpack.c.l.b16 %v1328
        %v3847 = vunpack.c.l.b16 %v1329
        %v3848 = vunpack.c.l.b16 %v1330
        %v3849 = vunpack.c.l.b16 %v1331
        %v3850 = vunpack.c.l.b16 %v1332
        %v3851 = vunpack.c.l.b16 %v1333
        %v3852 = vunpack.c.l.b16 %v1334
        %v3853 = vunpack.c.l.b16 %v1335
        %v3854 = vunpack.c.l.b16 %v1336
        %v3855 = vunpack.c.l.b16 %v1337
        %v3856 = vunpack.c.l.b16 %v1338
        %v3857 = vunpack.c.l.b16 %v1339
        %v3858 = vunpack.c.l.b16 %v1340
        %v3859 = vunpack.c.l.b16 %v1341
        %v3860 = vunpack.c.l.b16 %v1342
        %v3861 = vunpack.c.l.b16 %v1343
        %v3862 = vunpack.c.l.b16 %v1344
        %v3863 = vunpack.c.l.b16 %v1345
        %v3864 = vunpack.c.l.b16 %v1346
        %v3865 = vunpack.c.l.b16 %v1347
        %v3866 = vpack.c.b16 %v3819, %v3818
        %v3867 = vpack.c.b16 %v3821, %v3820
        %v3868 = vpack.c.b16 %v3823, %v3822
        %v3869 = vpack.c.b16 %v3825, %v3824
        %v3870 = vpack.c.b16 %v3827, %v3826
        %v3871 = vpack.c.b16 %v3829, %v3828
        %v3872 = vpack.c.b16 %v3831, %v3830
        %v3873 = vpack.c.b16 %v3833, %v3832
        %v3874 = vpack.c.b16 %v3835, %v3834
        %v3875 = vpack.c.b16 %v3837, %v3836
        %v3876 = vpack.c.b16 %v3839, %v3838
        %v3877 = vpack.c.b16 %v3841, %v3840
        %v3878 = vpack.c.b16 %v3843, %v3842
        %v3879 = vpack.c.b16 %v3845, %v3844
        %v3880 = vpack.c.b16 %v3847, %v3846
        %v3881 = vpack.c.b16 %v3849, %v3848
        %v3882 = vpack.c.b16 %v3851, %v3850
        %v3883 = vpack.c.b16 %v3853, %v3852
        %v3884 = vpack.c.b16 %v3855, %v3854
        %v3885 = vpack.c.b16 %v3857, %v3856
        %v3886 = vpack.c.b16 %v3859, %v3858
        %v3887 = vpack.c.b16 %v3861, %v3860
        %v3888 = vpack.c.b16 %v3863, %v3862
        %v3889 = vpack.c.b16 %v3865, %v3864
        %3914 = vmatprep.subr.bf16.mxu0 0
        %3915 = vmatpush1.bf16.msra.mxu0 %v3866
        %3916 = vmatprep.subr.bf16.mxu0 0
        %3917 = vmatpush1.bf16.msra.mxu0 %v3867
        %3918 = vmatprep.subr.bf16.mxu0 0
        %3919 = vmatpush1.bf16.msra.mxu0 %v3868
        %3920 = vmatprep.subr.bf16.mxu0 0
        %3921 = vmatpush1.bf16.msra.mxu0 %v3869
        %3922 = vmatprep.subr.bf16.mxu0 0
        %3923 = vmatpush1.bf16.msra.mxu0 %v3870
        %3924 = vmatprep.subr.bf16.mxu0 0
        %3925 = vmatpush1.bf16.msra.mxu0 %v3871
        %3926 = vmatprep.subr.bf16.mxu0 0
        %3927 = vmatpush1.bf16.msra.mxu0 %v3872
        %3928 = vmatprep.subr.bf16.mxu0 0
        %3929 = vmatpush1.bf16.msra.mxu0 %v3873
        %3930 = vmatprep.subr.bf16.mxu0 0
        %3931 = vmatpush1.bf16.msra.mxu0 %v3874
        %3932 = vmatprep.subr.bf16.mxu0 0
        %3933 = vmatpush1.bf16.msra.mxu0 %v3875
        %3934 = vmatprep.subr.bf16.mxu0 0
        %3935 = vmatpush1.bf16.msra.mxu0 %v3876
        %3936 = vmatprep.subr.bf16.mxu0 0
        %3937 = vmatpush1.bf16.msra.mxu0 %v3877
        %3938 = vmatprep.subr.bf16.mxu0 0
        %3939 = vmatpush1.bf16.msra.mxu0 %v3878
        %3940 = vmatprep.subr.bf16.mxu0 0
        %3941 = vmatpush1.bf16.msra.mxu0 %v3879
        %3942 = vmatprep.subr.bf16.mxu0 0
        %3943 = vmatpush1.bf16.msra.mxu0 %v3880
        %3944 = vmatprep.subr.bf16.mxu0 0
        %3945 = vmatpush1.bf16.msra.mxu0 %v3881
        %3946 = vmatprep.mubr.bf16.mxu0 %v3427
        %3947 = vmatmul.mubr.bf16.gmra.mrb[0].mxu0 %v3410
        %v3948 = vpop.f32.mrb[0].mxu0
        %v3949 = vadd.f32 %v3268, %v3948
        %v3950 = vpop.f32.mrb[0].mxu0
        %v3951 = vpop.f32.mrb[0].mxu0
        %v3952 = vadd.f32 %v3271, %v3951
        %v3953 = vpop.f32.mrb[0].mxu0
        %3954 = vmatprep.mubr.bf16.mxu0 %v3454
        %3955 = vmatmul.mubr.bf16.gmra.mrb[0].mxu0 %v3453
        %v3956 = vpop.f32.mrb[0].mxu0
        %v3957 = vadd.f32 %v3276, %v3956
        %v3958 = vpop.f32.mrb[0].mxu0
        %v3959 = vpop.f32.mrb[0].mxu0
        %v3960 = vadd.f32 %v3279, %v3959
        %v3961 = vpop.f32.mrb[0].mxu0
        %3962 = vmatprep.mubr.bf16.mxu0 %v2492
        %3963 = vmatmul.mubr.bf16.gmra.mrb[0].mxu0 %v3472
        %v3964 = vpop.f32.mrb[0].mxu0
        %v3965 = vadd.f32 %v3284, %v3964
        %v3966 = vpop.f32.mrb[0].mxu0
        %v3967 = vpop.f32.mrb[0].mxu0
        %v3968 = vadd.f32 %v3287, %v3967
        %v3969 = vpop.f32.mrb[0].mxu0
        %3970 = vmatprep.mubr.bf16.mxu0 %v2519
        %3971 = vmatmul.mubr.bf16.gmra.mrb[0].mxu0 %v3490
        %v3972 = vpop.f32.mrb[0].mxu0
        %v3973 = vadd.f32 %v3292, %v3972
        %v3974 = vpop.f32.mrb[0].mxu0
        %v3975 = vpop.f32.mrb[0].mxu0
        %v3976 = vadd.f32 %v3295, %v3975
        %v3977 = vpop.f32.mrb[0].mxu0
        %3978 = vmatprep.mubr.bf16.mxu0 %v2546
        %3979 = vmatmul.mubr.bf16.gmra.mrb[0].mxu0 %v3508
        %v3980 = vpop.f32.mrb[0].mxu0
        %v3981 = vadd.f32 %v3300, %v3980
        %v3982 = vpop.f32.mrb[0].mxu0
        %v3983 = vpop.f32.mrb[0].mxu0
        %v3984 = vadd.f32 %v3303, %v3983
        %v3985 = vpop.f32.mrb[0].mxu0
        %3986 = vmatprep.mubr.bf16.mxu0 %v2573
        %3987 = vmatmul.mubr.bf16.gmra.mrb[0].mxu0 %v3526
        %v3988 = vpop.f32.mrb[0].mxu0
        %v3989 = vadd.f32 %v3308, %v3988
        %v3990 = vpop.f32.mrb[0].mxu0
        %v3991 = vpop.f32.mrb[0].mxu0
        %v3992 = vadd.f32 %v3311, %v3991
        %v3993 = vpop.f32.mrb[0].mxu0
        %3994 = vmatprep.mubr.bf16.mxu0 %v2600
        %3995 = vmatmul.mubr.bf16.gmra.mrb[0].mxu0 %v3544
        %v3996 = vpop.f32.mrb[0].mxu0
        %v3997 = vadd.f32 %v3316, %v3996
        %v3998 = vpop.f32.mrb[0].mxu0
        %v3999 = vpop.f32.mrb[0].mxu0
        %v4000 = vadd.f32 %v3319, %v3999
        %v4001 = vpop.f32.mrb[0].mxu0
        %4002 = vmatprep.mubr.bf16.mxu0 %v2627
        %4003 = vmatmul.mubr.bf16.gmra.mrb[0].mxu0 %v3562
        %v4004 = vpop.f32.mrb[0].mxu0
        %v4005 = vadd.f32 %v3324, %v4004
        %v4006 = vpop.f32.mrb[0].mxu0
        %v4007 = vpop.f32.mrb[0].mxu0
        %v4008 = vadd.f32 %v3327, %v4007
        %v4009 = vpop.f32.mrb[0].mxu0
        %4010 = vmatprep.mubr.bf16.mxu0 %v2654
        %4011 = vmatmul.mubr.bf16.gmra.mrb[0].mxu0 %v3580
        %v4012 = vpop.f32.mrb[0].mxu0
        %v4013 = vadd.f32 %v3332, %v4012
        %v4014 = vpop.f32.mrb[0].mxu0
        %v4015 = vpop.f32.mrb[0].mxu0
        %v4016 = vadd.f32 %v3335, %v4015
        %v4017 = vpop.f32.mrb[0].mxu0
        %4018 = vmatprep.mubr.bf16.mxu0 %v2681
        %4019 = vmatmul.mubr.bf16.gmra.mrb[0].mxu0 %v3598
        %v4020 = vpop.f32.mrb[0].mxu0
        %v4021 = vadd.f32 %v3340, %v4020
        %v4022 = vpop.f32.mrb[0].mxu0
        %v4023 = vpop.f32.mrb[0].mxu0
        %v4024 = vadd.f32 %v3343, %v4023
        %v4025 = vpop.f32.mrb[0].mxu0
        %4026 = vmatprep.mubr.bf16.mxu0 %v2708
        %4027 = vmatmul.mubr.bf16.gmra.mrb[0].mxu0 %v3616
        %v4028 = vpop.f32.mrb[0].mxu0
        %v4029 = vadd.f32 %v3348, %v4028
        %v4030 = vpop.f32.mrb[0].mxu0
        %v4031 = vpop.f32.mrb[0].mxu0
        %v4032 = vadd.f32 %v3351, %v4031
        %v4033 = vpop.f32.mrb[0].mxu0
        %4034 = vmatprep.mubr.bf16.mxu0 %v2735
        %4035 = vmatmul.mubr.bf16.gmra.mrb[0].mxu0 %v3634
        %v4036 = vpop.f32.mrb[0].mxu0
        %v4037 = vadd.f32 %v3356, %v4036
        %v4038 = vpop.f32.mrb[0].mxu0
        %v4039 = vpop.f32.mrb[0].mxu0
        %v4040 = vadd.f32 %v3359, %v4039
        %v4041 = vpop.f32.mrb[0].mxu0
        %4042 = vmatprep.mubr.bf16.mxu0 %v2762
        %4043 = vmatmul.mubr.bf16.gmra.mrb[0].mxu0 %v3652
        %v4044 = vpop.f32.mrb[0].mxu0
        %v4045 = vadd.f32 %v3364, %v4044
        %v4046 = vpop.f32.mrb[0].mxu0
        %v4047 = vpop.f32.mrb[0].mxu0
        %v4048 = vadd.f32 %v3367, %v4047
        %v4049 = vpop.f32.mrb[0].mxu0
        %4050 = vmatprep.mubr.bf16.mxu0 %v2789
        %4051 = vmatmul.mubr.bf16.gmra.mrb[0].mxu0 %v3670
        %v4052 = vpop.f32.mrb[0].mxu0
        %v4053 = vadd.f32 %v3372, %v4052
        %v4054 = vpop.f32.mrb[0].mxu0
        %v4055 = vpop.f32.mrb[0].mxu0
        %v4056 = vadd.f32 %v3375, %v4055
        %v4057 = vpop.f32.mrb[0].mxu0
        %4058 = vmatprep.mubr.bf16.mxu0 %v3697
        %4059 = vmatmul.mubr.bf16.gmra.mrb[0].mxu0 %v3688
        %v4060 = vpop.f32.mrb[0].mxu0
        %v4061 = vadd.f32 %v3380, %v4060
        %v4062 = vpop.f32.mrb[0].mxu0
        %v4063 = vpop.f32.mrb[0].mxu0
        %v4064 = vadd.f32 %v3383, %v4063
        %v4065 = vpop.f32.mrb[0].mxu0
        %4066 = vmatprep.mubr.bf16.mxu0 %v3724
        %4067 = vmatmul.mubr.bf16.gmra.mrb[0].mxu0 %v3715
        %v4068 = vpop.f32.mrb[0].mxu0
        %v4069 = vadd.f32 %v3388, %v4068
        %v4070 = vpop.f32.mrb[0].mxu0
        %v4071 = vpop.f32.mrb[0].mxu0
        %v4072 = vadd.f32 %v3391, %v4071
        %v4073 = vpop.f32.mrb[0].mxu0
        %4074 = vdwg.mxu0
        %4075 = vmatprep.subr.bf16.mxu0 0
        %4076 = vmatpush1.bf16.msra.mxu0 %v3882
        %4077 = vmatprep.subr.bf16.mxu0 0
        %4078 = vmatpush1.bf16.msra.mxu0 %v3883
        %4079 = vmatprep.subr.bf16.mxu0 0
        %4080 = vmatpush1.bf16.msra.mxu0 %v3884
        %4081 = vmatprep.subr.bf16.mxu0 0
        %4082 = vmatpush1.bf16.msra.mxu0 %v3885
        %4083 = vmatprep.subr.bf16.mxu0 0
        %4084 = vmatpush1.bf16.msra.mxu0 %v3886
        %4085 = vmatprep.subr.bf16.mxu0 0
        %4086 = vmatpush1.bf16.msra.mxu0 %v3887
        %4087 = vmatprep.subr.bf16.mxu0 0
        %4088 = vmatpush1.bf16.msra.mxu0 %v3888
        %4089 = vmatprep.subr.bf16.mxu0 0
        %4090 = vmatpush1.bf16.msra.mxu0 %v3889
        %4091 = vmatprep.subr.bf16.mxu0 0
        %4092 = vmatpush1.bf16.msra.mxu0 0
        %4093 = vmatprep.subr.bf16.mxu0 0
        %4094 = vmatpush1.bf16.msra.mxu0 0
        %4095 = vmatprep.subr.bf16.mxu0 0
        %4096 = vmatpush1.bf16.msra.mxu0 0
        %4097 = vmatprep.subr.bf16.mxu0 0
        %4098 = vmatpush1.bf16.msra.mxu0 0
        %4099 = vmatprep.subr.bf16.mxu0 0
        %4100 = vmatpush1.bf16.msra.mxu0 0
        %4101 = vmatprep.subr.bf16.mxu0 0
        %4102 = vmatpush1.bf16.msra.mxu0 0
        %4103 = vmatprep.subr.bf16.mxu0 0
        %4104 = vmatpush1.bf16.msra.mxu0 0
        %4105 = vmatprep.subr.bf16.mxu0 0
        %4106 = vmatpush1.bf16.msra.mxu0 0
        %4107 = vmatprep.mubr.bf16.mxu0 0
        %4108 = vmatmul.mubr.bf16.gmra.mrb[0].mxu0 %v3444
        %v4109 = vpop.f32.mrb[0].mxu0
        %v4110 = vadd.f32 %v3949, %v4109
        %v4111 = vpop.f32.mrb[0].mxu0
        %v4112 = vpop.f32.mrb[0].mxu0
        %v4113 = vadd.f32 %v3952, %v4112
        %v4114 = vpop.f32.mrb[0].mxu0
        %4115 = vmatprep.mubr.bf16.mxu0 0
        %4116 = vmatmul.mubr.bf16.gmra.mrb[0].mxu0 %v3463
        %v4117 = vpop.f32.mrb[0].mxu0
        %v4118 = vadd.f32 %v3957, %v4117
        %v4119 = vpop.f32.mrb[0].mxu0
        %v4120 = vpop.f32.mrb[0].mxu0
        %v4121 = vadd.f32 %v3960, %v4120
        %v4122 = vpop.f32.mrb[0].mxu0
        %4123 = vmatprep.mubr.bf16.mxu0 0
        %4124 = vmatmul.mubr.bf16.gmra.mrb[0].mxu0 %v3481
        %v4125 = vpop.f32.mrb[0].mxu0
        %v4126 = vadd.f32 %v3965, %v4125
        %v4127 = vpop.f32.mrb[0].mxu0
        %v4128 = vpop.f32.mrb[0].mxu0
        %v4129 = vadd.f32 %v3968, %v4128
        %v4130 = vpop.f32.mrb[0].mxu0
        %4131 = vmatprep.mubr.bf16.mxu0 0
        %4132 = vmatmul.mubr.bf16.gmra.mrb[0].mxu0 %v3499
        %v4133 = vpop.f32.mrb[0].mxu0
        %v4134 = vadd.f32 %v3973, %v4133
        %v4135 = vpop.f32.mrb[0].mxu0
        %v4136 = vpop.f32.mrb[0].mxu0
        %v4137 = vadd.f32 %v3976, %v4136
        %v4138 = vpop.f32.mrb[0].mxu0
        %4139 = vmatprep.mubr.bf16.mxu0 0
        %4140 = vmatmul.mubr.bf16.gmra.mrb[0].mxu0 %v3517
        %v4141 = vpop.f32.mrb[0].mxu0
        %v4142 = vadd.f32 %v3981, %v4141
        %v4143 = vpop.f32.mrb[0].mxu0
        %v4144 = vpop.f32.mrb[0].mxu0
        %v4145 = vadd.f32 %v3984, %v4144
        %v4146 = vpop.f32.mrb[0].mxu0
        %4147 = vmatprep.mubr.bf16.mxu0 0
        %4148 = vmatmul.mubr.bf16.gmra.mrb[0].mxu0 %v3535
        %v4149 = vpop.f32.mrb[0].mxu0
        %v4150 = vadd.f32 %v3989, %v4149
        %v4151 = vpop.f32.mrb[0].mxu0
        %v4152 = vpop.f32.mrb[0].mxu0
        %v4153 = vadd.f32 %v3992, %v4152
        %v4154 = vpop.f32.mrb[0].mxu0
        %4155 = vmatprep.mubr.bf16.mxu0 0
        %4156 = vmatmul.mubr.bf16.gmra.mrb[0].mxu0 %v3553
        %v4157 = vpop.f32.mrb[0].mxu0
        %v4158 = vadd.f32 %v3997, %v4157
        %v4159 = vpop.f32.mrb[0].mxu0
        %v4160 = vpop.f32.mrb[0].mxu0
        %v4161 = vadd.f32 %v4000, %v4160
        %v4162 = vpop.f32.mrb[0].mxu0
        %4163 = vmatprep.mubr.bf16.mxu0 0
        %4164 = vmatmul.mubr.bf16.gmra.mrb[0].mxu0 %v3571
        %v4165 = vpop.f32.mrb[0].mxu0
        %v4166 = vadd.f32 %v4005, %v4165
        %v4167 = vpop.f32.mrb[0].mxu0
        %v4168 = vpop.f32.mrb[0].mxu0
        %v4169 = vadd.f32 %v4008, %v4168
        %v4170 = vpop.f32.mrb[0].mxu0
        %4171 = vmatprep.mubr.bf16.mxu0 0
        %4172 = vmatmul.mubr.bf16.gmra.mrb[0].mxu0 %v3589
        %v4173 = vpop.f32.mrb[0].mxu0
        %v4174 = vadd.f32 %v4013, %v4173
        %v4175 = vpop.f32.mrb[0].mxu0
        %v4176 = vpop.f32.mrb[0].mxu0
        %v4177 = vadd.f32 %v4016, %v4176
        %v4178 = vpop.f32.mrb[0].mxu0
        %4179 = vmatprep.mubr.bf16.mxu0 0
        %4180 = vmatmul.mubr.bf16.gmra.mrb[0].mxu0 %v3607
        %v4181 = vpop.f32.mrb[0].mxu0
        %v4182 = vadd.f32 %v4021, %v4181
        %v4183 = vpop.f32.mrb[0].mxu0
        %v4184 = vpop.f32.mrb[0].mxu0
        %v4185 = vadd.f32 %v4024, %v4184
        %v4186 = vpop.f32.mrb[0].mxu0
        %4187 = vmatprep.mubr.bf16.mxu0 0
        %4188 = vmatmul.mubr.bf16.gmra.mrb[0].mxu0 %v3625
        %v4189 = vpop.f32.mrb[0].mxu0
        %v4190 = vadd.f32 %v4029, %v4189
        %v4191 = vpop.f32.mrb[0].mxu0
        %v4192 = vpop.f32.mrb[0].mxu0
        %v4193 = vadd.f32 %v4032, %v4192
        %v4194 = vpop.f32.mrb[0].mxu0
        %4195 = vmatprep.mubr.bf16.mxu0 0
        %4196 = vmatmul.mubr.bf16.gmra.mrb[0].mxu0 %v3643
        %v4197 = vpop.f32.mrb[0].mxu0
        %v4198 = vadd.f32 %v4037, %v4197
        %v4199 = vpop.f32.mrb[0].mxu0
        %v4200 = vpop.f32.mrb[0].mxu0
        %v4201 = vadd.f32 %v4040, %v4200
        %v4202 = vpop.f32.mrb[0].mxu0
        %4203 = vmatprep.mubr.bf16.mxu0 0
        %4204 = vmatmul.mubr.bf16.gmra.mrb[0].mxu0 %v3661
        %v4205 = vpop.f32.mrb[0].mxu0
        %v4206 = vadd.f32 %v4045, %v4205
        %v4207 = vpop.f32.mrb[0].mxu0
        %v4208 = vpop.f32.mrb[0].mxu0
        %v4209 = vadd.f32 %v4048, %v4208
        %v4210 = vpop.f32.mrb[0].mxu0
        %4211 = vmatprep.mubr.bf16.mxu0 0
        %4212 = vmatmul.mubr.bf16.gmra.mrb[0].mxu0 %v3679
        %v4213 = vpop.f32.mrb[0].mxu0
        %v4214 = vadd.f32 %v4053, %v4213
        %v4215 = vpop.f32.mrb[0].mxu0
        %v4216 = vpop.f32.mrb[0].mxu0
        %v4217 = vadd.f32 %v4056, %v4216
        %v4218 = vpop.f32.mrb[0].mxu0
        %4219 = vmatprep.mubr.bf16.mxu0 0
        %4220 = vmatmul.mubr.bf16.gmra.mrb[0].mxu0 %v3706
        %v4221 = vpop.f32.mrb[0].mxu0
        %v4222 = vadd.f32 %v4061, %v4221
        %v4223 = vpop.f32.mrb[0].mxu0
        %v4224 = vpop.f32.mrb[0].mxu0
        %v4225 = vadd.f32 %v4064, %v4224
        %v4226 = vpop.f32.mrb[0].mxu0
        %4227 = vmatprep.mubr.bf16.mxu0 0
        %4228 = vmatmul.mubr.bf16.gmra.mrb[0].mxu0 %v3733
        %v4229 = vpop.f32.mrb[0].mxu0
        %v4230 = vadd.f32 %v4069, %v4229
        %v4231 = vpop.f32.mrb[0].mxu0
        %v4232 = vpop.f32.mrb[0].mxu0
        %v4233 = vadd.f32 %v4072, %v4232
        %v4234 = vpop.f32.mrb[0].mxu0
        %4235 = vdwg.mxu0
        %s4236 = scalar_lea.vmem [#allocation8], 384
        %v4237 = vld [vmem:[%s4236] sm:$0xf]
        %v4238 = vld [vmem:[%s4236 + $0x4] sm:$0xf]
        %v4239 = vld [vmem:[%s4236 + $0x8] sm:$0xf]
        %v4240 = vld [vmem:[%s4236 + $0xc] sm:$0xf]
        %v4241 = vld [vmem:[%s4236 + $0x10] sm:$0xf]
        %v4242 = vld [vmem:[%s4236 + $0x14] sm:$0xf]
        %v4243 = vld [vmem:[%s4236 + $0x18] sm:$0xf]
        %v4244 = vld [vmem:[%s4236 + $0x1c] sm:$0xf]
        %v4245 = vld [vmem:[%s4236 + $0x20] sm:$0xf]
        %v4246 = vld [vmem:[%s4236 + $0x24] sm:$0xf]
        %v4247 = vld [vmem:[%s4236 + $0x28] sm:$0xf]
        %v4248 = vld [vmem:[%s4236 + $0x2c] sm:$0xf]
        %v4249 = vld [vmem:[%s4236 + $0x30] sm:$0xf]
        %v4250 = vld [vmem:[%s4236 + $0x34] sm:$0xf]
        %v4251 = vld [vmem:[%s4236 + $0x38] sm:$0xf]
        %v4252 = vld [vmem:[%s4236 + $0x3c] sm:$0xf]
        %v4253 = vld [vmem:[%s4236 + $0x40] sm:$0xf]
        %v4254 = vld [vmem:[%s4236 + $0x44] sm:$0xf]
        %v4255 = vld [vmem:[%s4236 + $0x48] sm:$0xf]
        %v4256 = vld [vmem:[%s4236 + $0x4c] sm:$0xf]
        %v4257 = vld [vmem:[%s4236 + $0x50] sm:$0xf]
        %v4258 = vld [vmem:[%s4236 + $0x54] sm:$0xf]
        %v4259 = vld [vmem:[%s4236 + $0x58] sm:$0xf]
        %v4260 = vld [vmem:[%s4236 + $0x5c] sm:$0xf]
        %v4261 = vld [vmem:[%s4236 + $0x60] sm:$0xf]
        %v4262 = vld [vmem:[%s4236 + $0x64] sm:$0xf]
        %v4263 = vld [vmem:[%s4236 + $0x68] sm:$0xf]
        %v4264 = vld [vmem:[%s4236 + $0x6c] sm:$0xf]
        %v4265 = vld [vmem:[%s4236 + $0x70] sm:$0xf]
        %v4266 = vld [vmem:[%s4236 + $0x74] sm:$0xf]
        %v4267 = vld [vmem:[%s4236 + $0x78] sm:$0xf]
        %v4268 = vld [vmem:[%s4236 + $0x7c] sm:$0xf]
        %v4269 = vld [vmem:[%s4236 + $0x80] sm:$0xf]
        %v4270 = vld [vmem:[%s4236 + $0x84] sm:$0xf]
        %v4271 = vld [vmem:[%s4236 + $0x88] sm:$0xf]
        %v4272 = vld [vmem:[%s4236 + $0x8c] sm:$0xf]
        %v4273 = vld [vmem:[%s4236 + $0x90] sm:$0xf]
        %v4274 = vld [vmem:[%s4236 + $0x94] sm:$0xf]
        %v4275 = vld [vmem:[%s4236 + $0x98] sm:$0xf]
        %v4276 = vld [vmem:[%s4236 + $0x9c] sm:$0xf]
        %v4277 = vld [vmem:[%s4236 + $0xa0] sm:$0xf]
        %v4278 = vld [vmem:[%s4236 + $0xa4] sm:$0xf]
        %v4279 = vld [vmem:[%s4236 + $0xa8] sm:$0xf]
        %v4280 = vld [vmem:[%s4236 + $0xac] sm:$0xf]
        %v4281 = vld [vmem:[%s4236 + $0xb0] sm:$0xf]
        %v4282 = vld [vmem:[%s4236 + $0xb4] sm:$0xf]
        %v4283 = vld [vmem:[%s4236 + $0xb8] sm:$0xf]
        %v4284 = vld [vmem:[%s4236 + $0xbc] sm:$0xf]
        %v4285 = vld [vmem:[#allocation2 + $0x10] sm:$0xf8]
        %v4286 = vld [vmem:[#allocation2 + $0x18] sm:$0xff]
        %v4287 = vld [vmem:[#allocation2 + $0x20] sm:$0xff]
        %v4288 = vld [vmem:[#allocation2 + $0x28] sm:$0xff]
        %v4289 = vld [vmem:[#allocation2 + $0x30] sm:$0xff]
        %v4290 = vld [vmem:[#allocation2 + $0x38] sm:$0xff]
        %v4291 = vld [vmem:[#allocation2 + $0x40] sm:$0xff]
        %v4292 = vld [vmem:[#allocation2 + $0x48] sm:$0xff]
        %v4293 = vld [vmem:[#allocation2 + $0x50] sm:$0xff]
        %v4294 = vld [vmem:[#allocation2 + $0x58] sm:$0xff]
        %v4295 = vld [vmem:[#allocation2 + $0x60] sm:$0xff]
        %v4296 = vld [vmem:[#allocation2 + $0x68] sm:$0xff]
        %v4297 = vld [vmem:[#allocation2 + $0x70] sm:$0xff]
        %v4298 = vld [vmem:[#allocation2 + $0x78] sm:$0xff]
        %v4299 = vld [vmem:[#allocation2 + $0x80] sm:$0xff]
        %v4300 = vld [vmem:[#allocation2 + $0x88] sm:$0xff]
        %v4301 = vld [vmem:[#allocation2 + $0x90] sm:$0xf]
        %v4302 = vsel %vm1685, %v4285, 0
        %v4303 = vsel %vm1686, %v4286, 0
        %v4304 = vsel %vm1687, %v4287, 0
        %v4305 = vsel %vm1688, %v4288, 0
        %v4306 = vsel %vm1689, %v4289, 0
        %v4307 = vsel %vm1690, %v4290, 0
        %v4308 = vsel %vm1691, %v4291, 0
        %v4309 = vsel %vm1692, %v4292, 0
        %v4310 = vsel %vm1693, %v4293, 0
        %v4311 = vsel %vm1694, %v4294, 0
        %v4312 = vsel %vm1695, %v4295, 0
        %v4313 = vsel %vm1696, %v4296, 0
        %v4314 = vsel %vm1697, %v4297, 0
        %v4315 = vsel %vm1698, %v4298, 0
        %v4316 = vsel %vm1699, %v4299, 0
        %v4317 = vsel %vm1700, %v4300, 0
        %v4318 = vsel %vm1701, %v4301, 0
        %v4319 = vld [vmem:[#allocation2 + $0x10] sm:$0xf0]
        %v4320 = vld [vmem:[#allocation2 + $0x90] sm:$0x1f]
        %v4321 = vsel %vm2041, %v4319, 0
        %v4322 = vsel %vm2042, %v4286, 0
        %v4323 = vsel %vm2043, %v4287, 0
        %v4324 = vsel %vm2044, %v4288, 0
        %v4325 = vsel %vm2045, %v4289, 0
        %v4326 = vsel %vm2046, %v4290, 0
        %v4327 = vsel %vm2047, %v4291, 0
        %v4328 = vsel %vm2048, %v4292, 0
        %v4329 = vsel %vm2049, %v4293, 0
        %v4330 = vsel %vm2050, %v4294, 0
        %v4331 = vsel %vm2051, %v4295, 0
        %v4332 = vsel %vm2052, %v4296, 0
        %v4333 = vsel %vm2053, %v4297, 0
        %v4334 = vsel %vm2054, %v4298, 0
        %v4335 = vsel %vm2055, %v4299, 0
        %v4336 = vsel %vm2056, %v4300, 0
        %v4337 = vsel %vm2057, %v4320, 0
        %v4339 = vshrl.u32 %v4319, 16
        %v4341 = vshll.u32 %v4319, 16
        %v4343 = vrot.slane %v4341, 1
        %v4344 = vor.u32 %v4339, %v4343
        %v4346 = vshll.u32 %v4286, 16
        %v4348 = vrot.slane %v4346, 1
        %v4349 = vsel %vm2075, %v4344, %v4348
        %v4350 = vshrl.u32 %v4286, 16
        %v4352 = vor.u32 %v4350, %v4348
        %v4354 = vshll.u32 %v4287, 16
        %v4356 = vrot.slane %v4354, 1
        %v4357 = vsel %vm2075, %v4352, %v4356
        %v4358 = vshrl.u32 %v4287, 16
        %v4360 = vor.u32 %v4358, %v4356
        %v4362 = vshll.u32 %v4288, 16
        %v4364 = vrot.slane %v4362, 1
        %v4365 = vsel %vm2075, %v4360, %v4364
        %v4366 = vshrl.u32 %v4288, 16
        %v4368 = vor.u32 %v4366, %v4364
        %v4370 = vshll.u32 %v4289, 16
        %v4372 = vrot.slane %v4370, 1
        %v4373 = vsel %vm2075, %v4368, %v4372
        %v4374 = vshrl.u32 %v4289, 16
        %v4376 = vor.u32 %v4374, %v4372
        %v4378 = vshll.u32 %v4290, 16
        %v4380 = vrot.slane %v4378, 1
        %v4381 = vsel %vm2075, %v4376, %v4380
        %v4382 = vshrl.u32 %v4290, 16
        %v4384 = vor.u32 %v4382, %v4380
        %v4386 = vshll.u32 %v4291, 16
        %v4388 = vrot.slane %v4386, 1
        %v4389 = vsel %vm2075, %v4384, %v4388
        %v4390 = vshrl.u32 %v4291, 16
        %v4392 = vor.u32 %v4390, %v4388
        %v4394 = vshll.u32 %v4292, 16
        %v4396 = vrot.slane %v4394, 1
        %v4397 = vsel %vm2075, %v4392, %v4396
        %v4398 = vshrl.u32 %v4292, 16
        %v4400 = vor.u32 %v4398, %v4396
        %v4402 = vshll.u32 %v4293, 16
        %v4404 = vrot.slane %v4402, 1
        %v4405 = vsel %vm2075, %v4400, %v4404
        %v4406 = vshrl.u32 %v4293, 16
        %v4408 = vor.u32 %v4406, %v4404
        %v4410 = vshll.u32 %v4294, 16
        %v4412 = vrot.slane %v4410, 1
        %v4413 = vsel %vm2075, %v4408, %v4412
        %v4414 = vshrl.u32 %v4294, 16
        %v4416 = vor.u32 %v4414, %v4412
        %v4418 = vshll.u32 %v4295, 16
        %v4420 = vrot.slane %v4418, 1
        %v4421 = vsel %vm2075, %v4416, %v4420
        %v4422 = vshrl.u32 %v4295, 16
        %v4424 = vor.u32 %v4422, %v4420
        %v4426 = vshll.u32 %v4296, 16
        %v4428 = vrot.slane %v4426, 1
        %v4429 = vsel %vm2075, %v4424, %v4428
        %v4430 = vshrl.u32 %v4296, 16
        %v4432 = vor.u32 %v4430, %v4428
        %v4434 = vshll.u32 %v4297, 16
        %v4436 = vrot.slane %v4434, 1
        %v4437 = vsel %vm2075, %v4432, %v4436
        %v4438 = vshrl.u32 %v4297, 16
        %v4440 = vor.u32 %v4438, %v4436
        %v4442 = vshll.u32 %v4298, 16
        %v4444 = vrot.slane %v4442, 1
        %v4445 = vsel %vm2075, %v4440, %v4444
        %v4446 = vshrl.u32 %v4298, 16
        %v4448 = vor.u32 %v4446, %v4444
        %v4450 = vshll.u32 %v4299, 16
        %v4452 = vrot.slane %v4450, 1
        %v4453 = vsel %vm2075, %v4448, %v4452
        %v4454 = vshrl.u32 %v4299, 16
        %v4456 = vor.u32 %v4454, %v4452
        %v4458 = vshll.u32 %v4300, 16
        %v4460 = vrot.slane %v4458, 1
        %v4461 = vsel %vm2075, %v4456, %v4460
        %v4462 = vshrl.u32 %v4300, 16
        %v4464 = vor.u32 %v4462, %v4460
        %v4466 = vshll.u32 %v4301, 16
        %v4468 = vrot.slane %v4466, 1
        %v4469 = vsel %vm2075, %v4464, %v4468
        %v4470 = vshrl.u32 %v4301, 16
        %v4472 = vor.u32 %v4470, %v4468
        %v4490 = vrot.slane %v4321, 1
        %v4491 = vrot.slane %v4322, 1
        %v4492 = vsel %vm2228, %v4490, %v4491
        %v4493 = vrot.slane %v4323, 1
        %v4494 = vsel %vm2228, %v4491, %v4493
        %v4495 = vrot.slane %v4324, 1
        %v4496 = vsel %vm2228, %v4493, %v4495
        %v4497 = vrot.slane %v4325, 1
        %v4498 = vsel %vm2228, %v4495, %v4497
        %v4499 = vrot.slane %v4326, 1
        %v4500 = vsel %vm2228, %v4497, %v4499
        %v4501 = vrot.slane %v4327, 1
        %v4502 = vsel %vm2228, %v4499, %v4501
        %v4503 = vrot.slane %v4328, 1
        %v4504 = vsel %vm2228, %v4501, %v4503
        %v4505 = vrot.slane %v4329, 1
        %v4506 = vsel %vm2228, %v4503, %v4505
        %v4507 = vrot.slane %v4330, 1
        %v4508 = vsel %vm2228, %v4505, %v4507
        %v4509 = vrot.slane %v4331, 1
        %v4510 = vsel %vm2228, %v4507, %v4509
        %v4511 = vrot.slane %v4332, 1
        %v4512 = vsel %vm2228, %v4509, %v4511
        %v4513 = vrot.slane %v4333, 1
        %v4514 = vsel %vm2228, %v4511, %v4513
        %v4515 = vrot.slane %v4334, 1
        %v4516 = vsel %vm2228, %v4513, %v4515
        %v4517 = vrot.slane %v4335, 1
        %v4518 = vsel %vm2228, %v4515, %v4517
        %v4519 = vrot.slane %v4336, 1
        %v4520 = vsel %vm2228, %v4517, %v4519
        %v4521 = vrot.slane %v4337, 1
        %v4522 = vsel %vm2228, %v4519, %v4521
        %v4524 = vshrl.u32 %v4302, 16
        %v4526 = vrot.slane %v4524, 3
        %v4527 = vshll.u32 %v4302, 16
        %v4529 = vrot.slane %v4527, 4
        %v4530 = vor.u32 %v4526, %v4529
        %v4532 = vshrl.u32 %v4303, 16
        %v4534 = vrot.slane %v4532, 3
        %v4535 = vshll.u32 %v4303, 16
        %v4537 = vrot.slane %v4535, 4
        %v4538 = vor.u32 %v4534, %v4537
        %v4539 = vsel %vm1897, %v4530, %v4538
        %v4541 = vshrl.u32 %v4349, 16
        %v4543 = vrot.slane %v4541, 3
        %v4544 = vshll.u32 %v4349, 16
        %v4546 = vrot.slane %v4544, 4
        %v4547 = vor.u32 %v4543, %v4546
        %v4549 = vshrl.u32 %v4357, 16
        %v4551 = vrot.slane %v4549, 3
        %v4552 = vshll.u32 %v4357, 16
        %v4554 = vrot.slane %v4552, 4
        %v4555 = vor.u32 %v4551, %v4554
        %v4556 = vsel %vm1897, %v4547, %v4555
        %v4558 = vshrl.u32 %v4492, 16
        %v4560 = vrot.slane %v4558, 3
        %v4561 = vshll.u32 %v4492, 16
        %v4563 = vrot.slane %v4561, 4
        %v4564 = vor.u32 %v4560, %v4563
        %v4566 = vshrl.u32 %v4494, 16
        %v4568 = vrot.slane %v4566, 3
        %v4569 = vshll.u32 %v4494, 16
        %v4571 = vrot.slane %v4569, 4
        %v4572 = vor.u32 %v4568, %v4571
        %v4573 = vsel %vm1897, %v4564, %v4572
        %v4575 = vshrl.u32 %v4304, 16
        %v4577 = vrot.slane %v4575, 3
        %v4578 = vshll.u32 %v4304, 16
        %v4580 = vrot.slane %v4578, 4
        %v4581 = vor.u32 %v4577, %v4580
        %v4582 = vsel %vm1897, %v4538, %v4581
        %v4584 = vshrl.u32 %v4365, 16
        %v4586 = vrot.slane %v4584, 3
        %v4587 = vshll.u32 %v4365, 16
        %v4589 = vrot.slane %v4587, 4
        %v4590 = vor.u32 %v4586, %v4589
        %v4591 = vsel %vm1897, %v4555, %v4590
        %v4593 = vshrl.u32 %v4496, 16
        %v4595 = vrot.slane %v4593, 3
        %v4596 = vshll.u32 %v4496, 16
        %v4598 = vrot.slane %v4596, 4
        %v4599 = vor.u32 %v4595, %v4598
        %v4600 = vsel %vm1897, %v4572, %v4599
        %v4602 = vshrl.u32 %v4305, 16
        %v4604 = vrot.slane %v4602, 3
        %v4605 = vshll.u32 %v4305, 16
        %v4607 = vrot.slane %v4605, 4
        %v4608 = vor.u32 %v4604, %v4607
        %v4609 = vsel %vm1897, %v4581, %v4608
        %v4611 = vshrl.u32 %v4373, 16
        %v4613 = vrot.slane %v4611, 3
        %v4614 = vshll.u32 %v4373, 16
        %v4616 = vrot.slane %v4614, 4
        %v4617 = vor.u32 %v4613, %v4616
        %v4618 = vsel %vm1897, %v4590, %v4617
        %v4620 = vshrl.u32 %v4498, 16
        %v4622 = vrot.slane %v4620, 3
        %v4623 = vshll.u32 %v4498, 16
        %v4625 = vrot.slane %v4623, 4
        %v4626 = vor.u32 %v4622, %v4625
        %v4627 = vsel %vm1897, %v4599, %v4626
        %v4629 = vshrl.u32 %v4306, 16
        %v4631 = vrot.slane %v4629, 3
        %v4632 = vshll.u32 %v4306, 16
        %v4634 = vrot.slane %v4632, 4
        %v4635 = vor.u32 %v4631, %v4634
        %v4636 = vsel %vm1897, %v4608, %v4635
        %v4638 = vshrl.u32 %v4381, 16
        %v4640 = vrot.slane %v4638, 3
        %v4641 = vshll.u32 %v4381, 16
        %v4643 = vrot.slane %v4641, 4
        %v4644 = vor.u32 %v4640, %v4643
        %v4645 = vsel %vm1897, %v4617, %v4644
        %v4647 = vshrl.u32 %v4500, 16
        %v4649 = vrot.slane %v4647, 3
        %v4650 = vshll.u32 %v4500, 16
        %v4652 = vrot.slane %v4650, 4
        %v4653 = vor.u32 %v4649, %v4652
        %v4654 = vsel %vm1897, %v4626, %v4653
        %v4656 = vshrl.u32 %v4307, 16
        %v4658 = vrot.slane %v4656, 3
        %v4659 = vshll.u32 %v4307, 16
        %v4661 = vrot.slane %v4659, 4
        %v4662 = vor.u32 %v4658, %v4661
        %v4663 = vsel %vm1897, %v4635, %v4662
        %v4665 = vshrl.u32 %v4389, 16
        %v4667 = vrot.slane %v4665, 3
        %v4668 = vshll.u32 %v4389, 16
        %v4670 = vrot.slane %v4668, 4
        %v4671 = vor.u32 %v4667, %v4670
        %v4672 = vsel %vm1897, %v4644, %v4671
        %v4674 = vshrl.u32 %v4502, 16
        %v4676 = vrot.slane %v4674, 3
        %v4677 = vshll.u32 %v4502, 16
        %v4679 = vrot.slane %v4677, 4
        %v4680 = vor.u32 %v4676, %v4679
        %v4681 = vsel %vm1897, %v4653, %v4680
        %v4683 = vshrl.u32 %v4308, 16
        %v4685 = vrot.slane %v4683, 3
        %v4686 = vshll.u32 %v4308, 16
        %v4688 = vrot.slane %v4686, 4
        %v4689 = vor.u32 %v4685, %v4688
        %v4690 = vsel %vm1897, %v4662, %v4689
        %v4692 = vshrl.u32 %v4397, 16
        %v4694 = vrot.slane %v4692, 3
        %v4695 = vshll.u32 %v4397, 16
        %v4697 = vrot.slane %v4695, 4
        %v4698 = vor.u32 %v4694, %v4697
        %v4699 = vsel %vm1897, %v4671, %v4698
        %v4701 = vshrl.u32 %v4504, 16
        %v4703 = vrot.slane %v4701, 3
        %v4704 = vshll.u32 %v4504, 16
        %v4706 = vrot.slane %v4704, 4
        %v4707 = vor.u32 %v4703, %v4706
        %v4708 = vsel %vm1897, %v4680, %v4707
        %v4710 = vshrl.u32 %v4309, 16
        %v4712 = vrot.slane %v4710, 3
        %v4713 = vshll.u32 %v4309, 16
        %v4715 = vrot.slane %v4713, 4
        %v4716 = vor.u32 %v4712, %v4715
        %v4717 = vsel %vm1897, %v4689, %v4716
        %v4719 = vshrl.u32 %v4405, 16
        %v4721 = vrot.slane %v4719, 3
        %v4722 = vshll.u32 %v4405, 16
        %v4724 = vrot.slane %v4722, 4
        %v4725 = vor.u32 %v4721, %v4724
        %v4726 = vsel %vm1897, %v4698, %v4725
        %v4728 = vshrl.u32 %v4506, 16
        %v4730 = vrot.slane %v4728, 3
        %v4731 = vshll.u32 %v4506, 16
        %v4733 = vrot.slane %v4731, 4
        %v4734 = vor.u32 %v4730, %v4733
        %v4735 = vsel %vm1897, %v4707, %v4734
        %v4737 = vshrl.u32 %v4310, 16
        %v4739 = vrot.slane %v4737, 3
        %v4740 = vshll.u32 %v4310, 16
        %v4742 = vrot.slane %v4740, 4
        %v4743 = vor.u32 %v4739, %v4742
        %v4744 = vsel %vm1897, %v4716, %v4743
        %v4746 = vshrl.u32 %v4413, 16
        %v4748 = vrot.slane %v4746, 3
        %v4749 = vshll.u32 %v4413, 16
        %v4751 = vrot.slane %v4749, 4
        %v4752 = vor.u32 %v4748, %v4751
        %v4753 = vsel %vm1897, %v4725, %v4752
        %v4755 = vshrl.u32 %v4508, 16
        %v4757 = vrot.slane %v4755, 3
        %v4758 = vshll.u32 %v4508, 16
        %v4760 = vrot.slane %v4758, 4
        %v4761 = vor.u32 %v4757, %v4760
        %v4762 = vsel %vm1897, %v4734, %v4761
        %v4764 = vshrl.u32 %v4311, 16
        %v4766 = vrot.slane %v4764, 3
        %v4767 = vshll.u32 %v4311, 16
        %v4769 = vrot.slane %v4767, 4
        %v4770 = vor.u32 %v4766, %v4769
        %v4771 = vsel %vm1897, %v4743, %v4770
        %v4773 = vshrl.u32 %v4421, 16
        %v4775 = vrot.slane %v4773, 3
        %v4776 = vshll.u32 %v4421, 16
        %v4778 = vrot.slane %v4776, 4
        %v4779 = vor.u32 %v4775, %v4778
        %v4780 = vsel %vm1897, %v4752, %v4779
        %v4782 = vshrl.u32 %v4510, 16
        %v4784 = vrot.slane %v4782, 3
        %v4785 = vshll.u32 %v4510, 16
        %v4787 = vrot.slane %v4785, 4
        %v4788 = vor.u32 %v4784, %v4787
        %v4789 = vsel %vm1897, %v4761, %v4788
        %v4791 = vshrl.u32 %v4312, 16
        %v4793 = vrot.slane %v4791, 3
        %v4794 = vshll.u32 %v4312, 16
        %v4796 = vrot.slane %v4794, 4
        %v4797 = vor.u32 %v4793, %v4796
        %v4798 = vsel %vm1897, %v4770, %v4797
        %v4800 = vshrl.u32 %v4429, 16
        %v4802 = vrot.slane %v4800, 3
        %v4803 = vshll.u32 %v4429, 16
        %v4805 = vrot.slane %v4803, 4
        %v4806 = vor.u32 %v4802, %v4805
        %v4807 = vsel %vm1897, %v4779, %v4806
        %v4809 = vshrl.u32 %v4512, 16
        %v4811 = vrot.slane %v4809, 3
        %v4812 = vshll.u32 %v4512, 16
        %v4814 = vrot.slane %v4812, 4
        %v4815 = vor.u32 %v4811, %v4814
        %v4816 = vsel %vm1897, %v4788, %v4815
        %v4818 = vshrl.u32 %v4313, 16
        %v4820 = vrot.slane %v4818, 3
        %v4821 = vshll.u32 %v4313, 16
        %v4823 = vrot.slane %v4821, 4
        %v4824 = vor.u32 %v4820, %v4823
        %v4825 = vsel %vm1897, %v4797, %v4824
        %v4827 = vshrl.u32 %v4437, 16
        %v4829 = vrot.slane %v4827, 3
        %v4830 = vshll.u32 %v4437, 16
        %v4832 = vrot.slane %v4830, 4
        %v4833 = vor.u32 %v4829, %v4832
        %v4834 = vsel %vm1897, %v4806, %v4833
        %v4836 = vshrl.u32 %v4514, 16
        %v4838 = vrot.slane %v4836, 3
        %v4839 = vshll.u32 %v4514, 16
        %v4841 = vrot.slane %v4839, 4
        %v4842 = vor.u32 %v4838, %v4841
        %v4843 = vsel %vm1897, %v4815, %v4842
        %v4845 = vshrl.u32 %v4314, 16
        %v4847 = vrot.slane %v4845, 3
        %v4848 = vshll.u32 %v4314, 16
        %v4850 = vrot.slane %v4848, 4
        %v4851 = vor.u32 %v4847, %v4850
        %v4852 = vsel %vm1897, %v4824, %v4851
        %v4854 = vshrl.u32 %v4445, 16
        %v4856 = vrot.slane %v4854, 3
        %v4857 = vshll.u32 %v4445, 16
        %v4859 = vrot.slane %v4857, 4
        %v4860 = vor.u32 %v4856, %v4859
        %v4861 = vsel %vm1897, %v4833, %v4860
        %v4863 = vshrl.u32 %v4516, 16
        %v4865 = vrot.slane %v4863, 3
        %v4866 = vshll.u32 %v4516, 16
        %v4868 = vrot.slane %v4866, 4
        %v4869 = vor.u32 %v4865, %v4868
        %v4870 = vsel %vm1897, %v4842, %v4869
        %v4872 = vshrl.u32 %v4315, 16
        %v4874 = vrot.slane %v4872, 3
        %v4875 = vshll.u32 %v4315, 16
        %v4877 = vrot.slane %v4875, 4
        %v4878 = vor.u32 %v4874, %v4877
        %v4879 = vsel %vm1897, %v4851, %v4878
        %v4881 = vshrl.u32 %v4453, 16
        %v4883 = vrot.slane %v4881, 3
        %v4884 = vshll.u32 %v4453, 16
        %v4886 = vrot.slane %v4884, 4
        %v4887 = vor.u32 %v4883, %v4886
        %v4888 = vsel %vm1897, %v4860, %v4887
        %v4890 = vshrl.u32 %v4518, 16
        %v4892 = vrot.slane %v4890, 3
        %v4893 = vshll.u32 %v4518, 16
        %v4895 = vrot.slane %v4893, 4
        %v4896 = vor.u32 %v4892, %v4895
        %v4897 = vsel %vm1897, %v4869, %v4896
        %v4899 = vshrl.u32 %v4316, 16
        %v4901 = vrot.slane %v4899, 3
        %v4902 = vshll.u32 %v4316, 16
        %v4904 = vrot.slane %v4902, 4
        %v4905 = vor.u32 %v4901, %v4904
        %v4906 = vsel %vm1897, %v4878, %v4905
        %v4908 = vshrl.u32 %v4461, 16
        %v4910 = vrot.slane %v4908, 3
        %v4911 = vshll.u32 %v4461, 16
        %v4913 = vrot.slane %v4911, 4
        %v4914 = vor.u32 %v4910, %v4913
        %v4915 = vsel %vm1897, %v4887, %v4914
        %v4917 = vshrl.u32 %v4520, 16
        %v4919 = vrot.slane %v4917, 3
        %v4920 = vshll.u32 %v4520, 16
        %v4922 = vrot.slane %v4920, 4
        %v4923 = vor.u32 %v4919, %v4922
        %v4924 = vsel %vm1897, %v4896, %v4923
        %v4926 = vshrl.u32 %v4317, 16
        %v4928 = vrot.slane %v4926, 3
        %v4929 = vshll.u32 %v4317, 16
        %v4931 = vrot.slane %v4929, 4
        %v4932 = vor.u32 %v4928, %v4931
        %v4933 = vsel %vm1897, %v4905, %v4932
        %v4935 = vshrl.u32 %v4469, 16
        %v4937 = vrot.slane %v4935, 3
        %v4938 = vshll.u32 %v4469, 16
        %v4940 = vrot.slane %v4938, 4
        %v4941 = vor.u32 %v4937, %v4940
        %v4942 = vsel %vm1897, %v4914, %v4941
        %v4944 = vshrl.u32 %v4522, 16
        %v4946 = vrot.slane %v4944, 3
        %v4947 = vshll.u32 %v4522, 16
        %v4949 = vrot.slane %v4947, 4
        %v4950 = vor.u32 %v4946, %v4949
        %v4951 = vsel %vm1897, %v4923, %v4950
        %v4953 = vshrl.u32 %v4318, 16
        %v4955 = vrot.slane %v4953, 3
        %v4956 = vshll.u32 %v4318, 16
        %v4958 = vrot.slane %v4956, 4
        %v4959 = vor.u32 %v4955, %v4958
        %v4960 = vsel %vm1897, %v4932, %v4959
        %v4962 = vshrl.u32 %v4472, 16
        %v4964 = vrot.slane %v4962, 3
        %v4965 = vshll.u32 %v4472, 16
        %v4967 = vrot.slane %v4965, 4
        %v4968 = vor.u32 %v4964, %v4967
        %v4969 = vsel %vm1897, %v4941, %v4968
        %v4971 = vshrl.u32 %v4521, 16
        %v4973 = vrot.slane %v4971, 3
        %v4974 = vshll.u32 %v4521, 16
        %v4976 = vrot.slane %v4974, 4
        %v4977 = vor.u32 %v4973, %v4976
        %v4978 = vsel %vm1897, %v4950, %v4977
        %v5075 = vunpack.c.l.b16 %v4237
        %v5076 = vunpack.c.l.b16 %v4238
        %v5077 = vunpack.c.l.b16 %v4239
        %v5078 = vunpack.c.l.b16 %v4240
        %v5079 = vunpack.c.l.b16 %v4241
        %v5080 = vunpack.c.l.b16 %v4242
        %v5081 = vunpack.c.l.b16 %v4243
        %v5082 = vunpack.c.l.b16 %v4244
        %v5083 = vunpack.c.l.b16 %v4245
        %v5084 = vunpack.c.l.b16 %v4246
        %v5085 = vunpack.c.l.b16 %v4247
        %v5086 = vunpack.c.l.b16 %v4248
        %v5087 = vunpack.c.l.b16 %v4249
        %v5088 = vunpack.c.l.b16 %v4250
        %v5089 = vunpack.c.l.b16 %v4251
        %v5090 = vunpack.c.l.b16 %v4252
        %v5091 = vunpack.c.l.b16 %v4253
        %v5092 = vunpack.c.l.b16 %v4254
        %v5093 = vunpack.c.l.b16 %v4255
        %v5094 = vunpack.c.l.b16 %v4256
        %v5095 = vunpack.c.l.b16 %v4257
        %v5096 = vunpack.c.l.b16 %v4258
        %v5097 = vunpack.c.l.b16 %v4259
        %v5098 = vunpack.c.l.b16 %v4260
        %v5099 = vunpack.c.l.b16 %v4261
        %v5100 = vunpack.c.l.b16 %v4262
        %v5101 = vunpack.c.l.b16 %v4263
        %v5102 = vunpack.c.l.b16 %v4264
        %v5103 = vunpack.c.l.b16 %v4265
        %v5104 = vunpack.c.l.b16 %v4266
        %v5105 = vunpack.c.l.b16 %v4267
        %v5106 = vunpack.c.l.b16 %v4268
        %v5107 = vunpack.c.l.b16 %v4269
        %v5108 = vunpack.c.l.b16 %v4270
        %v5109 = vunpack.c.l.b16 %v4271
        %v5110 = vunpack.c.l.b16 %v4272
        %v5111 = vunpack.c.l.b16 %v4273
        %v5112 = vunpack.c.l.b16 %v4274
        %v5113 = vunpack.c.l.b16 %v4275
        %v5114 = vunpack.c.l.b16 %v4276
        %v5115 = vunpack.c.l.b16 %v4277
        %v5116 = vunpack.c.l.b16 %v4278
        %v5117 = vunpack.c.l.b16 %v4279
        %v5118 = vunpack.c.l.b16 %v4280
        %v5119 = vunpack.c.l.b16 %v4281
        %v5120 = vunpack.c.l.b16 %v4282
        %v5121 = vunpack.c.l.b16 %v4283
        %v5122 = vunpack.c.l.b16 %v4284
        %v5123 = vpack.c.b16 %v5076, %v5075
        %v5124 = vpack.c.b16 %v5078, %v5077
        %v5125 = vpack.c.b16 %v5080, %v5079
        %v5126 = vpack.c.b16 %v5082, %v5081
        %v5127 = vpack.c.b16 %v5084, %v5083
        %v5128 = vpack.c.b16 %v5086, %v5085
        %v5129 = vpack.c.b16 %v5088, %v5087
        %v5130 = vpack.c.b16 %v5090, %v5089
        %v5131 = vpack.c.b16 %v5092, %v5091
        %v5132 = vpack.c.b16 %v5094, %v5093
        %v5133 = vpack.c.b16 %v5096, %v5095
        %v5134 = vpack.c.b16 %v5098, %v5097
        %v5135 = vpack.c.b16 %v5100, %v5099
        %v5136 = vpack.c.b16 %v5102, %v5101
        %v5137 = vpack.c.b16 %v5104, %v5103
        %v5138 = vpack.c.b16 %v5106, %v5105
        %v5139 = vpack.c.b16 %v5108, %v5107
        %v5140 = vpack.c.b16 %v5110, %v5109
        %v5141 = vpack.c.b16 %v5112, %v5111
        %v5142 = vpack.c.b16 %v5114, %v5113
        %v5143 = vpack.c.b16 %v5116, %v5115
        %v5144 = vpack.c.b16 %v5118, %v5117
        %v5145 = vpack.c.b16 %v5120, %v5119
        %v5146 = vpack.c.b16 %v5122, %v5121
        %5171 = vmatprep.subr.bf16.mxu0 0
        %5172 = vmatpush1.bf16.msra.mxu0 %v5123
        %5173 = vmatprep.subr.bf16.mxu0 0
        %5174 = vmatpush1.bf16.msra.mxu0 %v5124
        %5175 = vmatprep.subr.bf16.mxu0 0
        %5176 = vmatpush1.bf16.msra.mxu0 %v5125
        %5177 = vmatprep.subr.bf16.mxu0 0
        %5178 = vmatpush1.bf16.msra.mxu0 %v5126
        %5179 = vmatprep.subr.bf16.mxu0 0
        %5180 = vmatpush1.bf16.msra.mxu0 %v5127
        %5181 = vmatprep.subr.bf16.mxu0 0
        %5182 = vmatpush1.bf16.msra.mxu0 %v5128
        %5183 = vmatprep.subr.bf16.mxu0 0
        %5184 = vmatpush1.bf16.msra.mxu0 %v5129
        %5185 = vmatprep.subr.bf16.mxu0 0
        %5186 = vmatpush1.bf16.msra.mxu0 %v5130
        %5187 = vmatprep.subr.bf16.mxu0 0
        %5188 = vmatpush1.bf16.msra.mxu0 %v5131
        %5189 = vmatprep.subr.bf16.mxu0 0
        %5190 = vmatpush1.bf16.msra.mxu0 %v5132
        %5191 = vmatprep.subr.bf16.mxu0 0
        %5192 = vmatpush1.bf16.msra.mxu0 %v5133
        %5193 = vmatprep.subr.bf16.mxu0 0
        %5194 = vmatpush1.bf16.msra.mxu0 %v5134
        %5195 = vmatprep.subr.bf16.mxu0 0
        %5196 = vmatpush1.bf16.msra.mxu0 %v5135
        %5197 = vmatprep.subr.bf16.mxu0 0
        %5198 = vmatpush1.bf16.msra.mxu0 %v5136
        %5199 = vmatprep.subr.bf16.mxu0 0
        %5200 = vmatpush1.bf16.msra.mxu0 %v5137
        %5201 = vmatprep.subr.bf16.mxu0 0
        %5202 = vmatpush1.bf16.msra.mxu0 %v5138
        %5203 = vmatprep.mubr.bf16.mxu0 %v4556
        %5204 = vmatmul.mubr.bf16.gmra.mrb[0].mxu0 %v4539
        %v5205 = vpop.f32.mrb[0].mxu0
        %v5206 = vadd.f32 0.0, %v5205
        %v5207 = vpop.f32.mrb[0].mxu0
        %v5208 = vpop.f32.mrb[0].mxu0
        %v5209 = vadd.f32 0.0, %v5208
        %v5210 = vpop.f32.mrb[0].mxu0
        %5211 = vmatprep.mubr.bf16.mxu0 %v4591
        %5212 = vmatmul.mubr.bf16.gmra.mrb[0].mxu0 %v4582
        %v5213 = vpop.f32.mrb[0].mxu0
        %v5214 = vadd.f32 0.0, %v5213
        %v5215 = vpop.f32.mrb[0].mxu0
        %v5216 = vpop.f32.mrb[0].mxu0
        %v5217 = vadd.f32 0.0, %v5216
        %v5218 = vpop.f32.mrb[0].mxu0
        %5219 = vmatprep.mubr.bf16.mxu0 %v4618
        %5220 = vmatmul.mubr.bf16.gmra.mrb[0].mxu0 %v4609
        %v5221 = vpop.f32.mrb[0].mxu0
        %v5222 = vadd.f32 0.0, %v5221
        %v5223 = vpop.f32.mrb[0].mxu0
        %v5224 = vpop.f32.mrb[0].mxu0
        %v5225 = vadd.f32 0.0, %v5224
        %v5226 = vpop.f32.mrb[0].mxu0
        %5227 = vmatprep.mubr.bf16.mxu0 %v4645
        %5228 = vmatmul.mubr.bf16.gmra.mrb[0].mxu0 %v4636
        %v5229 = vpop.f32.mrb[0].mxu0
        %v5230 = vadd.f32 0.0, %v5229
        %v5231 = vpop.f32.mrb[0].mxu0
        %v5232 = vpop.f32.mrb[0].mxu0
        %v5233 = vadd.f32 0.0, %v5232
        %v5234 = vpop.f32.mrb[0].mxu0
        %5235 = vmatprep.mubr.bf16.mxu0 %v4672
        %5236 = vmatmul.mubr.bf16.gmra.mrb[0].mxu0 %v4663
        %v5237 = vpop.f32.mrb[0].mxu0
        %v5238 = vadd.f32 0.0, %v5237
        %v5239 = vpop.f32.mrb[0].mxu0
        %v5240 = vpop.f32.mrb[0].mxu0
        %v5241 = vadd.f32 0.0, %v5240
        %v5242 = vpop.f32.mrb[0].mxu0
        %5243 = vmatprep.mubr.bf16.mxu0 %v4699
        %5244 = vmatmul.mubr.bf16.gmra.mrb[0].mxu0 %v4690
        %v5245 = vpop.f32.mrb[0].mxu0
        %v5246 = vadd.f32 0.0, %v5245
        %v5247 = vpop.f32.mrb[0].mxu0
        %v5248 = vpop.f32.mrb[0].mxu0
        %v5249 = vadd.f32 0.0, %v5248
        %v5250 = vpop.f32.mrb[0].mxu0
        %5251 = vmatprep.mubr.bf16.mxu0 %v4726
        %5252 = vmatmul.mubr.bf16.gmra.mrb[0].mxu0 %v4717
        %v5253 = vpop.f32.mrb[0].mxu0
        %v5254 = vadd.f32 0.0, %v5253
        %v5255 = vpop.f32.mrb[0].mxu0
        %v5256 = vpop.f32.mrb[0].mxu0
        %v5257 = vadd.f32 0.0, %v5256
        %v5258 = vpop.f32.mrb[0].mxu0
        %5259 = vmatprep.mubr.bf16.mxu0 %v4753
        %5260 = vmatmul.mubr.bf16.gmra.mrb[0].mxu0 %v4744
        %v5261 = vpop.f32.mrb[0].mxu0
        %v5262 = vadd.f32 0.0, %v5261
        %v5263 = vpop.f32.mrb[0].mxu0
        %v5264 = vpop.f32.mrb[0].mxu0
        %v5265 = vadd.f32 0.0, %v5264
        %v5266 = vpop.f32.mrb[0].mxu0
        %5267 = vmatprep.mubr.bf16.mxu0 %v4780
        %5268 = vmatmul.mubr.bf16.gmra.mrb[0].mxu0 %v4771
        %v5269 = vpop.f32.mrb[0].mxu0
        %v5270 = vadd.f32 0.0, %v5269
        %v5271 = vpop.f32.mrb[0].mxu0
        %v5272 = vpop.f32.mrb[0].mxu0
        %v5273 = vadd.f32 0.0, %v5272
        %v5274 = vpop.f32.mrb[0].mxu0
        %5275 = vmatprep.mubr.bf16.mxu0 %v4807
        %5276 = vmatmul.mubr.bf16.gmra.mrb[0].mxu0 %v4798
        %v5277 = vpop.f32.mrb[0].mxu0
        %v5278 = vadd.f32 0.0, %v5277
        %v5279 = vpop.f32.mrb[0].mxu0
        %v5280 = vpop.f32.mrb[0].mxu0
        %v5281 = vadd.f32 0.0, %v5280
        %v5282 = vpop.f32.mrb[0].mxu0
        %5283 = vmatprep.mubr.bf16.mxu0 %v4834
        %5284 = vmatmul.mubr.bf16.gmra.mrb[0].mxu0 %v4825
        %v5285 = vpop.f32.mrb[0].mxu0
        %v5286 = vadd.f32 0.0, %v5285
        %v5287 = vpop.f32.mrb[0].mxu0
        %v5288 = vpop.f32.mrb[0].mxu0
        %v5289 = vadd.f32 0.0, %v5288
        %v5290 = vpop.f32.mrb[0].mxu0
        %5291 = vmatprep.mubr.bf16.mxu0 %v4861
        %5292 = vmatmul.mubr.bf16.gmra.mrb[0].mxu0 %v4852
        %v5293 = vpop.f32.mrb[0].mxu0
        %v5294 = vadd.f32 0.0, %v5293
        %v5295 = vpop.f32.mrb[0].mxu0
        %v5296 = vpop.f32.mrb[0].mxu0
        %v5297 = vadd.f32 0.0, %v5296
        %v5298 = vpop.f32.mrb[0].mxu0
        %5299 = vmatprep.mubr.bf16.mxu0 %v4888
        %5300 = vmatmul.mubr.bf16.gmra.mrb[0].mxu0 %v4879
        %v5301 = vpop.f32.mrb[0].mxu0
        %v5302 = vadd.f32 0.0, %v5301
        %v5303 = vpop.f32.mrb[0].mxu0
        %v5304 = vpop.f32.mrb[0].mxu0
        %v5305 = vadd.f32 0.0, %v5304
        %v5306 = vpop.f32.mrb[0].mxu0
        %5307 = vmatprep.mubr.bf16.mxu0 %v4915
        %5308 = vmatmul.mubr.bf16.gmra.mrb[0].mxu0 %v4906
        %v5309 = vpop.f32.mrb[0].mxu0
        %v5310 = vadd.f32 0.0, %v5309
        %v5311 = vpop.f32.mrb[0].mxu0
        %v5312 = vpop.f32.mrb[0].mxu0
        %v5313 = vadd.f32 0.0, %v5312
        %v5314 = vpop.f32.mrb[0].mxu0
        %5315 = vmatprep.mubr.bf16.mxu0 %v4942
        %5316 = vmatmul.mubr.bf16.gmra.mrb[0].mxu0 %v4933
        %v5317 = vpop.f32.mrb[0].mxu0
        %v5318 = vadd.f32 0.0, %v5317
        %v5319 = vpop.f32.mrb[0].mxu0
        %v5320 = vpop.f32.mrb[0].mxu0
        %v5321 = vadd.f32 0.0, %v5320
        %v5322 = vpop.f32.mrb[0].mxu0
        %5323 = vmatprep.mubr.bf16.mxu0 %v4969
        %5324 = vmatmul.mubr.bf16.gmra.mrb[0].mxu0 %v4960
        %v5325 = vpop.f32.mrb[0].mxu0
        %v5326 = vadd.f32 0.0, %v5325
        %v5327 = vpop.f32.mrb[0].mxu0
        %v5328 = vpop.f32.mrb[0].mxu0
        %v5329 = vadd.f32 0.0, %v5328
        %v5330 = vpop.f32.mrb[0].mxu0
        %5331 = vdwg.mxu0
        %5332 = vmatprep.subr.bf16.mxu0 0
        %5333 = vmatpush1.bf16.msra.mxu0 %v5139
        %5334 = vmatprep.subr.bf16.mxu0 0
        %5335 = vmatpush1.bf16.msra.mxu0 %v5140
        %5336 = vmatprep.subr.bf16.mxu0 0
        %5337 = vmatpush1.bf16.msra.mxu0 %v5141
        %5338 = vmatprep.subr.bf16.mxu0 0
        %5339 = vmatpush1.bf16.msra.mxu0 %v5142
        %5340 = vmatprep.subr.bf16.mxu0 0
        %5341 = vmatpush1.bf16.msra.mxu0 %v5143
        %5342 = vmatprep.subr.bf16.mxu0 0
        %5343 = vmatpush1.bf16.msra.mxu0 %v5144
        %5344 = vmatprep.subr.bf16.mxu0 0
        %5345 = vmatpush1.bf16.msra.mxu0 %v5145
        %5346 = vmatprep.subr.bf16.mxu0 0
        %5347 = vmatpush1.bf16.msra.mxu0 %v5146
        %5348 = vmatprep.subr.bf16.mxu0 0
        %5349 = vmatpush1.bf16.msra.mxu0 0
        %5350 = vmatprep.subr.bf16.mxu0 0
        %5351 = vmatpush1.bf16.msra.mxu0 0
        %5352 = vmatprep.subr.bf16.mxu0 0
        %5353 = vmatpush1.bf16.msra.mxu0 0
        %5354 = vmatprep.subr.bf16.mxu0 0
        %5355 = vmatpush1.bf16.msra.mxu0 0
        %5356 = vmatprep.subr.bf16.mxu0 0
        %5357 = vmatpush1.bf16.msra.mxu0 0
        %5358 = vmatprep.subr.bf16.mxu0 0
        %5359 = vmatpush1.bf16.msra.mxu0 0
        %5360 = vmatprep.subr.bf16.mxu0 0
        %5361 = vmatpush1.bf16.msra.mxu0 0
        %5362 = vmatprep.subr.bf16.mxu0 0
        %5363 = vmatpush1.bf16.msra.mxu0 0
        %5364 = vmatprep.mubr.bf16.mxu0 0
        %5365 = vmatmul.mubr.bf16.gmra.mrb[0].mxu0 %v4573
        %v5366 = vpop.f32.mrb[0].mxu0
        %v5367 = vadd.f32 %v5206, %v5366
        %v5368 = vpop.f32.mrb[0].mxu0
        %v5369 = vpop.f32.mrb[0].mxu0
        %v5370 = vadd.f32 %v5209, %v5369
        %v5371 = vpop.f32.mrb[0].mxu0
        %5372 = vmatprep.mubr.bf16.mxu0 0
        %5373 = vmatmul.mubr.bf16.gmra.mrb[0].mxu0 %v4600
        %v5374 = vpop.f32.mrb[0].mxu0
        %v5375 = vadd.f32 %v5214, %v5374
        %v5376 = vpop.f32.mrb[0].mxu0
        %v5377 = vpop.f32.mrb[0].mxu0
        %v5378 = vadd.f32 %v5217, %v5377
        %v5379 = vpop.f32.mrb[0].mxu0
        %5380 = vmatprep.mubr.bf16.mxu0 0
        %5381 = vmatmul.mubr.bf16.gmra.mrb[0].mxu0 %v4627
        %v5382 = vpop.f32.mrb[0].mxu0
        %v5383 = vadd.f32 %v5222, %v5382
        %v5384 = vpop.f32.mrb[0].mxu0
        %v5385 = vpop.f32.mrb[0].mxu0
        %v5386 = vadd.f32 %v5225, %v5385
        %v5387 = vpop.f32.mrb[0].mxu0
        %5388 = vmatprep.mubr.bf16.mxu0 0
        %5389 = vmatmul.mubr.bf16.gmra.mrb[0].mxu0 %v4654
        %v5390 = vpop.f32.mrb[0].mxu0
        %v5391 = vadd.f32 %v5230, %v5390
        %v5392 = vpop.f32.mrb[0].mxu0
        %v5393 = vpop.f32.mrb[0].mxu0
        %v5394 = vadd.f32 %v5233, %v5393
        %v5395 = vpop.f32.mrb[0].mxu0
        %5396 = vmatprep.mubr.bf16.mxu0 0
        %5397 = vmatmul.mubr.bf16.gmra.mrb[0].mxu0 %v4681
        %v5398 = vpop.f32.mrb[0].mxu0
        %v5399 = vadd.f32 %v5238, %v5398
        %v5400 = vpop.f32.mrb[0].mxu0
        %v5401 = vpop.f32.mrb[0].mxu0
        %v5402 = vadd.f32 %v5241, %v5401
        %v5403 = vpop.f32.mrb[0].mxu0
        %5404 = vmatprep.mubr.bf16.mxu0 0
        %5405 = vmatmul.mubr.bf16.gmra.mrb[0].mxu0 %v4708
        %v5406 = vpop.f32.mrb[0].mxu0
        %v5407 = vadd.f32 %v5246, %v5406
        %v5408 = vpop.f32.mrb[0].mxu0
        %v5409 = vpop.f32.mrb[0].mxu0
        %v5410 = vadd.f32 %v5249, %v5409
        %v5411 = vpop.f32.mrb[0].mxu0
        %5412 = vmatprep.mubr.bf16.mxu0 0
        %5413 = vmatmul.mubr.bf16.gmra.mrb[0].mxu0 %v4735
        %v5414 = vpop.f32.mrb[0].mxu0
        %v5415 = vadd.f32 %v5254, %v5414
        %v5416 = vpop.f32.mrb[0].mxu0
        %v5417 = vpop.f32.mrb[0].mxu0
        %v5418 = vadd.f32 %v5257, %v5417
        %v5419 = vpop.f32.mrb[0].mxu0
        %5420 = vmatprep.mubr.bf16.mxu0 0
        %5421 = vmatmul.mubr.bf16.gmra.mrb[0].mxu0 %v4762
        %v5422 = vpop.f32.mrb[0].mxu0
        %v5423 = vadd.f32 %v5262, %v5422
        %v5424 = vpop.f32.mrb[0].mxu0
        %v5425 = vpop.f32.mrb[0].mxu0
        %v5426 = vadd.f32 %v5265, %v5425
        %v5427 = vpop.f32.mrb[0].mxu0
        %5428 = vmatprep.mubr.bf16.mxu0 0
        %5429 = vmatmul.mubr.bf16.gmra.mrb[0].mxu0 %v4789
        %v5430 = vpop.f32.mrb[0].mxu0
        %v5431 = vadd.f32 %v5270, %v5430
        %v5432 = vpop.f32.mrb[0].mxu0
        %v5433 = vpop.f32.mrb[0].mxu0
        %v5434 = vadd.f32 %v5273, %v5433
        %v5435 = vpop.f32.mrb[0].mxu0
        %5436 = vmatprep.mubr.bf16.mxu0 0
        %5437 = vmatmul.mubr.bf16.gmra.mrb[0].mxu0 %v4816
        %v5438 = vpop.f32.mrb[0].mxu0
        %v5439 = vadd.f32 %v5278, %v5438
        %v5440 = vpop.f32.mrb[0].mxu0
        %v5441 = vpop.f32.mrb[0].mxu0
        %v5442 = vadd.f32 %v5281, %v5441
        %v5443 = vpop.f32.mrb[0].mxu0
        %5444 = vmatprep.mubr.bf16.mxu0 0
        %5445 = vmatmul.mubr.bf16.gmra.mrb[0].mxu0 %v4843
        %v5446 = vpop.f32.mrb[0].mxu0
        %v5447 = vadd.f32 %v5286, %v5446
        %v5448 = vpop.f32.mrb[0].mxu0
        %v5449 = vpop.f32.mrb[0].mxu0
        %v5450 = vadd.f32 %v5289, %v5449
        %v5451 = vpop.f32.mrb[0].mxu0
        %5452 = vmatprep.mubr.bf16.mxu0 0
        %5453 = vmatmul.mubr.bf16.gmra.mrb[0].mxu0 %v4870
        %v5454 = vpop.f32.mrb[0].mxu0
        %v5455 = vadd.f32 %v5294, %v5454
        %v5456 = vpop.f32.mrb[0].mxu0
        %v5457 = vpop.f32.mrb[0].mxu0
        %v5458 = vadd.f32 %v5297, %v5457
        %v5459 = vpop.f32.mrb[0].mxu0
        %5460 = vmatprep.mubr.bf16.mxu0 0
        %5461 = vmatmul.mubr.bf16.gmra.mrb[0].mxu0 %v4897
        %v5462 = vpop.f32.mrb[0].mxu0
        %v5463 = vadd.f32 %v5302, %v5462
        %v5464 = vpop.f32.mrb[0].mxu0
        %v5465 = vpop.f32.mrb[0].mxu0
        %v5466 = vadd.f32 %v5305, %v5465
        %v5467 = vpop.f32.mrb[0].mxu0
        %5468 = vmatprep.mubr.bf16.mxu0 0
        %5469 = vmatmul.mubr.bf16.gmra.mrb[0].mxu0 %v4924
        %v5470 = vpop.f32.mrb[0].mxu0
        %v5471 = vadd.f32 %v5310, %v5470
        %v5472 = vpop.f32.mrb[0].mxu0
        %v5473 = vpop.f32.mrb[0].mxu0
        %v5474 = vadd.f32 %v5313, %v5473
        %v5475 = vpop.f32.mrb[0].mxu0
        %5476 = vmatprep.mubr.bf16.mxu0 0
        %5477 = vmatmul.mubr.bf16.gmra.mrb[0].mxu0 %v4951
        %v5478 = vpop.f32.mrb[0].mxu0
        %v5479 = vadd.f32 %v5318, %v5478
        %v5480 = vpop.f32.mrb[0].mxu0
        %v5481 = vpop.f32.mrb[0].mxu0
        %v5482 = vadd.f32 %v5321, %v5481
        %v5483 = vpop.f32.mrb[0].mxu0
        %5484 = vmatprep.mubr.bf16.mxu0 0
        %5485 = vmatmul.mubr.bf16.gmra.mrb[0].mxu0 %v4978
        %v5486 = vpop.f32.mrb[0].mxu0
        %v5487 = vadd.f32 %v5326, %v5486
        %v5488 = vpop.f32.mrb[0].mxu0
        %v5489 = vpop.f32.mrb[0].mxu0
        %v5490 = vadd.f32 %v5329, %v5489
        %v5491 = vpop.f32.mrb[0].mxu0
        %5492 = vdwg.mxu0
        %v5493 = vadd.f32 %v4110, %v5367
        %v5494 = vadd.f32 %v4113, %v5370
        %v5495 = vadd.f32 %v4118, %v5375
        %v5496 = vadd.f32 %v4121, %v5378
        %v5497 = vadd.f32 %v4126, %v5383
        %v5498 = vadd.f32 %v4129, %v5386
        %v5499 = vadd.f32 %v4134, %v5391
        %v5500 = vadd.f32 %v4137, %v5394
        %v5501 = vadd.f32 %v4142, %v5399
        %v5502 = vadd.f32 %v4145, %v5402
        %v5503 = vadd.f32 %v4150, %v5407
        %v5504 = vadd.f32 %v4153, %v5410
        %v5505 = vadd.f32 %v4158, %v5415
        %v5506 = vadd.f32 %v4161, %v5418
        %v5507 = vadd.f32 %v4166, %v5423
        %v5508 = vadd.f32 %v4169, %v5426
        %v5509 = vadd.f32 %v4174, %v5431
        %v5510 = vadd.f32 %v4177, %v5434
        %v5511 = vadd.f32 %v4182, %v5439
        %v5512 = vadd.f32 %v4185, %v5442
        %v5513 = vadd.f32 %v4190, %v5447
        %v5514 = vadd.f32 %v4193, %v5450
        %v5515 = vadd.f32 %v4198, %v5455
        %v5516 = vadd.f32 %v4201, %v5458
        %v5517 = vadd.f32 %v4206, %v5463
        %v5518 = vadd.f32 %v4209, %v5466
        %v5519 = vadd.f32 %v4214, %v5471
        %v5520 = vadd.f32 %v4217, %v5474
        %v5521 = vadd.f32 %v4222, %v5479
        %v5522 = vadd.f32 %v4225, %v5482
        %v5523 = vadd.f32 %v4230, %v5487
        %v5524 = vadd.f32 %v4233, %v5490
        %v5525 = vld [vmem:[%s2] sm:$0x1]
        %v5527 = vlaneseq
        %v5528 = vshrl.u32 %v5527, 7
        %v5529 = vsub.s32 0, %v5528
        %v5530 = vrot.slane %v5525, %v5529
        %v5532 = vmul.f32 %v5493, %v5530
        %v5533 = vmul.f32 %v5494, %v5530
        %v5534 = vmul.f32 %v5495, %v5530
        %v5535 = vmul.f32 %v5496, %v5530
        %v5536 = vmul.f32 %v5497, %v5530
        %v5537 = vmul.f32 %v5498, %v5530
        %v5538 = vmul.f32 %v5499, %v5530
        %v5539 = vmul.f32 %v5500, %v5530
        %v5540 = vmul.f32 %v5501, %v5530
        %v5541 = vmul.f32 %v5502, %v5530
        %v5542 = vmul.f32 %v5503, %v5530
        %v5543 = vmul.f32 %v5504, %v5530
        %v5544 = vmul.f32 %v5505, %v5530
        %v5545 = vmul.f32 %v5506, %v5530
        %v5546 = vmul.f32 %v5507, %v5530
        %v5547 = vmul.f32 %v5508, %v5530
        %v5548 = vmul.f32 %v5509, %v5530
        %v5549 = vmul.f32 %v5510, %v5530
        %v5550 = vmul.f32 %v5511, %v5530
        %v5551 = vmul.f32 %v5512, %v5530
        %v5552 = vmul.f32 %v5513, %v5530
        %v5553 = vmul.f32 %v5514, %v5530
        %v5554 = vmul.f32 %v5515, %v5530
        %v5555 = vmul.f32 %v5516, %v5530
        %v5556 = vmul.f32 %v5517, %v5530
        %v5557 = vmul.f32 %v5518, %v5530
        %v5558 = vmul.f32 %v5519, %v5530
        %v5559 = vmul.f32 %v5520, %v5530
        %v5560 = vmul.f32 %v5521, %v5530
        %v5561 = vmul.f32 %v5522, %v5530
        %v5562 = vmul.f32 %v5523, %v5530
        %v5563 = vmul.f32 %v5524, %v5530
        %v5564 = vld [vmem:[%s3] sm:$0x1]
        %v5566 = vlaneseq
        %v5567 = vshrl.u32 %v5566, 7
        %v5568 = vsub.s32 0, %v5567
        %v5569 = vrot.slane %v5564, %v5568
        %v5571 = vadd.f32 %v5532, %v5569
        %v5572 = vadd.f32 %v5533, %v5569
        %v5573 = vadd.f32 %v5534, %v5569
        %v5574 = vadd.f32 %v5535, %v5569
        %v5575 = vadd.f32 %v5536, %v5569
        %v5576 = vadd.f32 %v5537, %v5569
        %v5577 = vadd.f32 %v5538, %v5569
        %v5578 = vadd.f32 %v5539, %v5569
        %v5579 = vadd.f32 %v5540, %v5569
        %v5580 = vadd.f32 %v5541, %v5569
        %v5581 = vadd.f32 %v5542, %v5569
        %v5582 = vadd.f32 %v5543, %v5569
        %v5583 = vadd.f32 %v5544, %v5569
        %v5584 = vadd.f32 %v5545, %v5569
        %v5585 = vadd.f32 %v5546, %v5569
        %v5586 = vadd.f32 %v5547, %v5569
        %v5587 = vadd.f32 %v5548, %v5569
        %v5588 = vadd.f32 %v5549, %v5569
        %v5589 = vadd.f32 %v5550, %v5569
        %v5590 = vadd.f32 %v5551, %v5569
        %v5591 = vadd.f32 %v5552, %v5569
        %v5592 = vadd.f32 %v5553, %v5569
        %v5593 = vadd.f32 %v5554, %v5569
        %v5594 = vadd.f32 %v5555, %v5569
        %v5595 = vadd.f32 %v5556, %v5569
        %v5596 = vadd.f32 %v5557, %v5569
        %v5597 = vadd.f32 %v5558, %v5569
        %v5598 = vadd.f32 %v5559, %v5569
        %v5599 = vadd.f32 %v5560, %v5569
        %v5600 = vadd.f32 %v5561, %v5569
        %v5601 = vadd.f32 %v5562, %v5569
        %v5602 = vadd.f32 %v5563, %v5569
        %v5603 = vmax.f32 %v5571, 0.0
        %v5604 = vmax.f32 %v5572, 0.0
        %v5605 = vmax.f32 %v5573, 0.0
        %v5606 = vmax.f32 %v5574, 0.0
        %v5607 = vmax.f32 %v5575, 0.0
        %v5608 = vmax.f32 %v5576, 0.0
        %v5609 = vmax.f32 %v5577, 0.0
        %v5610 = vmax.f32 %v5578, 0.0
        %v5611 = vmax.f32 %v5579, 0.0
        %v5612 = vmax.f32 %v5580, 0.0
        %v5613 = vmax.f32 %v5581, 0.0
        %v5614 = vmax.f32 %v5582, 0.0
        %v5615 = vmax.f32 %v5583, 0.0
        %v5616 = vmax.f32 %v5584, 0.0
        %v5617 = vmax.f32 %v5585, 0.0
        %v5618 = vmax.f32 %v5586, 0.0
        %v5619 = vmax.f32 %v5587, 0.0
        %v5620 = vmax.f32 %v5588, 0.0
        %v5621 = vmax.f32 %v5589, 0.0
        %v5622 = vmax.f32 %v5590, 0.0
        %v5623 = vmax.f32 %v5591, 0.0
        %v5624 = vmax.f32 %v5592, 0.0
        %v5625 = vmax.f32 %v5593, 0.0
        %v5626 = vmax.f32 %v5594, 0.0
        %v5627 = vmax.f32 %v5595, 0.0
        %v5628 = vmax.f32 %v5596, 0.0
        %v5629 = vmax.f32 %v5597, 0.0
        %v5630 = vmax.f32 %v5598, 0.0
        %v5631 = vmax.f32 %v5599, 0.0
        %v5632 = vmax.f32 %v5600, 0.0
        %v5633 = vmax.f32 %v5601, 0.0
        %v5634 = vmax.f32 %v5602, 0.0
        %5635 = vst [vmem:[#allocation4] sm:$0xff] %v5603
        %5636 = vst [vmem:[#allocation4 + $0x8] sm:$0xff] %v5604
        %5637 = vst [vmem:[#allocation4 + $0x10] sm:$0xff] %v5605
        %5638 = vst [vmem:[#allocation4 + $0x18] sm:$0xff] %v5606
        %5639 = vst [vmem:[#allocation4 + $0x20] sm:$0xff] %v5607
        %5640 = vst [vmem:[#allocation4 + $0x28] sm:$0xff] %v5608
        %5641 = vst [vmem:[#allocation4 + $0x30] sm:$0xff] %v5609
        %5642 = vst [vmem:[#allocation4 + $0x38] sm:$0xff] %v5610
        %5643 = vst [vmem:[#allocation4 + $0x40] sm:$0xff] %v5611
        %5644 = vst [vmem:[#allocation4 + $0x48] sm:$0xff] %v5612
        %5645 = vst [vmem:[#allocation4 + $0x50] sm:$0xff] %v5613
        %5646 = vst [vmem:[#allocation4 + $0x58] sm:$0xff] %v5614
        %5647 = vst [vmem:[#allocation4 + $0x60] sm:$0xff] %v5615
        %5648 = vst [vmem:[#allocation4 + $0x68] sm:$0xff] %v5616
        %5649 = vst [vmem:[#allocation4 + $0x70] sm:$0xff] %v5617
        %5650 = vst [vmem:[#allocation4 + $0x78] sm:$0xff] %v5618
        %5651 = vst [vmem:[#allocation4 + $0x80] sm:$0xff] %v5619
        %5652 = vst [vmem:[#allocation4 + $0x88] sm:$0xff] %v5620
        %5653 = vst [vmem:[#allocation4 + $0x90] sm:$0xff] %v5621
        %5654 = vst [vmem:[#allocation4 + $0x98] sm:$0xff] %v5622
        %5655 = vst [vmem:[#allocation4 + $0xa0] sm:$0xff] %v5623
        %5656 = vst [vmem:[#allocation4 + $0xa8] sm:$0xff] %v5624
        %5657 = vst [vmem:[#allocation4 + $0xb0] sm:$0xff] %v5625
        %5658 = vst [vmem:[#allocation4 + $0xb8] sm:$0xff] %v5626
        %5659 = vst [vmem:[#allocation4 + $0xc0] sm:$0xff] %v5627
        %5660 = vst [vmem:[#allocation4 + $0xc8] sm:$0xff] %v5628
        %5661 = vst [vmem:[#allocation4 + $0xd0] sm:$0xff] %v5629
        %5662 = vst [vmem:[#allocation4 + $0xd8] sm:$0xff] %v5630
        %5663 = vst [vmem:[#allocation4 + $0xe0] sm:$0xff] %v5631
        %5664 = vst [vmem:[#allocation4 + $0xe8] sm:$0xff] %v5632
        %5665 = vst [vmem:[#allocation4 + $0xf0] sm:$0xff] %v5633
        %5666 = vst [vmem:[#allocation4 + $0xf8] sm:$0xff] %v5634
        %v5667 = vpack.c.bf16 %v5604, %v5603
        %v5668 = vpack.c.bf16 %v5606, %v5605
        %v5669 = vpack.c.bf16 %v5608, %v5607
        %v5670 = vpack.c.bf16 %v5610, %v5609
        %v5671 = vpack.c.bf16 %v5612, %v5611
        %v5672 = vpack.c.bf16 %v5614, %v5613
        %v5673 = vpack.c.bf16 %v5616, %v5615
        %v5674 = vpack.c.bf16 %v5618, %v5617
        %v5675 = vpack.c.bf16 %v5620, %v5619
        %v5676 = vpack.c.bf16 %v5622, %v5621
        %v5677 = vpack.c.bf16 %v5624, %v5623
        %v5678 = vpack.c.bf16 %v5626, %v5625
        %v5679 = vpack.c.bf16 %v5628, %v5627
        %v5680 = vpack.c.bf16 %v5630, %v5629
        %v5681 = vpack.c.bf16 %v5632, %v5631
        %v5682 = vpack.c.bf16 %v5634, %v5633
        %vm5699 = vcmask 1043456
        %v5700 = vrot.slane %v5667, 4
        %v5701 = vrot.slane %v5668, 4
        %v5702 = vsel %vm5699, %v5700, %v5701
        %v5703 = vrot.slane %v5669, 4
        %v5704 = vsel %vm5699, %v5701, %v5703
        %v5705 = vrot.slane %v5670, 4
        %v5706 = vsel %vm5699, %v5703, %v5705
        %v5707 = vrot.slane %v5671, 4
        %v5708 = vsel %vm5699, %v5705, %v5707
        %v5709 = vrot.slane %v5672, 4
        %v5710 = vsel %vm5699, %v5707, %v5709
        %v5711 = vrot.slane %v5673, 4
        %v5712 = vsel %vm5699, %v5709, %v5711
        %v5713 = vrot.slane %v5674, 4
        %v5714 = vsel %vm5699, %v5711, %v5713
        %v5715 = vrot.slane %v5675, 4
        %v5716 = vsel %vm5699, %v5713, %v5715
        %v5717 = vrot.slane %v5676, 4
        %v5718 = vsel %vm5699, %v5715, %v5717
        %v5719 = vrot.slane %v5677, 4
        %v5720 = vsel %vm5699, %v5717, %v5719
        %v5721 = vrot.slane %v5678, 4
        %v5722 = vsel %vm5699, %v5719, %v5721
        %v5723 = vrot.slane %v5679, 4
        %v5724 = vsel %vm5699, %v5721, %v5723
        %v5725 = vrot.slane %v5680, 4
        %v5726 = vsel %vm5699, %v5723, %v5725
        %v5727 = vrot.slane %v5681, 4
        %v5728 = vsel %vm5699, %v5725, %v5727
        %v5729 = vrot.slane %v5682, 4
        %v5730 = vsel %vm5699, %v5727, %v5729
        %5748 = vst [vmem:[#allocation3 + $0x8] sm:$0xf0] %v5700
        %5749 = vst [vmem:[#allocation3 + $0x10] sm:$0xff] %v5702
        %5750 = vst [vmem:[#allocation3 + $0x18] sm:$0xff] %v5704
        %5751 = vst [vmem:[#allocation3 + $0x20] sm:$0xff] %v5706
        %5752 = vst [vmem:[#allocation3 + $0x28] sm:$0xff] %v5708
        %5753 = vst [vmem:[#allocation3 + $0x30] sm:$0xff] %v5710
        %5754 = vst [vmem:[#allocation3 + $0x38] sm:$0xff] %v5712
        %5755 = vst [vmem:[#allocation3 + $0x40] sm:$0xff] %v5714
        %5756 = vst [vmem:[#allocation3 + $0x48] sm:$0xff] %v5716
        %5757 = vst [vmem:[#allocation3 + $0x50] sm:$0xff] %v5718
        %5758 = vst [vmem:[#allocation3 + $0x58] sm:$0xff] %v5720
        %5759 = vst [vmem:[#allocation3 + $0x60] sm:$0xff] %v5722
        %5760 = vst [vmem:[#allocation3 + $0x68] sm:$0xff] %v5724
        %5761 = vst [vmem:[#allocation3 + $0x70] sm:$0xff] %v5726
        %5762 = vst [vmem:[#allocation3 + $0x78] sm:$0xff] %v5728
        %5763 = vst [vmem:[#allocation3 + $0x80] sm:$0xff] %v5730
        %5764 = vst [vmem:[#allocation3 + $0x88] sm:$0xf] %v5729
        %v5765 = vld [vmem:[#allocation10] sm:$0xf]
        %v5766 = vld [vmem:[#allocation10 + $0x4] sm:$0xf]
        %v5767 = vld [vmem:[#allocation10 + $0x8] sm:$0xf]
        %v5768 = vld [vmem:[#allocation10 + $0xc] sm:$0xf]
        %v5769 = vld [vmem:[#allocation10 + $0x10] sm:$0xf]
        %v5770 = vld [vmem:[#allocation10 + $0x14] sm:$0xf]
        %v5771 = vld [vmem:[#allocation10 + $0x18] sm:$0xf]
        %v5772 = vld [vmem:[#allocation10 + $0x1c] sm:$0xf]
        %v5773 = vld [vmem:[#allocation10 + $0x20] sm:$0xf]
        %v5774 = vld [vmem:[#allocation10 + $0x24] sm:$0xf]
        %v5775 = vld [vmem:[#allocation10 + $0x28] sm:$0xf]
        %v5776 = vld [vmem:[#allocation10 + $0x2c] sm:$0xf]
        %v5777 = vld [vmem:[#allocation10 + $0x30] sm:$0xf]
        %v5778 = vld [vmem:[#allocation10 + $0x34] sm:$0xf]
        %v5779 = vld [vmem:[#allocation10 + $0x38] sm:$0xf]
        %v5780 = vld [vmem:[#allocation10 + $0x3c] sm:$0xf]
        %v5781 = vld [vmem:[#allocation10 + $0x40] sm:$0xf]
        %v5782 = vld [vmem:[#allocation10 + $0x44] sm:$0xf]
        %v5783 = vld [vmem:[#allocation10 + $0x48] sm:$0xf]
        %v5784 = vld [vmem:[#allocation10 + $0x4c] sm:$0xf]
        %v5785 = vld [vmem:[#allocation10 + $0x50] sm:$0xf]
        %v5786 = vld [vmem:[#allocation10 + $0x54] sm:$0xf]
        %v5787 = vld [vmem:[#allocation10 + $0x58] sm:$0xf]
        %v5788 = vld [vmem:[#allocation10 + $0x5c] sm:$0xf]
        %v5789 = vld [vmem:[#allocation10 + $0x60] sm:$0xf]
        %v5790 = vld [vmem:[#allocation10 + $0x64] sm:$0xf]
        %v5791 = vld [vmem:[#allocation10 + $0x68] sm:$0xf]
        %v5792 = vld [vmem:[#allocation10 + $0x6c] sm:$0xf]
        %v5793 = vld [vmem:[#allocation10 + $0x70] sm:$0xf]
        %v5794 = vld [vmem:[#allocation10 + $0x74] sm:$0xf]
        %v5795 = vld [vmem:[#allocation10 + $0x78] sm:$0xf]
        %v5796 = vld [vmem:[#allocation10 + $0x7c] sm:$0xf]
        %v5797 = vld [vmem:[#allocation10 + $0x80] sm:$0xf]
        %v5798 = vld [vmem:[#allocation10 + $0x84] sm:$0xf]
        %v5799 = vld [vmem:[#allocation10 + $0x88] sm:$0xf]
        %v5800 = vld [vmem:[#allocation10 + $0x8c] sm:$0xf]
        %v5801 = vld [vmem:[#allocation10 + $0x90] sm:$0xf]
        %v5802 = vld [vmem:[#allocation10 + $0x94] sm:$0xf]
        %v5803 = vld [vmem:[#allocation10 + $0x98] sm:$0xf]
        %v5804 = vld [vmem:[#allocation10 + $0x9c] sm:$0xf]
        %v5805 = vld [vmem:[#allocation10 + $0xa0] sm:$0xf]
        %v5806 = vld [vmem:[#allocation10 + $0xa4] sm:$0xf]
        %v5807 = vld [vmem:[#allocation10 + $0xa8] sm:$0xf]
        %v5808 = vld [vmem:[#allocation10 + $0xac] sm:$0xf]
        %v5809 = vld [vmem:[#allocation10 + $0xb0] sm:$0xf]
        %v5810 = vld [vmem:[#allocation10 + $0xb4] sm:$0xf]
        %v5811 = vld [vmem:[#allocation10 + $0xb8] sm:$0xf]
        %v5812 = vld [vmem:[#allocation10 + $0xbc] sm:$0xf]
        %v5813 = vld [vmem:[#allocation3] sm:$0xf0]
        %v5814 = vld [vmem:[#allocation3 + $0x8] sm:$0xff]
        %v5815 = vld [vmem:[#allocation3 + $0x10] sm:$0xff]
        %v5816 = vld [vmem:[#allocation3 + $0x18] sm:$0xff]
        %v5817 = vld [vmem:[#allocation3 + $0x20] sm:$0xff]
        %v5818 = vld [vmem:[#allocation3 + $0x28] sm:$0xff]
        %v5819 = vld [vmem:[#allocation3 + $0x30] sm:$0xff]
        %v5820 = vld [vmem:[#allocation3 + $0x38] sm:$0xff]
        %v5821 = vld [vmem:[#allocation3 + $0x40] sm:$0xff]
        %v5822 = vld [vmem:[#allocation3 + $0x48] sm:$0xff]
        %v5823 = vld [vmem:[#allocation3 + $0x50] sm:$0xff]
        %v5824 = vld [vmem:[#allocation3 + $0x58] sm:$0xff]
        %v5825 = vld [vmem:[#allocation3 + $0x60] sm:$0xff]
        %v5826 = vld [vmem:[#allocation3 + $0x68] sm:$0xff]
        %v5827 = vld [vmem:[#allocation3 + $0x70] sm:$0xff]
        %v5828 = vld [vmem:[#allocation3 + $0x78] sm:$0xff]
        %v5829 = vld [vmem:[#allocation3 + $0x80] sm:$0xf]
        %v5830 = vld [vmem:[#allocation3 + $0x8] sm:$0xf0]
        %v5831 = vld [vmem:[#allocation3 + $0x80] sm:$0xff]
        %v5832 = vld [vmem:[#allocation3 + $0x88] sm:$0xf]
        %v5833 = vld [vmem:[#allocation3 + $0x10] sm:$0xf0]
        %v5834 = vld [vmem:[#allocation3 + $0x18] sm:$0xff]
        %v5835 = vld [vmem:[#allocation3 + $0x20] sm:$0xff]
        %v5836 = vld [vmem:[#allocation3 + $0x28] sm:$0xff]
        %v5837 = vld [vmem:[#allocation3 + $0x30] sm:$0xff]
        %v5838 = vld [vmem:[#allocation3 + $0x38] sm:$0xff]
        %v5839 = vld [vmem:[#allocation3 + $0x40] sm:$0xff]
        %v5840 = vld [vmem:[#allocation3 + $0x48] sm:$0xff]
        %v5841 = vld [vmem:[#allocation3 + $0x50] sm:$0xff]
        %v5842 = vld [vmem:[#allocation3 + $0x58] sm:$0xff]
        %v5843 = vld [vmem:[#allocation3 + $0x60] sm:$0xff]
        %v5844 = vld [vmem:[#allocation3 + $0x68] sm:$0xff]
        %v5845 = vld [vmem:[#allocation3 + $0x70] sm:$0xff]
        %v5846 = vld [vmem:[#allocation3 + $0x78] sm:$0xff]
        %v5847 = vld [vmem:[#allocation3 + $0x80] sm:$0xff]
        %v5848 = vld [vmem:[#allocation3 + $0x88] sm:$0xff]
        %v5849 = vld [vmem:[#allocation3 + $0x90] sm:$0xf]
        %v5850 = vld [vmem:[%s5] sm:$0x1]
        %v5852 = vlaneseq
        %v5853 = vshrl.u32 %v5852, 7
        %v5854 = vsub.s32 0, %v5853
        %v5855 = vrot.slane %v5850, %v5854
        %v5894 = vrot.slane %v5813, 4
        %v5895 = vrot.slane %v5814, 4
        %v5896 = vsel %vm5699, %v5894, %v5895
        %v5897 = vrot.slane %v5830, 4
        %v5898 = vrot.slane %v5815, 4
        %v5899 = vsel %vm5699, %v5897, %v5898
        %v5900 = vrot.slane %v5833, 4
        %v5901 = vrot.slane %v5834, 4
        %v5902 = vsel %vm5699, %v5900, %v5901
        %v5903 = vsel %vm5699, %v5895, %v5898
        %v5904 = vrot.slane %v5816, 4
        %v5905 = vsel %vm5699, %v5898, %v5904
        %v5906 = vrot.slane %v5835, 4
        %v5907 = vsel %vm5699, %v5901, %v5906
        %v5908 = vrot.slane %v5817, 4
        %v5909 = vsel %vm5699, %v5904, %v5908
        %v5910 = vrot.slane %v5836, 4
        %v5911 = vsel %vm5699, %v5906, %v5910
        %v5912 = vrot.slane %v5818, 4
        %v5913 = vsel %vm5699, %v5908, %v5912
        %v5914 = vrot.slane %v5837, 4
        %v5915 = vsel %vm5699, %v5910, %v5914
        %v5916 = vrot.slane %v5819, 4
        %v5917 = vsel %vm5699, %v5912, %v5916
        %v5918 = vrot.slane %v5838, 4
        %v5919 = vsel %vm5699, %v5914, %v5918
        %v5920 = vrot.slane %v5820, 4
        %v5921 = vsel %vm5699, %v5916, %v5920
        %v5922 = vrot.slane %v5839, 4
        %v5923 = vsel %vm5699, %v5918, %v5922
        %v5924 = vrot.slane %v5821, 4
        %v5925 = vsel %vm5699, %v5920, %v5924
        %v5926 = vrot.slane %v5840, 4
        %v5927 = vsel %vm5699, %v5922, %v5926
        %v5928 = vrot.slane %v5822, 4
        %v5929 = vsel %vm5699, %v5924, %v5928
        %v5930 = vrot.slane %v5841, 4
        %v5931 = vsel %vm5699, %v5926, %v5930
        %v5932 = vrot.slane %v5823, 4
        %v5933 = vsel %vm5699, %v5928, %v5932
        %v5934 = vrot.slane %v5842, 4
        %v5935 = vsel %vm5699, %v5930, %v5934
        %v5936 = vrot.slane %v5824, 4
        %v5937 = vsel %vm5699, %v5932, %v5936
        %v5938 = vrot.slane %v5843, 4
        %v5939 = vsel %vm5699, %v5934, %v5938
        %v5940 = vrot.slane %v5825, 4
        %v5941 = vsel %vm5699, %v5936, %v5940
        %v5942 = vrot.slane %v5844, 4
        %v5943 = vsel %vm5699, %v5938, %v5942
        %v5944 = vrot.slane %v5826, 4
        %v5945 = vsel %vm5699, %v5940, %v5944
        %v5946 = vrot.slane %v5845, 4
        %v5947 = vsel %vm5699, %v5942, %v5946
        %v5948 = vrot.slane %v5827, 4
        %v5949 = vsel %vm5699, %v5944, %v5948
        %v5950 = vrot.slane %v5846, 4
        %v5951 = vsel %vm5699, %v5946, %v5950
        %v5952 = vrot.slane %v5828, 4
        %v5953 = vsel %vm5699, %v5948, %v5952
        %v5954 = vrot.slane %v5847, 4
        %v5955 = vsel %vm5699, %v5950, %v5954
        %v5956 = vrot.slane %v5831, 4
        %v5957 = vsel %vm5699, %v5952, %v5956
        %v5958 = vrot.slane %v5848, 4
        %v5959 = vsel %vm5699, %v5954, %v5958
        %v5960 = vrot.slane %v5829, 4
        %v5961 = vsel %vm5699, %v5952, %v5960
        %v5962 = vrot.slane %v5832, 4
        %v5963 = vsel %vm5699, %v5956, %v5962
        %v5964 = vrot.slane %v5849, 4
        %v5965 = vsel %vm5699, %v5958, %v5964
        %v6049 = vunpack.c.l.b16 %v5765
        %v6050 = vunpack.c.l.b16 %v5766
        %v6051 = vunpack.c.l.b16 %v5767
        %v6052 = vunpack.c.l.b16 %v5768
        %v6053 = vunpack.c.l.b16 %v5769
        %v6054 = vunpack.c.l.b16 %v5770
        %v6055 = vunpack.c.l.b16 %v5771
        %v6056 = vunpack.c.l.b16 %v5772
        %v6057 = vunpack.c.l.b16 %v5773
        %v6058 = vunpack.c.l.b16 %v5774
        %v6059 = vunpack.c.l.b16 %v5775
        %v6060 = vunpack.c.l.b16 %v5776
        %v6061 = vunpack.c.l.b16 %v5777
        %v6062 = vunpack.c.l.b16 %v5778
        %v6063 = vunpack.c.l.b16 %v5779
        %v6064 = vunpack.c.l.b16 %v5780
        %v6065 = vunpack.c.l.b16 %v5781
        %v6066 = vunpack.c.l.b16 %v5782
        %v6067 = vunpack.c.l.b16 %v5783
        %v6068 = vunpack.c.l.b16 %v5784
        %v6069 = vunpack.c.l.b16 %v5785
        %v6070 = vunpack.c.l.b16 %v5786
        %v6071 = vunpack.c.l.b16 %v5787
        %v6072 = vunpack.c.l.b16 %v5788
        %v6073 = vunpack.c.l.b16 %v5789
        %v6074 = vunpack.c.l.b16 %v5790
        %v6075 = vunpack.c.l.b16 %v5791
        %v6076 = vunpack.c.l.b16 %v5792
        %v6077 = vunpack.c.l.b16 %v5793
        %v6078 = vunpack.c.l.b16 %v5794
        %v6079 = vunpack.c.l.b16 %v5795
        %v6080 = vunpack.c.l.b16 %v5796
        %v6081 = vunpack.c.l.b16 %v5797
        %v6082 = vunpack.c.l.b16 %v5798
        %v6083 = vunpack.c.l.b16 %v5799
        %v6084 = vunpack.c.l.b16 %v5800
        %v6085 = vunpack.c.l.b16 %v5801
        %v6086 = vunpack.c.l.b16 %v5802
        %v6087 = vunpack.c.l.b16 %v5803
        %v6088 = vunpack.c.l.b16 %v5804
        %v6089 = vunpack.c.l.b16 %v5805
        %v6090 = vunpack.c.l.b16 %v5806
        %v6091 = vunpack.c.l.b16 %v5807
        %v6092 = vunpack.c.l.b16 %v5808
        %v6093 = vunpack.c.l.b16 %v5809
        %v6094 = vunpack.c.l.b16 %v5810
        %v6095 = vunpack.c.l.b16 %v5811
        %v6096 = vunpack.c.l.b16 %v5812
        %v6097 = vpack.c.b16 %v6050, %v6049
        %v6098 = vpack.c.b16 %v6052, %v6051
        %v6099 = vpack.c.b16 %v6054, %v6053
        %v6100 = vpack.c.b16 %v6056, %v6055
        %v6101 = vpack.c.b16 %v6058, %v6057
        %v6102 = vpack.c.b16 %v6060, %v6059
        %v6103 = vpack.c.b16 %v6062, %v6061
        %v6104 = vpack.c.b16 %v6064, %v6063
        %v6105 = vpack.c.b16 %v6066, %v6065
        %v6106 = vpack.c.b16 %v6068, %v6067
        %v6107 = vpack.c.b16 %v6070, %v6069
        %v6108 = vpack.c.b16 %v6072, %v6071
        %v6109 = vpack.c.b16 %v6074, %v6073
        %v6110 = vpack.c.b16 %v6076, %v6075
        %v6111 = vpack.c.b16 %v6078, %v6077
        %v6112 = vpack.c.b16 %v6080, %v6079
        %v6113 = vpack.c.b16 %v6082, %v6081
        %v6114 = vpack.c.b16 %v6084, %v6083
        %v6115 = vpack.c.b16 %v6086, %v6085
        %v6116 = vpack.c.b16 %v6088, %v6087
        %v6117 = vpack.c.b16 %v6090, %v6089
        %v6118 = vpack.c.b16 %v6092, %v6091
        %v6119 = vpack.c.b16 %v6094, %v6093
        %v6120 = vpack.c.b16 %v6096, %v6095
        %6145 = vmatprep.subr.bf16.mxu0 0
        %6146 = vmatpush1.bf16.msra.mxu0 %v6097
        %6147 = vmatprep.subr.bf16.mxu0 0
        %6148 = vmatpush1.bf16.msra.mxu0 %v6098
        %6149 = vmatprep.subr.bf16.mxu0 0
        %6150 = vmatpush1.bf16.msra.mxu0 %v6099
        %6151 = vmatprep.subr.bf16.mxu0 0
        %6152 = vmatpush1.bf16.msra.mxu0 %v6100
        %6153 = vmatprep.subr.bf16.mxu0 0
        %6154 = vmatpush1.bf16.msra.mxu0 %v6101
        %6155 = vmatprep.subr.bf16.mxu0 0
        %6156 = vmatpush1.bf16.msra.mxu0 %v6102
        %6157 = vmatprep.subr.bf16.mxu0 0
        %6158 = vmatpush1.bf16.msra.mxu0 %v6103
        %6159 = vmatprep.subr.bf16.mxu0 0
        %6160 = vmatpush1.bf16.msra.mxu0 %v6104
        %6161 = vmatprep.subr.bf16.mxu0 0
        %6162 = vmatpush1.bf16.msra.mxu0 %v6105
        %6163 = vmatprep.subr.bf16.mxu0 0
        %6164 = vmatpush1.bf16.msra.mxu0 %v6106
        %6165 = vmatprep.subr.bf16.mxu0 0
        %6166 = vmatpush1.bf16.msra.mxu0 %v6107
        %6167 = vmatprep.subr.bf16.mxu0 0
        %6168 = vmatpush1.bf16.msra.mxu0 %v6108
        %6169 = vmatprep.subr.bf16.mxu0 0
        %6170 = vmatpush1.bf16.msra.mxu0 %v6109
        %6171 = vmatprep.subr.bf16.mxu0 0
        %6172 = vmatpush1.bf16.msra.mxu0 %v6110
        %6173 = vmatprep.subr.bf16.mxu0 0
        %6174 = vmatpush1.bf16.msra.mxu0 %v6111
        %6175 = vmatprep.subr.bf16.mxu0 0
        %6176 = vmatpush1.bf16.msra.mxu0 %v6112
        %6177 = vmatprep.mubr.bf16.mxu0 %v5899
        %6178 = vmatmul.mubr.bf16.gmra.mrb[0].mxu0 %v5896
        %v6179 = vpop.f32.mrb[0].mxu0
        %v6180 = vadd.f32 %v5855, %v6179
        %v6181 = vpop.f32.mrb[0].mxu0
        %v6182 = vpop.f32.mrb[0].mxu0
        %v6183 = vadd.f32 %v5855, %v6182
        %v6184 = vpop.f32.mrb[0].mxu0
        %6185 = vmatprep.mubr.bf16.mxu0 %v5905
        %6186 = vmatmul.mubr.bf16.gmra.mrb[0].mxu0 %v5903
        %v6187 = vpop.f32.mrb[0].mxu0
        %v6188 = vadd.f32 %v5855, %v6187
        %v6189 = vpop.f32.mrb[0].mxu0
        %v6190 = vpop.f32.mrb[0].mxu0
        %v6191 = vadd.f32 %v5855, %v6190
        %v6192 = vpop.f32.mrb[0].mxu0
        %6193 = vmatprep.mubr.bf16.mxu0 %v5909
        %6194 = vmatmul.mubr.bf16.gmra.mrb[0].mxu0 %v5905
        %v6195 = vpop.f32.mrb[0].mxu0
        %v6196 = vadd.f32 %v5855, %v6195
        %v6197 = vpop.f32.mrb[0].mxu0
        %v6198 = vpop.f32.mrb[0].mxu0
        %v6199 = vadd.f32 %v5855, %v6198
        %v6200 = vpop.f32.mrb[0].mxu0
        %6201 = vmatprep.mubr.bf16.mxu0 %v5913
        %6202 = vmatmul.mubr.bf16.gmra.mrb[0].mxu0 %v5909
        %v6203 = vpop.f32.mrb[0].mxu0
        %v6204 = vadd.f32 %v5855, %v6203
        %v6205 = vpop.f32.mrb[0].mxu0
        %v6206 = vpop.f32.mrb[0].mxu0
        %v6207 = vadd.f32 %v5855, %v6206
        %v6208 = vpop.f32.mrb[0].mxu0
        %6209 = vmatprep.mubr.bf16.mxu0 %v5917
        %6210 = vmatmul.mubr.bf16.gmra.mrb[0].mxu0 %v5913
        %v6211 = vpop.f32.mrb[0].mxu0
        %v6212 = vadd.f32 %v5855, %v6211
        %v6213 = vpop.f32.mrb[0].mxu0
        %v6214 = vpop.f32.mrb[0].mxu0
        %v6215 = vadd.f32 %v5855, %v6214
        %v6216 = vpop.f32.mrb[0].mxu0
        %6217 = vmatprep.mubr.bf16.mxu0 %v5921
        %6218 = vmatmul.mubr.bf16.gmra.mrb[0].mxu0 %v5917
        %v6219 = vpop.f32.mrb[0].mxu0
        %v6220 = vadd.f32 %v5855, %v6219
        %v6221 = vpop.f32.mrb[0].mxu0
        %v6222 = vpop.f32.mrb[0].mxu0
        %v6223 = vadd.f32 %v5855, %v6222
        %v6224 = vpop.f32.mrb[0].mxu0
        %6225 = vmatprep.mubr.bf16.mxu0 %v5925
        %6226 = vmatmul.mubr.bf16.gmra.mrb[0].mxu0 %v5921
        %v6227 = vpop.f32.mrb[0].mxu0
        %v6228 = vadd.f32 %v5855, %v6227
        %v6229 = vpop.f32.mrb[0].mxu0
        %v6230 = vpop.f32.mrb[0].mxu0
        %v6231 = vadd.f32 %v5855, %v6230
        %v6232 = vpop.f32.mrb[0].mxu0
        %6233 = vmatprep.mubr.bf16.mxu0 %v5929
        %6234 = vmatmul.mubr.bf16.gmra.mrb[0].mxu0 %v5925
        %v6235 = vpop.f32.mrb[0].mxu0
        %v6236 = vadd.f32 %v5855, %v6235
        %v6237 = vpop.f32.mrb[0].mxu0
        %v6238 = vpop.f32.mrb[0].mxu0
        %v6239 = vadd.f32 %v5855, %v6238
        %v6240 = vpop.f32.mrb[0].mxu0
        %6241 = vmatprep.mubr.bf16.mxu0 %v5933
        %6242 = vmatmul.mubr.bf16.gmra.mrb[0].mxu0 %v5929
        %v6243 = vpop.f32.mrb[0].mxu0
        %v6244 = vadd.f32 %v5855, %v6243
        %v6245 = vpop.f32.mrb[0].mxu0
        %v6246 = vpop.f32.mrb[0].mxu0
        %v6247 = vadd.f32 %v5855, %v6246
        %v6248 = vpop.f32.mrb[0].mxu0
        %6249 = vmatprep.mubr.bf16.mxu0 %v5937
        %6250 = vmatmul.mubr.bf16.gmra.mrb[0].mxu0 %v5933
        %v6251 = vpop.f32.mrb[0].mxu0
        %v6252 = vadd.f32 %v5855, %v6251
        %v6253 = vpop.f32.mrb[0].mxu0
        %v6254 = vpop.f32.mrb[0].mxu0
        %v6255 = vadd.f32 %v5855, %v6254
        %v6256 = vpop.f32.mrb[0].mxu0
        %6257 = vmatprep.mubr.bf16.mxu0 %v5941
        %6258 = vmatmul.mubr.bf16.gmra.mrb[0].mxu0 %v5937
        %v6259 = vpop.f32.mrb[0].mxu0
        %v6260 = vadd.f32 %v5855, %v6259
        %v6261 = vpop.f32.mrb[0].mxu0
        %v6262 = vpop.f32.mrb[0].mxu0
        %v6263 = vadd.f32 %v5855, %v6262
        %v6264 = vpop.f32.mrb[0].mxu0
        %6265 = vmatprep.mubr.bf16.mxu0 %v5945
        %6266 = vmatmul.mubr.bf16.gmra.mrb[0].mxu0 %v5941
        %v6267 = vpop.f32.mrb[0].mxu0
        %v6268 = vadd.f32 %v5855, %v6267
        %v6269 = vpop.f32.mrb[0].mxu0
        %v6270 = vpop.f32.mrb[0].mxu0
        %v6271 = vadd.f32 %v5855, %v6270
        %v6272 = vpop.f32.mrb[0].mxu0
        %6273 = vmatprep.mubr.bf16.mxu0 %v5949
        %6274 = vmatmul.mubr.bf16.gmra.mrb[0].mxu0 %v5945
        %v6275 = vpop.f32.mrb[0].mxu0
        %v6276 = vadd.f32 %v5855, %v6275
        %v6277 = vpop.f32.mrb[0].mxu0
        %v6278 = vpop.f32.mrb[0].mxu0
        %v6279 = vadd.f32 %v5855, %v6278
        %v6280 = vpop.f32.mrb[0].mxu0
        %6281 = vmatprep.mubr.bf16.mxu0 %v5953
        %6282 = vmatmul.mubr.bf16.gmra.mrb[0].mxu0 %v5949
        %v6283 = vpop.f32.mrb[0].mxu0
        %v6284 = vadd.f32 %v5855, %v6283
        %v6285 = vpop.f32.mrb[0].mxu0
        %v6286 = vpop.f32.mrb[0].mxu0
        %v6287 = vadd.f32 %v5855, %v6286
        %v6288 = vpop.f32.mrb[0].mxu0
        %6289 = vmatprep.mubr.bf16.mxu0 %v5957
        %6290 = vmatmul.mubr.bf16.gmra.mrb[0].mxu0 %v5953
        %v6291 = vpop.f32.mrb[0].mxu0
        %v6292 = vadd.f32 %v5855, %v6291
        %v6293 = vpop.f32.mrb[0].mxu0
        %v6294 = vpop.f32.mrb[0].mxu0
        %v6295 = vadd.f32 %v5855, %v6294
        %v6296 = vpop.f32.mrb[0].mxu0
        %6297 = vmatprep.mubr.bf16.mxu0 %v5963
        %6298 = vmatmul.mubr.bf16.gmra.mrb[0].mxu0 %v5961
        %v6299 = vpop.f32.mrb[0].mxu0
        %v6300 = vadd.f32 %v5855, %v6299
        %v6301 = vpop.f32.mrb[0].mxu0
        %v6302 = vpop.f32.mrb[0].mxu0
        %v6303 = vadd.f32 %v5855, %v6302
        %v6304 = vpop.f32.mrb[0].mxu0
        %6305 = vdwg.mxu0
        %6306 = vmatprep.subr.bf16.mxu0 0
        %6307 = vmatpush1.bf16.msra.mxu0 %v6113
        %6308 = vmatprep.subr.bf16.mxu0 0
        %6309 = vmatpush1.bf16.msra.mxu0 %v6114
        %6310 = vmatprep.subr.bf16.mxu0 0
        %6311 = vmatpush1.bf16.msra.mxu0 %v6115
        %6312 = vmatprep.subr.bf16.mxu0 0
        %6313 = vmatpush1.bf16.msra.mxu0 %v6116
        %6314 = vmatprep.subr.bf16.mxu0 0
        %6315 = vmatpush1.bf16.msra.mxu0 %v6117
        %6316 = vmatprep.subr.bf16.mxu0 0
        %6317 = vmatpush1.bf16.msra.mxu0 %v6118
        %6318 = vmatprep.subr.bf16.mxu0 0
        %6319 = vmatpush1.bf16.msra.mxu0 %v6119
        %6320 = vmatprep.subr.bf16.mxu0 0
        %6321 = vmatpush1.bf16.msra.mxu0 %v6120
        %6322 = vmatprep.subr.bf16.mxu0 0
        %6323 = vmatpush1.bf16.msra.mxu0 0
        %6324 = vmatprep.subr.bf16.mxu0 0
        %6325 = vmatpush1.bf16.msra.mxu0 0
        %6326 = vmatprep.subr.bf16.mxu0 0
        %6327 = vmatpush1.bf16.msra.mxu0 0
        %6328 = vmatprep.subr.bf16.mxu0 0
        %6329 = vmatpush1.bf16.msra.mxu0 0
        %6330 = vmatprep.subr.bf16.mxu0 0
        %6331 = vmatpush1.bf16.msra.mxu0 0
        %6332 = vmatprep.subr.bf16.mxu0 0
        %6333 = vmatpush1.bf16.msra.mxu0 0
        %6334 = vmatprep.subr.bf16.mxu0 0
        %6335 = vmatpush1.bf16.msra.mxu0 0
        %6336 = vmatprep.subr.bf16.mxu0 0
        %6337 = vmatpush1.bf16.msra.mxu0 0
        %6338 = vmatprep.mubr.bf16.mxu0 0
        %6339 = vmatmul.mubr.bf16.gmra.mrb[0].mxu0 %v5902
        %v6340 = vpop.f32.mrb[0].mxu0
        %v6341 = vadd.f32 %v6180, %v6340
        %v6342 = vpop.f32.mrb[0].mxu0
        %v6343 = vpop.f32.mrb[0].mxu0
        %v6344 = vadd.f32 %v6183, %v6343
        %v6345 = vpop.f32.mrb[0].mxu0
        %6346 = vmatprep.mubr.bf16.mxu0 0
        %6347 = vmatmul.mubr.bf16.gmra.mrb[0].mxu0 %v5907
        %v6348 = vpop.f32.mrb[0].mxu0
        %v6349 = vadd.f32 %v6188, %v6348
        %v6350 = vpop.f32.mrb[0].mxu0
        %v6351 = vpop.f32.mrb[0].mxu0
        %v6352 = vadd.f32 %v6191, %v6351
        %v6353 = vpop.f32.mrb[0].mxu0
        %6354 = vmatprep.mubr.bf16.mxu0 0
        %6355 = vmatmul.mubr.bf16.gmra.mrb[0].mxu0 %v5911
        %v6356 = vpop.f32.mrb[0].mxu0
        %v6357 = vadd.f32 %v6196, %v6356
        %v6358 = vpop.f32.mrb[0].mxu0
        %v6359 = vpop.f32.mrb[0].mxu0
        %v6360 = vadd.f32 %v6199, %v6359
        %v6361 = vpop.f32.mrb[0].mxu0
        %6362 = vmatprep.mubr.bf16.mxu0 0
        %6363 = vmatmul.mubr.bf16.gmra.mrb[0].mxu0 %v5915
        %v6364 = vpop.f32.mrb[0].mxu0
        %v6365 = vadd.f32 %v6204, %v6364
        %v6366 = vpop.f32.mrb[0].mxu0
        %v6367 = vpop.f32.mrb[0].mxu0
        %v6368 = vadd.f32 %v6207, %v6367
        %v6369 = vpop.f32.mrb[0].mxu0
        %6370 = vmatprep.mubr.bf16.mxu0 0
        %6371 = vmatmul.mubr.bf16.gmra.mrb[0].mxu0 %v5919
        %v6372 = vpop.f32.mrb[0].mxu0
        %v6373 = vadd.f32 %v6212, %v6372
        %v6374 = vpop.f32.mrb[0].mxu0
        %v6375 = vpop.f32.mrb[0].mxu0
        %v6376 = vadd.f32 %v6215, %v6375
        %v6377 = vpop.f32.mrb[0].mxu0
        %6378 = vmatprep.mubr.bf16.mxu0 0
        %6379 = vmatmul.mubr.bf16.gmra.mrb[0].mxu0 %v5923
        %v6380 = vpop.f32.mrb[0].mxu0
        %v6381 = vadd.f32 %v6220, %v6380
        %v6382 = vpop.f32.mrb[0].mxu0
        %v6383 = vpop.f32.mrb[0].mxu0
        %v6384 = vadd.f32 %v6223, %v6383
        %v6385 = vpop.f32.mrb[0].mxu0
        %6386 = vmatprep.mubr.bf16.mxu0 0
        %6387 = vmatmul.mubr.bf16.gmra.mrb[0].mxu0 %v5927
        %v6388 = vpop.f32.mrb[0].mxu0
        %v6389 = vadd.f32 %v6228, %v6388
        %v6390 = vpop.f32.mrb[0].mxu0
        %v6391 = vpop.f32.mrb[0].mxu0
        %v6392 = vadd.f32 %v6231, %v6391
        %v6393 = vpop.f32.mrb[0].mxu0
        %6394 = vmatprep.mubr.bf16.mxu0 0
        %6395 = vmatmul.mubr.bf16.gmra.mrb[0].mxu0 %v5931
        %v6396 = vpop.f32.mrb[0].mxu0
        %v6397 = vadd.f32 %v6236, %v6396
        %v6398 = vpop.f32.mrb[0].mxu0
        %v6399 = vpop.f32.mrb[0].mxu0
        %v6400 = vadd.f32 %v6239, %v6399
        %v6401 = vpop.f32.mrb[0].mxu0
        %6402 = vmatprep.mubr.bf16.mxu0 0
        %6403 = vmatmul.mubr.bf16.gmra.mrb[0].mxu0 %v5935
        %v6404 = vpop.f32.mrb[0].mxu0
        %v6405 = vadd.f32 %v6244, %v6404
        %v6406 = vpop.f32.mrb[0].mxu0
        %v6407 = vpop.f32.mrb[0].mxu0
        %v6408 = vadd.f32 %v6247, %v6407
        %v6409 = vpop.f32.mrb[0].mxu0
        %6410 = vmatprep.mubr.bf16.mxu0 0
        %6411 = vmatmul.mubr.bf16.gmra.mrb[0].mxu0 %v5939
        %v6412 = vpop.f32.mrb[0].mxu0
        %v6413 = vadd.f32 %v6252, %v6412
        %v6414 = vpop.f32.mrb[0].mxu0
        %v6415 = vpop.f32.mrb[0].mxu0
        %v6416 = vadd.f32 %v6255, %v6415
        %v6417 = vpop.f32.mrb[0].mxu0
        %6418 = vmatprep.mubr.bf16.mxu0 0
        %6419 = vmatmul.mubr.bf16.gmra.mrb[0].mxu0 %v5943
        %v6420 = vpop.f32.mrb[0].mxu0
        %v6421 = vadd.f32 %v6260, %v6420
        %v6422 = vpop.f32.mrb[0].mxu0
        %v6423 = vpop.f32.mrb[0].mxu0
        %v6424 = vadd.f32 %v6263, %v6423
        %v6425 = vpop.f32.mrb[0].mxu0
        %6426 = vmatprep.mubr.bf16.mxu0 0
        %6427 = vmatmul.mubr.bf16.gmra.mrb[0].mxu0 %v5947
        %v6428 = vpop.f32.mrb[0].mxu0
        %v6429 = vadd.f32 %v6268, %v6428
        %v6430 = vpop.f32.mrb[0].mxu0
        %v6431 = vpop.f32.mrb[0].mxu0
        %v6432 = vadd.f32 %v6271, %v6431
        %v6433 = vpop.f32.mrb[0].mxu0
        %6434 = vmatprep.mubr.bf16.mxu0 0
        %6435 = vmatmul.mubr.bf16.gmra.mrb[0].mxu0 %v5951
        %v6436 = vpop.f32.mrb[0].mxu0
        %v6437 = vadd.f32 %v6276, %v6436
        %v6438 = vpop.f32.mrb[0].mxu0
        %v6439 = vpop.f32.mrb[0].mxu0
        %v6440 = vadd.f32 %v6279, %v6439
        %v6441 = vpop.f32.mrb[0].mxu0
        %6442 = vmatprep.mubr.bf16.mxu0 0
        %6443 = vmatmul.mubr.bf16.gmra.mrb[0].mxu0 %v5955
        %v6444 = vpop.f32.mrb[0].mxu0
        %v6445 = vadd.f32 %v6284, %v6444
        %v6446 = vpop.f32.mrb[0].mxu0
        %v6447 = vpop.f32.mrb[0].mxu0
        %v6448 = vadd.f32 %v6287, %v6447
        %v6449 = vpop.f32.mrb[0].mxu0
        %6450 = vmatprep.mubr.bf16.mxu0 0
        %6451 = vmatmul.mubr.bf16.gmra.mrb[0].mxu0 %v5959
        %v6452 = vpop.f32.mrb[0].mxu0
        %v6453 = vadd.f32 %v6292, %v6452
        %v6454 = vpop.f32.mrb[0].mxu0
        %v6455 = vpop.f32.mrb[0].mxu0
        %v6456 = vadd.f32 %v6295, %v6455
        %v6457 = vpop.f32.mrb[0].mxu0
        %6458 = vmatprep.mubr.bf16.mxu0 0
        %6459 = vmatmul.mubr.bf16.gmra.mrb[0].mxu0 %v5965
        %v6460 = vpop.f32.mrb[0].mxu0
        %v6461 = vadd.f32 %v6300, %v6460
        %v6462 = vpop.f32.mrb[0].mxu0
        %v6463 = vpop.f32.mrb[0].mxu0
        %v6464 = vadd.f32 %v6303, %v6463
        %v6465 = vpop.f32.mrb[0].mxu0
        %6466 = vdwg.mxu0
        %v6467 = vmax.f32 %v6341, 0.0
        %v6468 = vmax.f32 %v6344, 0.0
        %v6469 = vmax.f32 %v6349, 0.0
        %v6470 = vmax.f32 %v6352, 0.0
        %v6471 = vmax.f32 %v6357, 0.0
        %v6472 = vmax.f32 %v6360, 0.0
        %v6473 = vmax.f32 %v6365, 0.0
        %v6474 = vmax.f32 %v6368, 0.0
        %v6475 = vmax.f32 %v6373, 0.0
        %v6476 = vmax.f32 %v6376, 0.0
        %v6477 = vmax.f32 %v6381, 0.0
        %v6478 = vmax.f32 %v6384, 0.0
        %v6479 = vmax.f32 %v6389, 0.0
        %v6480 = vmax.f32 %v6392, 0.0
        %v6481 = vmax.f32 %v6397, 0.0
        %v6482 = vmax.f32 %v6400, 0.0
        %v6483 = vmax.f32 %v6405, 0.0
        %v6484 = vmax.f32 %v6408, 0.0
        %v6485 = vmax.f32 %v6413, 0.0
        %v6486 = vmax.f32 %v6416, 0.0
        %v6487 = vmax.f32 %v6421, 0.0
        %v6488 = vmax.f32 %v6424, 0.0
        %v6489 = vmax.f32 %v6429, 0.0
        %v6490 = vmax.f32 %v6432, 0.0
        %v6491 = vmax.f32 %v6437, 0.0
        %v6492 = vmax.f32 %v6440, 0.0
        %v6493 = vmax.f32 %v6445, 0.0
        %v6494 = vmax.f32 %v6448, 0.0
        %v6495 = vmax.f32 %v6453, 0.0
        %v6496 = vmax.f32 %v6456, 0.0
        %v6497 = vmax.f32 %v6461, 0.0
        %v6498 = vmax.f32 %v6464, 0.0
        %v6499 = vpack.c.bf16 %v6468, %v6467
        %v6500 = vpack.c.bf16 %v6470, %v6469
        %v6501 = vpack.c.bf16 %v6472, %v6471
        %v6502 = vpack.c.bf16 %v6474, %v6473
        %v6503 = vpack.c.bf16 %v6476, %v6475
        %v6504 = vpack.c.bf16 %v6478, %v6477
        %v6505 = vpack.c.bf16 %v6480, %v6479
        %v6506 = vpack.c.bf16 %v6482, %v6481
        %v6507 = vpack.c.bf16 %v6484, %v6483
        %v6508 = vpack.c.bf16 %v6486, %v6485
        %v6509 = vpack.c.bf16 %v6488, %v6487
        %v6510 = vpack.c.bf16 %v6490, %v6489
        %v6511 = vpack.c.bf16 %v6492, %v6491
        %v6512 = vpack.c.bf16 %v6494, %v6493
        %v6513 = vpack.c.bf16 %v6496, %v6495
        %v6514 = vpack.c.bf16 %v6498, %v6497
        %v6531 = vrot.slane %v6499, 4
        %v6532 = vrot.slane %v6500, 4
        %v6533 = vsel %vm5699, %v6531, %v6532
        %v6534 = vrot.slane %v6501, 4
        %v6535 = vsel %vm5699, %v6532, %v6534
        %v6536 = vrot.slane %v6502, 4
        %v6537 = vsel %vm5699, %v6534, %v6536
        %v6538 = vrot.slane %v6503, 4
        %v6539 = vsel %vm5699, %v6536, %v6538
        %v6540 = vrot.slane %v6504, 4
        %v6541 = vsel %vm5699, %v6538, %v6540
        %v6542 = vrot.slane %v6505, 4
        %v6543 = vsel %vm5699, %v6540, %v6542
        %v6544 = vrot.slane %v6506, 4
        %v6545 = vsel %vm5699, %v6542, %v6544
        %v6546 = vrot.slane %v6507, 4
        %v6547 = vsel %vm5699, %v6544, %v6546
        %v6548 = vrot.slane %v6508, 4
        %v6549 = vsel %vm5699, %v6546, %v6548
        %v6550 = vrot.slane %v6509, 4
        %v6551 = vsel %vm5699, %v6548, %v6550
        %v6552 = vrot.slane %v6510, 4
        %v6553 = vsel %vm5699, %v6550, %v6552
        %v6554 = vrot.slane %v6511, 4
        %v6555 = vsel %vm5699, %v6552, %v6554
        %v6556 = vrot.slane %v6512, 4
        %v6557 = vsel %vm5699, %v6554, %v6556
        %v6558 = vrot.slane %v6513, 4
        %v6559 = vsel %vm5699, %v6556, %v6558
        %v6560 = vrot.slane %v6514, 4
        %v6561 = vsel %vm5699, %v6558, %v6560
        %6579 = vst [vmem:[#allocation3 + $0x8] sm:$0xf0] %v6531
        %6580 = vst [vmem:[#allocation3 + $0x10] sm:$0xff] %v6533
        %6581 = vst [vmem:[#allocation3 + $0x18] sm:$0xff] %v6535
        %6582 = vst [vmem:[#allocation3 + $0x20] sm:$0xff] %v6537
        %6583 = vst [vmem:[#allocation3 + $0x28] sm:$0xff] %v6539
        %6584 = vst [vmem:[#allocation3 + $0x30] sm:$0xff] %v6541
        %6585 = vst [vmem:[#allocation3 + $0x38] sm:$0xff] %v6543
        %6586 = vst [vmem:[#allocation3 + $0x40] sm:$0xff] %v6545
        %6587 = vst [vmem:[#allocation3 + $0x48] sm:$0xff] %v6547
        %6588 = vst [vmem:[#allocation3 + $0x50] sm:$0xff] %v6549
        %6589 = vst [vmem:[#allocation3 + $0x58] sm:$0xff] %v6551
        %6590 = vst [vmem:[#allocation3 + $0x60] sm:$0xff] %v6553
        %6591 = vst [vmem:[#allocation3 + $0x68] sm:$0xff] %v6555
        %6592 = vst [vmem:[#allocation3 + $0x70] sm:$0xff] %v6557
        %6593 = vst [vmem:[#allocation3 + $0x78] sm:$0xff] %v6559
        %6594 = vst [vmem:[#allocation3 + $0x80] sm:$0xff] %v6561
        %6595 = vst [vmem:[#allocation3 + $0x88] sm:$0xf] %v6560
        %v6596 = vld [vmem:[#allocation11] sm:$0xf]
        %v6597 = vld [vmem:[#allocation11 + $0x4] sm:$0xf]
        %v6598 = vld [vmem:[#allocation11 + $0x8] sm:$0xf]
        %v6599 = vld [vmem:[#allocation11 + $0xc] sm:$0xf]
        %v6600 = vld [vmem:[#allocation11 + $0x10] sm:$0xf]
        %v6601 = vld [vmem:[#allocation11 + $0x14] sm:$0xf]
        %v6602 = vld [vmem:[#allocation11 + $0x18] sm:$0xf]
        %v6603 = vld [vmem:[#allocation11 + $0x1c] sm:$0xf]
        %v6604 = vld [vmem:[#allocation11 + $0x20] sm:$0xf]
        %v6605 = vld [vmem:[#allocation11 + $0x24] sm:$0xf]
        %v6606 = vld [vmem:[#allocation11 + $0x28] sm:$0xf]
        %v6607 = vld [vmem:[#allocation11 + $0x2c] sm:$0xf]
        %v6608 = vld [vmem:[#allocation11 + $0x30] sm:$0xf]
        %v6609 = vld [vmem:[#allocation11 + $0x34] sm:$0xf]
        %v6610 = vld [vmem:[#allocation11 + $0x38] sm:$0xf]
        %v6611 = vld [vmem:[#allocation11 + $0x3c] sm:$0xf]
        %v6612 = vld [vmem:[#allocation11 + $0x40] sm:$0xf]
        %v6613 = vld [vmem:[#allocation11 + $0x44] sm:$0xf]
        %v6614 = vld [vmem:[#allocation11 + $0x48] sm:$0xf]
        %v6615 = vld [vmem:[#allocation11 + $0x4c] sm:$0xf]
        %v6616 = vld [vmem:[#allocation11 + $0x50] sm:$0xf]
        %v6617 = vld [vmem:[#allocation11 + $0x54] sm:$0xf]
        %v6618 = vld [vmem:[#allocation11 + $0x58] sm:$0xf]
        %v6619 = vld [vmem:[#allocation11 + $0x5c] sm:$0xf]
        %v6620 = vld [vmem:[#allocation11 + $0x60] sm:$0xf]
        %v6621 = vld [vmem:[#allocation11 + $0x64] sm:$0xf]
        %v6622 = vld [vmem:[#allocation11 + $0x68] sm:$0xf]
        %v6623 = vld [vmem:[#allocation11 + $0x6c] sm:$0xf]
        %v6624 = vld [vmem:[#allocation11 + $0x70] sm:$0xf]
        %v6625 = vld [vmem:[#allocation11 + $0x74] sm:$0xf]
        %v6626 = vld [vmem:[#allocation11 + $0x78] sm:$0xf]
        %v6627 = vld [vmem:[#allocation11 + $0x7c] sm:$0xf]
        %v6628 = vld [vmem:[#allocation11 + $0x80] sm:$0xf]
        %v6629 = vld [vmem:[#allocation11 + $0x84] sm:$0xf]
        %v6630 = vld [vmem:[#allocation11 + $0x88] sm:$0xf]
        %v6631 = vld [vmem:[#allocation11 + $0x8c] sm:$0xf]
        %v6632 = vld [vmem:[#allocation11 + $0x90] sm:$0xf]
        %v6633 = vld [vmem:[#allocation11 + $0x94] sm:$0xf]
        %v6634 = vld [vmem:[#allocation11 + $0x98] sm:$0xf]
        %v6635 = vld [vmem:[#allocation11 + $0x9c] sm:$0xf]
        %v6636 = vld [vmem:[#allocation11 + $0xa0] sm:$0xf]
        %v6637 = vld [vmem:[#allocation11 + $0xa4] sm:$0xf]
        %v6638 = vld [vmem:[#allocation11 + $0xa8] sm:$0xf]
        %v6639 = vld [vmem:[#allocation11 + $0xac] sm:$0xf]
        %v6640 = vld [vmem:[#allocation11 + $0xb0] sm:$0xf]
        %v6641 = vld [vmem:[#allocation11 + $0xb4] sm:$0xf]
        %v6642 = vld [vmem:[#allocation11 + $0xb8] sm:$0xf]
        %v6643 = vld [vmem:[#allocation11 + $0xbc] sm:$0xf]
        %v6644 = vld [vmem:[#allocation3 + $0x8] sm:$0xf8]
        %v6645 = vld [vmem:[#allocation3 + $0x10] sm:$0xff]
        %v6646 = vld [vmem:[#allocation3 + $0x18] sm:$0xff]
        %v6647 = vld [vmem:[#allocation3 + $0x20] sm:$0xff]
        %v6648 = vld [vmem:[#allocation3 + $0x28] sm:$0xff]
        %v6649 = vld [vmem:[#allocation3 + $0x30] sm:$0xff]
        %v6650 = vld [vmem:[#allocation3 + $0x38] sm:$0xff]
        %v6651 = vld [vmem:[#allocation3 + $0x40] sm:$0xff]
        %v6652 = vld [vmem:[#allocation3 + $0x48] sm:$0xff]
        %v6653 = vld [vmem:[#allocation3 + $0x50] sm:$0xff]
        %v6654 = vld [vmem:[#allocation3 + $0x58] sm:$0xff]
        %v6655 = vld [vmem:[#allocation3 + $0x60] sm:$0xff]
        %v6656 = vld [vmem:[#allocation3 + $0x68] sm:$0xff]
        %v6657 = vld [vmem:[#allocation3 + $0x70] sm:$0xff]
        %v6658 = vld [vmem:[#allocation3 + $0x78] sm:$0xff]
        %v6659 = vld [vmem:[#allocation3 + $0x80] sm:$0xff]
        %v6660 = vld [vmem:[#allocation3 + $0x88] sm:$0xf]
        %v6661 = vsel %vm1685, %v6644, 0
        %v6662 = vsel %vm1686, %v6645, 0
        %v6663 = vsel %vm1687, %v6646, 0
        %v6664 = vsel %vm1688, %v6647, 0
        %v6665 = vsel %vm1689, %v6648, 0
        %v6666 = vsel %vm1690, %v6649, 0
        %v6667 = vsel %vm1691, %v6650, 0
        %v6668 = vsel %vm1692, %v6651, 0
        %v6669 = vsel %vm1693, %v6652, 0
        %v6670 = vsel %vm1694, %v6653, 0
        %v6671 = vsel %vm1695, %v6654, 0
        %v6672 = vsel %vm1696, %v6655, 0
        %v6673 = vsel %vm1697, %v6656, 0
        %v6674 = vsel %vm1698, %v6657, 0
        %v6675 = vsel %vm1699, %v6658, 0
        %v6676 = vsel %vm1700, %v6659, 0
        %v6677 = vsel %vm1701, %v6660, 0
        %v6678 = vld [vmem:[#allocation3 + $0x8] sm:$0xf0]
        %v6679 = vld [vmem:[#allocation3 + $0x88] sm:$0x1f]
        %v6680 = vsel %vm2041, %v6678, 0
        %v6681 = vsel %vm2042, %v6645, 0
        %v6682 = vsel %vm2043, %v6646, 0
        %v6683 = vsel %vm2044, %v6647, 0
        %v6684 = vsel %vm2045, %v6648, 0
        %v6685 = vsel %vm2046, %v6649, 0
        %v6686 = vsel %vm2047, %v6650, 0
        %v6687 = vsel %vm2048, %v6651, 0
        %v6688 = vsel %vm2049, %v6652, 0
        %v6689 = vsel %vm2050, %v6653, 0
        %v6690 = vsel %vm2051, %v6654, 0
        %v6691 = vsel %vm2052, %v6655, 0
        %v6692 = vsel %vm2053, %v6656, 0
        %v6693 = vsel %vm2054, %v6657, 0
        %v6694 = vsel %vm2055, %v6658, 0
        %v6695 = vsel %vm2056, %v6659, 0
        %v6696 = vsel %vm2057, %v6679, 0
        %v6698 = vshrl.u32 %v6678, 16
        %v6700 = vshll.u32 %v6678, 16
        %v6702 = vrot.slane %v6700, 1
        %v6703 = vor.u32 %v6698, %v6702
        %v6705 = vshll.u32 %v6645, 16
        %v6707 = vrot.slane %v6705, 1
        %v6708 = vsel %vm2075, %v6703, %v6707
        %v6709 = vshrl.u32 %v6645, 16
        %v6711 = vor.u32 %v6709, %v6707
        %v6713 = vshll.u32 %v6646, 16
        %v6715 = vrot.slane %v6713, 1
        %v6716 = vsel %vm2075, %v6711, %v6715
        %v6717 = vshrl.u32 %v6646, 16
        %v6719 = vor.u32 %v6717, %v6715
        %v6721 = vshll.u32 %v6647, 16
        %v6723 = vrot.slane %v6721, 1
        %v6724 = vsel %vm2075, %v6719, %v6723
        %v6725 = vshrl.u32 %v6647, 16
        %v6727 = vor.u32 %v6725, %v6723
        %v6729 = vshll.u32 %v6648, 16
        %v6731 = vrot.slane %v6729, 1
        %v6732 = vsel %vm2075, %v6727, %v6731
        %v6733 = vshrl.u32 %v6648, 16
        %v6735 = vor.u32 %v6733, %v6731
        %v6737 = vshll.u32 %v6649, 16
        %v6739 = vrot.slane %v6737, 1
        %v6740 = vsel %vm2075, %v6735, %v6739
        %v6741 = vshrl.u32 %v6649, 16
        %v6743 = vor.u32 %v6741, %v6739
        %v6745 = vshll.u32 %v6650, 16
        %v6747 = vrot.slane %v6745, 1
        %v6748 = vsel %vm2075, %v6743, %v6747
        %v6749 = vshrl.u32 %v6650, 16
        %v6751 = vor.u32 %v6749, %v6747
        %v6753 = vshll.u32 %v6651, 16
        %v6755 = vrot.slane %v6753, 1
        %v6756 = vsel %vm2075, %v6751, %v6755
        %v6757 = vshrl.u32 %v6651, 16
        %v6759 = vor.u32 %v6757, %v6755
        %v6761 = vshll.u32 %v6652, 16
        %v6763 = vrot.slane %v6761, 1
        %v6764 = vsel %vm2075, %v6759, %v6763
        %v6765 = vshrl.u32 %v6652, 16
        %v6767 = vor.u32 %v6765, %v6763
        %v6769 = vshll.u32 %v6653, 16
        %v6771 = vrot.slane %v6769, 1
        %v6772 = vsel %vm2075, %v6767, %v6771
        %v6773 = vshrl.u32 %v6653, 16
        %v6775 = vor.u32 %v6773, %v6771
        %v6777 = vshll.u32 %v6654, 16
        %v6779 = vrot.slane %v6777, 1
        %v6780 = vsel %vm2075, %v6775, %v6779
        %v6781 = vshrl.u32 %v6654, 16
        %v6783 = vor.u32 %v6781, %v6779
        %v6785 = vshll.u32 %v6655, 16
        %v6787 = vrot.slane %v6785, 1
        %v6788 = vsel %vm2075, %v6783, %v6787
        %v6789 = vshrl.u32 %v6655, 16
        %v6791 = vor.u32 %v6789, %v6787
        %v6793 = vshll.u32 %v6656, 16
        %v6795 = vrot.slane %v6793, 1
        %v6796 = vsel %vm2075, %v6791, %v6795
        %v6797 = vshrl.u32 %v6656, 16
        %v6799 = vor.u32 %v6797, %v6795
        %v6801 = vshll.u32 %v6657, 16
        %v6803 = vrot.slane %v6801, 1
        %v6804 = vsel %vm2075, %v6799, %v6803
        %v6805 = vshrl.u32 %v6657, 16
        %v6807 = vor.u32 %v6805, %v6803
        %v6809 = vshll.u32 %v6658, 16
        %v6811 = vrot.slane %v6809, 1
        %v6812 = vsel %vm2075, %v6807, %v6811
        %v6813 = vshrl.u32 %v6658, 16
        %v6815 = vor.u32 %v6813, %v6811
        %v6817 = vshll.u32 %v6659, 16
        %v6819 = vrot.slane %v6817, 1
        %v6820 = vsel %vm2075, %v6815, %v6819
        %v6821 = vshrl.u32 %v6659, 16
        %v6823 = vor.u32 %v6821, %v6819
        %v6825 = vshll.u32 %v6660, 16
        %v6827 = vrot.slane %v6825, 1
        %v6828 = vsel %vm2075, %v6823, %v6827
        %v6829 = vshrl.u32 %v6660, 16
        %v6831 = vor.u32 %v6829, %v6827
        %v6849 = vrot.slane %v6680, 1
        %v6850 = vrot.slane %v6681, 1
        %v6851 = vsel %vm2228, %v6849, %v6850
        %v6852 = vrot.slane %v6682, 1
        %v6853 = vsel %vm2228, %v6850, %v6852
        %v6854 = vrot.slane %v6683, 1
        %v6855 = vsel %vm2228, %v6852, %v6854
        %v6856 = vrot.slane %v6684, 1
        %v6857 = vsel %vm2228, %v6854, %v6856
        %v6858 = vrot.slane %v6685, 1
        %v6859 = vsel %vm2228, %v6856, %v6858
        %v6860 = vrot.slane %v6686, 1
        %v6861 = vsel %vm2228, %v6858, %v6860
        %v6862 = vrot.slane %v6687, 1
        %v6863 = vsel %vm2228, %v6860, %v6862
        %v6864 = vrot.slane %v6688, 1
        %v6865 = vsel %vm2228, %v6862, %v6864
        %v6866 = vrot.slane %v6689, 1
        %v6867 = vsel %vm2228, %v6864, %v6866
        %v6868 = vrot.slane %v6690, 1
        %v6869 = vsel %vm2228, %v6866, %v6868
        %v6870 = vrot.slane %v6691, 1
        %v6871 = vsel %vm2228, %v6868, %v6870
        %v6872 = vrot.slane %v6692, 1
        %v6873 = vsel %vm2228, %v6870, %v6872
        %v6874 = vrot.slane %v6693, 1
        %v6875 = vsel %vm2228, %v6872, %v6874
        %v6876 = vrot.slane %v6694, 1
        %v6877 = vsel %vm2228, %v6874, %v6876
        %v6878 = vrot.slane %v6695, 1
        %v6879 = vsel %vm2228, %v6876, %v6878
        %v6880 = vrot.slane %v6696, 1
        %v6881 = vsel %vm2228, %v6878, %v6880
        %v6883 = vshrl.u32 %v6661, 16
        %v6885 = vrot.slane %v6883, 3
        %v6886 = vshll.u32 %v6661, 16
        %v6888 = vrot.slane %v6886, 4
        %v6889 = vor.u32 %v6885, %v6888
        %v6891 = vshrl.u32 %v6662, 16
        %v6893 = vrot.slane %v6891, 3
        %v6894 = vshll.u32 %v6662, 16
        %v6896 = vrot.slane %v6894, 4
        %v6897 = vor.u32 %v6893, %v6896
        %v6898 = vsel %vm1897, %v6889, %v6897
        %v6900 = vshrl.u32 %v6708, 16
        %v6902 = vrot.slane %v6900, 3
        %v6903 = vshll.u32 %v6708, 16
        %v6905 = vrot.slane %v6903, 4
        %v6906 = vor.u32 %v6902, %v6905
        %v6908 = vshrl.u32 %v6716, 16
        %v6910 = vrot.slane %v6908, 3
        %v6911 = vshll.u32 %v6716, 16
        %v6913 = vrot.slane %v6911, 4
        %v6914 = vor.u32 %v6910, %v6913
        %v6915 = vsel %vm1897, %v6906, %v6914
        %v6917 = vshrl.u32 %v6851, 16
        %v6919 = vrot.slane %v6917, 3
        %v6920 = vshll.u32 %v6851, 16
        %v6922 = vrot.slane %v6920, 4
        %v6923 = vor.u32 %v6919, %v6922
        %v6925 = vshrl.u32 %v6853, 16
        %v6927 = vrot.slane %v6925, 3
        %v6928 = vshll.u32 %v6853, 16
        %v6930 = vrot.slane %v6928, 4
        %v6931 = vor.u32 %v6927, %v6930
        %v6932 = vsel %vm1897, %v6923, %v6931
        %v6934 = vshrl.u32 %v6663, 16
        %v6936 = vrot.slane %v6934, 3
        %v6937 = vshll.u32 %v6663, 16
        %v6939 = vrot.slane %v6937, 4
        %v6940 = vor.u32 %v6936, %v6939
        %v6941 = vsel %vm1897, %v6897, %v6940
        %v6943 = vshrl.u32 %v6724, 16
        %v6945 = vrot.slane %v6943, 3
        %v6946 = vshll.u32 %v6724, 16
        %v6948 = vrot.slane %v6946, 4
        %v6949 = vor.u32 %v6945, %v6948
        %v6950 = vsel %vm1897, %v6914, %v6949
        %v6952 = vshrl.u32 %v6855, 16
        %v6954 = vrot.slane %v6952, 3
        %v6955 = vshll.u32 %v6855, 16
        %v6957 = vrot.slane %v6955, 4
        %v6958 = vor.u32 %v6954, %v6957
        %v6959 = vsel %vm1897, %v6931, %v6958
        %v6961 = vshrl.u32 %v6664, 16
        %v6963 = vrot.slane %v6961, 3
        %v6964 = vshll.u32 %v6664, 16
        %v6966 = vrot.slane %v6964, 4
        %v6967 = vor.u32 %v6963, %v6966
        %v6968 = vsel %vm1897, %v6940, %v6967
        %v6970 = vshrl.u32 %v6732, 16
        %v6972 = vrot.slane %v6970, 3
        %v6973 = vshll.u32 %v6732, 16
        %v6975 = vrot.slane %v6973, 4
        %v6976 = vor.u32 %v6972, %v6975
        %v6977 = vsel %vm1897, %v6949, %v6976
        %v6979 = vshrl.u32 %v6857, 16
        %v6981 = vrot.slane %v6979, 3
        %v6982 = vshll.u32 %v6857, 16
        %v6984 = vrot.slane %v6982, 4
        %v6985 = vor.u32 %v6981, %v6984
        %v6986 = vsel %vm1897, %v6958, %v6985
        %v6988 = vshrl.u32 %v6665, 16
        %v6990 = vrot.slane %v6988, 3
        %v6991 = vshll.u32 %v6665, 16
        %v6993 = vrot.slane %v6991, 4
        %v6994 = vor.u32 %v6990, %v6993
        %v6995 = vsel %vm1897, %v6967, %v6994
        %v6997 = vshrl.u32 %v6740, 16
        %v6999 = vrot.slane %v6997, 3
        %v7000 = vshll.u32 %v6740, 16
        %v7002 = vrot.slane %v7000, 4
        %v7003 = vor.u32 %v6999, %v7002
        %v7004 = vsel %vm1897, %v6976, %v7003
        %v7006 = vshrl.u32 %v6859, 16
        %v7008 = vrot.slane %v7006, 3
        %v7009 = vshll.u32 %v6859, 16
        %v7011 = vrot.slane %v7009, 4
        %v7012 = vor.u32 %v7008, %v7011
        %v7013 = vsel %vm1897, %v6985, %v7012
        %v7015 = vshrl.u32 %v6666, 16
        %v7017 = vrot.slane %v7015, 3
        %v7018 = vshll.u32 %v6666, 16
        %v7020 = vrot.slane %v7018, 4
        %v7021 = vor.u32 %v7017, %v7020
        %v7022 = vsel %vm1897, %v6994, %v7021
        %v7024 = vshrl.u32 %v6748, 16
        %v7026 = vrot.slane %v7024, 3
        %v7027 = vshll.u32 %v6748, 16
        %v7029 = vrot.slane %v7027, 4
        %v7030 = vor.u32 %v7026, %v7029
        %v7031 = vsel %vm1897, %v7003, %v7030
        %v7033 = vshrl.u32 %v6861, 16
        %v7035 = vrot.slane %v7033, 3
        %v7036 = vshll.u32 %v6861, 16
        %v7038 = vrot.slane %v7036, 4
        %v7039 = vor.u32 %v7035, %v7038
        %v7040 = vsel %vm1897, %v7012, %v7039
        %v7042 = vshrl.u32 %v6667, 16
        %v7044 = vrot.slane %v7042, 3
        %v7045 = vshll.u32 %v6667, 16
        %v7047 = vrot.slane %v7045, 4
        %v7048 = vor.u32 %v7044, %v7047
        %v7049 = vsel %vm1897, %v7021, %v7048
        %v7051 = vshrl.u32 %v6756, 16
        %v7053 = vrot.slane %v7051, 3
        %v7054 = vshll.u32 %v6756, 16
        %v7056 = vrot.slane %v7054, 4
        %v7057 = vor.u32 %v7053, %v7056
        %v7058 = vsel %vm1897, %v7030, %v7057
        %v7060 = vshrl.u32 %v6863, 16
        %v7062 = vrot.slane %v7060, 3
        %v7063 = vshll.u32 %v6863, 16
        %v7065 = vrot.slane %v7063, 4
        %v7066 = vor.u32 %v7062, %v7065
        %v7067 = vsel %vm1897, %v7039, %v7066
        %v7069 = vshrl.u32 %v6668, 16
        %v7071 = vrot.slane %v7069, 3
        %v7072 = vshll.u32 %v6668, 16
        %v7074 = vrot.slane %v7072, 4
        %v7075 = vor.u32 %v7071, %v7074
        %v7076 = vsel %vm1897, %v7048, %v7075
        %v7078 = vshrl.u32 %v6764, 16
        %v7080 = vrot.slane %v7078, 3
        %v7081 = vshll.u32 %v6764, 16
        %v7083 = vrot.slane %v7081, 4
        %v7084 = vor.u32 %v7080, %v7083
        %v7085 = vsel %vm1897, %v7057, %v7084
        %v7087 = vshrl.u32 %v6865, 16
        %v7089 = vrot.slane %v7087, 3
        %v7090 = vshll.u32 %v6865, 16
        %v7092 = vrot.slane %v7090, 4
        %v7093 = vor.u32 %v7089, %v7092
        %v7094 = vsel %vm1897, %v7066, %v7093
        %v7096 = vshrl.u32 %v6669, 16
        %v7098 = vrot.slane %v7096, 3
        %v7099 = vshll.u32 %v6669, 16
        %v7101 = vrot.slane %v7099, 4
        %v7102 = vor.u32 %v7098, %v7101
        %v7103 = vsel %vm1897, %v7075, %v7102
        %v7105 = vshrl.u32 %v6772, 16
        %v7107 = vrot.slane %v7105, 3
        %v7108 = vshll.u32 %v6772, 16
        %v7110 = vrot.slane %v7108, 4
        %v7111 = vor.u32 %v7107, %v7110
        %v7112 = vsel %vm1897, %v7084, %v7111
        %v7114 = vshrl.u32 %v6867, 16
        %v7116 = vrot.slane %v7114, 3
        %v7117 = vshll.u32 %v6867, 16
        %v7119 = vrot.slane %v7117, 4
        %v7120 = vor.u32 %v7116, %v7119
        %v7121 = vsel %vm1897, %v7093, %v7120
        %v7123 = vshrl.u32 %v6670, 16
        %v7125 = vrot.slane %v7123, 3
        %v7126 = vshll.u32 %v6670, 16
        %v7128 = vrot.slane %v7126, 4
        %v7129 = vor.u32 %v7125, %v7128
        %v7130 = vsel %vm1897, %v7102, %v7129
        %v7132 = vshrl.u32 %v6780, 16
        %v7134 = vrot.slane %v7132, 3
        %v7135 = vshll.u32 %v6780, 16
        %v7137 = vrot.slane %v7135, 4
        %v7138 = vor.u32 %v7134, %v7137
        %v7139 = vsel %vm1897, %v7111, %v7138
        %v7141 = vshrl.u32 %v6869, 16
        %v7143 = vrot.slane %v7141, 3
        %v7144 = vshll.u32 %v6869, 16
        %v7146 = vrot.slane %v7144, 4
        %v7147 = vor.u32 %v7143, %v7146
        %v7148 = vsel %vm1897, %v7120, %v7147
        %v7150 = vshrl.u32 %v6671, 16
        %v7152 = vrot.slane %v7150, 3
        %v7153 = vshll.u32 %v6671, 16
        %v7155 = vrot.slane %v7153, 4
        %v7156 = vor.u32 %v7152, %v7155
        %v7157 = vsel %vm1897, %v7129, %v7156
        %v7159 = vshrl.u32 %v6788, 16
        %v7161 = vrot.slane %v7159, 3
        %v7162 = vshll.u32 %v6788, 16
        %v7164 = vrot.slane %v7162, 4
        %v7165 = vor.u32 %v7161, %v7164
        %v7166 = vsel %vm1897, %v7138, %v7165
        %v7168 = vshrl.u32 %v6871, 16
        %v7170 = vrot.slane %v7168, 3
        %v7171 = vshll.u32 %v6871, 16
        %v7173 = vrot.slane %v7171, 4
        %v7174 = vor.u32 %v7170, %v7173
        %v7175 = vsel %vm1897, %v7147, %v7174
        %v7177 = vshrl.u32 %v6672, 16
        %v7179 = vrot.slane %v7177, 3
        %v7180 = vshll.u32 %v6672, 16
        %v7182 = vrot.slane %v7180, 4
        %v7183 = vor.u32 %v7179, %v7182
        %v7184 = vsel %vm1897, %v7156, %v7183
        %v7186 = vshrl.u32 %v6796, 16
        %v7188 = vrot.slane %v7186, 3
        %v7189 = vshll.u32 %v6796, 16
        %v7191 = vrot.slane %v7189, 4
        %v7192 = vor.u32 %v7188, %v7191
        %v7193 = vsel %vm1897, %v7165, %v7192
        %v7195 = vshrl.u32 %v6873, 16
        %v7197 = vrot.slane %v7195, 3
        %v7198 = vshll.u32 %v6873, 16
        %v7200 = vrot.slane %v7198, 4
        %v7201 = vor.u32 %v7197, %v7200
        %v7202 = vsel %vm1897, %v7174, %v7201
        %v7204 = vshrl.u32 %v6673, 16
        %v7206 = vrot.slane %v7204, 3
        %v7207 = vshll.u32 %v6673, 16
        %v7209 = vrot.slane %v7207, 4
        %v7210 = vor.u32 %v7206, %v7209
        %v7211 = vsel %vm1897, %v7183, %v7210
        %v7213 = vshrl.u32 %v6804, 16
        %v7215 = vrot.slane %v7213, 3
        %v7216 = vshll.u32 %v6804, 16
        %v7218 = vrot.slane %v7216, 4
        %v7219 = vor.u32 %v7215, %v7218
        %v7220 = vsel %vm1897, %v7192, %v7219
        %v7222 = vshrl.u32 %v6875, 16
        %v7224 = vrot.slane %v7222, 3
        %v7225 = vshll.u32 %v6875, 16
        %v7227 = vrot.slane %v7225, 4
        %v7228 = vor.u32 %v7224, %v7227
        %v7229 = vsel %vm1897, %v7201, %v7228
        %v7231 = vshrl.u32 %v6674, 16
        %v7233 = vrot.slane %v7231, 3
        %v7234 = vshll.u32 %v6674, 16
        %v7236 = vrot.slane %v7234, 4
        %v7237 = vor.u32 %v7233, %v7236
        %v7238 = vsel %vm1897, %v7210, %v7237
        %v7240 = vshrl.u32 %v6812, 16
        %v7242 = vrot.slane %v7240, 3
        %v7243 = vshll.u32 %v6812, 16
        %v7245 = vrot.slane %v7243, 4
        %v7246 = vor.u32 %v7242, %v7245
        %v7247 = vsel %vm1897, %v7219, %v7246
        %v7249 = vshrl.u32 %v6877, 16
        %v7251 = vrot.slane %v7249, 3
        %v7252 = vshll.u32 %v6877, 16
        %v7254 = vrot.slane %v7252, 4
        %v7255 = vor.u32 %v7251, %v7254
        %v7256 = vsel %vm1897, %v7228, %v7255
        %v7258 = vshrl.u32 %v6675, 16
        %v7260 = vrot.slane %v7258, 3
        %v7261 = vshll.u32 %v6675, 16
        %v7263 = vrot.slane %v7261, 4
        %v7264 = vor.u32 %v7260, %v7263
        %v7265 = vsel %vm1897, %v7237, %v7264
        %v7267 = vshrl.u32 %v6820, 16
        %v7269 = vrot.slane %v7267, 3
        %v7270 = vshll.u32 %v6820, 16
        %v7272 = vrot.slane %v7270, 4
        %v7273 = vor.u32 %v7269, %v7272
        %v7274 = vsel %vm1897, %v7246, %v7273
        %v7276 = vshrl.u32 %v6879, 16
        %v7278 = vrot.slane %v7276, 3
        %v7279 = vshll.u32 %v6879, 16
        %v7281 = vrot.slane %v7279, 4
        %v7282 = vor.u32 %v7278, %v7281
        %v7283 = vsel %vm1897, %v7255, %v7282
        %v7285 = vshrl.u32 %v6676, 16
        %v7287 = vrot.slane %v7285, 3
        %v7288 = vshll.u32 %v6676, 16
        %v7290 = vrot.slane %v7288, 4
        %v7291 = vor.u32 %v7287, %v7290
        %v7292 = vsel %vm1897, %v7264, %v7291
        %v7294 = vshrl.u32 %v6828, 16
        %v7296 = vrot.slane %v7294, 3
        %v7297 = vshll.u32 %v6828, 16
        %v7299 = vrot.slane %v7297, 4
        %v7300 = vor.u32 %v7296, %v7299
        %v7301 = vsel %vm1897, %v7273, %v7300
        %v7303 = vshrl.u32 %v6881, 16
        %v7305 = vrot.slane %v7303, 3
        %v7306 = vshll.u32 %v6881, 16
        %v7308 = vrot.slane %v7306, 4
        %v7309 = vor.u32 %v7305, %v7308
        %v7310 = vsel %vm1897, %v7282, %v7309
        %v7312 = vshrl.u32 %v6677, 16
        %v7314 = vrot.slane %v7312, 3
        %v7315 = vshll.u32 %v6677, 16
        %v7317 = vrot.slane %v7315, 4
        %v7318 = vor.u32 %v7314, %v7317
        %v7319 = vsel %vm1897, %v7291, %v7318
        %v7321 = vshrl.u32 %v6831, 16
        %v7323 = vrot.slane %v7321, 3
        %v7324 = vshll.u32 %v6831, 16
        %v7326 = vrot.slane %v7324, 4
        %v7327 = vor.u32 %v7323, %v7326
        %v7328 = vsel %vm1897, %v7300, %v7327
        %v7330 = vshrl.u32 %v6880, 16
        %v7332 = vrot.slane %v7330, 3
        %v7333 = vshll.u32 %v6880, 16
        %v7335 = vrot.slane %v7333, 4
        %v7336 = vor.u32 %v7332, %v7335
        %v7337 = vsel %vm1897, %v7309, %v7336
        %v7434 = vunpack.c.l.b16 %v6596
        %v7435 = vunpack.c.l.b16 %v6597
        %v7436 = vunpack.c.l.b16 %v6598
        %v7437 = vunpack.c.l.b16 %v6599
        %v7438 = vunpack.c.l.b16 %v6600
        %v7439 = vunpack.c.l.b16 %v6601
        %v7440 = vunpack.c.l.b16 %v6602
        %v7441 = vunpack.c.l.b16 %v6603
        %v7442 = vunpack.c.l.b16 %v6604
        %v7443 = vunpack.c.l.b16 %v6605
        %v7444 = vunpack.c.l.b16 %v6606
        %v7445 = vunpack.c.l.b16 %v6607
        %v7446 = vunpack.c.l.b16 %v6608
        %v7447 = vunpack.c.l.b16 %v6609
        %v7448 = vunpack.c.l.b16 %v6610
        %v7449 = vunpack.c.l.b16 %v6611
        %v7450 = vunpack.c.l.b16 %v6612
        %v7451 = vunpack.c.l.b16 %v6613
        %v7452 = vunpack.c.l.b16 %v6614
        %v7453 = vunpack.c.l.b16 %v6615
        %v7454 = vunpack.c.l.b16 %v6616
        %v7455 = vunpack.c.l.b16 %v6617
        %v7456 = vunpack.c.l.b16 %v6618
        %v7457 = vunpack.c.l.b16 %v6619
        %v7458 = vunpack.c.l.b16 %v6620
        %v7459 = vunpack.c.l.b16 %v6621
        %v7460 = vunpack.c.l.b16 %v6622
        %v7461 = vunpack.c.l.b16 %v6623
        %v7462 = vunpack.c.l.b16 %v6624
        %v7463 = vunpack.c.l.b16 %v6625
        %v7464 = vunpack.c.l.b16 %v6626
        %v7465 = vunpack.c.l.b16 %v6627
        %v7466 = vunpack.c.l.b16 %v6628
        %v7467 = vunpack.c.l.b16 %v6629
        %v7468 = vunpack.c.l.b16 %v6630
        %v7469 = vunpack.c.l.b16 %v6631
        %v7470 = vunpack.c.l.b16 %v6632
        %v7471 = vunpack.c.l.b16 %v6633
        %v7472 = vunpack.c.l.b16 %v6634
        %v7473 = vunpack.c.l.b16 %v6635
        %v7474 = vunpack.c.l.b16 %v6636
        %v7475 = vunpack.c.l.b16 %v6637
        %v7476 = vunpack.c.l.b16 %v6638
        %v7477 = vunpack.c.l.b16 %v6639
        %v7478 = vunpack.c.l.b16 %v6640
        %v7479 = vunpack.c.l.b16 %v6641
        %v7480 = vunpack.c.l.b16 %v6642
        %v7481 = vunpack.c.l.b16 %v6643
        %v7482 = vpack.c.b16 %v7435, %v7434
        %v7483 = vpack.c.b16 %v7437, %v7436
        %v7484 = vpack.c.b16 %v7439, %v7438
        %v7485 = vpack.c.b16 %v7441, %v7440
        %v7486 = vpack.c.b16 %v7443, %v7442
        %v7487 = vpack.c.b16 %v7445, %v7444
        %v7488 = vpack.c.b16 %v7447, %v7446
        %v7489 = vpack.c.b16 %v7449, %v7448
        %v7490 = vpack.c.b16 %v7451, %v7450
        %v7491 = vpack.c.b16 %v7453, %v7452
        %v7492 = vpack.c.b16 %v7455, %v7454
        %v7493 = vpack.c.b16 %v7457, %v7456
        %v7494 = vpack.c.b16 %v7459, %v7458
        %v7495 = vpack.c.b16 %v7461, %v7460
        %v7496 = vpack.c.b16 %v7463, %v7462
        %v7497 = vpack.c.b16 %v7465, %v7464
        %v7498 = vpack.c.b16 %v7467, %v7466
        %v7499 = vpack.c.b16 %v7469, %v7468
        %v7500 = vpack.c.b16 %v7471, %v7470
        %v7501 = vpack.c.b16 %v7473, %v7472
        %v7502 = vpack.c.b16 %v7475, %v7474
        %v7503 = vpack.c.b16 %v7477, %v7476
        %v7504 = vpack.c.b16 %v7479, %v7478
        %v7505 = vpack.c.b16 %v7481, %v7480
        %7530 = vmatprep.subr.bf16.mxu0 0
        %7531 = vmatpush1.bf16.msra.mxu0 %v7482
        %7532 = vmatprep.subr.bf16.mxu0 0
        %7533 = vmatpush1.bf16.msra.mxu0 %v7483
        %7534 = vmatprep.subr.bf16.mxu0 0
        %7535 = vmatpush1.bf16.msra.mxu0 %v7484
        %7536 = vmatprep.subr.bf16.mxu0 0
        %7537 = vmatpush1.bf16.msra.mxu0 %v7485
        %7538 = vmatprep.subr.bf16.mxu0 0
        %7539 = vmatpush1.bf16.msra.mxu0 %v7486
        %7540 = vmatprep.subr.bf16.mxu0 0
        %7541 = vmatpush1.bf16.msra.mxu0 %v7487
        %7542 = vmatprep.subr.bf16.mxu0 0
        %7543 = vmatpush1.bf16.msra.mxu0 %v7488
        %7544 = vmatprep.subr.bf16.mxu0 0
        %7545 = vmatpush1.bf16.msra.mxu0 %v7489
        %7546 = vmatprep.subr.bf16.mxu0 0
        %7547 = vmatpush1.bf16.msra.mxu0 %v7490
        %7548 = vmatprep.subr.bf16.mxu0 0
        %7549 = vmatpush1.bf16.msra.mxu0 %v7491
        %7550 = vmatprep.subr.bf16.mxu0 0
        %7551 = vmatpush1.bf16.msra.mxu0 %v7492
        %7552 = vmatprep.subr.bf16.mxu0 0
        %7553 = vmatpush1.bf16.msra.mxu0 %v7493
        %7554 = vmatprep.subr.bf16.mxu0 0
        %7555 = vmatpush1.bf16.msra.mxu0 %v7494
        %7556 = vmatprep.subr.bf16.mxu0 0
        %7557 = vmatpush1.bf16.msra.mxu0 %v7495
        %7558 = vmatprep.subr.bf16.mxu0 0
        %7559 = vmatpush1.bf16.msra.mxu0 %v7496
        %7560 = vmatprep.subr.bf16.mxu0 0
        %7561 = vmatpush1.bf16.msra.mxu0 %v7497
        %7562 = vmatprep.mubr.bf16.mxu0 %v6915
        %7563 = vmatmul.mubr.bf16.gmra.mrb[0].mxu0 %v6898
        %v7564 = vpop.f32.mrb[0].mxu0
        %v7565 = vadd.f32 0.0, %v7564
        %v7566 = vpop.f32.mrb[0].mxu0
        %v7567 = vpop.f32.mrb[0].mxu0
        %v7568 = vadd.f32 0.0, %v7567
        %v7569 = vpop.f32.mrb[0].mxu0
        %7570 = vmatprep.mubr.bf16.mxu0 %v6950
        %7571 = vmatmul.mubr.bf16.gmra.mrb[0].mxu0 %v6941
        %v7572 = vpop.f32.mrb[0].mxu0
        %v7573 = vadd.f32 0.0, %v7572
        %v7574 = vpop.f32.mrb[0].mxu0
        %v7575 = vpop.f32.mrb[0].mxu0
        %v7576 = vadd.f32 0.0, %v7575
        %v7577 = vpop.f32.mrb[0].mxu0
        %7578 = vmatprep.mubr.bf16.mxu0 %v6977
        %7579 = vmatmul.mubr.bf16.gmra.mrb[0].mxu0 %v6968
        %v7580 = vpop.f32.mrb[0].mxu0
        %v7581 = vadd.f32 0.0, %v7580
        %v7582 = vpop.f32.mrb[0].mxu0
        %v7583 = vpop.f32.mrb[0].mxu0
        %v7584 = vadd.f32 0.0, %v7583
        %v7585 = vpop.f32.mrb[0].mxu0
        %7586 = vmatprep.mubr.bf16.mxu0 %v7004
        %7587 = vmatmul.mubr.bf16.gmra.mrb[0].mxu0 %v6995
        %v7588 = vpop.f32.mrb[0].mxu0
        %v7589 = vadd.f32 0.0, %v7588
        %v7590 = vpop.f32.mrb[0].mxu0
        %v7591 = vpop.f32.mrb[0].mxu0
        %v7592 = vadd.f32 0.0, %v7591
        %v7593 = vpop.f32.mrb[0].mxu0
        %7594 = vmatprep.mubr.bf16.mxu0 %v7031
        %7595 = vmatmul.mubr.bf16.gmra.mrb[0].mxu0 %v7022
        %v7596 = vpop.f32.mrb[0].mxu0
        %v7597 = vadd.f32 0.0, %v7596
        %v7598 = vpop.f32.mrb[0].mxu0
        %v7599 = vpop.f32.mrb[0].mxu0
        %v7600 = vadd.f32 0.0, %v7599
        %v7601 = vpop.f32.mrb[0].mxu0
        %7602 = vmatprep.mubr.bf16.mxu0 %v7058
        %7603 = vmatmul.mubr.bf16.gmra.mrb[0].mxu0 %v7049
        %v7604 = vpop.f32.mrb[0].mxu0
        %v7605 = vadd.f32 0.0, %v7604
        %v7606 = vpop.f32.mrb[0].mxu0
        %v7607 = vpop.f32.mrb[0].mxu0
        %v7608 = vadd.f32 0.0, %v7607
        %v7609 = vpop.f32.mrb[0].mxu0
        %7610 = vmatprep.mubr.bf16.mxu0 %v7085
        %7611 = vmatmul.mubr.bf16.gmra.mrb[0].mxu0 %v7076
        %v7612 = vpop.f32.mrb[0].mxu0
        %v7613 = vadd.f32 0.0, %v7612
        %v7614 = vpop.f32.mrb[0].mxu0
        %v7615 = vpop.f32.mrb[0].mxu0
        %v7616 = vadd.f32 0.0, %v7615
        %v7617 = vpop.f32.mrb[0].mxu0
        %7618 = vmatprep.mubr.bf16.mxu0 %v7112
        %7619 = vmatmul.mubr.bf16.gmra.mrb[0].mxu0 %v7103
        %v7620 = vpop.f32.mrb[0].mxu0
        %v7621 = vadd.f32 0.0, %v7620
        %v7622 = vpop.f32.mrb[0].mxu0
        %v7623 = vpop.f32.mrb[0].mxu0
        %v7624 = vadd.f32 0.0, %v7623
        %v7625 = vpop.f32.mrb[0].mxu0
        %7626 = vmatprep.mubr.bf16.mxu0 %v7139
        %7627 = vmatmul.mubr.bf16.gmra.mrb[0].mxu0 %v7130
        %v7628 = vpop.f32.mrb[0].mxu0
        %v7629 = vadd.f32 0.0, %v7628
        %v7630 = vpop.f32.mrb[0].mxu0
        %v7631 = vpop.f32.mrb[0].mxu0
        %v7632 = vadd.f32 0.0, %v7631
        %v7633 = vpop.f32.mrb[0].mxu0
        %7634 = vmatprep.mubr.bf16.mxu0 %v7166
        %7635 = vmatmul.mubr.bf16.gmra.mrb[0].mxu0 %v7157
        %v7636 = vpop.f32.mrb[0].mxu0
        %v7637 = vadd.f32 0.0, %v7636
        %v7638 = vpop.f32.mrb[0].mxu0
        %v7639 = vpop.f32.mrb[0].mxu0
        %v7640 = vadd.f32 0.0, %v7639
        %v7641 = vpop.f32.mrb[0].mxu0
        %7642 = vmatprep.mubr.bf16.mxu0 %v7193
        %7643 = vmatmul.mubr.bf16.gmra.mrb[0].mxu0 %v7184
        %v7644 = vpop.f32.mrb[0].mxu0
        %v7645 = vadd.f32 0.0, %v7644
        %v7646 = vpop.f32.mrb[0].mxu0
        %v7647 = vpop.f32.mrb[0].mxu0
        %v7648 = vadd.f32 0.0, %v7647
        %v7649 = vpop.f32.mrb[0].mxu0
        %7650 = vmatprep.mubr.bf16.mxu0 %v7220
        %7651 = vmatmul.mubr.bf16.gmra.mrb[0].mxu0 %v7211
        %v7652 = vpop.f32.mrb[0].mxu0
        %v7653 = vadd.f32 0.0, %v7652
        %v7654 = vpop.f32.mrb[0].mxu0
        %v7655 = vpop.f32.mrb[0].mxu0
        %v7656 = vadd.f32 0.0, %v7655
        %v7657 = vpop.f32.mrb[0].mxu0
        %7658 = vmatprep.mubr.bf16.mxu0 %v7247
        %7659 = vmatmul.mubr.bf16.gmra.mrb[0].mxu0 %v7238
        %v7660 = vpop.f32.mrb[0].mxu0
        %v7661 = vadd.f32 0.0, %v7660
        %v7662 = vpop.f32.mrb[0].mxu0
        %v7663 = vpop.f32.mrb[0].mxu0
        %v7664 = vadd.f32 0.0, %v7663
        %v7665 = vpop.f32.mrb[0].mxu0
        %7666 = vmatprep.mubr.bf16.mxu0 %v7274
        %7667 = vmatmul.mubr.bf16.gmra.mrb[0].mxu0 %v7265
        %v7668 = vpop.f32.mrb[0].mxu0
        %v7669 = vadd.f32 0.0, %v7668
        %v7670 = vpop.f32.mrb[0].mxu0
        %v7671 = vpop.f32.mrb[0].mxu0
        %v7672 = vadd.f32 0.0, %v7671
        %v7673 = vpop.f32.mrb[0].mxu0
        %7674 = vmatprep.mubr.bf16.mxu0 %v7301
        %7675 = vmatmul.mubr.bf16.gmra.mrb[0].mxu0 %v7292
        %v7676 = vpop.f32.mrb[0].mxu0
        %v7677 = vadd.f32 0.0, %v7676
        %v7678 = vpop.f32.mrb[0].mxu0
        %v7679 = vpop.f32.mrb[0].mxu0
        %v7680 = vadd.f32 0.0, %v7679
        %v7681 = vpop.f32.mrb[0].mxu0
        %7682 = vmatprep.mubr.bf16.mxu0 %v7328
        %7683 = vmatmul.mubr.bf16.gmra.mrb[0].mxu0 %v7319
        %v7684 = vpop.f32.mrb[0].mxu0
        %v7685 = vadd.f32 0.0, %v7684
        %v7686 = vpop.f32.mrb[0].mxu0
        %v7687 = vpop.f32.mrb[0].mxu0
        %v7688 = vadd.f32 0.0, %v7687
        %v7689 = vpop.f32.mrb[0].mxu0
        %7690 = vdwg.mxu0
        %7691 = vmatprep.subr.bf16.mxu0 0
        %7692 = vmatpush1.bf16.msra.mxu0 %v7498
        %7693 = vmatprep.subr.bf16.mxu0 0
        %7694 = vmatpush1.bf16.msra.mxu0 %v7499
        %7695 = vmatprep.subr.bf16.mxu0 0
        %7696 = vmatpush1.bf16.msra.mxu0 %v7500
        %7697 = vmatprep.subr.bf16.mxu0 0
        %7698 = vmatpush1.bf16.msra.mxu0 %v7501
        %7699 = vmatprep.subr.bf16.mxu0 0
        %7700 = vmatpush1.bf16.msra.mxu0 %v7502
        %7701 = vmatprep.subr.bf16.mxu0 0
        %7702 = vmatpush1.bf16.msra.mxu0 %v7503
        %7703 = vmatprep.subr.bf16.mxu0 0
        %7704 = vmatpush1.bf16.msra.mxu0 %v7504
        %7705 = vmatprep.subr.bf16.mxu0 0
        %7706 = vmatpush1.bf16.msra.mxu0 %v7505
        %7707 = vmatprep.subr.bf16.mxu0 0
        %7708 = vmatpush1.bf16.msra.mxu0 0
        %7709 = vmatprep.subr.bf16.mxu0 0
        %7710 = vmatpush1.bf16.msra.mxu0 0
        %7711 = vmatprep.subr.bf16.mxu0 0
        %7712 = vmatpush1.bf16.msra.mxu0 0
        %7713 = vmatprep.subr.bf16.mxu0 0
        %7714 = vmatpush1.bf16.msra.mxu0 0
        %7715 = vmatprep.subr.bf16.mxu0 0
        %7716 = vmatpush1.bf16.msra.mxu0 0
        %7717 = vmatprep.subr.bf16.mxu0 0
        %7718 = vmatpush1.bf16.msra.mxu0 0
        %7719 = vmatprep.subr.bf16.mxu0 0
        %7720 = vmatpush1.bf16.msra.mxu0 0
        %7721 = vmatprep.subr.bf16.mxu0 0
        %7722 = vmatpush1.bf16.msra.mxu0 0
        %7723 = vmatprep.mubr.bf16.mxu0 0
        %7724 = vmatmul.mubr.bf16.gmra.mrb[0].mxu0 %v6932
        %v7725 = vpop.f32.mrb[0].mxu0
        %v7726 = vadd.f32 %v7565, %v7725
        %v7727 = vpop.f32.mrb[0].mxu0
        %v7728 = vpop.f32.mrb[0].mxu0
        %v7729 = vadd.f32 %v7568, %v7728
        %v7730 = vpop.f32.mrb[0].mxu0
        %7731 = vmatprep.mubr.bf16.mxu0 0
        %7732 = vmatmul.mubr.bf16.gmra.mrb[0].mxu0 %v6959
        %v7733 = vpop.f32.mrb[0].mxu0
        %v7734 = vadd.f32 %v7573, %v7733
        %v7735 = vpop.f32.mrb[0].mxu0
        %v7736 = vpop.f32.mrb[0].mxu0
        %v7737 = vadd.f32 %v7576, %v7736
        %v7738 = vpop.f32.mrb[0].mxu0
        %7739 = vmatprep.mubr.bf16.mxu0 0
        %7740 = vmatmul.mubr.bf16.gmra.mrb[0].mxu0 %v6986
        %v7741 = vpop.f32.mrb[0].mxu0
        %v7742 = vadd.f32 %v7581, %v7741
        %v7743 = vpop.f32.mrb[0].mxu0
        %v7744 = vpop.f32.mrb[0].mxu0
        %v7745 = vadd.f32 %v7584, %v7744
        %v7746 = vpop.f32.mrb[0].mxu0
        %7747 = vmatprep.mubr.bf16.mxu0 0
        %7748 = vmatmul.mubr.bf16.gmra.mrb[0].mxu0 %v7013
        %v7749 = vpop.f32.mrb[0].mxu0
        %v7750 = vadd.f32 %v7589, %v7749
        %v7751 = vpop.f32.mrb[0].mxu0
        %v7752 = vpop.f32.mrb[0].mxu0
        %v7753 = vadd.f32 %v7592, %v7752
        %v7754 = vpop.f32.mrb[0].mxu0
        %7755 = vmatprep.mubr.bf16.mxu0 0
        %7756 = vmatmul.mubr.bf16.gmra.mrb[0].mxu0 %v7040
        %v7757 = vpop.f32.mrb[0].mxu0
        %v7758 = vadd.f32 %v7597, %v7757
        %v7759 = vpop.f32.mrb[0].mxu0
        %v7760 = vpop.f32.mrb[0].mxu0
        %v7761 = vadd.f32 %v7600, %v7760
        %v7762 = vpop.f32.mrb[0].mxu0
        %7763 = vmatprep.mubr.bf16.mxu0 0
        %7764 = vmatmul.mubr.bf16.gmra.mrb[0].mxu0 %v7067
        %v7765 = vpop.f32.mrb[0].mxu0
        %v7766 = vadd.f32 %v7605, %v7765
        %v7767 = vpop.f32.mrb[0].mxu0
        %v7768 = vpop.f32.mrb[0].mxu0
        %v7769 = vadd.f32 %v7608, %v7768
        %v7770 = vpop.f32.mrb[0].mxu0
        %7771 = vmatprep.mubr.bf16.mxu0 0
        %7772 = vmatmul.mubr.bf16.gmra.mrb[0].mxu0 %v7094
        %v7773 = vpop.f32.mrb[0].mxu0
        %v7774 = vadd.f32 %v7613, %v7773
        %v7775 = vpop.f32.mrb[0].mxu0
        %v7776 = vpop.f32.mrb[0].mxu0
        %v7777 = vadd.f32 %v7616, %v7776
        %v7778 = vpop.f32.mrb[0].mxu0
        %7779 = vmatprep.mubr.bf16.mxu0 0
        %7780 = vmatmul.mubr.bf16.gmra.mrb[0].mxu0 %v7121
        %v7781 = vpop.f32.mrb[0].mxu0
        %v7782 = vadd.f32 %v7621, %v7781
        %v7783 = vpop.f32.mrb[0].mxu0
        %v7784 = vpop.f32.mrb[0].mxu0
        %v7785 = vadd.f32 %v7624, %v7784
        %v7786 = vpop.f32.mrb[0].mxu0
        %7787 = vmatprep.mubr.bf16.mxu0 0
        %7788 = vmatmul.mubr.bf16.gmra.mrb[0].mxu0 %v7148
        %v7789 = vpop.f32.mrb[0].mxu0
        %v7790 = vadd.f32 %v7629, %v7789
        %v7791 = vpop.f32.mrb[0].mxu0
        %v7792 = vpop.f32.mrb[0].mxu0
        %v7793 = vadd.f32 %v7632, %v7792
        %v7794 = vpop.f32.mrb[0].mxu0
        %7795 = vmatprep.mubr.bf16.mxu0 0
        %7796 = vmatmul.mubr.bf16.gmra.mrb[0].mxu0 %v7175
        %v7797 = vpop.f32.mrb[0].mxu0
        %v7798 = vadd.f32 %v7637, %v7797
        %v7799 = vpop.f32.mrb[0].mxu0
        %v7800 = vpop.f32.mrb[0].mxu0
        %v7801 = vadd.f32 %v7640, %v7800
        %v7802 = vpop.f32.mrb[0].mxu0
        %7803 = vmatprep.mubr.bf16.mxu0 0
        %7804 = vmatmul.mubr.bf16.gmra.mrb[0].mxu0 %v7202
        %v7805 = vpop.f32.mrb[0].mxu0
        %v7806 = vadd.f32 %v7645, %v7805
        %v7807 = vpop.f32.mrb[0].mxu0
        %v7808 = vpop.f32.mrb[0].mxu0
        %v7809 = vadd.f32 %v7648, %v7808
        %v7810 = vpop.f32.mrb[0].mxu0
        %7811 = vmatprep.mubr.bf16.mxu0 0
        %7812 = vmatmul.mubr.bf16.gmra.mrb[0].mxu0 %v7229
        %v7813 = vpop.f32.mrb[0].mxu0
        %v7814 = vadd.f32 %v7653, %v7813
        %v7815 = vpop.f32.mrb[0].mxu0
        %v7816 = vpop.f32.mrb[0].mxu0
        %v7817 = vadd.f32 %v7656, %v7816
        %v7818 = vpop.f32.mrb[0].mxu0
        %7819 = vmatprep.mubr.bf16.mxu0 0
        %7820 = vmatmul.mubr.bf16.gmra.mrb[0].mxu0 %v7256
        %v7821 = vpop.f32.mrb[0].mxu0
        %v7822 = vadd.f32 %v7661, %v7821
        %v7823 = vpop.f32.mrb[0].mxu0
        %v7824 = vpop.f32.mrb[0].mxu0
        %v7825 = vadd.f32 %v7664, %v7824
        %v7826 = vpop.f32.mrb[0].mxu0
        %7827 = vmatprep.mubr.bf16.mxu0 0
        %7828 = vmatmul.mubr.bf16.gmra.mrb[0].mxu0 %v7283
        %v7829 = vpop.f32.mrb[0].mxu0
        %v7830 = vadd.f32 %v7669, %v7829
        %v7831 = vpop.f32.mrb[0].mxu0
        %v7832 = vpop.f32.mrb[0].mxu0
        %v7833 = vadd.f32 %v7672, %v7832
        %v7834 = vpop.f32.mrb[0].mxu0
        %7835 = vmatprep.mubr.bf16.mxu0 0
        %7836 = vmatmul.mubr.bf16.gmra.mrb[0].mxu0 %v7310
        %v7837 = vpop.f32.mrb[0].mxu0
        %v7838 = vadd.f32 %v7677, %v7837
        %v7839 = vpop.f32.mrb[0].mxu0
        %v7840 = vpop.f32.mrb[0].mxu0
        %v7841 = vadd.f32 %v7680, %v7840
        %v7842 = vpop.f32.mrb[0].mxu0
        %7843 = vmatprep.mubr.bf16.mxu0 0
        %7844 = vmatmul.mubr.bf16.gmra.mrb[0].mxu0 %v7337
        %v7845 = vpop.f32.mrb[0].mxu0
        %v7846 = vadd.f32 %v7685, %v7845
        %v7847 = vpop.f32.mrb[0].mxu0
        %v7848 = vpop.f32.mrb[0].mxu0
        %v7849 = vadd.f32 %v7688, %v7848
        %v7850 = vpop.f32.mrb[0].mxu0
        %7851 = vdwg.mxu0
        %v7852 = vld [vmem:[%s7] sm:$0x1]
        %v7854 = vlaneseq
        %v7855 = vshrl.u32 %v7854, 7
        %v7856 = vsub.s32 0, %v7855
        %v7857 = vrot.slane %v7852, %v7856
        %v7859 = vmul.f32 %v7726, %v7857
        %v7860 = vmul.f32 %v7729, %v7857
        %v7861 = vmul.f32 %v7734, %v7857
        %v7862 = vmul.f32 %v7737, %v7857
        %v7863 = vmul.f32 %v7742, %v7857
        %v7864 = vmul.f32 %v7745, %v7857
        %v7865 = vmul.f32 %v7750, %v7857
        %v7866 = vmul.f32 %v7753, %v7857
        %v7867 = vmul.f32 %v7758, %v7857
        %v7868 = vmul.f32 %v7761, %v7857
        %v7869 = vmul.f32 %v7766, %v7857
        %v7870 = vmul.f32 %v7769, %v7857
        %v7871 = vmul.f32 %v7774, %v7857
        %v7872 = vmul.f32 %v7777, %v7857
        %v7873 = vmul.f32 %v7782, %v7857
        %v7874 = vmul.f32 %v7785, %v7857
        %v7875 = vmul.f32 %v7790, %v7857
        %v7876 = vmul.f32 %v7793, %v7857
        %v7877 = vmul.f32 %v7798, %v7857
        %v7878 = vmul.f32 %v7801, %v7857
        %v7879 = vmul.f32 %v7806, %v7857
        %v7880 = vmul.f32 %v7809, %v7857
        %v7881 = vmul.f32 %v7814, %v7857
        %v7882 = vmul.f32 %v7817, %v7857
        %v7883 = vmul.f32 %v7822, %v7857
        %v7884 = vmul.f32 %v7825, %v7857
        %v7885 = vmul.f32 %v7830, %v7857
        %v7886 = vmul.f32 %v7833, %v7857
        %v7887 = vmul.f32 %v7838, %v7857
        %v7888 = vmul.f32 %v7841, %v7857
        %v7889 = vmul.f32 %v7846, %v7857
        %v7890 = vmul.f32 %v7849, %v7857
        %v7891 = vld [vmem:[%s8] sm:$0x1]
        %v7893 = vlaneseq
        %v7894 = vshrl.u32 %v7893, 7
        %v7895 = vsub.s32 0, %v7894
        %v7896 = vrot.slane %v7891, %v7895
        %v7898 = vadd.f32 %v7859, %v7896
        %v7899 = vadd.f32 %v7860, %v7896
        %v7900 = vadd.f32 %v7861, %v7896
        %v7901 = vadd.f32 %v7862, %v7896
        %v7902 = vadd.f32 %v7863, %v7896
        %v7903 = vadd.f32 %v7864, %v7896
        %v7904 = vadd.f32 %v7865, %v7896
        %v7905 = vadd.f32 %v7866, %v7896
        %v7906 = vadd.f32 %v7867, %v7896
        %v7907 = vadd.f32 %v7868, %v7896
        %v7908 = vadd.f32 %v7869, %v7896
        %v7909 = vadd.f32 %v7870, %v7896
        %v7910 = vadd.f32 %v7871, %v7896
        %v7911 = vadd.f32 %v7872, %v7896
        %v7912 = vadd.f32 %v7873, %v7896
        %v7913 = vadd.f32 %v7874, %v7896
        %v7914 = vadd.f32 %v7875, %v7896
        %v7915 = vadd.f32 %v7876, %v7896
        %v7916 = vadd.f32 %v7877, %v7896
        %v7917 = vadd.f32 %v7878, %v7896
        %v7918 = vadd.f32 %v7879, %v7896
        %v7919 = vadd.f32 %v7880, %v7896
        %v7920 = vadd.f32 %v7881, %v7896
        %v7921 = vadd.f32 %v7882, %v7896
        %v7922 = vadd.f32 %v7883, %v7896
        %v7923 = vadd.f32 %v7884, %v7896
        %v7924 = vadd.f32 %v7885, %v7896
        %v7925 = vadd.f32 %v7886, %v7896
        %v7926 = vadd.f32 %v7887, %v7896
        %v7927 = vadd.f32 %v7888, %v7896
        %v7928 = vadd.f32 %v7889, %v7896
        %v7929 = vadd.f32 %v7890, %v7896
        %v7930 = vmax.f32 %v7898, 0.0
        %v7931 = vmax.f32 %v7899, 0.0
        %v7932 = vmax.f32 %v7900, 0.0
        %v7933 = vmax.f32 %v7901, 0.0
        %v7934 = vmax.f32 %v7902, 0.0
        %v7935 = vmax.f32 %v7903, 0.0
        %v7936 = vmax.f32 %v7904, 0.0
        %v7937 = vmax.f32 %v7905, 0.0
        %v7938 = vmax.f32 %v7906, 0.0
        %v7939 = vmax.f32 %v7907, 0.0
        %v7940 = vmax.f32 %v7908, 0.0
        %v7941 = vmax.f32 %v7909, 0.0
        %v7942 = vmax.f32 %v7910, 0.0
        %v7943 = vmax.f32 %v7911, 0.0
        %v7944 = vmax.f32 %v7912, 0.0
        %v7945 = vmax.f32 %v7913, 0.0
        %v7946 = vmax.f32 %v7914, 0.0
        %v7947 = vmax.f32 %v7915, 0.0
        %v7948 = vmax.f32 %v7916, 0.0
        %v7949 = vmax.f32 %v7917, 0.0
        %v7950 = vmax.f32 %v7918, 0.0
        %v7951 = vmax.f32 %v7919, 0.0
        %v7952 = vmax.f32 %v7920, 0.0
        %v7953 = vmax.f32 %v7921, 0.0
        %v7954 = vmax.f32 %v7922, 0.0
        %v7955 = vmax.f32 %v7923, 0.0
        %v7956 = vmax.f32 %v7924, 0.0
        %v7957 = vmax.f32 %v7925, 0.0
        %v7958 = vmax.f32 %v7926, 0.0
        %v7959 = vmax.f32 %v7927, 0.0
        %v7960 = vmax.f32 %v7928, 0.0
        %v7961 = vmax.f32 %v7929, 0.0
        %v7962 = vpack.c.bf16 %v7931, %v7930
        %v7963 = vpack.c.bf16 %v7933, %v7932
        %v7964 = vpack.c.bf16 %v7935, %v7934
        %v7965 = vpack.c.bf16 %v7937, %v7936
        %v7966 = vpack.c.bf16 %v7939, %v7938
        %v7967 = vpack.c.bf16 %v7941, %v7940
        %v7968 = vpack.c.bf16 %v7943, %v7942
        %v7969 = vpack.c.bf16 %v7945, %v7944
        %v7970 = vpack.c.bf16 %v7947, %v7946
        %v7971 = vpack.c.bf16 %v7949, %v7948
        %v7972 = vpack.c.bf16 %v7951, %v7950
        %v7973 = vpack.c.bf16 %v7953, %v7952
        %v7974 = vpack.c.bf16 %v7955, %v7954
        %v7975 = vpack.c.bf16 %v7957, %v7956
        %v7976 = vpack.c.bf16 %v7959, %v7958
        %v7977 = vpack.c.bf16 %v7961, %v7960
        %v7994 = vrot.slane %v7962, 4
        %v7995 = vrot.slane %v7963, 4
        %v7996 = vsel %vm5699, %v7994, %v7995
        %v7997 = vrot.slane %v7964, 4
        %v7998 = vsel %vm5699, %v7995, %v7997
        %v7999 = vrot.slane %v7965, 4
        %v8000 = vsel %vm5699, %v7997, %v7999
        %v8001 = vrot.slane %v7966, 4
        %v8002 = vsel %vm5699, %v7999, %v8001
        %v8003 = vrot.slane %v7967, 4
        %v8004 = vsel %vm5699, %v8001, %v8003
        %v8005 = vrot.slane %v7968, 4
        %v8006 = vsel %vm5699, %v8003, %v8005
        %v8007 = vrot.slane %v7969, 4
        %v8008 = vsel %vm5699, %v8005, %v8007
        %v8009 = vrot.slane %v7970, 4
        %v8010 = vsel %vm5699, %v8007, %v8009
        %v8011 = vrot.slane %v7971, 4
        %v8012 = vsel %vm5699, %v8009, %v8011
        %v8013 = vrot.slane %v7972, 4
        %v8014 = vsel %vm5699, %v8011, %v8013
        %v8015 = vrot.slane %v7973, 4
        %v8016 = vsel %vm5699, %v8013, %v8015
        %v8017 = vrot.slane %v7974, 4
        %v8018 = vsel %vm5699, %v8015, %v8017
        %v8019 = vrot.slane %v7975, 4
        %v8020 = vsel %vm5699, %v8017, %v8019
        %v8021 = vrot.slane %v7976, 4
        %v8022 = vsel %vm5699, %v8019, %v8021
        %v8023 = vrot.slane %v7977, 4
        %v8024 = vsel %vm5699, %v8021, %v8023
        %8042 = vst [vmem:[#allocation3 + $0x8] sm:$0xf0] %v7994
        %8043 = vst [vmem:[#allocation3 + $0x10] sm:$0xff] %v7996
        %8044 = vst [vmem:[#allocation3 + $0x18] sm:$0xff] %v7998
        %8045 = vst [vmem:[#allocation3 + $0x20] sm:$0xff] %v8000
        %8046 = vst [vmem:[#allocation3 + $0x28] sm:$0xff] %v8002
        %8047 = vst [vmem:[#allocation3 + $0x30] sm:$0xff] %v8004
        %8048 = vst [vmem:[#allocation3 + $0x38] sm:$0xff] %v8006
        %8049 = vst [vmem:[#allocation3 + $0x40] sm:$0xff] %v8008
        %8050 = vst [vmem:[#allocation3 + $0x48] sm:$0xff] %v8010
        %8051 = vst [vmem:[#allocation3 + $0x50] sm:$0xff] %v8012
        %8052 = vst [vmem:[#allocation3 + $0x58] sm:$0xff] %v8014
        %8053 = vst [vmem:[#allocation3 + $0x60] sm:$0xff] %v8016
        %8054 = vst [vmem:[#allocation3 + $0x68] sm:$0xff] %v8018
        %8055 = vst [vmem:[#allocation3 + $0x70] sm:$0xff] %v8020
        %8056 = vst [vmem:[#allocation3 + $0x78] sm:$0xff] %v8022
        %8057 = vst [vmem:[#allocation3 + $0x80] sm:$0xff] %v8024
        %8058 = vst [vmem:[#allocation3 + $0x88] sm:$0xf] %v8023
        %v8059 = vld [vmem:[#allocation13] sm:$0xf]
        %v8060 = vld [vmem:[#allocation13 + $0x4] sm:$0xf]
        %v8061 = vld [vmem:[#allocation13 + $0x8] sm:$0xf]
        %v8062 = vld [vmem:[#allocation13 + $0xc] sm:$0xf]
        %v8063 = vld [vmem:[#allocation13 + $0x10] sm:$0xf]
        %v8064 = vld [vmem:[#allocation13 + $0x14] sm:$0xf]
        %v8065 = vld [vmem:[#allocation13 + $0x18] sm:$0xf]
        %v8066 = vld [vmem:[#allocation13 + $0x1c] sm:$0xf]
        %v8067 = vld [vmem:[#allocation13 + $0x20] sm:$0xf]
        %v8068 = vld [vmem:[#allocation13 + $0x24] sm:$0xf]
        %v8069 = vld [vmem:[#allocation13 + $0x28] sm:$0xf]
        %v8070 = vld [vmem:[#allocation13 + $0x2c] sm:$0xf]
        %v8071 = vld [vmem:[#allocation13 + $0x30] sm:$0xf]
        %v8072 = vld [vmem:[#allocation13 + $0x34] sm:$0xf]
        %v8073 = vld [vmem:[#allocation13 + $0x38] sm:$0xf]
        %v8074 = vld [vmem:[#allocation13 + $0x3c] sm:$0xf]
        %v8075 = vld [vmem:[#allocation13 + $0x40] sm:$0xf]
        %v8076 = vld [vmem:[#allocation13 + $0x44] sm:$0xf]
        %v8077 = vld [vmem:[#allocation13 + $0x48] sm:$0xf]
        %v8078 = vld [vmem:[#allocation13 + $0x4c] sm:$0xf]
        %v8079 = vld [vmem:[#allocation13 + $0x50] sm:$0xf]
        %v8080 = vld [vmem:[#allocation13 + $0x54] sm:$0xf]
        %v8081 = vld [vmem:[#allocation13 + $0x58] sm:$0xf]
        %v8082 = vld [vmem:[#allocation13 + $0x5c] sm:$0xf]
        %v8083 = vld [vmem:[#allocation13 + $0x60] sm:$0xf]
        %v8084 = vld [vmem:[#allocation13 + $0x64] sm:$0xf]
        %v8085 = vld [vmem:[#allocation13 + $0x68] sm:$0xf]
        %v8086 = vld [vmem:[#allocation13 + $0x6c] sm:$0xf]
        %v8087 = vld [vmem:[#allocation13 + $0x70] sm:$0xf]
        %v8088 = vld [vmem:[#allocation13 + $0x74] sm:$0xf]
        %v8089 = vld [vmem:[#allocation13 + $0x78] sm:$0xf]
        %v8090 = vld [vmem:[#allocation13 + $0x7c] sm:$0xf]
        %v8091 = vld [vmem:[#allocation13 + $0x80] sm:$0xf]
        %v8092 = vld [vmem:[#allocation13 + $0x84] sm:$0xf]
        %v8093 = vld [vmem:[#allocation13 + $0x88] sm:$0xf]
        %v8094 = vld [vmem:[#allocation13 + $0x8c] sm:$0xf]
        %v8095 = vld [vmem:[#allocation13 + $0x90] sm:$0xf]
        %v8096 = vld [vmem:[#allocation13 + $0x94] sm:$0xf]
        %v8097 = vld [vmem:[#allocation13 + $0x98] sm:$0xf]
        %v8098 = vld [vmem:[#allocation13 + $0x9c] sm:$0xf]
        %v8099 = vld [vmem:[#allocation13 + $0xa0] sm:$0xf]
        %v8100 = vld [vmem:[#allocation13 + $0xa4] sm:$0xf]
        %v8101 = vld [vmem:[#allocation13 + $0xa8] sm:$0xf]
        %v8102 = vld [vmem:[#allocation13 + $0xac] sm:$0xf]
        %v8103 = vld [vmem:[#allocation13 + $0xb0] sm:$0xf]
        %v8104 = vld [vmem:[#allocation13 + $0xb4] sm:$0xf]
        %v8105 = vld [vmem:[#allocation13 + $0xb8] sm:$0xf]
        %v8106 = vld [vmem:[#allocation13 + $0xbc] sm:$0xf]
        %v8107 = vld [vmem:[#allocation3] sm:$0xf0]
        %v8108 = vld [vmem:[#allocation3 + $0x8] sm:$0xff]
        %v8109 = vld [vmem:[#allocation3 + $0x10] sm:$0xff]
        %v8110 = vld [vmem:[#allocation3 + $0x18] sm:$0xff]
        %v8111 = vld [vmem:[#allocation3 + $0x20] sm:$0xff]
        %v8112 = vld [vmem:[#allocation3 + $0x28] sm:$0xff]
        %v8113 = vld [vmem:[#allocation3 + $0x30] sm:$0xff]
        %v8114 = vld [vmem:[#allocation3 + $0x38] sm:$0xff]
        %v8115 = vld [vmem:[#allocation3 + $0x40] sm:$0xff]
        %v8116 = vld [vmem:[#allocation3 + $0x48] sm:$0xff]
        %v8117 = vld [vmem:[#allocation3 + $0x50] sm:$0xff]
        %v8118 = vld [vmem:[#allocation3 + $0x58] sm:$0xff]
        %v8119 = vld [vmem:[#allocation3 + $0x60] sm:$0xff]
        %v8120 = vld [vmem:[#allocation3 + $0x68] sm:$0xff]
        %v8121 = vld [vmem:[#allocation3 + $0x70] sm:$0xff]
        %v8122 = vld [vmem:[#allocation3 + $0x78] sm:$0xff]
        %v8123 = vld [vmem:[#allocation3 + $0x80] sm:$0xf]
        %v8124 = vld [vmem:[#allocation3 + $0x8] sm:$0xf0]
        %v8125 = vld [vmem:[#allocation3 + $0x80] sm:$0xff]
        %v8126 = vld [vmem:[#allocation3 + $0x88] sm:$0xf]
        %v8127 = vld [vmem:[#allocation3 + $0x10] sm:$0xf0]
        %v8128 = vld [vmem:[#allocation3 + $0x18] sm:$0xff]
        %v8129 = vld [vmem:[#allocation3 + $0x20] sm:$0xff]
        %v8130 = vld [vmem:[#allocation3 + $0x28] sm:$0xff]
        %v8131 = vld [vmem:[#allocation3 + $0x30] sm:$0xff]
        %v8132 = vld [vmem:[#allocation3 + $0x38] sm:$0xff]
        %v8133 = vld [vmem:[#allocation3 + $0x40] sm:$0xff]
        %v8134 = vld [vmem:[#allocation3 + $0x48] sm:$0xff]
        %v8135 = vld [vmem:[#allocation3 + $0x50] sm:$0xff]
        %v8136 = vld [vmem:[#allocation3 + $0x58] sm:$0xff]
        %v8137 = vld [vmem:[#allocation3 + $0x60] sm:$0xff]
        %v8138 = vld [vmem:[#allocation3 + $0x68] sm:$0xff]
        %v8139 = vld [vmem:[#allocation3 + $0x70] sm:$0xff]
        %v8140 = vld [vmem:[#allocation3 + $0x78] sm:$0xff]
        %v8141 = vld [vmem:[#allocation3 + $0x80] sm:$0xff]
        %v8142 = vld [vmem:[#allocation3 + $0x88] sm:$0xff]
        %v8143 = vld [vmem:[#allocation3 + $0x90] sm:$0xf]
        %v8144 = vld [vmem:[%s10] sm:$0x1]
        %v8146 = vlaneseq
        %v8147 = vshrl.u32 %v8146, 7
        %v8148 = vsub.s32 0, %v8147
        %v8149 = vrot.slane %v8144, %v8148
        %v8188 = vrot.slane %v8107, 4
        %v8189 = vrot.slane %v8108, 4
        %v8190 = vsel %vm5699, %v8188, %v8189
        %v8191 = vrot.slane %v8124, 4
        %v8192 = vrot.slane %v8109, 4
        %v8193 = vsel %vm5699, %v8191, %v8192
        %v8194 = vrot.slane %v8127, 4
        %v8195 = vrot.slane %v8128, 4
        %v8196 = vsel %vm5699, %v8194, %v8195
        %v8197 = vsel %vm5699, %v8189, %v8192
        %v8198 = vrot.slane %v8110, 4
        %v8199 = vsel %vm5699, %v8192, %v8198
        %v8200 = vrot.slane %v8129, 4
        %v8201 = vsel %vm5699, %v8195, %v8200
        %v8202 = vrot.slane %v8111, 4
        %v8203 = vsel %vm5699, %v8198, %v8202
        %v8204 = vrot.slane %v8130, 4
        %v8205 = vsel %vm5699, %v8200, %v8204
        %v8206 = vrot.slane %v8112, 4
        %v8207 = vsel %vm5699, %v8202, %v8206
        %v8208 = vrot.slane %v8131, 4
        %v8209 = vsel %vm5699, %v8204, %v8208
        %v8210 = vrot.slane %v8113, 4
        %v8211 = vsel %vm5699, %v8206, %v8210
        %v8212 = vrot.slane %v8132, 4
        %v8213 = vsel %vm5699, %v8208, %v8212
        %v8214 = vrot.slane %v8114, 4
        %v8215 = vsel %vm5699, %v8210, %v8214
        %v8216 = vrot.slane %v8133, 4
        %v8217 = vsel %vm5699, %v8212, %v8216
        %v8218 = vrot.slane %v8115, 4
        %v8219 = vsel %vm5699, %v8214, %v8218
        %v8220 = vrot.slane %v8134, 4
        %v8221 = vsel %vm5699, %v8216, %v8220
        %v8222 = vrot.slane %v8116, 4
        %v8223 = vsel %vm5699, %v8218, %v8222
        %v8224 = vrot.slane %v8135, 4
        %v8225 = vsel %vm5699, %v8220, %v8224
        %v8226 = vrot.slane %v8117, 4
        %v8227 = vsel %vm5699, %v8222, %v8226
        %v8228 = vrot.slane %v8136, 4
        %v8229 = vsel %vm5699, %v8224, %v8228
        %v8230 = vrot.slane %v8118, 4
        %v8231 = vsel %vm5699, %v8226, %v8230
        %v8232 = vrot.slane %v8137, 4
        %v8233 = vsel %vm5699, %v8228, %v8232
        %v8234 = vrot.slane %v8119, 4
        %v8235 = vsel %vm5699, %v8230, %v8234
        %v8236 = vrot.slane %v8138, 4
        %v8237 = vsel %vm5699, %v8232, %v8236
        %v8238 = vrot.slane %v8120, 4
        %v8239 = vsel %vm5699, %v8234, %v8238
        %v8240 = vrot.slane %v8139, 4
        %v8241 = vsel %vm5699, %v8236, %v8240
        %v8242 = vrot.slane %v8121, 4
        %v8243 = vsel %vm5699, %v8238, %v8242
        %v8244 = vrot.slane %v8140, 4
        %v8245 = vsel %vm5699, %v8240, %v8244
        %v8246 = vrot.slane %v8122, 4
        %v8247 = vsel %vm5699, %v8242, %v8246
        %v8248 = vrot.slane %v8141, 4
        %v8249 = vsel %vm5699, %v8244, %v8248
        %v8250 = vrot.slane %v8125, 4
        %v8251 = vsel %vm5699, %v8246, %v8250
        %v8252 = vrot.slane %v8142, 4
        %v8253 = vsel %vm5699, %v8248, %v8252
        %v8254 = vrot.slane %v8123, 4
        %v8255 = vsel %vm5699, %v8246, %v8254
        %v8256 = vrot.slane %v8126, 4
        %v8257 = vsel %vm5699, %v8250, %v8256
        %v8258 = vrot.slane %v8143, 4
        %v8259 = vsel %vm5699, %v8252, %v8258
        %v8343 = vunpack.c.l.b16 %v8059
        %v8344 = vunpack.c.l.b16 %v8060
        %v8345 = vunpack.c.l.b16 %v8061
        %v8346 = vunpack.c.l.b16 %v8062
        %v8347 = vunpack.c.l.b16 %v8063
        %v8348 = vunpack.c.l.b16 %v8064
        %v8349 = vunpack.c.l.b16 %v8065
        %v8350 = vunpack.c.l.b16 %v8066
        %v8351 = vunpack.c.l.b16 %v8067
        %v8352 = vunpack.c.l.b16 %v8068
        %v8353 = vunpack.c.l.b16 %v8069
        %v8354 = vunpack.c.l.b16 %v8070
        %v8355 = vunpack.c.l.b16 %v8071
        %v8356 = vunpack.c.l.b16 %v8072
        %v8357 = vunpack.c.l.b16 %v8073
        %v8358 = vunpack.c.l.b16 %v8074
        %v8359 = vunpack.c.l.b16 %v8075
        %v8360 = vunpack.c.l.b16 %v8076
        %v8361 = vunpack.c.l.b16 %v8077
        %v8362 = vunpack.c.l.b16 %v8078
        %v8363 = vunpack.c.l.b16 %v8079
        %v8364 = vunpack.c.l.b16 %v8080
        %v8365 = vunpack.c.l.b16 %v8081
        %v8366 = vunpack.c.l.b16 %v8082
        %v8367 = vunpack.c.l.b16 %v8083
        %v8368 = vunpack.c.l.b16 %v8084
        %v8369 = vunpack.c.l.b16 %v8085
        %v8370 = vunpack.c.l.b16 %v8086
        %v8371 = vunpack.c.l.b16 %v8087
        %v8372 = vunpack.c.l.b16 %v8088
        %v8373 = vunpack.c.l.b16 %v8089
        %v8374 = vunpack.c.l.b16 %v8090
        %v8375 = vunpack.c.l.b16 %v8091
        %v8376 = vunpack.c.l.b16 %v8092
        %v8377 = vunpack.c.l.b16 %v8093
        %v8378 = vunpack.c.l.b16 %v8094
        %v8379 = vunpack.c.l.b16 %v8095
        %v8380 = vunpack.c.l.b16 %v8096
        %v8381 = vunpack.c.l.b16 %v8097
        %v8382 = vunpack.c.l.b16 %v8098
        %v8383 = vunpack.c.l.b16 %v8099
        %v8384 = vunpack.c.l.b16 %v8100
        %v8385 = vunpack.c.l.b16 %v8101
        %v8386 = vunpack.c.l.b16 %v8102
        %v8387 = vunpack.c.l.b16 %v8103
        %v8388 = vunpack.c.l.b16 %v8104
        %v8389 = vunpack.c.l.b16 %v8105
        %v8390 = vunpack.c.l.b16 %v8106
        %v8391 = vpack.c.b16 %v8344, %v8343
        %v8392 = vpack.c.b16 %v8346, %v8345
        %v8393 = vpack.c.b16 %v8348, %v8347
        %v8394 = vpack.c.b16 %v8350, %v8349
        %v8395 = vpack.c.b16 %v8352, %v8351
        %v8396 = vpack.c.b16 %v8354, %v8353
        %v8397 = vpack.c.b16 %v8356, %v8355
        %v8398 = vpack.c.b16 %v8358, %v8357
        %v8399 = vpack.c.b16 %v8360, %v8359
        %v8400 = vpack.c.b16 %v8362, %v8361
        %v8401 = vpack.c.b16 %v8364, %v8363
        %v8402 = vpack.c.b16 %v8366, %v8365
        %v8403 = vpack.c.b16 %v8368, %v8367
        %v8404 = vpack.c.b16 %v8370, %v8369
        %v8405 = vpack.c.b16 %v8372, %v8371
        %v8406 = vpack.c.b16 %v8374, %v8373
        %v8407 = vpack.c.b16 %v8376, %v8375
        %v8408 = vpack.c.b16 %v8378, %v8377
        %v8409 = vpack.c.b16 %v8380, %v8379
        %v8410 = vpack.c.b16 %v8382, %v8381
        %v8411 = vpack.c.b16 %v8384, %v8383
        %v8412 = vpack.c.b16 %v8386, %v8385
        %v8413 = vpack.c.b16 %v8388, %v8387
        %v8414 = vpack.c.b16 %v8390, %v8389
        %8439 = vmatprep.subr.bf16.mxu0 0
        %8440 = vmatpush1.bf16.msra.mxu0 %v8391
        %8441 = vmatprep.subr.bf16.mxu0 0
        %8442 = vmatpush1.bf16.msra.mxu0 %v8392
        %8443 = vmatprep.subr.bf16.mxu0 0
        %8444 = vmatpush1.bf16.msra.mxu0 %v8393
        %8445 = vmatprep.subr.bf16.mxu0 0
        %8446 = vmatpush1.bf16.msra.mxu0 %v8394
        %8447 = vmatprep.subr.bf16.mxu0 0
        %8448 = vmatpush1.bf16.msra.mxu0 %v8395
        %8449 = vmatprep.subr.bf16.mxu0 0
        %8450 = vmatpush1.bf16.msra.mxu0 %v8396
        %8451 = vmatprep.subr.bf16.mxu0 0
        %8452 = vmatpush1.bf16.msra.mxu0 %v8397
        %8453 = vmatprep.subr.bf16.mxu0 0
        %8454 = vmatpush1.bf16.msra.mxu0 %v8398
        %8455 = vmatprep.subr.bf16.mxu0 0
        %8456 = vmatpush1.bf16.msra.mxu0 %v8399
        %8457 = vmatprep.subr.bf16.mxu0 0
        %8458 = vmatpush1.bf16.msra.mxu0 %v8400
        %8459 = vmatprep.subr.bf16.mxu0 0
        %8460 = vmatpush1.bf16.msra.mxu0 %v8401
        %8461 = vmatprep.subr.bf16.mxu0 0
        %8462 = vmatpush1.bf16.msra.mxu0 %v8402
        %8463 = vmatprep.subr.bf16.mxu0 0
        %8464 = vmatpush1.bf16.msra.mxu0 %v8403
        %8465 = vmatprep.subr.bf16.mxu0 0
        %8466 = vmatpush1.bf16.msra.mxu0 %v8404
        %8467 = vmatprep.subr.bf16.mxu0 0
        %8468 = vmatpush1.bf16.msra.mxu0 %v8405
        %8469 = vmatprep.subr.bf16.mxu0 0
        %8470 = vmatpush1.bf16.msra.mxu0 %v8406
        %8471 = vmatprep.mubr.bf16.mxu0 %v8193
        %8472 = vmatmul.mubr.bf16.gmra.mrb[0].mxu0 %v8190
        %v8473 = vpop.f32.mrb[0].mxu0
        %v8474 = vadd.f32 %v8149, %v8473
        %v8475 = vpop.f32.mrb[0].mxu0
        %v8476 = vpop.f32.mrb[0].mxu0
        %v8477 = vadd.f32 %v8149, %v8476
        %v8478 = vpop.f32.mrb[0].mxu0
        %8479 = vmatprep.mubr.bf16.mxu0 %v8199
        %8480 = vmatmul.mubr.bf16.gmra.mrb[0].mxu0 %v8197
        %v8481 = vpop.f32.mrb[0].mxu0
        %v8482 = vadd.f32 %v8149, %v8481
        %v8483 = vpop.f32.mrb[0].mxu0
        %v8484 = vpop.f32.mrb[0].mxu0
        %v8485 = vadd.f32 %v8149, %v8484
        %v8486 = vpop.f32.mrb[0].mxu0
        %8487 = vmatprep.mubr.bf16.mxu0 %v8203
        %8488 = vmatmul.mubr.bf16.gmra.mrb[0].mxu0 %v8199
        %v8489 = vpop.f32.mrb[0].mxu0
        %v8490 = vadd.f32 %v8149, %v8489
        %v8491 = vpop.f32.mrb[0].mxu0
        %v8492 = vpop.f32.mrb[0].mxu0
        %v8493 = vadd.f32 %v8149, %v8492
        %v8494 = vpop.f32.mrb[0].mxu0
        %8495 = vmatprep.mubr.bf16.mxu0 %v8207
        %8496 = vmatmul.mubr.bf16.gmra.mrb[0].mxu0 %v8203
        %v8497 = vpop.f32.mrb[0].mxu0
        %v8498 = vadd.f32 %v8149, %v8497
        %v8499 = vpop.f32.mrb[0].mxu0
        %v8500 = vpop.f32.mrb[0].mxu0
        %v8501 = vadd.f32 %v8149, %v8500
        %v8502 = vpop.f32.mrb[0].mxu0
        %8503 = vmatprep.mubr.bf16.mxu0 %v8211
        %8504 = vmatmul.mubr.bf16.gmra.mrb[0].mxu0 %v8207
        %v8505 = vpop.f32.mrb[0].mxu0
        %v8506 = vadd.f32 %v8149, %v8505
        %v8507 = vpop.f32.mrb[0].mxu0
        %v8508 = vpop.f32.mrb[0].mxu0
        %v8509 = vadd.f32 %v8149, %v8508
        %v8510 = vpop.f32.mrb[0].mxu0
        %8511 = vmatprep.mubr.bf16.mxu0 %v8215
        %8512 = vmatmul.mubr.bf16.gmra.mrb[0].mxu0 %v8211
        %v8513 = vpop.f32.mrb[0].mxu0
        %v8514 = vadd.f32 %v8149, %v8513
        %v8515 = vpop.f32.mrb[0].mxu0
        %v8516 = vpop.f32.mrb[0].mxu0
        %v8517 = vadd.f32 %v8149, %v8516
        %v8518 = vpop.f32.mrb[0].mxu0
        %8519 = vmatprep.mubr.bf16.mxu0 %v8219
        %8520 = vmatmul.mubr.bf16.gmra.mrb[0].mxu0 %v8215
        %v8521 = vpop.f32.mrb[0].mxu0
        %v8522 = vadd.f32 %v8149, %v8521
        %v8523 = vpop.f32.mrb[0].mxu0
        %v8524 = vpop.f32.mrb[0].mxu0
        %v8525 = vadd.f32 %v8149, %v8524
        %v8526 = vpop.f32.mrb[0].mxu0
        %8527 = vmatprep.mubr.bf16.mxu0 %v8223
        %8528 = vmatmul.mubr.bf16.gmra.mrb[0].mxu0 %v8219
        %v8529 = vpop.f32.mrb[0].mxu0
        %v8530 = vadd.f32 %v8149, %v8529
        %v8531 = vpop.f32.mrb[0].mxu0
        %v8532 = vpop.f32.mrb[0].mxu0
        %v8533 = vadd.f32 %v8149, %v8532
        %v8534 = vpop.f32.mrb[0].mxu0
        %8535 = vmatprep.mubr.bf16.mxu0 %v8227
        %8536 = vmatmul.mubr.bf16.gmra.mrb[0].mxu0 %v8223
        %v8537 = vpop.f32.mrb[0].mxu0
        %v8538 = vadd.f32 %v8149, %v8537
        %v8539 = vpop.f32.mrb[0].mxu0
        %v8540 = vpop.f32.mrb[0].mxu0
        %v8541 = vadd.f32 %v8149, %v8540
        %v8542 = vpop.f32.mrb[0].mxu0
        %8543 = vmatprep.mubr.bf16.mxu0 %v8231
        %8544 = vmatmul.mubr.bf16.gmra.mrb[0].mxu0 %v8227
        %v8545 = vpop.f32.mrb[0].mxu0
        %v8546 = vadd.f32 %v8149, %v8545
        %v8547 = vpop.f32.mrb[0].mxu0
        %v8548 = vpop.f32.mrb[0].mxu0
        %v8549 = vadd.f32 %v8149, %v8548
        %v8550 = vpop.f32.mrb[0].mxu0
        %8551 = vmatprep.mubr.bf16.mxu0 %v8235
        %8552 = vmatmul.mubr.bf16.gmra.mrb[0].mxu0 %v8231
        %v8553 = vpop.f32.mrb[0].mxu0
        %v8554 = vadd.f32 %v8149, %v8553
        %v8555 = vpop.f32.mrb[0].mxu0
        %v8556 = vpop.f32.mrb[0].mxu0
        %v8557 = vadd.f32 %v8149, %v8556
        %v8558 = vpop.f32.mrb[0].mxu0
        %8559 = vmatprep.mubr.bf16.mxu0 %v8239
        %8560 = vmatmul.mubr.bf16.gmra.mrb[0].mxu0 %v8235
        %v8561 = vpop.f32.mrb[0].mxu0
        %v8562 = vadd.f32 %v8149, %v8561
        %v8563 = vpop.f32.mrb[0].mxu0
        %v8564 = vpop.f32.mrb[0].mxu0
        %v8565 = vadd.f32 %v8149, %v8564
        %v8566 = vpop.f32.mrb[0].mxu0
        %8567 = vmatprep.mubr.bf16.mxu0 %v8243
        %8568 = vmatmul.mubr.bf16.gmra.mrb[0].mxu0 %v8239
        %v8569 = vpop.f32.mrb[0].mxu0
        %v8570 = vadd.f32 %v8149, %v8569
        %v8571 = vpop.f32.mrb[0].mxu0
        %v8572 = vpop.f32.mrb[0].mxu0
        %v8573 = vadd.f32 %v8149, %v8572
        %v8574 = vpop.f32.mrb[0].mxu0
        %8575 = vmatprep.mubr.bf16.mxu0 %v8247
        %8576 = vmatmul.mubr.bf16.gmra.mrb[0].mxu0 %v8243
        %v8577 = vpop.f32.mrb[0].mxu0
        %v8578 = vadd.f32 %v8149, %v8577
        %v8579 = vpop.f32.mrb[0].mxu0
        %v8580 = vpop.f32.mrb[0].mxu0
        %v8581 = vadd.f32 %v8149, %v8580
        %v8582 = vpop.f32.mrb[0].mxu0
        %8583 = vmatprep.mubr.bf16.mxu0 %v8251
        %8584 = vmatmul.mubr.bf16.gmra.mrb[0].mxu0 %v8247
        %v8585 = vpop.f32.mrb[0].mxu0
        %v8586 = vadd.f32 %v8149, %v8585
        %v8587 = vpop.f32.mrb[0].mxu0
        %v8588 = vpop.f32.mrb[0].mxu0
        %v8589 = vadd.f32 %v8149, %v8588
        %v8590 = vpop.f32.mrb[0].mxu0
        %8591 = vmatprep.mubr.bf16.mxu0 %v8257
        %8592 = vmatmul.mubr.bf16.gmra.mrb[0].mxu0 %v8255
        %v8593 = vpop.f32.mrb[0].mxu0
        %v8594 = vadd.f32 %v8149, %v8593
        %v8595 = vpop.f32.mrb[0].mxu0
        %v8596 = vpop.f32.mrb[0].mxu0
        %v8597 = vadd.f32 %v8149, %v8596
        %v8598 = vpop.f32.mrb[0].mxu0
        %8599 = vdwg.mxu0
        %8600 = vmatprep.subr.bf16.mxu0 0
        %8601 = vmatpush1.bf16.msra.mxu0 %v8407
        %8602 = vmatprep.subr.bf16.mxu0 0
        %8603 = vmatpush1.bf16.msra.mxu0 %v8408
        %8604 = vmatprep.subr.bf16.mxu0 0
        %8605 = vmatpush1.bf16.msra.mxu0 %v8409
        %8606 = vmatprep.subr.bf16.mxu0 0
        %8607 = vmatpush1.bf16.msra.mxu0 %v8410
        %8608 = vmatprep.subr.bf16.mxu0 0
        %8609 = vmatpush1.bf16.msra.mxu0 %v8411
        %8610 = vmatprep.subr.bf16.mxu0 0
        %8611 = vmatpush1.bf16.msra.mxu0 %v8412
        %8612 = vmatprep.subr.bf16.mxu0 0
        %8613 = vmatpush1.bf16.msra.mxu0 %v8413
        %8614 = vmatprep.subr.bf16.mxu0 0
        %8615 = vmatpush1.bf16.msra.mxu0 %v8414
        %8616 = vmatprep.subr.bf16.mxu0 0
        %8617 = vmatpush1.bf16.msra.mxu0 0
        %8618 = vmatprep.subr.bf16.mxu0 0
        %8619 = vmatpush1.bf16.msra.mxu0 0
        %8620 = vmatprep.subr.bf16.mxu0 0
        %8621 = vmatpush1.bf16.msra.mxu0 0
        %8622 = vmatprep.subr.bf16.mxu0 0
        %8623 = vmatpush1.bf16.msra.mxu0 0
        %8624 = vmatprep.subr.bf16.mxu0 0
        %8625 = vmatpush1.bf16.msra.mxu0 0
        %8626 = vmatprep.subr.bf16.mxu0 0
        %8627 = vmatpush1.bf16.msra.mxu0 0
        %8628 = vmatprep.subr.bf16.mxu0 0
        %8629 = vmatpush1.bf16.msra.mxu0 0
        %8630 = vmatprep.subr.bf16.mxu0 0
        %8631 = vmatpush1.bf16.msra.mxu0 0
        %8632 = vmatprep.mubr.bf16.mxu0 0
        %8633 = vmatmul.mubr.bf16.gmra.mrb[0].mxu0 %v8196
        %v8634 = vpop.f32.mrb[0].mxu0
        %v8635 = vadd.f32 %v8474, %v8634
        %v8636 = vpop.f32.mrb[0].mxu0
        %v8637 = vpop.f32.mrb[0].mxu0
        %v8638 = vadd.f32 %v8477, %v8637
        %v8639 = vpop.f32.mrb[0].mxu0
        %8640 = vmatprep.mubr.bf16.mxu0 0
        %8641 = vmatmul.mubr.bf16.gmra.mrb[0].mxu0 %v8201
        %v8642 = vpop.f32.mrb[0].mxu0
        %v8643 = vadd.f32 %v8482, %v8642
        %v8644 = vpop.f32.mrb[0].mxu0
        %v8645 = vpop.f32.mrb[0].mxu0
        %v8646 = vadd.f32 %v8485, %v8645
        %v8647 = vpop.f32.mrb[0].mxu0
        %8648 = vmatprep.mubr.bf16.mxu0 0
        %8649 = vmatmul.mubr.bf16.gmra.mrb[0].mxu0 %v8205
        %v8650 = vpop.f32.mrb[0].mxu0
        %v8651 = vadd.f32 %v8490, %v8650
        %v8652 = vpop.f32.mrb[0].mxu0
        %v8653 = vpop.f32.mrb[0].mxu0
        %v8654 = vadd.f32 %v8493, %v8653
        %v8655 = vpop.f32.mrb[0].mxu0
        %8656 = vmatprep.mubr.bf16.mxu0 0
        %8657 = vmatmul.mubr.bf16.gmra.mrb[0].mxu0 %v8209
        %v8658 = vpop.f32.mrb[0].mxu0
        %v8659 = vadd.f32 %v8498, %v8658
        %v8660 = vpop.f32.mrb[0].mxu0
        %v8661 = vpop.f32.mrb[0].mxu0
        %v8662 = vadd.f32 %v8501, %v8661
        %v8663 = vpop.f32.mrb[0].mxu0
        %8664 = vmatprep.mubr.bf16.mxu0 0
        %8665 = vmatmul.mubr.bf16.gmra.mrb[0].mxu0 %v8213
        %v8666 = vpop.f32.mrb[0].mxu0
        %v8667 = vadd.f32 %v8506, %v8666
        %v8668 = vpop.f32.mrb[0].mxu0
        %v8669 = vpop.f32.mrb[0].mxu0
        %v8670 = vadd.f32 %v8509, %v8669
        %v8671 = vpop.f32.mrb[0].mxu0
        %8672 = vmatprep.mubr.bf16.mxu0 0
        %8673 = vmatmul.mubr.bf16.gmra.mrb[0].mxu0 %v8217
        %v8674 = vpop.f32.mrb[0].mxu0
        %v8675 = vadd.f32 %v8514, %v8674
        %v8676 = vpop.f32.mrb[0].mxu0
        %v8677 = vpop.f32.mrb[0].mxu0
        %v8678 = vadd.f32 %v8517, %v8677
        %v8679 = vpop.f32.mrb[0].mxu0
        %8680 = vmatprep.mubr.bf16.mxu0 0
        %8681 = vmatmul.mubr.bf16.gmra.mrb[0].mxu0 %v8221
        %v8682 = vpop.f32.mrb[0].mxu0
        %v8683 = vadd.f32 %v8522, %v8682
        %v8684 = vpop.f32.mrb[0].mxu0
        %v8685 = vpop.f32.mrb[0].mxu0
        %v8686 = vadd.f32 %v8525, %v8685
        %v8687 = vpop.f32.mrb[0].mxu0
        %8688 = vmatprep.mubr.bf16.mxu0 0
        %8689 = vmatmul.mubr.bf16.gmra.mrb[0].mxu0 %v8225
        %v8690 = vpop.f32.mrb[0].mxu0
        %v8691 = vadd.f32 %v8530, %v8690
        %v8692 = vpop.f32.mrb[0].mxu0
        %v8693 = vpop.f32.mrb[0].mxu0
        %v8694 = vadd.f32 %v8533, %v8693
        %v8695 = vpop.f32.mrb[0].mxu0
        %8696 = vmatprep.mubr.bf16.mxu0 0
        %8697 = vmatmul.mubr.bf16.gmra.mrb[0].mxu0 %v8229
        %v8698 = vpop.f32.mrb[0].mxu0
        %v8699 = vadd.f32 %v8538, %v8698
        %v8700 = vpop.f32.mrb[0].mxu0
        %v8701 = vpop.f32.mrb[0].mxu0
        %v8702 = vadd.f32 %v8541, %v8701
        %v8703 = vpop.f32.mrb[0].mxu0
        %8704 = vmatprep.mubr.bf16.mxu0 0
        %8705 = vmatmul.mubr.bf16.gmra.mrb[0].mxu0 %v8233
        %v8706 = vpop.f32.mrb[0].mxu0
        %v8707 = vadd.f32 %v8546, %v8706
        %v8708 = vpop.f32.mrb[0].mxu0
        %v8709 = vpop.f32.mrb[0].mxu0
        %v8710 = vadd.f32 %v8549, %v8709
        %v8711 = vpop.f32.mrb[0].mxu0
        %8712 = vmatprep.mubr.bf16.mxu0 0
        %8713 = vmatmul.mubr.bf16.gmra.mrb[0].mxu0 %v8237
        %v8714 = vpop.f32.mrb[0].mxu0
        %v8715 = vadd.f32 %v8554, %v8714
        %v8716 = vpop.f32.mrb[0].mxu0
        %v8717 = vpop.f32.mrb[0].mxu0
        %v8718 = vadd.f32 %v8557, %v8717
        %v8719 = vpop.f32.mrb[0].mxu0
        %8720 = vmatprep.mubr.bf16.mxu0 0
        %8721 = vmatmul.mubr.bf16.gmra.mrb[0].mxu0 %v8241
        %v8722 = vpop.f32.mrb[0].mxu0
        %v8723 = vadd.f32 %v8562, %v8722
        %v8724 = vpop.f32.mrb[0].mxu0
        %v8725 = vpop.f32.mrb[0].mxu0
        %v8726 = vadd.f32 %v8565, %v8725
        %v8727 = vpop.f32.mrb[0].mxu0
        %8728 = vmatprep.mubr.bf16.mxu0 0
        %8729 = vmatmul.mubr.bf16.gmra.mrb[0].mxu0 %v8245
        %v8730 = vpop.f32.mrb[0].mxu0
        %v8731 = vadd.f32 %v8570, %v8730
        %v8732 = vpop.f32.mrb[0].mxu0
        %v8733 = vpop.f32.mrb[0].mxu0
        %v8734 = vadd.f32 %v8573, %v8733
        %v8735 = vpop.f32.mrb[0].mxu0
        %8736 = vmatprep.mubr.bf16.mxu0 0
        %8737 = vmatmul.mubr.bf16.gmra.mrb[0].mxu0 %v8249
        %v8738 = vpop.f32.mrb[0].mxu0
        %v8739 = vadd.f32 %v8578, %v8738
        %v8740 = vpop.f32.mrb[0].mxu0
        %v8741 = vpop.f32.mrb[0].mxu0
        %v8742 = vadd.f32 %v8581, %v8741
        %v8743 = vpop.f32.mrb[0].mxu0
        %8744 = vmatprep.mubr.bf16.mxu0 0
        %8745 = vmatmul.mubr.bf16.gmra.mrb[0].mxu0 %v8253
        %v8746 = vpop.f32.mrb[0].mxu0
        %v8747 = vadd.f32 %v8586, %v8746
        %v8748 = vpop.f32.mrb[0].mxu0
        %v8749 = vpop.f32.mrb[0].mxu0
        %v8750 = vadd.f32 %v8589, %v8749
        %v8751 = vpop.f32.mrb[0].mxu0
        %8752 = vmatprep.mubr.bf16.mxu0 0
        %8753 = vmatmul.mubr.bf16.gmra.mrb[0].mxu0 %v8259
        %v8754 = vpop.f32.mrb[0].mxu0
        %v8755 = vadd.f32 %v8594, %v8754
        %v8756 = vpop.f32.mrb[0].mxu0
        %v8757 = vpop.f32.mrb[0].mxu0
        %v8758 = vadd.f32 %v8597, %v8757
        %v8759 = vpop.f32.mrb[0].mxu0
        %8760 = vdwg.mxu0
        %v8761 = vmax.f32 %v8635, 0.0
        %v8762 = vmax.f32 %v8638, 0.0
        %v8763 = vmax.f32 %v8643, 0.0
        %v8764 = vmax.f32 %v8646, 0.0
        %v8765 = vmax.f32 %v8651, 0.0
        %v8766 = vmax.f32 %v8654, 0.0
        %v8767 = vmax.f32 %v8659, 0.0
        %v8768 = vmax.f32 %v8662, 0.0
        %v8769 = vmax.f32 %v8667, 0.0
        %v8770 = vmax.f32 %v8670, 0.0
        %v8771 = vmax.f32 %v8675, 0.0
        %v8772 = vmax.f32 %v8678, 0.0
        %v8773 = vmax.f32 %v8683, 0.0
        %v8774 = vmax.f32 %v8686, 0.0
        %v8775 = vmax.f32 %v8691, 0.0
        %v8776 = vmax.f32 %v8694, 0.0
        %v8777 = vmax.f32 %v8699, 0.0
        %v8778 = vmax.f32 %v8702, 0.0
        %v8779 = vmax.f32 %v8707, 0.0
        %v8780 = vmax.f32 %v8710, 0.0
        %v8781 = vmax.f32 %v8715, 0.0
        %v8782 = vmax.f32 %v8718, 0.0
        %v8783 = vmax.f32 %v8723, 0.0
        %v8784 = vmax.f32 %v8726, 0.0
        %v8785 = vmax.f32 %v8731, 0.0
        %v8786 = vmax.f32 %v8734, 0.0
        %v8787 = vmax.f32 %v8739, 0.0
        %v8788 = vmax.f32 %v8742, 0.0
        %v8789 = vmax.f32 %v8747, 0.0
        %v8790 = vmax.f32 %v8750, 0.0
        %v8791 = vmax.f32 %v8755, 0.0
        %v8792 = vmax.f32 %v8758, 0.0
        %v8793 = vpack.c.bf16 %v8762, %v8761
        %v8794 = vpack.c.bf16 %v8764, %v8763
        %v8795 = vpack.c.bf16 %v8766, %v8765
        %v8796 = vpack.c.bf16 %v8768, %v8767
        %v8797 = vpack.c.bf16 %v8770, %v8769
        %v8798 = vpack.c.bf16 %v8772, %v8771
        %v8799 = vpack.c.bf16 %v8774, %v8773
        %v8800 = vpack.c.bf16 %v8776, %v8775
        %v8801 = vpack.c.bf16 %v8778, %v8777
        %v8802 = vpack.c.bf16 %v8780, %v8779
        %v8803 = vpack.c.bf16 %v8782, %v8781
        %v8804 = vpack.c.bf16 %v8784, %v8783
        %v8805 = vpack.c.bf16 %v8786, %v8785
        %v8806 = vpack.c.bf16 %v8788, %v8787
        %v8807 = vpack.c.bf16 %v8790, %v8789
        %v8808 = vpack.c.bf16 %v8792, %v8791
        %v8825 = vrot.slane %v8793, 4
        %v8826 = vrot.slane %v8794, 4
        %v8827 = vsel %vm5699, %v8825, %v8826
        %v8828 = vrot.slane %v8795, 4
        %v8829 = vsel %vm5699, %v8826, %v8828
        %v8830 = vrot.slane %v8796, 4
        %v8831 = vsel %vm5699, %v8828, %v8830
        %v8832 = vrot.slane %v8797, 4
        %v8833 = vsel %vm5699, %v8830, %v8832
        %v8834 = vrot.slane %v8798, 4
        %v8835 = vsel %vm5699, %v8832, %v8834
        %v8836 = vrot.slane %v8799, 4
        %v8837 = vsel %vm5699, %v8834, %v8836
        %v8838 = vrot.slane %v8800, 4
        %v8839 = vsel %vm5699, %v8836, %v8838
        %v8840 = vrot.slane %v8801, 4
        %v8841 = vsel %vm5699, %v8838, %v8840
        %v8842 = vrot.slane %v8802, 4
        %v8843 = vsel %vm5699, %v8840, %v8842
        %v8844 = vrot.slane %v8803, 4
        %v8845 = vsel %vm5699, %v8842, %v8844
        %v8846 = vrot.slane %v8804, 4
        %v8847 = vsel %vm5699, %v8844, %v8846
        %v8848 = vrot.slane %v8805, 4
        %v8849 = vsel %vm5699, %v8846, %v8848
        %v8850 = vrot.slane %v8806, 4
        %v8851 = vsel %vm5699, %v8848, %v8850
        %v8852 = vrot.slane %v8807, 4
        %v8853 = vsel %vm5699, %v8850, %v8852
        %v8854 = vrot.slane %v8808, 4
        %v8855 = vsel %vm5699, %v8852, %v8854
        %8873 = vst [vmem:[#allocation3 + $0x8] sm:$0xf0] %v8825
        %8874 = vst [vmem:[#allocation3 + $0x10] sm:$0xff] %v8827
        %8875 = vst [vmem:[#allocation3 + $0x18] sm:$0xff] %v8829
        %8876 = vst [vmem:[#allocation3 + $0x20] sm:$0xff] %v8831
        %8877 = vst [vmem:[#allocation3 + $0x28] sm:$0xff] %v8833
        %8878 = vst [vmem:[#allocation3 + $0x30] sm:$0xff] %v8835
        %8879 = vst [vmem:[#allocation3 + $0x38] sm:$0xff] %v8837
        %8880 = vst [vmem:[#allocation3 + $0x40] sm:$0xff] %v8839
        %8881 = vst [vmem:[#allocation3 + $0x48] sm:$0xff] %v8841
        %8882 = vst [vmem:[#allocation3 + $0x50] sm:$0xff] %v8843
        %8883 = vst [vmem:[#allocation3 + $0x58] sm:$0xff] %v8845
        %8884 = vst [vmem:[#allocation3 + $0x60] sm:$0xff] %v8847
        %8885 = vst [vmem:[#allocation3 + $0x68] sm:$0xff] %v8849
        %8886 = vst [vmem:[#allocation3 + $0x70] sm:$0xff] %v8851
        %8887 = vst [vmem:[#allocation3 + $0x78] sm:$0xff] %v8853
        %8888 = vst [vmem:[#allocation3 + $0x80] sm:$0xff] %v8855
        %8889 = vst [vmem:[#allocation3 + $0x88] sm:$0xf] %v8854
        %v8890 = vld [vmem:[#allocation14] sm:$0xf]
        %v8891 = vld [vmem:[#allocation14 + $0x4] sm:$0xf]
        %v8892 = vld [vmem:[#allocation14 + $0x8] sm:$0xf]
        %v8893 = vld [vmem:[#allocation14 + $0xc] sm:$0xf]
        %v8894 = vld [vmem:[#allocation14 + $0x10] sm:$0xf]
        %v8895 = vld [vmem:[#allocation14 + $0x14] sm:$0xf]
        %v8896 = vld [vmem:[#allocation14 + $0x18] sm:$0xf]
        %v8897 = vld [vmem:[#allocation14 + $0x1c] sm:$0xf]
        %v8898 = vld [vmem:[#allocation14 + $0x20] sm:$0xf]
        %v8899 = vld [vmem:[#allocation14 + $0x24] sm:$0xf]
        %v8900 = vld [vmem:[#allocation14 + $0x28] sm:$0xf]
        %v8901 = vld [vmem:[#allocation14 + $0x2c] sm:$0xf]
        %v8902 = vld [vmem:[#allocation14 + $0x30] sm:$0xf]
        %v8903 = vld [vmem:[#allocation14 + $0x34] sm:$0xf]
        %v8904 = vld [vmem:[#allocation14 + $0x38] sm:$0xf]
        %v8905 = vld [vmem:[#allocation14 + $0x3c] sm:$0xf]
        %v8906 = vld [vmem:[#allocation14 + $0x40] sm:$0xf]
        %v8907 = vld [vmem:[#allocation14 + $0x44] sm:$0xf]
        %v8908 = vld [vmem:[#allocation14 + $0x48] sm:$0xf]
        %v8909 = vld [vmem:[#allocation14 + $0x4c] sm:$0xf]
        %v8910 = vld [vmem:[#allocation14 + $0x50] sm:$0xf]
        %v8911 = vld [vmem:[#allocation14 + $0x54] sm:$0xf]
        %v8912 = vld [vmem:[#allocation14 + $0x58] sm:$0xf]
        %v8913 = vld [vmem:[#allocation14 + $0x5c] sm:$0xf]
        %v8914 = vld [vmem:[#allocation14 + $0x60] sm:$0xf]
        %v8915 = vld [vmem:[#allocation14 + $0x64] sm:$0xf]
        %v8916 = vld [vmem:[#allocation14 + $0x68] sm:$0xf]
        %v8917 = vld [vmem:[#allocation14 + $0x6c] sm:$0xf]
        %v8918 = vld [vmem:[#allocation14 + $0x70] sm:$0xf]
        %v8919 = vld [vmem:[#allocation14 + $0x74] sm:$0xf]
        %v8920 = vld [vmem:[#allocation14 + $0x78] sm:$0xf]
        %v8921 = vld [vmem:[#allocation14 + $0x7c] sm:$0xf]
        %v8922 = vld [vmem:[#allocation14 + $0x80] sm:$0xf]
        %v8923 = vld [vmem:[#allocation14 + $0x84] sm:$0xf]
        %v8924 = vld [vmem:[#allocation14 + $0x88] sm:$0xf]
        %v8925 = vld [vmem:[#allocation14 + $0x8c] sm:$0xf]
        %v8926 = vld [vmem:[#allocation14 + $0x90] sm:$0xf]
        %v8927 = vld [vmem:[#allocation14 + $0x94] sm:$0xf]
        %v8928 = vld [vmem:[#allocation14 + $0x98] sm:$0xf]
        %v8929 = vld [vmem:[#allocation14 + $0x9c] sm:$0xf]
        %v8930 = vld [vmem:[#allocation14 + $0xa0] sm:$0xf]
        %v8931 = vld [vmem:[#allocation14 + $0xa4] sm:$0xf]
        %v8932 = vld [vmem:[#allocation14 + $0xa8] sm:$0xf]
        %v8933 = vld [vmem:[#allocation14 + $0xac] sm:$0xf]
        %v8934 = vld [vmem:[#allocation14 + $0xb0] sm:$0xf]
        %v8935 = vld [vmem:[#allocation14 + $0xb4] sm:$0xf]
        %v8936 = vld [vmem:[#allocation14 + $0xb8] sm:$0xf]
        %v8937 = vld [vmem:[#allocation14 + $0xbc] sm:$0xf]
        %v8938 = vld [vmem:[#allocation3 + $0x8] sm:$0xf8]
        %v8939 = vld [vmem:[#allocation3 + $0x10] sm:$0xff]
        %v8940 = vld [vmem:[#allocation3 + $0x18] sm:$0xff]
        %v8941 = vld [vmem:[#allocation3 + $0x20] sm:$0xff]
        %v8942 = vld [vmem:[#allocation3 + $0x28] sm:$0xff]
        %v8943 = vld [vmem:[#allocation3 + $0x30] sm:$0xff]
        %v8944 = vld [vmem:[#allocation3 + $0x38] sm:$0xff]
        %v8945 = vld [vmem:[#allocation3 + $0x40] sm:$0xff]
        %v8946 = vld [vmem:[#allocation3 + $0x48] sm:$0xff]
        %v8947 = vld [vmem:[#allocation3 + $0x50] sm:$0xff]
        %v8948 = vld [vmem:[#allocation3 + $0x58] sm:$0xff]
        %v8949 = vld [vmem:[#allocation3 + $0x60] sm:$0xff]
        %v8950 = vld [vmem:[#allocation3 + $0x68] sm:$0xff]
        %v8951 = vld [vmem:[#allocation3 + $0x70] sm:$0xff]
        %v8952 = vld [vmem:[#allocation3 + $0x78] sm:$0xff]
        %v8953 = vld [vmem:[#allocation3 + $0x80] sm:$0xff]
        %v8954 = vld [vmem:[#allocation3 + $0x88] sm:$0xf]
        %v8955 = vsel %vm1685, %v8938, 0
        %v8956 = vsel %vm1686, %v8939, 0
        %v8957 = vsel %vm1687, %v8940, 0
        %v8958 = vsel %vm1688, %v8941, 0
        %v8959 = vsel %vm1689, %v8942, 0
        %v8960 = vsel %vm1690, %v8943, 0
        %v8961 = vsel %vm1691, %v8944, 0
        %v8962 = vsel %vm1692, %v8945, 0
        %v8963 = vsel %vm1693, %v8946, 0
        %v8964 = vsel %vm1694, %v8947, 0
        %v8965 = vsel %vm1695, %v8948, 0
        %v8966 = vsel %vm1696, %v8949, 0
        %v8967 = vsel %vm1697, %v8950, 0
        %v8968 = vsel %vm1698, %v8951, 0
        %v8969 = vsel %vm1699, %v8952, 0
        %v8970 = vsel %vm1700, %v8953, 0
        %v8971 = vsel %vm1701, %v8954, 0
        %v8972 = vld [vmem:[#allocation3 + $0x8] sm:$0xf0]
        %v8973 = vld [vmem:[#allocation3 + $0x88] sm:$0x1f]
        %v8974 = vsel %vm2041, %v8972, 0
        %v8975 = vsel %vm2042, %v8939, 0
        %v8976 = vsel %vm2043, %v8940, 0
        %v8977 = vsel %vm2044, %v8941, 0
        %v8978 = vsel %vm2045, %v8942, 0
        %v8979 = vsel %vm2046, %v8943, 0
        %v8980 = vsel %vm2047, %v8944, 0
        %v8981 = vsel %vm2048, %v8945, 0
        %v8982 = vsel %vm2049, %v8946, 0
        %v8983 = vsel %vm2050, %v8947, 0
        %v8984 = vsel %vm2051, %v8948, 0
        %v8985 = vsel %vm2052, %v8949, 0
        %v8986 = vsel %vm2053, %v8950, 0
        %v8987 = vsel %vm2054, %v8951, 0
        %v8988 = vsel %vm2055, %v8952, 0
        %v8989 = vsel %vm2056, %v8953, 0
        %v8990 = vsel %vm2057, %v8973, 0
        %v8992 = vshrl.u32 %v8972, 16
        %v8994 = vshll.u32 %v8972, 16
        %v8996 = vrot.slane %v8994, 1
        %v8997 = vor.u32 %v8992, %v8996
        %v8999 = vshll.u32 %v8939, 16
        %v9001 = vrot.slane %v8999, 1
        %v9002 = vsel %vm2075, %v8997, %v9001
        %v9003 = vshrl.u32 %v8939, 16
        %v9005 = vor.u32 %v9003, %v9001
        %v9007 = vshll.u32 %v8940, 16
        %v9009 = vrot.slane %v9007, 1
        %v9010 = vsel %vm2075, %v9005, %v9009
        %v9011 = vshrl.u32 %v8940, 16
        %v9013 = vor.u32 %v9011, %v9009
        %v9015 = vshll.u32 %v8941, 16
        %v9017 = vrot.slane %v9015, 1
        %v9018 = vsel %vm2075, %v9013, %v9017
        %v9019 = vshrl.u32 %v8941, 16
        %v9021 = vor.u32 %v9019, %v9017
        %v9023 = vshll.u32 %v8942, 16
        %v9025 = vrot.slane %v9023, 1
        %v9026 = vsel %vm2075, %v9021, %v9025
        %v9027 = vshrl.u32 %v8942, 16
        %v9029 = vor.u32 %v9027, %v9025
        %v9031 = vshll.u32 %v8943, 16
        %v9033 = vrot.slane %v9031, 1
        %v9034 = vsel %vm2075, %v9029, %v9033
        %v9035 = vshrl.u32 %v8943, 16
        %v9037 = vor.u32 %v9035, %v9033
        %v9039 = vshll.u32 %v8944, 16
        %v9041 = vrot.slane %v9039, 1
        %v9042 = vsel %vm2075, %v9037, %v9041
        %v9043 = vshrl.u32 %v8944, 16
        %v9045 = vor.u32 %v9043, %v9041
        %v9047 = vshll.u32 %v8945, 16
        %v9049 = vrot.slane %v9047, 1
        %v9050 = vsel %vm2075, %v9045, %v9049
        %v9051 = vshrl.u32 %v8945, 16
        %v9053 = vor.u32 %v9051, %v9049
        %v9055 = vshll.u32 %v8946, 16
        %v9057 = vrot.slane %v9055, 1
        %v9058 = vsel %vm2075, %v9053, %v9057
        %v9059 = vshrl.u32 %v8946, 16
        %v9061 = vor.u32 %v9059, %v9057
        %v9063 = vshll.u32 %v8947, 16
        %v9065 = vrot.slane %v9063, 1
        %v9066 = vsel %vm2075, %v9061, %v9065
        %v9067 = vshrl.u32 %v8947, 16
        %v9069 = vor.u32 %v9067, %v9065
        %v9071 = vshll.u32 %v8948, 16
        %v9073 = vrot.slane %v9071, 1
        %v9074 = vsel %vm2075, %v9069, %v9073
        %v9075 = vshrl.u32 %v8948, 16
        %v9077 = vor.u32 %v9075, %v9073
        %v9079 = vshll.u32 %v8949, 16
        %v9081 = vrot.slane %v9079, 1
        %v9082 = vsel %vm2075, %v9077, %v9081
        %v9083 = vshrl.u32 %v8949, 16
        %v9085 = vor.u32 %v9083, %v9081
        %v9087 = vshll.u32 %v8950, 16
        %v9089 = vrot.slane %v9087, 1
        %v9090 = vsel %vm2075, %v9085, %v9089
        %v9091 = vshrl.u32 %v8950, 16
        %v9093 = vor.u32 %v9091, %v9089
        %v9095 = vshll.u32 %v8951, 16
        %v9097 = vrot.slane %v9095, 1
        %v9098 = vsel %vm2075, %v9093, %v9097
        %v9099 = vshrl.u32 %v8951, 16
        %v9101 = vor.u32 %v9099, %v9097
        %v9103 = vshll.u32 %v8952, 16
        %v9105 = vrot.slane %v9103, 1
        %v9106 = vsel %vm2075, %v9101, %v9105
        %v9107 = vshrl.u32 %v8952, 16
        %v9109 = vor.u32 %v9107, %v9105
        %v9111 = vshll.u32 %v8953, 16
        %v9113 = vrot.slane %v9111, 1
        %v9114 = vsel %vm2075, %v9109, %v9113
        %v9115 = vshrl.u32 %v8953, 16
        %v9117 = vor.u32 %v9115, %v9113
        %v9119 = vshll.u32 %v8954, 16
        %v9121 = vrot.slane %v9119, 1
        %v9122 = vsel %vm2075, %v9117, %v9121
        %v9123 = vshrl.u32 %v8954, 16
        %v9125 = vor.u32 %v9123, %v9121
        %v9143 = vrot.slane %v8974, 1
        %v9144 = vrot.slane %v8975, 1
        %v9145 = vsel %vm2228, %v9143, %v9144
        %v9146 = vrot.slane %v8976, 1
        %v9147 = vsel %vm2228, %v9144, %v9146
        %v9148 = vrot.slane %v8977, 1
        %v9149 = vsel %vm2228, %v9146, %v9148
        %v9150 = vrot.slane %v8978, 1
        %v9151 = vsel %vm2228, %v9148, %v9150
        %v9152 = vrot.slane %v8979, 1
        %v9153 = vsel %vm2228, %v9150, %v9152
        %v9154 = vrot.slane %v8980, 1
        %v9155 = vsel %vm2228, %v9152, %v9154
        %v9156 = vrot.slane %v8981, 1
        %v9157 = vsel %vm2228, %v9154, %v9156
        %v9158 = vrot.slane %v8982, 1
        %v9159 = vsel %vm2228, %v9156, %v9158
        %v9160 = vrot.slane %v8983, 1
        %v9161 = vsel %vm2228, %v9158, %v9160
        %v9162 = vrot.slane %v8984, 1
        %v9163 = vsel %vm2228, %v9160, %v9162
        %v9164 = vrot.slane %v8985, 1
        %v9165 = vsel %vm2228, %v9162, %v9164
        %v9166 = vrot.slane %v8986, 1
        %v9167 = vsel %vm2228, %v9164, %v9166
        %v9168 = vrot.slane %v8987, 1
        %v9169 = vsel %vm2228, %v9166, %v9168
        %v9170 = vrot.slane %v8988, 1
        %v9171 = vsel %vm2228, %v9168, %v9170
        %v9172 = vrot.slane %v8989, 1
        %v9173 = vsel %vm2228, %v9170, %v9172
        %v9174 = vrot.slane %v8990, 1
        %v9175 = vsel %vm2228, %v9172, %v9174
        %v9177 = vshrl.u32 %v8955, 16
        %v9179 = vrot.slane %v9177, 3
        %v9180 = vshll.u32 %v8955, 16
        %v9182 = vrot.slane %v9180, 4
        %v9183 = vor.u32 %v9179, %v9182
        %v9185 = vshrl.u32 %v8956, 16
        %v9187 = vrot.slane %v9185, 3
        %v9188 = vshll.u32 %v8956, 16
        %v9190 = vrot.slane %v9188, 4
        %v9191 = vor.u32 %v9187, %v9190
        %v9192 = vsel %vm1897, %v9183, %v9191
        %v9194 = vshrl.u32 %v9002, 16
        %v9196 = vrot.slane %v9194, 3
        %v9197 = vshll.u32 %v9002, 16
        %v9199 = vrot.slane %v9197, 4
        %v9200 = vor.u32 %v9196, %v9199
        %v9202 = vshrl.u32 %v9010, 16
        %v9204 = vrot.slane %v9202, 3
        %v9205 = vshll.u32 %v9010, 16
        %v9207 = vrot.slane %v9205, 4
        %v9208 = vor.u32 %v9204, %v9207
        %v9209 = vsel %vm1897, %v9200, %v9208
        %v9211 = vshrl.u32 %v9145, 16
        %v9213 = vrot.slane %v9211, 3
        %v9214 = vshll.u32 %v9145, 16
        %v9216 = vrot.slane %v9214, 4
        %v9217 = vor.u32 %v9213, %v9216
        %v9219 = vshrl.u32 %v9147, 16
        %v9221 = vrot.slane %v9219, 3
        %v9222 = vshll.u32 %v9147, 16
        %v9224 = vrot.slane %v9222, 4
        %v9225 = vor.u32 %v9221, %v9224
        %v9226 = vsel %vm1897, %v9217, %v9225
        %v9228 = vshrl.u32 %v8957, 16
        %v9230 = vrot.slane %v9228, 3
        %v9231 = vshll.u32 %v8957, 16
        %v9233 = vrot.slane %v9231, 4
        %v9234 = vor.u32 %v9230, %v9233
        %v9235 = vsel %vm1897, %v9191, %v9234
        %v9237 = vshrl.u32 %v9018, 16
        %v9239 = vrot.slane %v9237, 3
        %v9240 = vshll.u32 %v9018, 16
        %v9242 = vrot.slane %v9240, 4
        %v9243 = vor.u32 %v9239, %v9242
        %v9244 = vsel %vm1897, %v9208, %v9243
        %v9246 = vshrl.u32 %v9149, 16
        %v9248 = vrot.slane %v9246, 3
        %v9249 = vshll.u32 %v9149, 16
        %v9251 = vrot.slane %v9249, 4
        %v9252 = vor.u32 %v9248, %v9251
        %v9253 = vsel %vm1897, %v9225, %v9252
        %v9255 = vshrl.u32 %v8958, 16
        %v9257 = vrot.slane %v9255, 3
        %v9258 = vshll.u32 %v8958, 16
        %v9260 = vrot.slane %v9258, 4
        %v9261 = vor.u32 %v9257, %v9260
        %v9262 = vsel %vm1897, %v9234, %v9261
        %v9264 = vshrl.u32 %v9026, 16
        %v9266 = vrot.slane %v9264, 3
        %v9267 = vshll.u32 %v9026, 16
        %v9269 = vrot.slane %v9267, 4
        %v9270 = vor.u32 %v9266, %v9269
        %v9271 = vsel %vm1897, %v9243, %v9270
        %v9273 = vshrl.u32 %v9151, 16
        %v9275 = vrot.slane %v9273, 3
        %v9276 = vshll.u32 %v9151, 16
        %v9278 = vrot.slane %v9276, 4
        %v9279 = vor.u32 %v9275, %v9278
        %v9280 = vsel %vm1897, %v9252, %v9279
        %v9282 = vshrl.u32 %v8959, 16
        %v9284 = vrot.slane %v9282, 3
        %v9285 = vshll.u32 %v8959, 16
        %v9287 = vrot.slane %v9285, 4
        %v9288 = vor.u32 %v9284, %v9287
        %v9289 = vsel %vm1897, %v9261, %v9288
        %v9291 = vshrl.u32 %v9034, 16
        %v9293 = vrot.slane %v9291, 3
        %v9294 = vshll.u32 %v9034, 16
        %v9296 = vrot.slane %v9294, 4
        %v9297 = vor.u32 %v9293, %v9296
        %v9298 = vsel %vm1897, %v9270, %v9297
        %v9300 = vshrl.u32 %v9153, 16
        %v9302 = vrot.slane %v9300, 3
        %v9303 = vshll.u32 %v9153, 16
        %v9305 = vrot.slane %v9303, 4
        %v9306 = vor.u32 %v9302, %v9305
        %v9307 = vsel %vm1897, %v9279, %v9306
        %v9309 = vshrl.u32 %v8960, 16
        %v9311 = vrot.slane %v9309, 3
        %v9312 = vshll.u32 %v8960, 16
        %v9314 = vrot.slane %v9312, 4
        %v9315 = vor.u32 %v9311, %v9314
        %v9316 = vsel %vm1897, %v9288, %v9315
        %v9318 = vshrl.u32 %v9042, 16
        %v9320 = vrot.slane %v9318, 3
        %v9321 = vshll.u32 %v9042, 16
        %v9323 = vrot.slane %v9321, 4
        %v9324 = vor.u32 %v9320, %v9323
        %v9325 = vsel %vm1897, %v9297, %v9324
        %v9327 = vshrl.u32 %v9155, 16
        %v9329 = vrot.slane %v9327, 3
        %v9330 = vshll.u32 %v9155, 16
        %v9332 = vrot.slane %v9330, 4
        %v9333 = vor.u32 %v9329, %v9332
        %v9334 = vsel %vm1897, %v9306, %v9333
        %v9336 = vshrl.u32 %v8961, 16
        %v9338 = vrot.slane %v9336, 3
        %v9339 = vshll.u32 %v8961, 16
        %v9341 = vrot.slane %v9339, 4
        %v9342 = vor.u32 %v9338, %v9341
        %v9343 = vsel %vm1897, %v9315, %v9342
        %v9345 = vshrl.u32 %v9050, 16
        %v9347 = vrot.slane %v9345, 3
        %v9348 = vshll.u32 %v9050, 16
        %v9350 = vrot.slane %v9348, 4
        %v9351 = vor.u32 %v9347, %v9350
        %v9352 = vsel %vm1897, %v9324, %v9351
        %v9354 = vshrl.u32 %v9157, 16
        %v9356 = vrot.slane %v9354, 3
        %v9357 = vshll.u32 %v9157, 16
        %v9359 = vrot.slane %v9357, 4
        %v9360 = vor.u32 %v9356, %v9359
        %v9361 = vsel %vm1897, %v9333, %v9360
        %v9363 = vshrl.u32 %v8962, 16
        %v9365 = vrot.slane %v9363, 3
        %v9366 = vshll.u32 %v8962, 16
        %v9368 = vrot.slane %v9366, 4
        %v9369 = vor.u32 %v9365, %v9368
        %v9370 = vsel %vm1897, %v9342, %v9369
        %v9372 = vshrl.u32 %v9058, 16
        %v9374 = vrot.slane %v9372, 3
        %v9375 = vshll.u32 %v9058, 16
        %v9377 = vrot.slane %v9375, 4
        %v9378 = vor.u32 %v9374, %v9377
        %v9379 = vsel %vm1897, %v9351, %v9378
        %v9381 = vshrl.u32 %v9159, 16
        %v9383 = vrot.slane %v9381, 3
        %v9384 = vshll.u32 %v9159, 16
        %v9386 = vrot.slane %v9384, 4
        %v9387 = vor.u32 %v9383, %v9386
        %v9388 = vsel %vm1897, %v9360, %v9387
        %v9390 = vshrl.u32 %v8963, 16
        %v9392 = vrot.slane %v9390, 3
        %v9393 = vshll.u32 %v8963, 16
        %v9395 = vrot.slane %v9393, 4
        %v9396 = vor.u32 %v9392, %v9395
        %v9397 = vsel %vm1897, %v9369, %v9396
        %v9399 = vshrl.u32 %v9066, 16
        %v9401 = vrot.slane %v9399, 3
        %v9402 = vshll.u32 %v9066, 16
        %v9404 = vrot.slane %v9402, 4
        %v9405 = vor.u32 %v9401, %v9404
        %v9406 = vsel %vm1897, %v9378, %v9405
        %v9408 = vshrl.u32 %v9161, 16
        %v9410 = vrot.slane %v9408, 3
        %v9411 = vshll.u32 %v9161, 16
        %v9413 = vrot.slane %v9411, 4
        %v9414 = vor.u32 %v9410, %v9413
        %v9415 = vsel %vm1897, %v9387, %v9414
        %v9417 = vshrl.u32 %v8964, 16
        %v9419 = vrot.slane %v9417, 3
        %v9420 = vshll.u32 %v8964, 16
        %v9422 = vrot.slane %v9420, 4
        %v9423 = vor.u32 %v9419, %v9422
        %v9424 = vsel %vm1897, %v9396, %v9423
        %v9426 = vshrl.u32 %v9074, 16
        %v9428 = vrot.slane %v9426, 3
        %v9429 = vshll.u32 %v9074, 16
        %v9431 = vrot.slane %v9429, 4
        %v9432 = vor.u32 %v9428, %v9431
        %v9433 = vsel %vm1897, %v9405, %v9432
        %v9435 = vshrl.u32 %v9163, 16
        %v9437 = vrot.slane %v9435, 3
        %v9438 = vshll.u32 %v9163, 16
        %v9440 = vrot.slane %v9438, 4
        %v9441 = vor.u32 %v9437, %v9440
        %v9442 = vsel %vm1897, %v9414, %v9441
        %v9444 = vshrl.u32 %v8965, 16
        %v9446 = vrot.slane %v9444, 3
        %v9447 = vshll.u32 %v8965, 16
        %v9449 = vrot.slane %v9447, 4
        %v9450 = vor.u32 %v9446, %v9449
        %v9451 = vsel %vm1897, %v9423, %v9450
        %v9453 = vshrl.u32 %v9082, 16
        %v9455 = vrot.slane %v9453, 3
        %v9456 = vshll.u32 %v9082, 16
        %v9458 = vrot.slane %v9456, 4
        %v9459 = vor.u32 %v9455, %v9458
        %v9460 = vsel %vm1897, %v9432, %v9459
        %v9462 = vshrl.u32 %v9165, 16
        %v9464 = vrot.slane %v9462, 3
        %v9465 = vshll.u32 %v9165, 16
        %v9467 = vrot.slane %v9465, 4
        %v9468 = vor.u32 %v9464, %v9467
        %v9469 = vsel %vm1897, %v9441, %v9468
        %v9471 = vshrl.u32 %v8966, 16
        %v9473 = vrot.slane %v9471, 3
        %v9474 = vshll.u32 %v8966, 16
        %v9476 = vrot.slane %v9474, 4
        %v9477 = vor.u32 %v9473, %v9476
        %v9478 = vsel %vm1897, %v9450, %v9477
        %v9480 = vshrl.u32 %v9090, 16
        %v9482 = vrot.slane %v9480, 3
        %v9483 = vshll.u32 %v9090, 16
        %v9485 = vrot.slane %v9483, 4
        %v9486 = vor.u32 %v9482, %v9485
        %v9487 = vsel %vm1897, %v9459, %v9486
        %v9489 = vshrl.u32 %v9167, 16
        %v9491 = vrot.slane %v9489, 3
        %v9492 = vshll.u32 %v9167, 16
        %v9494 = vrot.slane %v9492, 4
        %v9495 = vor.u32 %v9491, %v9494
        %v9496 = vsel %vm1897, %v9468, %v9495
        %v9498 = vshrl.u32 %v8967, 16
        %v9500 = vrot.slane %v9498, 3
        %v9501 = vshll.u32 %v8967, 16
        %v9503 = vrot.slane %v9501, 4
        %v9504 = vor.u32 %v9500, %v9503
        %v9505 = vsel %vm1897, %v9477, %v9504
        %v9507 = vshrl.u32 %v9098, 16
        %v9509 = vrot.slane %v9507, 3
        %v9510 = vshll.u32 %v9098, 16
        %v9512 = vrot.slane %v9510, 4
        %v9513 = vor.u32 %v9509, %v9512
        %v9514 = vsel %vm1897, %v9486, %v9513
        %v9516 = vshrl.u32 %v9169, 16
        %v9518 = vrot.slane %v9516, 3
        %v9519 = vshll.u32 %v9169, 16
        %v9521 = vrot.slane %v9519, 4
        %v9522 = vor.u32 %v9518, %v9521
        %v9523 = vsel %vm1897, %v9495, %v9522
        %v9525 = vshrl.u32 %v8968, 16
        %v9527 = vrot.slane %v9525, 3
        %v9528 = vshll.u32 %v8968, 16
        %v9530 = vrot.slane %v9528, 4
        %v9531 = vor.u32 %v9527, %v9530
        %v9532 = vsel %vm1897, %v9504, %v9531
        %v9534 = vshrl.u32 %v9106, 16
        %v9536 = vrot.slane %v9534, 3
        %v9537 = vshll.u32 %v9106, 16
        %v9539 = vrot.slane %v9537, 4
        %v9540 = vor.u32 %v9536, %v9539
        %v9541 = vsel %vm1897, %v9513, %v9540
        %v9543 = vshrl.u32 %v9171, 16
        %v9545 = vrot.slane %v9543, 3
        %v9546 = vshll.u32 %v9171, 16
        %v9548 = vrot.slane %v9546, 4
        %v9549 = vor.u32 %v9545, %v9548
        %v9550 = vsel %vm1897, %v9522, %v9549
        %v9552 = vshrl.u32 %v8969, 16
        %v9554 = vrot.slane %v9552, 3
        %v9555 = vshll.u32 %v8969, 16
        %v9557 = vrot.slane %v9555, 4
        %v9558 = vor.u32 %v9554, %v9557
        %v9559 = vsel %vm1897, %v9531, %v9558
        %v9561 = vshrl.u32 %v9114, 16
        %v9563 = vrot.slane %v9561, 3
        %v9564 = vshll.u32 %v9114, 16
        %v9566 = vrot.slane %v9564, 4
        %v9567 = vor.u32 %v9563, %v9566
        %v9568 = vsel %vm1897, %v9540, %v9567
        %v9570 = vshrl.u32 %v9173, 16
        %v9572 = vrot.slane %v9570, 3
        %v9573 = vshll.u32 %v9173, 16
        %v9575 = vrot.slane %v9573, 4
        %v9576 = vor.u32 %v9572, %v9575
        %v9577 = vsel %vm1897, %v9549, %v9576
        %v9579 = vshrl.u32 %v8970, 16
        %v9581 = vrot.slane %v9579, 3
        %v9582 = vshll.u32 %v8970, 16
        %v9584 = vrot.slane %v9582, 4
        %v9585 = vor.u32 %v9581, %v9584
        %v9586 = vsel %vm1897, %v9558, %v9585
        %v9588 = vshrl.u32 %v9122, 16
        %v9590 = vrot.slane %v9588, 3
        %v9591 = vshll.u32 %v9122, 16
        %v9593 = vrot.slane %v9591, 4
        %v9594 = vor.u32 %v9590, %v9593
        %v9595 = vsel %vm1897, %v9567, %v9594
        %v9597 = vshrl.u32 %v9175, 16
        %v9599 = vrot.slane %v9597, 3
        %v9600 = vshll.u32 %v9175, 16
        %v9602 = vrot.slane %v9600, 4
        %v9603 = vor.u32 %v9599, %v9602
        %v9604 = vsel %vm1897, %v9576, %v9603
        %v9606 = vshrl.u32 %v8971, 16
        %v9608 = vrot.slane %v9606, 3
        %v9609 = vshll.u32 %v8971, 16
        %v9611 = vrot.slane %v9609, 4
        %v9612 = vor.u32 %v9608, %v9611
        %v9613 = vsel %vm1897, %v9585, %v9612
        %v9615 = vshrl.u32 %v9125, 16
        %v9617 = vrot.slane %v9615, 3
        %v9618 = vshll.u32 %v9125, 16
        %v9620 = vrot.slane %v9618, 4
        %v9621 = vor.u32 %v9617, %v9620
        %v9622 = vsel %vm1897, %v9594, %v9621
        %v9624 = vshrl.u32 %v9174, 16
        %v9626 = vrot.slane %v9624, 3
        %v9627 = vshll.u32 %v9174, 16
        %v9629 = vrot.slane %v9627, 4
        %v9630 = vor.u32 %v9626, %v9629
        %v9631 = vsel %vm1897, %v9603, %v9630
        %v9728 = vunpack.c.l.b16 %v8890
        %v9729 = vunpack.c.l.b16 %v8891
        %v9730 = vunpack.c.l.b16 %v8892
        %v9731 = vunpack.c.l.b16 %v8893
        %v9732 = vunpack.c.l.b16 %v8894
        %v9733 = vunpack.c.l.b16 %v8895
        %v9734 = vunpack.c.l.b16 %v8896
        %v9735 = vunpack.c.l.b16 %v8897
        %v9736 = vunpack.c.l.b16 %v8898
        %v9737 = vunpack.c.l.b16 %v8899
        %v9738 = vunpack.c.l.b16 %v8900
        %v9739 = vunpack.c.l.b16 %v8901
        %v9740 = vunpack.c.l.b16 %v8902
        %v9741 = vunpack.c.l.b16 %v8903
        %v9742 = vunpack.c.l.b16 %v8904
        %v9743 = vunpack.c.l.b16 %v8905
        %v9744 = vunpack.c.l.b16 %v8906
        %v9745 = vunpack.c.l.b16 %v8907
        %v9746 = vunpack.c.l.b16 %v8908
        %v9747 = vunpack.c.l.b16 %v8909
        %v9748 = vunpack.c.l.b16 %v8910
        %v9749 = vunpack.c.l.b16 %v8911
        %v9750 = vunpack.c.l.b16 %v8912
        %v9751 = vunpack.c.l.b16 %v8913
        %v9752 = vunpack.c.l.b16 %v8914
        %v9753 = vunpack.c.l.b16 %v8915
        %v9754 = vunpack.c.l.b16 %v8916
        %v9755 = vunpack.c.l.b16 %v8917
        %v9756 = vunpack.c.l.b16 %v8918
        %v9757 = vunpack.c.l.b16 %v8919
        %v9758 = vunpack.c.l.b16 %v8920
        %v9759 = vunpack.c.l.b16 %v8921
        %v9760 = vunpack.c.l.b16 %v8922
        %v9761 = vunpack.c.l.b16 %v8923
        %v9762 = vunpack.c.l.b16 %v8924
        %v9763 = vunpack.c.l.b16 %v8925
        %v9764 = vunpack.c.l.b16 %v8926
        %v9765 = vunpack.c.l.b16 %v8927
        %v9766 = vunpack.c.l.b16 %v8928
        %v9767 = vunpack.c.l.b16 %v8929
        %v9768 = vunpack.c.l.b16 %v8930
        %v9769 = vunpack.c.l.b16 %v8931
        %v9770 = vunpack.c.l.b16 %v8932
        %v9771 = vunpack.c.l.b16 %v8933
        %v9772 = vunpack.c.l.b16 %v8934
        %v9773 = vunpack.c.l.b16 %v8935
        %v9774 = vunpack.c.l.b16 %v8936
        %v9775 = vunpack.c.l.b16 %v8937
        %v9776 = vpack.c.b16 %v9729, %v9728
        %v9777 = vpack.c.b16 %v9731, %v9730
        %v9778 = vpack.c.b16 %v9733, %v9732
        %v9779 = vpack.c.b16 %v9735, %v9734
        %v9780 = vpack.c.b16 %v9737, %v9736
        %v9781 = vpack.c.b16 %v9739, %v9738
        %v9782 = vpack.c.b16 %v9741, %v9740
        %v9783 = vpack.c.b16 %v9743, %v9742
        %v9784 = vpack.c.b16 %v9745, %v9744
        %v9785 = vpack.c.b16 %v9747, %v9746
        %v9786 = vpack.c.b16 %v9749, %v9748
        %v9787 = vpack.c.b16 %v9751, %v9750
        %v9788 = vpack.c.b16 %v9753, %v9752
        %v9789 = vpack.c.b16 %v9755, %v9754
        %v9790 = vpack.c.b16 %v9757, %v9756
        %v9791 = vpack.c.b16 %v9759, %v9758
        %v9792 = vpack.c.b16 %v9761, %v9760
        %v9793 = vpack.c.b16 %v9763, %v9762
        %v9794 = vpack.c.b16 %v9765, %v9764
        %v9795 = vpack.c.b16 %v9767, %v9766
        %v9796 = vpack.c.b16 %v9769, %v9768
        %v9797 = vpack.c.b16 %v9771, %v9770
        %v9798 = vpack.c.b16 %v9773, %v9772
        %v9799 = vpack.c.b16 %v9775, %v9774
        %9824 = vmatprep.subr.bf16.mxu0 0
        %9825 = vmatpush1.bf16.msra.mxu0 %v9776
        %9826 = vmatprep.subr.bf16.mxu0 0
        %9827 = vmatpush1.bf16.msra.mxu0 %v9777
        %9828 = vmatprep.subr.bf16.mxu0 0
        %9829 = vmatpush1.bf16.msra.mxu0 %v9778
        %9830 = vmatprep.subr.bf16.mxu0 0
        %9831 = vmatpush1.bf16.msra.mxu0 %v9779
        %9832 = vmatprep.subr.bf16.mxu0 0
        %9833 = vmatpush1.bf16.msra.mxu0 %v9780
        %9834 = vmatprep.subr.bf16.mxu0 0
        %9835 = vmatpush1.bf16.msra.mxu0 %v9781
        %9836 = vmatprep.subr.bf16.mxu0 0
        %9837 = vmatpush1.bf16.msra.mxu0 %v9782
        %9838 = vmatprep.subr.bf16.mxu0 0
        %9839 = vmatpush1.bf16.msra.mxu0 %v9783
        %9840 = vmatprep.subr.bf16.mxu0 0
        %9841 = vmatpush1.bf16.msra.mxu0 %v9784
        %9842 = vmatprep.subr.bf16.mxu0 0
        %9843 = vmatpush1.bf16.msra.mxu0 %v9785
        %9844 = vmatprep.subr.bf16.mxu0 0
        %9845 = vmatpush1.bf16.msra.mxu0 %v9786
        %9846 = vmatprep.subr.bf16.mxu0 0
        %9847 = vmatpush1.bf16.msra.mxu0 %v9787
        %9848 = vmatprep.subr.bf16.mxu0 0
        %9849 = vmatpush1.bf16.msra.mxu0 %v9788
        %9850 = vmatprep.subr.bf16.mxu0 0
        %9851 = vmatpush1.bf16.msra.mxu0 %v9789
        %9852 = vmatprep.subr.bf16.mxu0 0
        %9853 = vmatpush1.bf16.msra.mxu0 %v9790
        %9854 = vmatprep.subr.bf16.mxu0 0
        %9855 = vmatpush1.bf16.msra.mxu0 %v9791
        %9856 = vmatprep.mubr.bf16.mxu0 %v9209
        %9857 = vmatmul.mubr.bf16.gmra.mrb[0].mxu0 %v9192
        %v9858 = vpop.f32.mrb[0].mxu0
        %v9859 = vadd.f32 0.0, %v9858
        %v9860 = vpop.f32.mrb[0].mxu0
        %v9861 = vpop.f32.mrb[0].mxu0
        %v9862 = vadd.f32 0.0, %v9861
        %v9863 = vpop.f32.mrb[0].mxu0
        %9864 = vmatprep.mubr.bf16.mxu0 %v9244
        %9865 = vmatmul.mubr.bf16.gmra.mrb[0].mxu0 %v9235
        %v9866 = vpop.f32.mrb[0].mxu0
        %v9867 = vadd.f32 0.0, %v9866
        %v9868 = vpop.f32.mrb[0].mxu0
        %v9869 = vpop.f32.mrb[0].mxu0
        %v9870 = vadd.f32 0.0, %v9869
        %v9871 = vpop.f32.mrb[0].mxu0
        %9872 = vmatprep.mubr.bf16.mxu0 %v9271
        %9873 = vmatmul.mubr.bf16.gmra.mrb[0].mxu0 %v9262
        %v9874 = vpop.f32.mrb[0].mxu0
        %v9875 = vadd.f32 0.0, %v9874
        %v9876 = vpop.f32.mrb[0].mxu0
        %v9877 = vpop.f32.mrb[0].mxu0
        %v9878 = vadd.f32 0.0, %v9877
        %v9879 = vpop.f32.mrb[0].mxu0
        %9880 = vmatprep.mubr.bf16.mxu0 %v9298
        %9881 = vmatmul.mubr.bf16.gmra.mrb[0].mxu0 %v9289
        %v9882 = vpop.f32.mrb[0].mxu0
        %v9883 = vadd.f32 0.0, %v9882
        %v9884 = vpop.f32.mrb[0].mxu0
        %v9885 = vpop.f32.mrb[0].mxu0
        %v9886 = vadd.f32 0.0, %v9885
        %v9887 = vpop.f32.mrb[0].mxu0
        %9888 = vmatprep.mubr.bf16.mxu0 %v9325
        %9889 = vmatmul.mubr.bf16.gmra.mrb[0].mxu0 %v9316
        %v9890 = vpop.f32.mrb[0].mxu0
        %v9891 = vadd.f32 0.0, %v9890
        %v9892 = vpop.f32.mrb[0].mxu0
        %v9893 = vpop.f32.mrb[0].mxu0
        %v9894 = vadd.f32 0.0, %v9893
        %v9895 = vpop.f32.mrb[0].mxu0
        %9896 = vmatprep.mubr.bf16.mxu0 %v9352
        %9897 = vmatmul.mubr.bf16.gmra.mrb[0].mxu0 %v9343
        %v9898 = vpop.f32.mrb[0].mxu0
        %v9899 = vadd.f32 0.0, %v9898
        %v9900 = vpop.f32.mrb[0].mxu0
        %v9901 = vpop.f32.mrb[0].mxu0
        %v9902 = vadd.f32 0.0, %v9901
        %v9903 = vpop.f32.mrb[0].mxu0
        %9904 = vmatprep.mubr.bf16.mxu0 %v9379
        %9905 = vmatmul.mubr.bf16.gmra.mrb[0].mxu0 %v9370
        %v9906 = vpop.f32.mrb[0].mxu0
        %v9907 = vadd.f32 0.0, %v9906
        %v9908 = vpop.f32.mrb[0].mxu0
        %v9909 = vpop.f32.mrb[0].mxu0
        %v9910 = vadd.f32 0.0, %v9909
        %v9911 = vpop.f32.mrb[0].mxu0
        %9912 = vmatprep.mubr.bf16.mxu0 %v9406
        %9913 = vmatmul.mubr.bf16.gmra.mrb[0].mxu0 %v9397
        %v9914 = vpop.f32.mrb[0].mxu0
        %v9915 = vadd.f32 0.0, %v9914
        %v9916 = vpop.f32.mrb[0].mxu0
        %v9917 = vpop.f32.mrb[0].mxu0
        %v9918 = vadd.f32 0.0, %v9917
        %v9919 = vpop.f32.mrb[0].mxu0
        %9920 = vmatprep.mubr.bf16.mxu0 %v9433
        %9921 = vmatmul.mubr.bf16.gmra.mrb[0].mxu0 %v9424
        %v9922 = vpop.f32.mrb[0].mxu0
        %v9923 = vadd.f32 0.0, %v9922
        %v9924 = vpop.f32.mrb[0].mxu0
        %v9925 = vpop.f32.mrb[0].mxu0
        %v9926 = vadd.f32 0.0, %v9925
        %v9927 = vpop.f32.mrb[0].mxu0
        %9928 = vmatprep.mubr.bf16.mxu0 %v9460
        %9929 = vmatmul.mubr.bf16.gmra.mrb[0].mxu0 %v9451
        %v9930 = vpop.f32.mrb[0].mxu0
        %v9931 = vadd.f32 0.0, %v9930
        %v9932 = vpop.f32.mrb[0].mxu0
        %v9933 = vpop.f32.mrb[0].mxu0
        %v9934 = vadd.f32 0.0, %v9933
        %v9935 = vpop.f32.mrb[0].mxu0
        %9936 = vmatprep.mubr.bf16.mxu0 %v9487
        %9937 = vmatmul.mubr.bf16.gmra.mrb[0].mxu0 %v9478
        %v9938 = vpop.f32.mrb[0].mxu0
        %v9939 = vadd.f32 0.0, %v9938
        %v9940 = vpop.f32.mrb[0].mxu0
        %v9941 = vpop.f32.mrb[0].mxu0
        %v9942 = vadd.f32 0.0, %v9941
        %v9943 = vpop.f32.mrb[0].mxu0
        %9944 = vmatprep.mubr.bf16.mxu0 %v9514
        %9945 = vmatmul.mubr.bf16.gmra.mrb[0].mxu0 %v9505
        %v9946 = vpop.f32.mrb[0].mxu0
        %v9947 = vadd.f32 0.0, %v9946
        %v9948 = vpop.f32.mrb[0].mxu0
        %v9949 = vpop.f32.mrb[0].mxu0
        %v9950 = vadd.f32 0.0, %v9949
        %v9951 = vpop.f32.mrb[0].mxu0
        %9952 = vmatprep.mubr.bf16.mxu0 %v9541
        %9953 = vmatmul.mubr.bf16.gmra.mrb[0].mxu0 %v9532
        %v9954 = vpop.f32.mrb[0].mxu0
        %v9955 = vadd.f32 0.0, %v9954
        %v9956 = vpop.f32.mrb[0].mxu0
        %v9957 = vpop.f32.mrb[0].mxu0
        %v9958 = vadd.f32 0.0, %v9957
        %v9959 = vpop.f32.mrb[0].mxu0
        %9960 = vmatprep.mubr.bf16.mxu0 %v9568
        %9961 = vmatmul.mubr.bf16.gmra.mrb[0].mxu0 %v9559
        %v9962 = vpop.f32.mrb[0].mxu0
        %v9963 = vadd.f32 0.0, %v9962
        %v9964 = vpop.f32.mrb[0].mxu0
        %v9965 = vpop.f32.mrb[0].mxu0
        %v9966 = vadd.f32 0.0, %v9965
        %v9967 = vpop.f32.mrb[0].mxu0
        %9968 = vmatprep.mubr.bf16.mxu0 %v9595
        %9969 = vmatmul.mubr.bf16.gmra.mrb[0].mxu0 %v9586
        %v9970 = vpop.f32.mrb[0].mxu0
        %v9971 = vadd.f32 0.0, %v9970
        %v9972 = vpop.f32.mrb[0].mxu0
        %v9973 = vpop.f32.mrb[0].mxu0
        %v9974 = vadd.f32 0.0, %v9973
        %v9975 = vpop.f32.mrb[0].mxu0
        %9976 = vmatprep.mubr.bf16.mxu0 %v9622
        %9977 = vmatmul.mubr.bf16.gmra.mrb[0].mxu0 %v9613
        %v9978 = vpop.f32.mrb[0].mxu0
        %v9979 = vadd.f32 0.0, %v9978
        %v9980 = vpop.f32.mrb[0].mxu0
        %v9981 = vpop.f32.mrb[0].mxu0
        %v9982 = vadd.f32 0.0, %v9981
        %v9983 = vpop.f32.mrb[0].mxu0
        %9984 = vdwg.mxu0
        %9985 = vmatprep.subr.bf16.mxu0 0
        %9986 = vmatpush1.bf16.msra.mxu0 %v9792
        %9987 = vmatprep.subr.bf16.mxu0 0
        %9988 = vmatpush1.bf16.msra.mxu0 %v9793
        %9989 = vmatprep.subr.bf16.mxu0 0
        %9990 = vmatpush1.bf16.msra.mxu0 %v9794
        %9991 = vmatprep.subr.bf16.mxu0 0
        %9992 = vmatpush1.bf16.msra.mxu0 %v9795
        %9993 = vmatprep.subr.bf16.mxu0 0
        %9994 = vmatpush1.bf16.msra.mxu0 %v9796
        %9995 = vmatprep.subr.bf16.mxu0 0
        %9996 = vmatpush1.bf16.msra.mxu0 %v9797
        %9997 = vmatprep.subr.bf16.mxu0 0
        %9998 = vmatpush1.bf16.msra.mxu0 %v9798
        %9999 = vmatprep.subr.bf16.mxu0 0
        %10000 = vmatpush1.bf16.msra.mxu0 %v9799
        %10001 = vmatprep.subr.bf16.mxu0 0
        %10002 = vmatpush1.bf16.msra.mxu0 0
        %10003 = vmatprep.subr.bf16.mxu0 0
        %10004 = vmatpush1.bf16.msra.mxu0 0
        %10005 = vmatprep.subr.bf16.mxu0 0
        %10006 = vmatpush1.bf16.msra.mxu0 0
        %10007 = vmatprep.subr.bf16.mxu0 0
        %10008 = vmatpush1.bf16.msra.mxu0 0
        %10009 = vmatprep.subr.bf16.mxu0 0
        %10010 = vmatpush1.bf16.msra.mxu0 0
        %10011 = vmatprep.subr.bf16.mxu0 0
        %10012 = vmatpush1.bf16.msra.mxu0 0
        %10013 = vmatprep.subr.bf16.mxu0 0
        %10014 = vmatpush1.bf16.msra.mxu0 0
        %10015 = vmatprep.subr.bf16.mxu0 0
        %10016 = vmatpush1.bf16.msra.mxu0 0
        %10017 = vmatprep.mubr.bf16.mxu0 0
        %10018 = vmatmul.mubr.bf16.gmra.mrb[0].mxu0 %v9226
        %v10019 = vpop.f32.mrb[0].mxu0
        %v10020 = vadd.f32 %v9859, %v10019
        %v10021 = vpop.f32.mrb[0].mxu0
        %v10022 = vpop.f32.mrb[0].mxu0
        %v10023 = vadd.f32 %v9862, %v10022
        %v10024 = vpop.f32.mrb[0].mxu0
        %10025 = vmatprep.mubr.bf16.mxu0 0
        %10026 = vmatmul.mubr.bf16.gmra.mrb[0].mxu0 %v9253
        %v10027 = vpop.f32.mrb[0].mxu0
        %v10028 = vadd.f32 %v9867, %v10027
        %v10029 = vpop.f32.mrb[0].mxu0
        %v10030 = vpop.f32.mrb[0].mxu0
        %v10031 = vadd.f32 %v9870, %v10030
        %v10032 = vpop.f32.mrb[0].mxu0
        %10033 = vmatprep.mubr.bf16.mxu0 0
        %10034 = vmatmul.mubr.bf16.gmra.mrb[0].mxu0 %v9280
        %v10035 = vpop.f32.mrb[0].mxu0
        %v10036 = vadd.f32 %v9875, %v10035
        %v10037 = vpop.f32.mrb[0].mxu0
        %v10038 = vpop.f32.mrb[0].mxu0
        %v10039 = vadd.f32 %v9878, %v10038
        %v10040 = vpop.f32.mrb[0].mxu0
        %10041 = vmatprep.mubr.bf16.mxu0 0
        %10042 = vmatmul.mubr.bf16.gmra.mrb[0].mxu0 %v9307
        %v10043 = vpop.f32.mrb[0].mxu0
        %v10044 = vadd.f32 %v9883, %v10043
        %v10045 = vpop.f32.mrb[0].mxu0
        %v10046 = vpop.f32.mrb[0].mxu0
        %v10047 = vadd.f32 %v9886, %v10046
        %v10048 = vpop.f32.mrb[0].mxu0
        %10049 = vmatprep.mubr.bf16.mxu0 0
        %10050 = vmatmul.mubr.bf16.gmra.mrb[0].mxu0 %v9334
        %v10051 = vpop.f32.mrb[0].mxu0
        %v10052 = vadd.f32 %v9891, %v10051
        %v10053 = vpop.f32.mrb[0].mxu0
        %v10054 = vpop.f32.mrb[0].mxu0
        %v10055 = vadd.f32 %v9894, %v10054
        %v10056 = vpop.f32.mrb[0].mxu0
        %10057 = vmatprep.mubr.bf16.mxu0 0
        %10058 = vmatmul.mubr.bf16.gmra.mrb[0].mxu0 %v9361
        %v10059 = vpop.f32.mrb[0].mxu0
        %v10060 = vadd.f32 %v9899, %v10059
        %v10061 = vpop.f32.mrb[0].mxu0
        %v10062 = vpop.f32.mrb[0].mxu0
        %v10063 = vadd.f32 %v9902, %v10062
        %v10064 = vpop.f32.mrb[0].mxu0
        %10065 = vmatprep.mubr.bf16.mxu0 0
        %10066 = vmatmul.mubr.bf16.gmra.mrb[0].mxu0 %v9388
        %v10067 = vpop.f32.mrb[0].mxu0
        %v10068 = vadd.f32 %v9907, %v10067
        %v10069 = vpop.f32.mrb[0].mxu0
        %v10070 = vpop.f32.mrb[0].mxu0
        %v10071 = vadd.f32 %v9910, %v10070
        %v10072 = vpop.f32.mrb[0].mxu0
        %10073 = vmatprep.mubr.bf16.mxu0 0
        %10074 = vmatmul.mubr.bf16.gmra.mrb[0].mxu0 %v9415
        %v10075 = vpop.f32.mrb[0].mxu0
        %v10076 = vadd.f32 %v9915, %v10075
        %v10077 = vpop.f32.mrb[0].mxu0
        %v10078 = vpop.f32.mrb[0].mxu0
        %v10079 = vadd.f32 %v9918, %v10078
        %v10080 = vpop.f32.mrb[0].mxu0
        %10081 = vmatprep.mubr.bf16.mxu0 0
        %10082 = vmatmul.mubr.bf16.gmra.mrb[0].mxu0 %v9442
        %v10083 = vpop.f32.mrb[0].mxu0
        %v10084 = vadd.f32 %v9923, %v10083
        %v10085 = vpop.f32.mrb[0].mxu0
        %v10086 = vpop.f32.mrb[0].mxu0
        %v10087 = vadd.f32 %v9926, %v10086
        %v10088 = vpop.f32.mrb[0].mxu0
        %10089 = vmatprep.mubr.bf16.mxu0 0
        %10090 = vmatmul.mubr.bf16.gmra.mrb[0].mxu0 %v9469
        %v10091 = vpop.f32.mrb[0].mxu0
        %v10092 = vadd.f32 %v9931, %v10091
        %v10093 = vpop.f32.mrb[0].mxu0
        %v10094 = vpop.f32.mrb[0].mxu0
        %v10095 = vadd.f32 %v9934, %v10094
        %v10096 = vpop.f32.mrb[0].mxu0
        %10097 = vmatprep.mubr.bf16.mxu0 0
        %10098 = vmatmul.mubr.bf16.gmra.mrb[0].mxu0 %v9496
        %v10099 = vpop.f32.mrb[0].mxu0
        %v10100 = vadd.f32 %v9939, %v10099
        %v10101 = vpop.f32.mrb[0].mxu0
        %v10102 = vpop.f32.mrb[0].mxu0
        %v10103 = vadd.f32 %v9942, %v10102
        %v10104 = vpop.f32.mrb[0].mxu0
        %10105 = vmatprep.mubr.bf16.mxu0 0
        %10106 = vmatmul.mubr.bf16.gmra.mrb[0].mxu0 %v9523
        %v10107 = vpop.f32.mrb[0].mxu0
        %v10108 = vadd.f32 %v9947, %v10107
        %v10109 = vpop.f32.mrb[0].mxu0
        %v10110 = vpop.f32.mrb[0].mxu0
        %v10111 = vadd.f32 %v9950, %v10110
        %v10112 = vpop.f32.mrb[0].mxu0
        %10113 = vmatprep.mubr.bf16.mxu0 0
        %10114 = vmatmul.mubr.bf16.gmra.mrb[0].mxu0 %v9550
        %v10115 = vpop.f32.mrb[0].mxu0
        %v10116 = vadd.f32 %v9955, %v10115
        %v10117 = vpop.f32.mrb[0].mxu0
        %v10118 = vpop.f32.mrb[0].mxu0
        %v10119 = vadd.f32 %v9958, %v10118
        %v10120 = vpop.f32.mrb[0].mxu0
        %10121 = vmatprep.mubr.bf16.mxu0 0
        %10122 = vmatmul.mubr.bf16.gmra.mrb[0].mxu0 %v9577
        %v10123 = vpop.f32.mrb[0].mxu0
        %v10124 = vadd.f32 %v9963, %v10123
        %v10125 = vpop.f32.mrb[0].mxu0
        %v10126 = vpop.f32.mrb[0].mxu0
        %v10127 = vadd.f32 %v9966, %v10126
        %v10128 = vpop.f32.mrb[0].mxu0
        %10129 = vmatprep.mubr.bf16.mxu0 0
        %10130 = vmatmul.mubr.bf16.gmra.mrb[0].mxu0 %v9604
        %v10131 = vpop.f32.mrb[0].mxu0
        %v10132 = vadd.f32 %v9971, %v10131
        %v10133 = vpop.f32.mrb[0].mxu0
        %v10134 = vpop.f32.mrb[0].mxu0
        %v10135 = vadd.f32 %v9974, %v10134
        %v10136 = vpop.f32.mrb[0].mxu0
        %10137 = vmatprep.mubr.bf16.mxu0 0
        %10138 = vmatmul.mubr.bf16.gmra.mrb[0].mxu0 %v9631
        %v10139 = vpop.f32.mrb[0].mxu0
        %v10140 = vadd.f32 %v9979, %v10139
        %v10141 = vpop.f32.mrb[0].mxu0
        %v10142 = vpop.f32.mrb[0].mxu0
        %v10143 = vadd.f32 %v9982, %v10142
        %v10144 = vpop.f32.mrb[0].mxu0
        %10145 = vdwg.mxu0
        %v10146 = vld [vmem:[%s12] sm:$0x1]
        %v10148 = vlaneseq
        %v10149 = vshrl.u32 %v10148, 7
        %v10150 = vsub.s32 0, %v10149
        %v10151 = vrot.slane %v10146, %v10150
        %v10153 = vmul.f32 %v10020, %v10151
        %v10154 = vmul.f32 %v10023, %v10151
        %v10155 = vmul.f32 %v10028, %v10151
        %v10156 = vmul.f32 %v10031, %v10151
        %v10157 = vmul.f32 %v10036, %v10151
        %v10158 = vmul.f32 %v10039, %v10151
        %v10159 = vmul.f32 %v10044, %v10151
        %v10160 = vmul.f32 %v10047, %v10151
        %v10161 = vmul.f32 %v10052, %v10151
        %v10162 = vmul.f32 %v10055, %v10151
        %v10163 = vmul.f32 %v10060, %v10151
        %v10164 = vmul.f32 %v10063, %v10151
        %v10165 = vmul.f32 %v10068, %v10151
        %v10166 = vmul.f32 %v10071, %v10151
        %v10167 = vmul.f32 %v10076, %v10151
        %v10168 = vmul.f32 %v10079, %v10151
        %v10169 = vmul.f32 %v10084, %v10151
        %v10170 = vmul.f32 %v10087, %v10151
        %v10171 = vmul.f32 %v10092, %v10151
        %v10172 = vmul.f32 %v10095, %v10151
        %v10173 = vmul.f32 %v10100, %v10151
        %v10174 = vmul.f32 %v10103, %v10151
        %v10175 = vmul.f32 %v10108, %v10151
        %v10176 = vmul.f32 %v10111, %v10151
        %v10177 = vmul.f32 %v10116, %v10151
        %v10178 = vmul.f32 %v10119, %v10151
        %v10179 = vmul.f32 %v10124, %v10151
        %v10180 = vmul.f32 %v10127, %v10151
        %v10181 = vmul.f32 %v10132, %v10151
        %v10182 = vmul.f32 %v10135, %v10151
        %v10183 = vmul.f32 %v10140, %v10151
        %v10184 = vmul.f32 %v10143, %v10151
        %v10185 = vld [vmem:[%s13] sm:$0x1]
        %v10187 = vlaneseq
        %v10188 = vshrl.u32 %v10187, 7
        %v10189 = vsub.s32 0, %v10188
        %v10190 = vrot.slane %v10185, %v10189
        %v10192 = vadd.f32 %v10153, %v10190
        %v10193 = vadd.f32 %v10154, %v10190
        %v10194 = vadd.f32 %v10155, %v10190
        %v10195 = vadd.f32 %v10156, %v10190
        %v10196 = vadd.f32 %v10157, %v10190
        %v10197 = vadd.f32 %v10158, %v10190
        %v10198 = vadd.f32 %v10159, %v10190
        %v10199 = vadd.f32 %v10160, %v10190
        %v10200 = vadd.f32 %v10161, %v10190
        %v10201 = vadd.f32 %v10162, %v10190
        %v10202 = vadd.f32 %v10163, %v10190
        %v10203 = vadd.f32 %v10164, %v10190
        %v10204 = vadd.f32 %v10165, %v10190
        %v10205 = vadd.f32 %v10166, %v10190
        %v10206 = vadd.f32 %v10167, %v10190
        %v10207 = vadd.f32 %v10168, %v10190
        %v10208 = vadd.f32 %v10169, %v10190
        %v10209 = vadd.f32 %v10170, %v10190
        %v10210 = vadd.f32 %v10171, %v10190
        %v10211 = vadd.f32 %v10172, %v10190
        %v10212 = vadd.f32 %v10173, %v10190
        %v10213 = vadd.f32 %v10174, %v10190
        %v10214 = vadd.f32 %v10175, %v10190
        %v10215 = vadd.f32 %v10176, %v10190
        %v10216 = vadd.f32 %v10177, %v10190
        %v10217 = vadd.f32 %v10178, %v10190
        %v10218 = vadd.f32 %v10179, %v10190
        %v10219 = vadd.f32 %v10180, %v10190
        %v10220 = vadd.f32 %v10181, %v10190
        %v10221 = vadd.f32 %v10182, %v10190
        %v10222 = vadd.f32 %v10183, %v10190
        %v10223 = vadd.f32 %v10184, %v10190
        %v10224 = vld [vmem:[#allocation4] sm:$0xff]
        %v10225 = vld [vmem:[#allocation4 + $0x8] sm:$0xff]
        %v10226 = vld [vmem:[#allocation4 + $0x10] sm:$0xff]
        %v10227 = vld [vmem:[#allocation4 + $0x18] sm:$0xff]
        %v10228 = vld [vmem:[#allocation4 + $0x20] sm:$0xff]
        %v10229 = vld [vmem:[#allocation4 + $0x28] sm:$0xff]
        %v10230 = vld [vmem:[#allocation4 + $0x30] sm:$0xff]
        %v10231 = vld [vmem:[#allocation4 + $0x38] sm:$0xff]
        %v10232 = vld [vmem:[#allocation4 + $0x40] sm:$0xff]
        %v10233 = vld [vmem:[#allocation4 + $0x48] sm:$0xff]
        %v10234 = vld [vmem:[#allocation4 + $0x50] sm:$0xff]
        %v10235 = vld [vmem:[#allocation4 + $0x58] sm:$0xff]
        %v10236 = vld [vmem:[#allocation4 + $0x60] sm:$0xff]
        %v10237 = vld [vmem:[#allocation4 + $0x68] sm:$0xff]
        %v10238 = vld [vmem:[#allocation4 + $0x70] sm:$0xff]
        %v10239 = vld [vmem:[#allocation4 + $0x78] sm:$0xff]
        %v10240 = vld [vmem:[#allocation4 + $0x80] sm:$0xff]
        %v10241 = vld [vmem:[#allocation4 + $0x88] sm:$0xff]
        %v10242 = vld [vmem:[#allocation4 + $0x90] sm:$0xff]
        %v10243 = vld [vmem:[#allocation4 + $0x98] sm:$0xff]
        %v10244 = vld [vmem:[#allocation4 + $0xa0] sm:$0xff]
        %v10245 = vld [vmem:[#allocation4 + $0xa8] sm:$0xff]
        %v10246 = vld [vmem:[#allocation4 + $0xb0] sm:$0xff]
        %v10247 = vld [vmem:[#allocation4 + $0xb8] sm:$0xff]
        %v10248 = vld [vmem:[#allocation4 + $0xc0] sm:$0xff]
        %v10249 = vld [vmem:[#allocation4 + $0xc8] sm:$0xff]
        %v10250 = vld [vmem:[#allocation4 + $0xd0] sm:$0xff]
        %v10251 = vld [vmem:[#allocation4 + $0xd8] sm:$0xff]
        %v10252 = vld [vmem:[#allocation4 + $0xe0] sm:$0xff]
        %v10253 = vld [vmem:[#allocation4 + $0xe8] sm:$0xff]
        %v10254 = vld [vmem:[#allocation4 + $0xf0] sm:$0xff]
        %v10255 = vld [vmem:[#allocation4 + $0xf8] sm:$0xff]
        %v10256 = vadd.f32 %v10192, %v10224
        %v10257 = vadd.f32 %v10193, %v10225
        %v10258 = vadd.f32 %v10194, %v10226
        %v10259 = vadd.f32 %v10195, %v10227
        %v10260 = vadd.f32 %v10196, %v10228
        %v10261 = vadd.f32 %v10197, %v10229
        %v10262 = vadd.f32 %v10198, %v10230
        %v10263 = vadd.f32 %v10199, %v10231
        %v10264 = vadd.f32 %v10200, %v10232
        %v10265 = vadd.f32 %v10201, %v10233
        %v10266 = vadd.f32 %v10202, %v10234
        %v10267 = vadd.f32 %v10203, %v10235
        %v10268 = vadd.f32 %v10204, %v10236
        %v10269 = vadd.f32 %v10205, %v10237
        %v10270 = vadd.f32 %v10206, %v10238
        %v10271 = vadd.f32 %v10207, %v10239
        %v10272 = vadd.f32 %v10208, %v10240
        %v10273 = vadd.f32 %v10209, %v10241
        %v10274 = vadd.f32 %v10210, %v10242
        %v10275 = vadd.f32 %v10211, %v10243
        %v10276 = vadd.f32 %v10212, %v10244
        %v10277 = vadd.f32 %v10213, %v10245
        %v10278 = vadd.f32 %v10214, %v10246
        %v10279 = vadd.f32 %v10215, %v10247
        %v10280 = vadd.f32 %v10216, %v10248
        %v10281 = vadd.f32 %v10217, %v10249
        %v10282 = vadd.f32 %v10218, %v10250
        %v10283 = vadd.f32 %v10219, %v10251
        %v10284 = vadd.f32 %v10220, %v10252
        %v10285 = vadd.f32 %v10221, %v10253
        %v10286 = vadd.f32 %v10222, %v10254
        %v10287 = vadd.f32 %v10223, %v10255
        %v10288 = vmax.f32 %v10256, 0.0
        %v10289 = vmax.f32 %v10257, 0.0
        %v10290 = vmax.f32 %v10258, 0.0
        %v10291 = vmax.f32 %v10259, 0.0
        %v10292 = vmax.f32 %v10260, 0.0
        %v10293 = vmax.f32 %v10261, 0.0
        %v10294 = vmax.f32 %v10262, 0.0
        %v10295 = vmax.f32 %v10263, 0.0
        %v10296 = vmax.f32 %v10264, 0.0
        %v10297 = vmax.f32 %v10265, 0.0
        %v10298 = vmax.f32 %v10266, 0.0
        %v10299 = vmax.f32 %v10267, 0.0
        %v10300 = vmax.f32 %v10268, 0.0
        %v10301 = vmax.f32 %v10269, 0.0
        %v10302 = vmax.f32 %v10270, 0.0
        %v10303 = vmax.f32 %v10271, 0.0
        %v10304 = vmax.f32 %v10272, 0.0
        %v10305 = vmax.f32 %v10273, 0.0
        %v10306 = vmax.f32 %v10274, 0.0
        %v10307 = vmax.f32 %v10275, 0.0
        %v10308 = vmax.f32 %v10276, 0.0
        %v10309 = vmax.f32 %v10277, 0.0
        %v10310 = vmax.f32 %v10278, 0.0
        %v10311 = vmax.f32 %v10279, 0.0
        %v10312 = vmax.f32 %v10280, 0.0
        %v10313 = vmax.f32 %v10281, 0.0
        %v10314 = vmax.f32 %v10282, 0.0
        %v10315 = vmax.f32 %v10283, 0.0
        %v10316 = vmax.f32 %v10284, 0.0
        %v10317 = vmax.f32 %v10285, 0.0
        %v10318 = vmax.f32 %v10286, 0.0
        %v10319 = vmax.f32 %v10287, 0.0
        %10320 = vst [vmem:[%s660] sm:$0xff] %v10288
        %10321 = vst [vmem:[%s660 + $0x8] sm:$0xff] %v10289
        %10322 = vst [vmem:[%s660 + $0x10] sm:$0xff] %v10290
        %10323 = vst [vmem:[%s660 + $0x18] sm:$0xff] %v10291
        %10324 = vst [vmem:[%s660 + $0x20] sm:$0xff] %v10292
        %10325 = vst [vmem:[%s660 + $0x28] sm:$0xff] %v10293
        %10326 = vst [vmem:[%s660 + $0x30] sm:$0xff] %v10294
        %10327 = vst [vmem:[%s660 + $0x38] sm:$0xff] %v10295
        %10328 = vst [vmem:[%s660 + $0x40] sm:$0xff] %v10296
        %10329 = vst [vmem:[%s660 + $0x48] sm:$0xff] %v10297
        %10330 = vst [vmem:[%s660 + $0x50] sm:$0xff] %v10298
        %10331 = vst [vmem:[%s660 + $0x58] sm:$0xff] %v10299
        %10332 = vst [vmem:[%s660 + $0x60] sm:$0xff] %v10300
        %10333 = vst [vmem:[%s660 + $0x68] sm:$0xff] %v10301
        %10334 = vst [vmem:[%s660 + $0x70] sm:$0xff] %v10302
        %10335 = vst [vmem:[%s660 + $0x78] sm:$0xff] %v10303
        %10336 = vst [vmem:[%s660 + $0x80] sm:$0xff] %v10304
        %10337 = vst [vmem:[%s660 + $0x88] sm:$0xff] %v10305
        %10338 = vst [vmem:[%s660 + $0x90] sm:$0xff] %v10306
        %10339 = vst [vmem:[%s660 + $0x98] sm:$0xff] %v10307
        %10340 = vst [vmem:[%s660 + $0xa0] sm:$0xff] %v10308
        %10341 = vst [vmem:[%s660 + $0xa8] sm:$0xff] %v10309
        %10342 = vst [vmem:[%s660 + $0xb0] sm:$0xff] %v10310
        %10343 = vst [vmem:[%s660 + $0xb8] sm:$0xff] %v10311
        %10344 = vst [vmem:[%s660 + $0xc0] sm:$0xff] %v10312
        %10345 = vst [vmem:[%s660 + $0xc8] sm:$0xff] %v10313
        %10346 = vst [vmem:[%s660 + $0xd0] sm:$0xff] %v10314
        %10347 = vst [vmem:[%s660 + $0xd8] sm:$0xff] %v10315
        %10348 = vst [vmem:[%s660 + $0xe0] sm:$0xff] %v10316
        %10349 = vst [vmem:[%s660 + $0xe8] sm:$0xff] %v10317
        %10350 = vst [vmem:[%s660 + $0xf0] sm:$0xff] %v10318
        %10351 = vst [vmem:[%s660 + $0xf8] sm:$0xff] %v10319
        %v10352 = vpack.c.bf16 %v10289, %v10288
        %v10353 = vpack.c.bf16 %v10291, %v10290
        %v10354 = vpack.c.bf16 %v10293, %v10292
        %v10355 = vpack.c.bf16 %v10295, %v10294
        %v10356 = vpack.c.bf16 %v10297, %v10296
        %v10357 = vpack.c.bf16 %v10299, %v10298
        %v10358 = vpack.c.bf16 %v10301, %v10300
        %v10359 = vpack.c.bf16 %v10303, %v10302
        %v10360 = vpack.c.bf16 %v10305, %v10304
        %v10361 = vpack.c.bf16 %v10307, %v10306
        %v10362 = vpack.c.bf16 %v10309, %v10308
        %v10363 = vpack.c.bf16 %v10311, %v10310
        %v10364 = vpack.c.bf16 %v10313, %v10312
        %v10365 = vpack.c.bf16 %v10315, %v10314
        %v10366 = vpack.c.bf16 %v10317, %v10316
        %v10367 = vpack.c.bf16 %v10319, %v10318
        %v10384 = vrot.slane %v10352, 4
        %v10385 = vrot.slane %v10353, 4
        %v10386 = vsel %vm5699, %v10384, %v10385
        %v10387 = vrot.slane %v10354, 4
        %v10388 = vsel %vm5699, %v10385, %v10387
        %v10389 = vrot.slane %v10355, 4
        %v10390 = vsel %vm5699, %v10387, %v10389
        %v10391 = vrot.slane %v10356, 4
        %v10392 = vsel %vm5699, %v10389, %v10391
        %v10393 = vrot.slane %v10357, 4
        %v10394 = vsel %vm5699, %v10391, %v10393
        %v10395 = vrot.slane %v10358, 4
        %v10396 = vsel %vm5699, %v10393, %v10395
        %v10397 = vrot.slane %v10359, 4
        %v10398 = vsel %vm5699, %v10395, %v10397
        %v10399 = vrot.slane %v10360, 4
        %v10400 = vsel %vm5699, %v10397, %v10399
        %v10401 = vrot.slane %v10361, 4
        %v10402 = vsel %vm5699, %v10399, %v10401
        %v10403 = vrot.slane %v10362, 4
        %v10404 = vsel %vm5699, %v10401, %v10403
        %v10405 = vrot.slane %v10363, 4
        %v10406 = vsel %vm5699, %v10403, %v10405
        %v10407 = vrot.slane %v10364, 4
        %v10408 = vsel %vm5699, %v10405, %v10407
        %v10409 = vrot.slane %v10365, 4
        %v10410 = vsel %vm5699, %v10407, %v10409
        %v10411 = vrot.slane %v10366, 4
        %v10412 = vsel %vm5699, %v10409, %v10411
        %v10413 = vrot.slane %v10367, 4
        %v10414 = vsel %vm5699, %v10411, %v10413
        %10432 = vst [vmem:[#allocation3 + $0x8] sm:$0xf0] %v10384
        %10433 = vst [vmem:[#allocation3 + $0x10] sm:$0xff] %v10386
        %10434 = vst [vmem:[#allocation3 + $0x18] sm:$0xff] %v10388
        %10435 = vst [vmem:[#allocation3 + $0x20] sm:$0xff] %v10390
        %10436 = vst [vmem:[#allocation3 + $0x28] sm:$0xff] %v10392
        %10437 = vst [vmem:[#allocation3 + $0x30] sm:$0xff] %v10394
        %10438 = vst [vmem:[#allocation3 + $0x38] sm:$0xff] %v10396
        %10439 = vst [vmem:[#allocation3 + $0x40] sm:$0xff] %v10398
        %10440 = vst [vmem:[#allocation3 + $0x48] sm:$0xff] %v10400
        %10441 = vst [vmem:[#allocation3 + $0x50] sm:$0xff] %v10402
        %10442 = vst [vmem:[#allocation3 + $0x58] sm:$0xff] %v10404
        %10443 = vst [vmem:[#allocation3 + $0x60] sm:$0xff] %v10406
        %10444 = vst [vmem:[#allocation3 + $0x68] sm:$0xff] %v10408
        %10445 = vst [vmem:[#allocation3 + $0x70] sm:$0xff] %v10410
        %10446 = vst [vmem:[#allocation3 + $0x78] sm:$0xff] %v10412
        %10447 = vst [vmem:[#allocation3 + $0x80] sm:$0xff] %v10414
        %10448 = vst [vmem:[#allocation3 + $0x88] sm:$0xf] %v10413
        %v10449 = vld [vmem:[#allocation3 + $0x8] sm:$0xf8]
        %v10450 = vld [vmem:[#allocation3 + $0x10] sm:$0xff]
        %v10451 = vld [vmem:[#allocation3 + $0x18] sm:$0xff]
        %v10452 = vld [vmem:[#allocation3 + $0x20] sm:$0xff]
        %v10453 = vld [vmem:[#allocation3 + $0x28] sm:$0xff]
        %v10454 = vld [vmem:[#allocation3 + $0x30] sm:$0xff]
        %v10455 = vld [vmem:[#allocation3 + $0x38] sm:$0xff]
        %v10456 = vld [vmem:[#allocation3 + $0x40] sm:$0xff]
        %v10457 = vld [vmem:[#allocation3 + $0x48] sm:$0xff]
        %v10458 = vld [vmem:[#allocation3 + $0x50] sm:$0xff]
        %v10459 = vld [vmem:[#allocation3 + $0x58] sm:$0xff]
        %v10460 = vld [vmem:[#allocation3 + $0x60] sm:$0xff]
        %v10461 = vld [vmem:[#allocation3 + $0x68] sm:$0xff]
        %v10462 = vld [vmem:[#allocation3 + $0x70] sm:$0xff]
        %v10463 = vld [vmem:[#allocation3 + $0x78] sm:$0xff]
        %v10464 = vld [vmem:[#allocation3 + $0x80] sm:$0xff]
        %v10465 = vld [vmem:[#allocation3 + $0x88] sm:$0xf]
        %v10466 = vunpack.c.l.bf16 %v10449
        %v10467 = vunpack.c.h.bf16 %v10449
        %v10468 = vunpack.c.l.bf16 %v10450
        %v10469 = vunpack.c.h.bf16 %v10450
        %v10470 = vunpack.c.l.bf16 %v10451
        %v10471 = vunpack.c.h.bf16 %v10451
        %v10472 = vunpack.c.l.bf16 %v10452
        %v10473 = vunpack.c.h.bf16 %v10452
        %v10474 = vunpack.c.l.bf16 %v10453
        %v10475 = vunpack.c.h.bf16 %v10453
        %v10476 = vunpack.c.l.bf16 %v10454
        %v10477 = vunpack.c.h.bf16 %v10454
        %v10478 = vunpack.c.l.bf16 %v10455
        %v10479 = vunpack.c.h.bf16 %v10455
        %v10480 = vunpack.c.l.bf16 %v10456
        %v10481 = vunpack.c.h.bf16 %v10456
        %v10482 = vunpack.c.l.bf16 %v10457
        %v10483 = vunpack.c.h.bf16 %v10457
        %v10484 = vunpack.c.l.bf16 %v10458
        %v10485 = vunpack.c.h.bf16 %v10458
        %v10486 = vunpack.c.l.bf16 %v10459
        %v10487 = vunpack.c.h.bf16 %v10459
        %v10488 = vunpack.c.l.bf16 %v10460
        %v10489 = vunpack.c.h.bf16 %v10460
        %v10490 = vunpack.c.l.bf16 %v10461
        %v10491 = vunpack.c.h.bf16 %v10461
        %v10492 = vunpack.c.l.bf16 %v10462
        %v10493 = vunpack.c.h.bf16 %v10462
        %v10494 = vunpack.c.l.bf16 %v10463
        %v10495 = vunpack.c.h.bf16 %v10463
        %v10496 = vunpack.c.l.bf16 %v10464
        %v10497 = vunpack.c.h.bf16 %v10464
        %v10498 = vunpack.c.l.bf16 %v10465
        %vm10532 = vcmask 1040384
        %v10533 = vrot.slane %v10466, 7
        %v10534 = vrot.slane %v10467, 7
        %v10535 = vsel %vm10532, %v10533, %v10534
        %v10536 = vrot.slane %v10468, 7
        %v10537 = vsel %vm10532, %v10534, %v10536
        %v10538 = vrot.slane %v10469, 7
        %v10539 = vsel %vm10532, %v10536, %v10538
        %v10540 = vrot.slane %v10470, 7
        %v10541 = vsel %vm10532, %v10538, %v10540
        %v10542 = vrot.slane %v10471, 7
        %v10543 = vsel %vm10532, %v10540, %v10542
        %v10544 = vrot.slane %v10472, 7
        %v10545 = vsel %vm10532, %v10542, %v10544
        %v10546 = vrot.slane %v10473, 7
        %v10547 = vsel %vm10532, %v10544, %v10546
        %v10548 = vrot.slane %v10474, 7
        %v10549 = vsel %vm10532, %v10546, %v10548
        %v10550 = vrot.slane %v10475, 7
        %v10551 = vsel %vm10532, %v10548, %v10550
        %v10552 = vrot.slane %v10476, 7
        %v10553 = vsel %vm10532, %v10550, %v10552
        %v10554 = vrot.slane %v10477, 7
        %v10555 = vsel %vm10532, %v10552, %v10554
        %v10556 = vrot.slane %v10478, 7
        %v10557 = vsel %vm10532, %v10554, %v10556
        %v10558 = vrot.slane %v10479, 7
        %v10559 = vsel %vm10532, %v10556, %v10558
        %v10560 = vrot.slane %v10480, 7
        %v10561 = vsel %vm10532, %v10558, %v10560
        %v10562 = vrot.slane %v10481, 7
        %v10563 = vsel %vm10532, %v10560, %v10562
        %v10564 = vrot.slane %v10482, 7
        %v10565 = vsel %vm10532, %v10562, %v10564
        %v10566 = vrot.slane %v10483, 7
        %v10567 = vsel %vm10532, %v10564, %v10566
        %v10568 = vrot.slane %v10484, 7
        %v10569 = vsel %vm10532, %v10566, %v10568
        %v10570 = vrot.slane %v10485, 7
        %v10571 = vsel %vm10532, %v10568, %v10570
        %v10572 = vrot.slane %v10486, 7
        %v10573 = vsel %vm10532, %v10570, %v10572
        %v10574 = vrot.slane %v10487, 7
        %v10575 = vsel %vm10532, %v10572, %v10574
        %v10576 = vrot.slane %v10488, 7
        %v10577 = vsel %vm10532, %v10574, %v10576
        %v10578 = vrot.slane %v10489, 7
        %v10579 = vsel %vm10532, %v10576, %v10578
        %v10580 = vrot.slane %v10490, 7
        %v10581 = vsel %vm10532, %v10578, %v10580
        %v10582 = vrot.slane %v10491, 7
        %v10583 = vsel %vm10532, %v10580, %v10582
        %v10584 = vrot.slane %v10492, 7
        %v10585 = vsel %vm10532, %v10582, %v10584
        %v10586 = vrot.slane %v10493, 7
        %v10587 = vsel %vm10532, %v10584, %v10586
        %v10588 = vrot.slane %v10494, 7
        %v10589 = vsel %vm10532, %v10586, %v10588
        %v10590 = vrot.slane %v10495, 7
        %v10591 = vsel %vm10532, %v10588, %v10590
        %v10592 = vrot.slane %v10496, 7
        %v10593 = vsel %vm10532, %v10590, %v10592
        %v10594 = vrot.slane %v10497, 7
        %v10595 = vsel %vm10532, %v10592, %v10594
        %v10596 = vrot.slane %v10498, 7
        %v10597 = vsel %vm10532, %v10594, %v10596
        %v10630 = vsel %vm1397, %v10535, %v10288
        %v10631 = vsel %vm1398, %v10537, %v10289
        %v10632 = vsel %vm1399, %v10539, %v10290
        %v10633 = vsel %vm1400, %v10541, %v10291
        %v10634 = vsel %vm1401, %v10543, %v10292
        %v10635 = vsel %vm1402, %v10545, %v10293
        %v10636 = vsel %vm1403, %v10547, %v10294
        %v10637 = vsel %vm1404, %v10549, %v10295
        %v10638 = vsel %vm1405, %v10551, %v10296
        %v10639 = vsel %vm1406, %v10553, %v10297
        %v10640 = vsel %vm1407, %v10555, %v10298
        %v10641 = vsel %vm1408, %v10557, %v10299
        %v10642 = vsel %vm1409, %v10559, %v10300
        %v10643 = vsel %vm1410, %v10561, %v10301
        %v10644 = vsel %vm1411, %v10563, %v10302
        %v10645 = vsel %vm1412, %v10565, %v10303
        %v10646 = vsel %vm1413, %v10567, %v10304
        %v10647 = vsel %vm1414, %v10569, %v10305
        %v10648 = vsel %vm1415, %v10571, %v10306
        %v10649 = vsel %vm1416, %v10573, %v10307
        %v10650 = vsel %vm1417, %v10575, %v10308
        %v10651 = vsel %vm1418, %v10577, %v10309
        %v10652 = vsel %vm1419, %v10579, %v10310
        %v10653 = vsel %vm1420, %v10581, %v10311
        %v10654 = vsel %vm1421, %v10583, %v10312
        %v10655 = vsel %vm1422, %v10585, %v10313
        %v10656 = vsel %vm1423, %v10587, %v10314
        %v10657 = vsel %vm1424, %v10589, %v10315
        %v10658 = vsel %vm1425, %v10591, %v10316
        %v10659 = vsel %vm1426, %v10593, %v10317
        %v10660 = vsel %vm1427, %v10595, %v10318
        %v10661 = vsel %vm1428, %v10597, %v10319
        %v10662 = vld [vmem:[#allocation3 + $0x8] sm:$0xf0]
        %v10663 = vld [vmem:[#allocation3 + $0x88] sm:$0x1f]
        %v10681 = vrot.slane %v10662, 4
        %v10682 = vrot.slane %v10450, 4
        %v10683 = vsel %vm5699, %v10681, %v10682
        %v10684 = vrot.slane %v10451, 4
        %v10685 = vsel %vm5699, %v10682, %v10684
        %v10686 = vrot.slane %v10452, 4
        %v10687 = vsel %vm5699, %v10684, %v10686
        %v10688 = vrot.slane %v10453, 4
        %v10689 = vsel %vm5699, %v10686, %v10688
        %v10690 = vrot.slane %v10454, 4
        %v10691 = vsel %vm5699, %v10688, %v10690
        %v10692 = vrot.slane %v10455, 4
        %v10693 = vsel %vm5699, %v10690, %v10692
        %v10694 = vrot.slane %v10456, 4
        %v10695 = vsel %vm5699, %v10692, %v10694
        %v10696 = vrot.slane %v10457, 4
        %v10697 = vsel %vm5699, %v10694, %v10696
        %v10698 = vrot.slane %v10458, 4
        %v10699 = vsel %vm5699, %v10696, %v10698
        %v10700 = vrot.slane %v10459, 4
        %v10701 = vsel %vm5699, %v10698, %v10700
        %v10702 = vrot.slane %v10460, 4
        %v10703 = vsel %vm5699, %v10700, %v10702
        %v10704 = vrot.slane %v10461, 4
        %v10705 = vsel %vm5699, %v10702, %v10704
        %v10706 = vrot.slane %v10462, 4
        %v10707 = vsel %vm5699, %v10704, %v10706
        %v10708 = vrot.slane %v10463, 4
        %v10709 = vsel %vm5699, %v10706, %v10708
        %v10710 = vrot.slane %v10464, 4
        %v10711 = vsel %vm5699, %v10708, %v10710
        %v10712 = vrot.slane %v10663, 4
        %v10713 = vsel %vm5699, %v10710, %v10712
        %v10731 = vunpack.c.l.bf16 %v10683
        %v10732 = vunpack.c.h.bf16 %v10683
        %v10733 = vunpack.c.l.bf16 %v10685
        %v10734 = vunpack.c.h.bf16 %v10685
        %v10735 = vunpack.c.l.bf16 %v10687
        %v10736 = vunpack.c.h.bf16 %v10687
        %v10737 = vunpack.c.l.bf16 %v10689
        %v10738 = vunpack.c.h.bf16 %v10689
        %v10739 = vunpack.c.l.bf16 %v10691
        %v10740 = vunpack.c.h.bf16 %v10691
        %v10741 = vunpack.c.l.bf16 %v10693
        %v10742 = vunpack.c.h.bf16 %v10693
        %v10743 = vunpack.c.l.bf16 %v10695
        %v10744 = vunpack.c.h.bf16 %v10695
        %v10745 = vunpack.c.l.bf16 %v10697
        %v10746 = vunpack.c.h.bf16 %v10697
        %v10747 = vunpack.c.l.bf16 %v10699
        %v10748 = vunpack.c.h.bf16 %v10699
        %v10749 = vunpack.c.l.bf16 %v10701
        %v10750 = vunpack.c.h.bf16 %v10701
        %v10751 = vunpack.c.l.bf16 %v10703
        %v10752 = vunpack.c.h.bf16 %v10703
        %v10753 = vunpack.c.l.bf16 %v10705
        %v10754 = vunpack.c.h.bf16 %v10705
        %v10755 = vunpack.c.l.bf16 %v10707
        %v10756 = vunpack.c.h.bf16 %v10707
        %v10757 = vunpack.c.l.bf16 %v10709
        %v10758 = vunpack.c.h.bf16 %v10709
        %v10759 = vunpack.c.l.bf16 %v10711
        %v10760 = vunpack.c.h.bf16 %v10711
        %v10761 = vunpack.c.l.bf16 %v10713
        %v10762 = vunpack.c.h.bf16 %v10713
        %v10763 = vunpack.c.l.bf16 %v10712
        %vm10797 = vcmask 1046528
        %v10798 = vrot.slane %v10731, 1
        %v10799 = vrot.slane %v10732, 1
        %v10800 = vsel %vm10797, %v10798, %v10799
        %v10801 = vrot.slane %v10733, 1
        %v10802 = vsel %vm10797, %v10799, %v10801
        %v10803 = vrot.slane %v10734, 1
        %v10804 = vsel %vm10797, %v10801, %v10803
        %v10805 = vrot.slane %v10735, 1
        %v10806 = vsel %vm10797, %v10803, %v10805
        %v10807 = vrot.slane %v10736, 1
        %v10808 = vsel %vm10797, %v10805, %v10807
        %v10809 = vrot.slane %v10737, 1
        %v10810 = vsel %vm10797, %v10807, %v10809
        %v10811 = vrot.slane %v10738, 1
        %v10812 = vsel %vm10797, %v10809, %v10811
        %v10813 = vrot.slane %v10739, 1
        %v10814 = vsel %vm10797, %v10811, %v10813
        %v10815 = vrot.slane %v10740, 1
        %v10816 = vsel %vm10797, %v10813, %v10815
        %v10817 = vrot.slane %v10741, 1
        %v10818 = vsel %vm10797, %v10815, %v10817
        %v10819 = vrot.slane %v10742, 1
        %v10820 = vsel %vm10797, %v10817, %v10819
        %v10821 = vrot.slane %v10743, 1
        %v10822 = vsel %vm10797, %v10819, %v10821
        %v10823 = vrot.slane %v10744, 1
        %v10824 = vsel %vm10797, %v10821, %v10823
        %v10825 = vrot.slane %v10745, 1
        %v10826 = vsel %vm10797, %v10823, %v10825
        %v10827 = vrot.slane %v10746, 1
        %v10828 = vsel %vm10797, %v10825, %v10827
        %v10829 = vrot.slane %v10747, 1
        %v10830 = vsel %vm10797, %v10827, %v10829
        %v10831 = vrot.slane %v10748, 1
        %v10832 = vsel %vm10797, %v10829, %v10831
        %v10833 = vrot.slane %v10749, 1
        %v10834 = vsel %vm10797, %v10831, %v10833
        %v10835 = vrot.slane %v10750, 1
        %v10836 = vsel %vm10797, %v10833, %v10835
        %v10837 = vrot.slane %v10751, 1
        %v10838 = vsel %vm10797, %v10835, %v10837
        %v10839 = vrot.slane %v10752, 1
        %v10840 = vsel %vm10797, %v10837, %v10839
        %v10841 = vrot.slane %v10753, 1
        %v10842 = vsel %vm10797, %v10839, %v10841
        %v10843 = vrot.slane %v10754, 1
        %v10844 = vsel %vm10797, %v10841, %v10843
        %v10845 = vrot.slane %v10755, 1
        %v10846 = vsel %vm10797, %v10843, %v10845
        %v10847 = vrot.slane %v10756, 1
        %v10848 = vsel %vm10797, %v10845, %v10847
        %v10849 = vrot.slane %v10757, 1
        %v10850 = vsel %vm10797, %v10847, %v10849
        %v10851 = vrot.slane %v10758, 1
        %v10852 = vsel %vm10797, %v10849, %v10851
        %v10853 = vrot.slane %v10759, 1
        %v10854 = vsel %vm10797, %v10851, %v10853
        %v10855 = vrot.slane %v10760, 1
        %v10856 = vsel %vm10797, %v10853, %v10855
        %v10857 = vrot.slane %v10761, 1
        %v10858 = vsel %vm10797, %v10855, %v10857
        %v10859 = vrot.slane %v10762, 1
        %v10860 = vsel %vm10797, %v10857, %v10859
        %v10861 = vrot.slane %v10763, 1
        %v10862 = vsel %vm10797, %v10859, %v10861
        %v10895 = vsel %vm1753, %v10800, %v10288
        %v10896 = vsel %vm1754, %v10802, %v10289
        %v10897 = vsel %vm1755, %v10804, %v10290
        %v10898 = vsel %vm1756, %v10806, %v10291
        %v10899 = vsel %vm1757, %v10808, %v10292
        %v10900 = vsel %vm1758, %v10810, %v10293
        %v10901 = vsel %vm1759, %v10812, %v10294
        %v10902 = vsel %vm1760, %v10814, %v10295
        %v10903 = vsel %vm1761, %v10816, %v10296
        %v10904 = vsel %vm1762, %v10818, %v10297
        %v10905 = vsel %vm1763, %v10820, %v10298
        %v10906 = vsel %vm1764, %v10822, %v10299
        %v10907 = vsel %vm1765, %v10824, %v10300
        %v10908 = vsel %vm1766, %v10826, %v10301
        %v10909 = vsel %vm1767, %v10828, %v10302
        %v10910 = vsel %vm1768, %v10830, %v10303
        %v10911 = vsel %vm1769, %v10832, %v10304
        %v10912 = vsel %vm1770, %v10834, %v10305
        %v10913 = vsel %vm1771, %v10836, %v10306
        %v10914 = vsel %vm1772, %v10838, %v10307
        %v10915 = vsel %vm1773, %v10840, %v10308
        %v10916 = vsel %vm1774, %v10842, %v10309
        %v10917 = vsel %vm1775, %v10844, %v10310
        %v10918 = vsel %vm1776, %v10846, %v10311
        %v10919 = vsel %vm1777, %v10848, %v10312
        %v10920 = vsel %vm1778, %v10850, %v10313
        %v10921 = vsel %vm1779, %v10852, %v10314
        %v10922 = vsel %vm1780, %v10854, %v10315
        %v10923 = vsel %vm1781, %v10856, %v10316
        %v10924 = vsel %vm1782, %v10858, %v10317
        %v10925 = vsel %vm1783, %v10860, %v10318
        %v10926 = vsel %vm1784, %v10862, %v10319
        %v10927 = vmul.f32 %v10288, 0.75
        %v10928 = vmul.f32 %v10289, 0.75
        %v10929 = vmul.f32 %v10290, 0.75
        %v10930 = vmul.f32 %v10291, 0.75
        %v10931 = vmul.f32 %v10292, 0.75
        %v10932 = vmul.f32 %v10293, 0.75
        %v10933 = vmul.f32 %v10294, 0.75
        %v10934 = vmul.f32 %v10295, 0.75
        %v10935 = vmul.f32 %v10296, 0.75
        %v10936 = vmul.f32 %v10297, 0.75
        %v10937 = vmul.f32 %v10298, 0.75
        %v10938 = vmul.f32 %v10299, 0.75
        %v10939 = vmul.f32 %v10300, 0.75
        %v10940 = vmul.f32 %v10301, 0.75
        %v10941 = vmul.f32 %v10302, 0.75
        %v10942 = vmul.f32 %v10303, 0.75
        %v10943 = vmul.f32 %v10304, 0.75
        %v10944 = vmul.f32 %v10305, 0.75
        %v10945 = vmul.f32 %v10306, 0.75
        %v10946 = vmul.f32 %v10307, 0.75
        %v10947 = vmul.f32 %v10308, 0.75
        %v10948 = vmul.f32 %v10309, 0.75
        %v10949 = vmul.f32 %v10310, 0.75
        %v10950 = vmul.f32 %v10311, 0.75
        %v10951 = vmul.f32 %v10312, 0.75
        %v10952 = vmul.f32 %v10313, 0.75
        %v10953 = vmul.f32 %v10314, 0.75
        %v10954 = vmul.f32 %v10315, 0.75
        %v10955 = vmul.f32 %v10316, 0.75
        %v10956 = vmul.f32 %v10317, 0.75
        %v10957 = vmul.f32 %v10318, 0.75
        %v10958 = vmul.f32 %v10319, 0.75
        %v10959 = vmul.f32 %v10630, 0.25
        %v10960 = vmul.f32 %v10631, 0.25
        %v10961 = vmul.f32 %v10632, 0.25
        %v10962 = vmul.f32 %v10633, 0.25
        %v10963 = vmul.f32 %v10634, 0.25
        %v10964 = vmul.f32 %v10635, 0.25
        %v10965 = vmul.f32 %v10636, 0.25
        %v10966 = vmul.f32 %v10637, 0.25
        %v10967 = vmul.f32 %v10638, 0.25
        %v10968 = vmul.f32 %v10639, 0.25
        %v10969 = vmul.f32 %v10640, 0.25
        %v10970 = vmul.f32 %v10641, 0.25
        %v10971 = vmul.f32 %v10642, 0.25
        %v10972 = vmul.f32 %v10643, 0.25
        %v10973 = vmul.f32 %v10644, 0.25
        %v10974 = vmul.f32 %v10645, 0.25
        %v10975 = vmul.f32 %v10646, 0.25
        %v10976 = vmul.f32 %v10647, 0.25
        %v10977 = vmul.f32 %v10648, 0.25
        %v10978 = vmul.f32 %v10649, 0.25
        %v10979 = vmul.f32 %v10650, 0.25
        %v10980 = vmul.f32 %v10651, 0.25
        %v10981 = vmul.f32 %v10652, 0.25
        %v10982 = vmul.f32 %v10653, 0.25
        %v10983 = vmul.f32 %v10654, 0.25
        %v10984 = vmul.f32 %v10655, 0.25
        %v10985 = vmul.f32 %v10656, 0.25
        %v10986 = vmul.f32 %v10657, 0.25
        %v10987 = vmul.f32 %v10658, 0.25
        %v10988 = vmul.f32 %v10659, 0.25
        %v10989 = vmul.f32 %v10660, 0.25
        %v10990 = vmul.f32 %v10661, 0.25
        %v10991 = vadd.f32 %v10927, %v10959
        %v10992 = vadd.f32 %v10928, %v10960
        %v10993 = vadd.f32 %v10929, %v10961
        %v10994 = vadd.f32 %v10930, %v10962
        %v10995 = vadd.f32 %v10931, %v10963
        %v10996 = vadd.f32 %v10932, %v10964
        %v10997 = vadd.f32 %v10933, %v10965
        %v10998 = vadd.f32 %v10934, %v10966
        %v10999 = vadd.f32 %v10935, %v10967
        %v11000 = vadd.f32 %v10936, %v10968
        %v11001 = vadd.f32 %v10937, %v10969
        %v11002 = vadd.f32 %v10938, %v10970
        %v11003 = vadd.f32 %v10939, %v10971
        %v11004 = vadd.f32 %v10940, %v10972
        %v11005 = vadd.f32 %v10941, %v10973
        %v11006 = vadd.f32 %v10942, %v10974
        %v11007 = vadd.f32 %v10943, %v10975
        %v11008 = vadd.f32 %v10944, %v10976
        %v11009 = vadd.f32 %v10945, %v10977
        %v11010 = vadd.f32 %v10946, %v10978
        %v11011 = vadd.f32 %v10947, %v10979
        %v11012 = vadd.f32 %v10948, %v10980
        %v11013 = vadd.f32 %v10949, %v10981
        %v11014 = vadd.f32 %v10950, %v10982
        %v11015 = vadd.f32 %v10951, %v10983
        %v11016 = vadd.f32 %v10952, %v10984
        %v11017 = vadd.f32 %v10953, %v10985
        %v11018 = vadd.f32 %v10954, %v10986
        %v11019 = vadd.f32 %v10955, %v10987
        %v11020 = vadd.f32 %v10956, %v10988
        %v11021 = vadd.f32 %v10957, %v10989
        %v11022 = vadd.f32 %v10958, %v10990
        %v11023 = vmul.f32 %v10895, 0.25
        %v11024 = vmul.f32 %v10896, 0.25
        %v11025 = vmul.f32 %v10897, 0.25
        %v11026 = vmul.f32 %v10898, 0.25
        %v11027 = vmul.f32 %v10899, 0.25
        %v11028 = vmul.f32 %v10900, 0.25
        %v11029 = vmul.f32 %v10901, 0.25
        %v11030 = vmul.f32 %v10902, 0.25
        %v11031 = vmul.f32 %v10903, 0.25
        %v11032 = vmul.f32 %v10904, 0.25
        %v11033 = vmul.f32 %v10905, 0.25
        %v11034 = vmul.f32 %v10906, 0.25
        %v11035 = vmul.f32 %v10907, 0.25
        %v11036 = vmul.f32 %v10908, 0.25
        %v11037 = vmul.f32 %v10909, 0.25
        %v11038 = vmul.f32 %v10910, 0.25
        %v11039 = vmul.f32 %v10911, 0.25
        %v11040 = vmul.f32 %v10912, 0.25
        %v11041 = vmul.f32 %v10913, 0.25
        %v11042 = vmul.f32 %v10914, 0.25
        %v11043 = vmul.f32 %v10915, 0.25
        %v11044 = vmul.f32 %v10916, 0.25
        %v11045 = vmul.f32 %v10917, 0.25
        %v11046 = vmul.f32 %v10918, 0.25
        %v11047 = vmul.f32 %v10919, 0.25
        %v11048 = vmul.f32 %v10920, 0.25
        %v11049 = vmul.f32 %v10921, 0.25
        %v11050 = vmul.f32 %v10922, 0.25
        %v11051 = vmul.f32 %v10923, 0.25
        %v11052 = vmul.f32 %v10924, 0.25
        %v11053 = vmul.f32 %v10925, 0.25
        %v11054 = vmul.f32 %v10926, 0.25
        %v11055 = vadd.f32 %v10927, %v11023
        %v11056 = vadd.f32 %v10928, %v11024
        %v11057 = vadd.f32 %v10929, %v11025
        %v11058 = vadd.f32 %v10930, %v11026
        %v11059 = vadd.f32 %v10931, %v11027
        %v11060 = vadd.f32 %v10932, %v11028
        %v11061 = vadd.f32 %v10933, %v11029
        %v11062 = vadd.f32 %v10934, %v11030
        %v11063 = vadd.f32 %v10935, %v11031
        %v11064 = vadd.f32 %v10936, %v11032
        %v11065 = vadd.f32 %v10937, %v11033
        %v11066 = vadd.f32 %v10938, %v11034
        %v11067 = vadd.f32 %v10939, %v11035
        %v11068 = vadd.f32 %v10940, %v11036
        %v11069 = vadd.f32 %v10941, %v11037
        %v11070 = vadd.f32 %v10942, %v11038
        %v11071 = vadd.f32 %v10943, %v11039
        %v11072 = vadd.f32 %v10944, %v11040
        %v11073 = vadd.f32 %v10945, %v11041
        %v11074 = vadd.f32 %v10946, %v11042
        %v11075 = vadd.f32 %v10947, %v11043
        %v11076 = vadd.f32 %v10948, %v11044
        %v11077 = vadd.f32 %v10949, %v11045
        %v11078 = vadd.f32 %v10950, %v11046
        %v11079 = vadd.f32 %v10951, %v11047
        %v11080 = vadd.f32 %v10952, %v11048
        %v11081 = vadd.f32 %v10953, %v11049
        %v11082 = vadd.f32 %v10954, %v11050
        %v11083 = vadd.f32 %v10955, %v11051
        %v11084 = vadd.f32 %v10956, %v11052
        %v11085 = vadd.f32 %v10957, %v11053
        %v11086 = vadd.f32 %v10958, %v11054
        %v11087 = vld [vmem:[%s602] sm:$0xff]
        %v11088 = vld [vmem:[%s602 + $0x8] sm:$0xff]
        %v11089 = vld [vmem:[%s602 + $0x10] sm:$0xff]
        %v11090 = vld [vmem:[%s602 + $0x18] sm:$0xff]
        %v11091 = vld [vmem:[%s602 + $0x20] sm:$0xff]
        %v11092 = vld [vmem:[%s602 + $0x28] sm:$0xff]
        %v11093 = vld [vmem:[%s602 + $0x30] sm:$0xff]
        %v11094 = vld [vmem:[%s602 + $0x38] sm:$0xff]
        %v11095 = vld [vmem:[%s602 + $0x40] sm:$0xff]
        %v11096 = vld [vmem:[%s602 + $0x48] sm:$0xff]
        %v11097 = vld [vmem:[%s602 + $0x50] sm:$0xff]
        %v11098 = vld [vmem:[%s602 + $0x58] sm:$0xff]
        %v11099 = vld [vmem:[%s602 + $0x60] sm:$0xff]
        %v11100 = vld [vmem:[%s602 + $0x68] sm:$0xff]
        %v11101 = vld [vmem:[%s602 + $0x70] sm:$0xff]
        %v11102 = vld [vmem:[%s602 + $0x78] sm:$0xff]
        %v11103 = vld [vmem:[%s602 + $0x80] sm:$0xff]
        %v11104 = vld [vmem:[%s602 + $0x88] sm:$0xff]
        %v11105 = vld [vmem:[%s602 + $0x90] sm:$0xff]
        %v11106 = vld [vmem:[%s602 + $0x98] sm:$0xff]
        %v11107 = vld [vmem:[%s602 + $0xa0] sm:$0xff]
        %v11108 = vld [vmem:[%s602 + $0xa8] sm:$0xff]
        %v11109 = vld [vmem:[%s602 + $0xb0] sm:$0xff]
        %v11110 = vld [vmem:[%s602 + $0xb8] sm:$0xff]
        %v11111 = vld [vmem:[%s602 + $0xc0] sm:$0xff]
        %v11112 = vld [vmem:[%s602 + $0xc8] sm:$0xff]
        %v11113 = vld [vmem:[%s602 + $0xd0] sm:$0xff]
        %v11114 = vld [vmem:[%s602 + $0xd8] sm:$0xff]
        %v11115 = vld [vmem:[%s602 + $0xe0] sm:$0xff]
        %v11116 = vld [vmem:[%s602 + $0xe8] sm:$0xff]
        %v11117 = vld [vmem:[%s602 + $0xf0] sm:$0xff]
        %v11118 = vld [vmem:[%s602 + $0xf8] sm:$0xff]
        %v11119 = vld [vmem:[%s602 + $0x100] sm:$0xff]
        %v11120 = vld [vmem:[%s602 + $0x108] sm:$0xff]
        %v11121 = vld [vmem:[%s602 + $0x110] sm:$0xff]
        %v11122 = vld [vmem:[%s602 + $0x118] sm:$0xff]
        %v11123 = vld [vmem:[%s602 + $0x120] sm:$0xff]
        %v11124 = vld [vmem:[%s602 + $0x128] sm:$0xff]
        %v11125 = vld [vmem:[%s602 + $0x130] sm:$0xff]
        %v11126 = vld [vmem:[%s602 + $0x138] sm:$0xff]
        %v11127 = vld [vmem:[%s602 + $0x140] sm:$0xff]
        %v11128 = vld [vmem:[%s602 + $0x148] sm:$0xff]
        %v11129 = vld [vmem:[%s602 + $0x150] sm:$0xff]
        %v11130 = vld [vmem:[%s602 + $0x158] sm:$0xff]
        %v11131 = vld [vmem:[%s602 + $0x160] sm:$0xff]
        %v11132 = vld [vmem:[%s602 + $0x168] sm:$0xff]
        %v11133 = vld [vmem:[%s602 + $0x170] sm:$0xff]
        %v11134 = vld [vmem:[%s602 + $0x178] sm:$0xff]
        %v11135 = vld [vmem:[%s602 + $0x180] sm:$0xff]
        %v11136 = vld [vmem:[%s602 + $0x188] sm:$0xff]
        %v11137 = vld [vmem:[%s602 + $0x190] sm:$0xff]
        %v11138 = vld [vmem:[%s602 + $0x198] sm:$0xff]
        %v11139 = vld [vmem:[%s602 + $0x1a0] sm:$0xff]
        %v11140 = vld [vmem:[%s602 + $0x1a8] sm:$0xff]
        %v11141 = vld [vmem:[%s602 + $0x1b0] sm:$0xff]
        %v11142 = vld [vmem:[%s602 + $0x1b8] sm:$0xff]
        %v11143 = vld [vmem:[%s602 + $0x1c0] sm:$0xff]
        %v11144 = vld [vmem:[%s602 + $0x1c8] sm:$0xff]
        %v11145 = vld [vmem:[%s602 + $0x1d0] sm:$0xff]
        %v11146 = vld [vmem:[%s602 + $0x1d8] sm:$0xff]
        %v11147 = vld [vmem:[%s602 + $0x1e0] sm:$0xff]
        %v11148 = vld [vmem:[%s602 + $0x1e8] sm:$0xff]
        %v11149 = vld [vmem:[%s602 + $0x1f0] sm:$0xff]
        %v11150 = vld [vmem:[%s602 + $0x1f8] sm:$0xff]
        %v11151 = vmul.f32 %v10991, 0.75
        %v11152 = vmul.f32 %v10992, 0.75
        %v11153 = vmul.f32 %v10993, 0.75
        %v11154 = vmul.f32 %v10994, 0.75
        %v11155 = vmul.f32 %v10995, 0.75
        %v11156 = vmul.f32 %v10996, 0.75
        %v11157 = vmul.f32 %v10997, 0.75
        %v11158 = vmul.f32 %v10998, 0.75
        %v11159 = vmul.f32 %v10999, 0.75
        %v11160 = vmul.f32 %v11000, 0.75
        %v11161 = vmul.f32 %v11001, 0.75
        %v11162 = vmul.f32 %v11002, 0.75
        %v11163 = vmul.f32 %v11003, 0.75
        %v11164 = vmul.f32 %v11004, 0.75
        %v11165 = vmul.f32 %v11005, 0.75
        %v11166 = vmul.f32 %v11006, 0.75
        %v11167 = vmul.f32 %v11007, 0.75
        %v11168 = vmul.f32 %v11008, 0.75
        %v11169 = vmul.f32 %v11009, 0.75
        %v11170 = vmul.f32 %v11010, 0.75
        %v11171 = vmul.f32 %v11011, 0.75
        %v11172 = vmul.f32 %v11012, 0.75
        %v11173 = vmul.f32 %v11013, 0.75
        %v11174 = vmul.f32 %v11014, 0.75
        %v11175 = vmul.f32 %v11015, 0.75
        %v11176 = vmul.f32 %v11016, 0.75
        %v11177 = vmul.f32 %v11017, 0.75
        %v11178 = vmul.f32 %v11018, 0.75
        %v11179 = vmul.f32 %v11019, 0.75
        %v11180 = vmul.f32 %v11020, 0.75
        %v11181 = vmul.f32 %v11021, 0.75
        %v11182 = vmul.f32 %v11022, 0.75
        %v11183 = vmul.f32 %v10991, 0.25
        %v11184 = vmul.f32 %v10992, 0.25
        %v11185 = vmul.f32 %v10993, 0.25
        %v11186 = vmul.f32 %v10994, 0.25
        %v11187 = vmul.f32 %v10995, 0.25
        %v11188 = vmul.f32 %v10996, 0.25
        %v11189 = vmul.f32 %v10997, 0.25
        %v11190 = vmul.f32 %v10998, 0.25
        %v11191 = vmul.f32 %v10999, 0.25
        %v11192 = vmul.f32 %v11000, 0.25
        %v11193 = vmul.f32 %v11001, 0.25
        %v11194 = vmul.f32 %v11002, 0.25
        %v11195 = vmul.f32 %v11003, 0.25
        %v11196 = vmul.f32 %v11004, 0.25
        %v11197 = vmul.f32 %v11005, 0.25
        %v11198 = vmul.f32 %v11006, 0.25
        %v11199 = vmul.f32 %v11007, 0.25
        %v11200 = vmul.f32 %v11008, 0.25
        %v11201 = vmul.f32 %v11009, 0.25
        %v11202 = vmul.f32 %v11010, 0.25
        %v11203 = vmul.f32 %v11011, 0.25
        %v11204 = vmul.f32 %v11012, 0.25
        %v11205 = vmul.f32 %v11013, 0.25
        %v11206 = vmul.f32 %v11014, 0.25
        %v11207 = vmul.f32 %v11015, 0.25
        %v11208 = vmul.f32 %v11016, 0.25
        %v11209 = vmul.f32 %v11017, 0.25
        %v11210 = vmul.f32 %v11018, 0.25
        %v11211 = vmul.f32 %v11019, 0.25
        %v11212 = vmul.f32 %v11020, 0.25
        %v11213 = vadd.f32 %v11151, %v11183
        %v11214 = vadd.f32 %v11152, %v11184
        %v11215 = vadd.f32 %v11153, %v11183
        %v11216 = vadd.f32 %v11154, %v11184
        %v11217 = vadd.f32 %v11155, %v11185
        %v11218 = vadd.f32 %v11156, %v11186
        %v11219 = vadd.f32 %v11157, %v11187
        %v11220 = vadd.f32 %v11158, %v11188
        %v11221 = vadd.f32 %v11159, %v11189
        %v11222 = vadd.f32 %v11160, %v11190
        %v11223 = vadd.f32 %v11161, %v11191
        %v11224 = vadd.f32 %v11162, %v11192
        %v11225 = vadd.f32 %v11163, %v11193
        %v11226 = vadd.f32 %v11164, %v11194
        %v11227 = vadd.f32 %v11165, %v11195
        %v11228 = vadd.f32 %v11166, %v11196
        %v11229 = vadd.f32 %v11167, %v11197
        %v11230 = vadd.f32 %v11168, %v11198
        %v11231 = vadd.f32 %v11169, %v11199
        %v11232 = vadd.f32 %v11170, %v11200
        %v11233 = vadd.f32 %v11171, %v11201
        %v11234 = vadd.f32 %v11172, %v11202
        %v11235 = vadd.f32 %v11173, %v11203
        %v11236 = vadd.f32 %v11174, %v11204
        %v11237 = vadd.f32 %v11175, %v11205
        %v11238 = vadd.f32 %v11176, %v11206
        %v11239 = vadd.f32 %v11177, %v11207
        %v11240 = vadd.f32 %v11178, %v11208
        %v11241 = vadd.f32 %v11179, %v11209
        %v11242 = vadd.f32 %v11180, %v11210
        %v11243 = vadd.f32 %v11181, %v11211
        %v11244 = vadd.f32 %v11182, %v11212
        %v11245 = vmul.f32 %v11021, 0.25
        %v11246 = vmul.f32 %v11022, 0.25
        %v11247 = vadd.f32 %v11151, %v11185
        %v11248 = vadd.f32 %v11152, %v11186
        %v11249 = vadd.f32 %v11153, %v11187
        %v11250 = vadd.f32 %v11154, %v11188
        %v11251 = vadd.f32 %v11155, %v11189
        %v11252 = vadd.f32 %v11156, %v11190
        %v11253 = vadd.f32 %v11157, %v11191
        %v11254 = vadd.f32 %v11158, %v11192
        %v11255 = vadd.f32 %v11159, %v11193
        %v11256 = vadd.f32 %v11160, %v11194
        %v11257 = vadd.f32 %v11161, %v11195
        %v11258 = vadd.f32 %v11162, %v11196
        %v11259 = vadd.f32 %v11163, %v11197
        %v11260 = vadd.f32 %v11164, %v11198
        %v11261 = vadd.f32 %v11165, %v11199
        %v11262 = vadd.f32 %v11166, %v11200
        %v11263 = vadd.f32 %v11167, %v11201
        %v11264 = vadd.f32 %v11168, %v11202
        %v11265 = vadd.f32 %v11169, %v11203
        %v11266 = vadd.f32 %v11170, %v11204
        %v11267 = vadd.f32 %v11171, %v11205
        %v11268 = vadd.f32 %v11172, %v11206
        %v11269 = vadd.f32 %v11173, %v11207
        %v11270 = vadd.f32 %v11174, %v11208
        %v11271 = vadd.f32 %v11175, %v11209
        %v11272 = vadd.f32 %v11176, %v11210
        %v11273 = vadd.f32 %v11177, %v11211
        %v11274 = vadd.f32 %v11178, %v11212
        %v11275 = vadd.f32 %v11179, %v11245
        %v11276 = vadd.f32 %v11180, %v11246
        %v11277 = vadd.f32 %v11181, %v11245
        %v11278 = vadd.f32 %v11182, %v11246
        %v11279 = vadd.f32 %v11213, %v11087
        %v11280 = vadd.f32 %v11214, %v11088
        %v11281 = vadd.f32 %v11247, %v11089
        %v11282 = vadd.f32 %v11248, %v11090
        %v11283 = vadd.f32 %v11215, %v11091
        %v11284 = vadd.f32 %v11216, %v11092
        %v11285 = vadd.f32 %v11249, %v11093
        %v11286 = vadd.f32 %v11250, %v11094
        %v11287 = vadd.f32 %v11217, %v11095
        %v11288 = vadd.f32 %v11218, %v11096
        %v11289 = vadd.f32 %v11251, %v11097
        %v11290 = vadd.f32 %v11252, %v11098
        %v11291 = vadd.f32 %v11219, %v11099
        %v11292 = vadd.f32 %v11220, %v11100
        %v11293 = vadd.f32 %v11253, %v11101
        %v11294 = vadd.f32 %v11254, %v11102
        %v11295 = vadd.f32 %v11221, %v11103
        %v11296 = vadd.f32 %v11222, %v11104
        %v11297 = vadd.f32 %v11255, %v11105
        %v11298 = vadd.f32 %v11256, %v11106
        %v11299 = vadd.f32 %v11223, %v11107
        %v11300 = vadd.f32 %v11224, %v11108
        %v11301 = vadd.f32 %v11257, %v11109
        %v11302 = vadd.f32 %v11258, %v11110
        %v11303 = vadd.f32 %v11225, %v11111
        %v11304 = vadd.f32 %v11226, %v11112
        %v11305 = vadd.f32 %v11259, %v11113
        %v11306 = vadd.f32 %v11260, %v11114
        %v11307 = vadd.f32 %v11227, %v11115
        %v11308 = vadd.f32 %v11228, %v11116
        %v11309 = vadd.f32 %v11261, %v11117
        %v11310 = vadd.f32 %v11262, %v11118
        %v11311 = vadd.f32 %v11229, %v11119
        %v11312 = vadd.f32 %v11230, %v11120
        %v11313 = vadd.f32 %v11263, %v11121
        %v11314 = vadd.f32 %v11264, %v11122
        %v11315 = vadd.f32 %v11231, %v11123
        %v11316 = vadd.f32 %v11232, %v11124
        %v11317 = vadd.f32 %v11265, %v11125
        %v11318 = vadd.f32 %v11266, %v11126
        %v11319 = vadd.f32 %v11233, %v11127
        %v11320 = vadd.f32 %v11234, %v11128
        %v11321 = vadd.f32 %v11267, %v11129
        %v11322 = vadd.f32 %v11268, %v11130
        %v11323 = vadd.f32 %v11235, %v11131
        %v11324 = vadd.f32 %v11236, %v11132
        %v11325 = vadd.f32 %v11269, %v11133
        %v11326 = vadd.f32 %v11270, %v11134
        %v11327 = vadd.f32 %v11237, %v11135
        %v11328 = vadd.f32 %v11238, %v11136
        %v11329 = vadd.f32 %v11271, %v11137
        %v11330 = vadd.f32 %v11272, %v11138
        %v11331 = vadd.f32 %v11239, %v11139
        %v11332 = vadd.f32 %v11240, %v11140
        %v11333 = vadd.f32 %v11273, %v11141
        %v11334 = vadd.f32 %v11274, %v11142
        %v11335 = vadd.f32 %v11241, %v11143
        %v11336 = vadd.f32 %v11242, %v11144
        %v11337 = vadd.f32 %v11275, %v11145
        %v11338 = vadd.f32 %v11276, %v11146
        %v11339 = vadd.f32 %v11243, %v11147
        %v11340 = vadd.f32 %v11244, %v11148
        %v11341 = vadd.f32 %v11277, %v11149
        %v11342 = vadd.f32 %v11278, %v11150
        %11343 = vst [vmem:[%s653] sm:$0xff] %v11279
        %11344 = vst [vmem:[%s653 + $0x8] sm:$0xff] %v11280
        %11345 = vst [vmem:[%s653 + $0x10] sm:$0xff] %v11281
        %11346 = vst [vmem:[%s653 + $0x18] sm:$0xff] %v11282
        %11347 = vst [vmem:[%s653 + $0x20] sm:$0xff] %v11283
        %11348 = vst [vmem:[%s653 + $0x28] sm:$0xff] %v11284
        %11349 = vst [vmem:[%s653 + $0x30] sm:$0xff] %v11285
        %11350 = vst [vmem:[%s653 + $0x38] sm:$0xff] %v11286
        %11351 = vst [vmem:[%s653 + $0x40] sm:$0xff] %v11287
        %11352 = vst [vmem:[%s653 + $0x48] sm:$0xff] %v11288
        %11353 = vst [vmem:[%s653 + $0x50] sm:$0xff] %v11289
        %11354 = vst [vmem:[%s653 + $0x58] sm:$0xff] %v11290
        %11355 = vst [vmem:[%s653 + $0x60] sm:$0xff] %v11291
        %11356 = vst [vmem:[%s653 + $0x68] sm:$0xff] %v11292
        %11357 = vst [vmem:[%s653 + $0x70] sm:$0xff] %v11293
        %11358 = vst [vmem:[%s653 + $0x78] sm:$0xff] %v11294
        %11359 = vst [vmem:[%s653 + $0x80] sm:$0xff] %v11295
        %11360 = vst [vmem:[%s653 + $0x88] sm:$0xff] %v11296
        %11361 = vst [vmem:[%s653 + $0x90] sm:$0xff] %v11297
        %11362 = vst [vmem:[%s653 + $0x98] sm:$0xff] %v11298
        %11363 = vst [vmem:[%s653 + $0xa0] sm:$0xff] %v11299
        %11364 = vst [vmem:[%s653 + $0xa8] sm:$0xff] %v11300
        %11365 = vst [vmem:[%s653 + $0xb0] sm:$0xff] %v11301
        %11366 = vst [vmem:[%s653 + $0xb8] sm:$0xff] %v11302
        %11367 = vst [vmem:[%s653 + $0xc0] sm:$0xff] %v11303
        %11368 = vst [vmem:[%s653 + $0xc8] sm:$0xff] %v11304
        %11369 = vst [vmem:[%s653 + $0xd0] sm:$0xff] %v11305
        %11370 = vst [vmem:[%s653 + $0xd8] sm:$0xff] %v11306
        %11371 = vst [vmem:[%s653 + $0xe0] sm:$0xff] %v11307
        %11372 = vst [vmem:[%s653 + $0xe8] sm:$0xff] %v11308
        %11373 = vst [vmem:[%s653 + $0xf0] sm:$0xff] %v11309
        %11374 = vst [vmem:[%s653 + $0xf8] sm:$0xff] %v11310
        %11375 = vst [vmem:[%s653 + $0x100] sm:$0xff] %v11311
        %11376 = vst [vmem:[%s653 + $0x108] sm:$0xff] %v11312
        %11377 = vst [vmem:[%s653 + $0x110] sm:$0xff] %v11313
        %11378 = vst [vmem:[%s653 + $0x118] sm:$0xff] %v11314
        %11379 = vst [vmem:[%s653 + $0x120] sm:$0xff] %v11315
        %11380 = vst [vmem:[%s653 + $0x128] sm:$0xff] %v11316
        %11381 = vst [vmem:[%s653 + $0x130] sm:$0xff] %v11317
        %11382 = vst [vmem:[%s653 + $0x138] sm:$0xff] %v11318
        %11383 = vst [vmem:[%s653 + $0x140] sm:$0xff] %v11319
        %11384 = vst [vmem:[%s653 + $0x148] sm:$0xff] %v11320
        %11385 = vst [vmem:[%s653 + $0x150] sm:$0xff] %v11321
        %11386 = vst [vmem:[%s653 + $0x158] sm:$0xff] %v11322
        %11387 = vst [vmem:[%s653 + $0x160] sm:$0xff] %v11323
        %11388 = vst [vmem:[%s653 + $0x168] sm:$0xff] %v11324
        %11389 = vst [vmem:[%s653 + $0x170] sm:$0xff] %v11325
        %11390 = vst [vmem:[%s653 + $0x178] sm:$0xff] %v11326
        %11391 = vst [vmem:[%s653 + $0x180] sm:$0xff] %v11327
        %11392 = vst [vmem:[%s653 + $0x188] sm:$0xff] %v11328
        %11393 = vst [vmem:[%s653 + $0x190] sm:$0xff] %v11329
        %11394 = vst [vmem:[%s653 + $0x198] sm:$0xff] %v11330
        %11395 = vst [vmem:[%s653 + $0x1a0] sm:$0xff] %v11331
        %11396 = vst [vmem:[%s653 + $0x1a8] sm:$0xff] %v11332
        %11397 = vst [vmem:[%s653 + $0x1b0] sm:$0xff] %v11333
        %11398 = vst [vmem:[%s653 + $0x1b8] sm:$0xff] %v11334
        %11399 = vst [vmem:[%s653 + $0x1c0] sm:$0xff] %v11335
        %11400 = vst [vmem:[%s653 + $0x1c8] sm:$0xff] %v11336
        %11401 = vst [vmem:[%s653 + $0x1d0] sm:$0xff] %v11337
        %11402 = vst [vmem:[%s653 + $0x1d8] sm:$0xff] %v11338
        %11403 = vst [vmem:[%s653 + $0x1e0] sm:$0xff] %v11339
        %11404 = vst [vmem:[%s653 + $0x1e8] sm:$0xff] %v11340
        %11405 = vst [vmem:[%s653 + $0x1f0] sm:$0xff] %v11341
        %11406 = vst [vmem:[%s653 + $0x1f8] sm:$0xff] %v11342
        %s11407 = scalar_lea.vmem %s602, 512 [#allocation16]
        %v11408 = vld [vmem:[%s11407] sm:$0xff]
        %v11409 = vld [vmem:[%s11407 + $0x8] sm:$0xff]
        %v11410 = vld [vmem:[%s11407 + $0x10] sm:$0xff]
        %v11411 = vld [vmem:[%s11407 + $0x18] sm:$0xff]
        %v11412 = vld [vmem:[%s11407 + $0x20] sm:$0xff]
        %v11413 = vld [vmem:[%s11407 + $0x28] sm:$0xff]
        %v11414 = vld [vmem:[%s11407 + $0x30] sm:$0xff]
        %v11415 = vld [vmem:[%s11407 + $0x38] sm:$0xff]
        %v11416 = vld [vmem:[%s11407 + $0x40] sm:$0xff]
        %v11417 = vld [vmem:[%s11407 + $0x48] sm:$0xff]
        %v11418 = vld [vmem:[%s11407 + $0x50] sm:$0xff]
        %v11419 = vld [vmem:[%s11407 + $0x58] sm:$0xff]
        %v11420 = vld [vmem:[%s11407 + $0x60] sm:$0xff]
        %v11421 = vld [vmem:[%s11407 + $0x68] sm:$0xff]
        %v11422 = vld [vmem:[%s11407 + $0x70] sm:$0xff]
        %v11423 = vld [vmem:[%s11407 + $0x78] sm:$0xff]
        %v11424 = vld [vmem:[%s11407 + $0x80] sm:$0xff]
        %v11425 = vld [vmem:[%s11407 + $0x88] sm:$0xff]
        %v11426 = vld [vmem:[%s11407 + $0x90] sm:$0xff]
        %v11427 = vld [vmem:[%s11407 + $0x98] sm:$0xff]
        %v11428 = vld [vmem:[%s11407 + $0xa0] sm:$0xff]
        %v11429 = vld [vmem:[%s11407 + $0xa8] sm:$0xff]
        %v11430 = vld [vmem:[%s11407 + $0xb0] sm:$0xff]
        %v11431 = vld [vmem:[%s11407 + $0xb8] sm:$0xff]
        %v11432 = vld [vmem:[%s11407 + $0xc0] sm:$0xff]
        %v11433 = vld [vmem:[%s11407 + $0xc8] sm:$0xff]
        %v11434 = vld [vmem:[%s11407 + $0xd0] sm:$0xff]
        %v11435 = vld [vmem:[%s11407 + $0xd8] sm:$0xff]
        %v11436 = vld [vmem:[%s11407 + $0xe0] sm:$0xff]
        %v11437 = vld [vmem:[%s11407 + $0xe8] sm:$0xff]
        %v11438 = vld [vmem:[%s11407 + $0xf0] sm:$0xff]
        %v11439 = vld [vmem:[%s11407 + $0xf8] sm:$0xff]
        %v11440 = vld [vmem:[%s11407 + $0x100] sm:$0xff]
        %v11441 = vld [vmem:[%s11407 + $0x108] sm:$0xff]
        %v11442 = vld [vmem:[%s11407 + $0x110] sm:$0xff]
        %v11443 = vld [vmem:[%s11407 + $0x118] sm:$0xff]
        %v11444 = vld [vmem:[%s11407 + $0x120] sm:$0xff]
        %v11445 = vld [vmem:[%s11407 + $0x128] sm:$0xff]
        %v11446 = vld [vmem:[%s11407 + $0x130] sm:$0xff]
        %v11447 = vld [vmem:[%s11407 + $0x138] sm:$0xff]
        %v11448 = vld [vmem:[%s11407 + $0x140] sm:$0xff]
        %v11449 = vld [vmem:[%s11407 + $0x148] sm:$0xff]
        %v11450 = vld [vmem:[%s11407 + $0x150] sm:$0xff]
        %v11451 = vld [vmem:[%s11407 + $0x158] sm:$0xff]
        %v11452 = vld [vmem:[%s11407 + $0x160] sm:$0xff]
        %v11453 = vld [vmem:[%s11407 + $0x168] sm:$0xff]
        %v11454 = vld [vmem:[%s11407 + $0x170] sm:$0xff]
        %v11455 = vld [vmem:[%s11407 + $0x178] sm:$0xff]
        %v11456 = vld [vmem:[%s11407 + $0x180] sm:$0xff]
        %v11457 = vld [vmem:[%s11407 + $0x188] sm:$0xff]
        %v11458 = vld [vmem:[%s11407 + $0x190] sm:$0xff]
        %v11459 = vld [vmem:[%s11407 + $0x198] sm:$0xff]
        %v11460 = vld [vmem:[%s11407 + $0x1a0] sm:$0xff]
        %v11461 = vld [vmem:[%s11407 + $0x1a8] sm:$0xff]
        %v11462 = vld [vmem:[%s11407 + $0x1b0] sm:$0xff]
        %v11463 = vld [vmem:[%s11407 + $0x1b8] sm:$0xff]
        %v11464 = vld [vmem:[%s11407 + $0x1c0] sm:$0xff]
        %v11465 = vld [vmem:[%s11407 + $0x1c8] sm:$0xff]
        %v11466 = vld [vmem:[%s11407 + $0x1d0] sm:$0xff]
        %v11467 = vld [vmem:[%s11407 + $0x1d8] sm:$0xff]
        %v11468 = vld [vmem:[%s11407 + $0x1e0] sm:$0xff]
        %v11469 = vld [vmem:[%s11407 + $0x1e8] sm:$0xff]
        %v11470 = vld [vmem:[%s11407 + $0x1f0] sm:$0xff]
        %v11471 = vld [vmem:[%s11407 + $0x1f8] sm:$0xff]
        %v11472 = vmul.f32 %v11055, 0.75
        %v11473 = vmul.f32 %v11056, 0.75
        %v11474 = vmul.f32 %v11057, 0.75
        %v11475 = vmul.f32 %v11058, 0.75
        %v11476 = vmul.f32 %v11059, 0.75
        %v11477 = vmul.f32 %v11060, 0.75
        %v11478 = vmul.f32 %v11061, 0.75
        %v11479 = vmul.f32 %v11062, 0.75
        %v11480 = vmul.f32 %v11063, 0.75
        %v11481 = vmul.f32 %v11064, 0.75
        %v11482 = vmul.f32 %v11065, 0.75
        %v11483 = vmul.f32 %v11066, 0.75
        %v11484 = vmul.f32 %v11067, 0.75
        %v11485 = vmul.f32 %v11068, 0.75
        %v11486 = vmul.f32 %v11069, 0.75
        %v11487 = vmul.f32 %v11070, 0.75
        %v11488 = vmul.f32 %v11071, 0.75
        %v11489 = vmul.f32 %v11072, 0.75
        %v11490 = vmul.f32 %v11073, 0.75
        %v11491 = vmul.f32 %v11074, 0.75
        %v11492 = vmul.f32 %v11075, 0.75
        %v11493 = vmul.f32 %v11076, 0.75
        %v11494 = vmul.f32 %v11077, 0.75
        %v11495 = vmul.f32 %v11078, 0.75
        %v11496 = vmul.f32 %v11079, 0.75
        %v11497 = vmul.f32 %v11080, 0.75
        %v11498 = vmul.f32 %v11081, 0.75
        %v11499 = vmul.f32 %v11082, 0.75
        %v11500 = vmul.f32 %v11083, 0.75
        %v11501 = vmul.f32 %v11084, 0.75
        %v11502 = vmul.f32 %v11085, 0.75
        %v11503 = vmul.f32 %v11086, 0.75
        %v11504 = vmul.f32 %v11055, 0.25
        %v11505 = vmul.f32 %v11056, 0.25
        %v11506 = vmul.f32 %v11057, 0.25
        %v11507 = vmul.f32 %v11058, 0.25
        %v11508 = vmul.f32 %v11059, 0.25
        %v11509 = vmul.f32 %v11060, 0.25
        %v11510 = vmul.f32 %v11061, 0.25
        %v11511 = vmul.f32 %v11062, 0.25
        %v11512 = vmul.f32 %v11063, 0.25
        %v11513 = vmul.f32 %v11064, 0.25
        %v11514 = vmul.f32 %v11065, 0.25
        %v11515 = vmul.f32 %v11066, 0.25
        %v11516 = vmul.f32 %v11067, 0.25
        %v11517 = vmul.f32 %v11068, 0.25
        %v11518 = vmul.f32 %v11069, 0.25
        %v11519 = vmul.f32 %v11070, 0.25
        %v11520 = vmul.f32 %v11071, 0.25
        %v11521 = vmul.f32 %v11072, 0.25
        %v11522 = vmul.f32 %v11073, 0.25
        %v11523 = vmul.f32 %v11074, 0.25
        %v11524 = vmul.f32 %v11075, 0.25
        %v11525 = vmul.f32 %v11076, 0.25
        %v11526 = vmul.f32 %v11077, 0.25
        %v11527 = vmul.f32 %v11078, 0.25
        %v11528 = vmul.f32 %v11079, 0.25
        %v11529 = vmul.f32 %v11080, 0.25
        %v11530 = vmul.f32 %v11081, 0.25
        %v11531 = vmul.f32 %v11082, 0.25
        %v11532 = vmul.f32 %v11083, 0.25
        %v11533 = vmul.f32 %v11084, 0.25
        %v11534 = vadd.f32 %v11472, %v11504
        %v11535 = vadd.f32 %v11473, %v11505
        %v11536 = vadd.f32 %v11474, %v11504
        %v11537 = vadd.f32 %v11475, %v11505
        %v11538 = vadd.f32 %v11476, %v11506
        %v11539 = vadd.f32 %v11477, %v11507
        %v11540 = vadd.f32 %v11478, %v11508
        %v11541 = vadd.f32 %v11479, %v11509
        %v11542 = vadd.f32 %v11480, %v11510
        %v11543 = vadd.f32 %v11481, %v11511
        %v11544 = vadd.f32 %v11482, %v11512
        %v11545 = vadd.f32 %v11483, %v11513
        %v11546 = vadd.f32 %v11484, %v11514
        %v11547 = vadd.f32 %v11485, %v11515
        %v11548 = vadd.f32 %v11486, %v11516
        %v11549 = vadd.f32 %v11487, %v11517
        %v11550 = vadd.f32 %v11488, %v11518
        %v11551 = vadd.f32 %v11489, %v11519
        %v11552 = vadd.f32 %v11490, %v11520
        %v11553 = vadd.f32 %v11491, %v11521
        %v11554 = vadd.f32 %v11492, %v11522
        %v11555 = vadd.f32 %v11493, %v11523
        %v11556 = vadd.f32 %v11494, %v11524
        %v11557 = vadd.f32 %v11495, %v11525
        %v11558 = vadd.f32 %v11496, %v11526
        %v11559 = vadd.f32 %v11497, %v11527
        %v11560 = vadd.f32 %v11498, %v11528
        %v11561 = vadd.f32 %v11499, %v11529
        %v11562 = vadd.f32 %v11500, %v11530
        %v11563 = vadd.f32 %v11501, %v11531
        %v11564 = vadd.f32 %v11502, %v11532
        %v11565 = vadd.f32 %v11503, %v11533
        %v11566 = vmul.f32 %v11085, 0.25
        %v11567 = vmul.f32 %v11086, 0.25
        %v11568 = vadd.f32 %v11472, %v11506
        %v11569 = vadd.f32 %v11473, %v11507
        %v11570 = vadd.f32 %v11474, %v11508
        %v11571 = vadd.f32 %v11475, %v11509
        %v11572 = vadd.f32 %v11476, %v11510
        %v11573 = vadd.f32 %v11477, %v11511
        %v11574 = vadd.f32 %v11478, %v11512
        %v11575 = vadd.f32 %v11479, %v11513
        %v11576 = vadd.f32 %v11480, %v11514
        %v11577 = vadd.f32 %v11481, %v11515
        %v11578 = vadd.f32 %v11482, %v11516
        %v11579 = vadd.f32 %v11483, %v11517
        %v11580 = vadd.f32 %v11484, %v11518
        %v11581 = vadd.f32 %v11485, %v11519
        %v11582 = vadd.f32 %v11486, %v11520
        %v11583 = vadd.f32 %v11487, %v11521
        %v11584 = vadd.f32 %v11488, %v11522
        %v11585 = vadd.f32 %v11489, %v11523
        %v11586 = vadd.f32 %v11490, %v11524
        %v11587 = vadd.f32 %v11491, %v11525
        %v11588 = vadd.f32 %v11492, %v11526
        %v11589 = vadd.f32 %v11493, %v11527
        %v11590 = vadd.f32 %v11494, %v11528
        %v11591 = vadd.f32 %v11495, %v11529
        %v11592 = vadd.f32 %v11496, %v11530
        %v11593 = vadd.f32 %v11497, %v11531
        %v11594 = vadd.f32 %v11498, %v11532
        %v11595 = vadd.f32 %v11499, %v11533
        %v11596 = vadd.f32 %v11500, %v11566
        %v11597 = vadd.f32 %v11501, %v11567
        %v11598 = vadd.f32 %v11502, %v11566
        %v11599 = vadd.f32 %v11503, %v11567
        %v11600 = vadd.f32 %v11534, %v11408
        %v11601 = vadd.f32 %v11535, %v11409
        %v11602 = vadd.f32 %v11568, %v11410
        %v11603 = vadd.f32 %v11569, %v11411
        %v11604 = vadd.f32 %v11536, %v11412
        %v11605 = vadd.f32 %v11537, %v11413
        %v11606 = vadd.f32 %v11570, %v11414
        %v11607 = vadd.f32 %v11571, %v11415
        %v11608 = vadd.f32 %v11538, %v11416
        %v11609 = vadd.f32 %v11539, %v11417
        %v11610 = vadd.f32 %v11572, %v11418
        %v11611 = vadd.f32 %v11573, %v11419
        %v11612 = vadd.f32 %v11540, %v11420
        %v11613 = vadd.f32 %v11541, %v11421
        %v11614 = vadd.f32 %v11574, %v11422
        %v11615 = vadd.f32 %v11575, %v11423
        %v11616 = vadd.f32 %v11542, %v11424
        %v11617 = vadd.f32 %v11543, %v11425
        %v11618 = vadd.f32 %v11576, %v11426
        %v11619 = vadd.f32 %v11577, %v11427
        %v11620 = vadd.f32 %v11544, %v11428
        %v11621 = vadd.f32 %v11545, %v11429
        %v11622 = vadd.f32 %v11578, %v11430
        %v11623 = vadd.f32 %v11579, %v11431
        %v11624 = vadd.f32 %v11546, %v11432
        %v11625 = vadd.f32 %v11547, %v11433
        %v11626 = vadd.f32 %v11580, %v11434
        %v11627 = vadd.f32 %v11581, %v11435
        %v11628 = vadd.f32 %v11548, %v11436
        %v11629 = vadd.f32 %v11549, %v11437
        %v11630 = vadd.f32 %v11582, %v11438
        %v11631 = vadd.f32 %v11583, %v11439
        %v11632 = vadd.f32 %v11550, %v11440
        %v11633 = vadd.f32 %v11551, %v11441
        %v11634 = vadd.f32 %v11584, %v11442
        %v11635 = vadd.f32 %v11585, %v11443
        %v11636 = vadd.f32 %v11552, %v11444
        %v11637 = vadd.f32 %v11553, %v11445
        %v11638 = vadd.f32 %v11586, %v11446
        %v11639 = vadd.f32 %v11587, %v11447
        %v11640 = vadd.f32 %v11554, %v11448
        %v11641 = vadd.f32 %v11555, %v11449
        %v11642 = vadd.f32 %v11588, %v11450
        %v11643 = vadd.f32 %v11589, %v11451
        %v11644 = vadd.f32 %v11556, %v11452
        %v11645 = vadd.f32 %v11557, %v11453
        %v11646 = vadd.f32 %v11590, %v11454
        %v11647 = vadd.f32 %v11591, %v11455
        %v11648 = vadd.f32 %v11558, %v11456
        %v11649 = vadd.f32 %v11559, %v11457
        %v11650 = vadd.f32 %v11592, %v11458
        %v11651 = vadd.f32 %v11593, %v11459
        %v11652 = vadd.f32 %v11560, %v11460
        %v11653 = vadd.f32 %v11561, %v11461
        %v11654 = vadd.f32 %v11594, %v11462
        %v11655 = vadd.f32 %v11595, %v11463
        %v11656 = vadd.f32 %v11562, %v11464
        %v11657 = vadd.f32 %v11563, %v11465
        %v11658 = vadd.f32 %v11596, %v11466
        %v11659 = vadd.f32 %v11597, %v11467
        %v11660 = vadd.f32 %v11564, %v11468
        %v11661 = vadd.f32 %v11565, %v11469
        %v11662 = vadd.f32 %v11598, %v11470
        %v11663 = vadd.f32 %v11599, %v11471
        %s11664 = scalar_lea.vmem %s653, 512 [#allocation17]
        %11665 = vst [vmem:[%s11664] sm:$0xff] %v11600
        %11666 = vst [vmem:[%s11664 + $0x8] sm:$0xff] %v11601
        %11667 = vst [vmem:[%s11664 + $0x10] sm:$0xff] %v11602
        %11668 = vst [vmem:[%s11664 + $0x18] sm:$0xff] %v11603
        %11669 = vst [vmem:[%s11664 + $0x20] sm:$0xff] %v11604
        %11670 = vst [vmem:[%s11664 + $0x28] sm:$0xff] %v11605
        %11671 = vst [vmem:[%s11664 + $0x30] sm:$0xff] %v11606
        %11672 = vst [vmem:[%s11664 + $0x38] sm:$0xff] %v11607
        %11673 = vst [vmem:[%s11664 + $0x40] sm:$0xff] %v11608
        %11674 = vst [vmem:[%s11664 + $0x48] sm:$0xff] %v11609
        %11675 = vst [vmem:[%s11664 + $0x50] sm:$0xff] %v11610
        %11676 = vst [vmem:[%s11664 + $0x58] sm:$0xff] %v11611
        %11677 = vst [vmem:[%s11664 + $0x60] sm:$0xff] %v11612
        %11678 = vst [vmem:[%s11664 + $0x68] sm:$0xff] %v11613
        %11679 = vst [vmem:[%s11664 + $0x70] sm:$0xff] %v11614
        %11680 = vst [vmem:[%s11664 + $0x78] sm:$0xff] %v11615
        %11681 = vst [vmem:[%s11664 + $0x80] sm:$0xff] %v11616
        %11682 = vst [vmem:[%s11664 + $0x88] sm:$0xff] %v11617
        %11683 = vst [vmem:[%s11664 + $0x90] sm:$0xff] %v11618
        %11684 = vst [vmem:[%s11664 + $0x98] sm:$0xff] %v11619
        %11685 = vst [vmem:[%s11664 + $0xa0] sm:$0xff] %v11620
        %11686 = vst [vmem:[%s11664 + $0xa8] sm:$0xff] %v11621
        %11687 = vst [vmem:[%s11664 + $0xb0] sm:$0xff] %v11622
        %11688 = vst [vmem:[%s11664 + $0xb8] sm:$0xff] %v11623
        %11689 = vst [vmem:[%s11664 + $0xc0] sm:$0xff] %v11624
        %11690 = vst [vmem:[%s11664 + $0xc8] sm:$0xff] %v11625
        %11691 = vst [vmem:[%s11664 + $0xd0] sm:$0xff] %v11626
        %11692 = vst [vmem:[%s11664 + $0xd8] sm:$0xff] %v11627
        %11693 = vst [vmem:[%s11664 + $0xe0] sm:$0xff] %v11628
        %11694 = vst [vmem:[%s11664 + $0xe8] sm:$0xff] %v11629
        %11695 = vst [vmem:[%s11664 + $0xf0] sm:$0xff] %v11630
        %11696 = vst [vmem:[%s11664 + $0xf8] sm:$0xff] %v11631
        %11697 = vst [vmem:[%s11664 + $0x100] sm:$0xff] %v11632
        %11698 = vst [vmem:[%s11664 + $0x108] sm:$0xff] %v11633
        %11699 = vst [vmem:[%s11664 + $0x110] sm:$0xff] %v11634
        %11700 = vst [vmem:[%s11664 + $0x118] sm:$0xff] %v11635
        %11701 = vst [vmem:[%s11664 + $0x120] sm:$0xff] %v11636
        %11702 = vst [vmem:[%s11664 + $0x128] sm:$0xff] %v11637
        %11703 = vst [vmem:[%s11664 + $0x130] sm:$0xff] %v11638
        %11704 = vst [vmem:[%s11664 + $0x138] sm:$0xff] %v11639
        %11705 = vst [vmem:[%s11664 + $0x140] sm:$0xff] %v11640
        %11706 = vst [vmem:[%s11664 + $0x148] sm:$0xff] %v11641
        %11707 = vst [vmem:[%s11664 + $0x150] sm:$0xff] %v11642
        %11708 = vst [vmem:[%s11664 + $0x158] sm:$0xff] %v11643
        %11709 = vst [vmem:[%s11664 + $0x160] sm:$0xff] %v11644
        %11710 = vst [vmem:[%s11664 + $0x168] sm:$0xff] %v11645
        %11711 = vst [vmem:[%s11664 + $0x170] sm:$0xff] %v11646
        %11712 = vst [vmem:[%s11664 + $0x178] sm:$0xff] %v11647
        %11713 = vst [vmem:[%s11664 + $0x180] sm:$0xff] %v11648
        %11714 = vst [vmem:[%s11664 + $0x188] sm:$0xff] %v11649
        %11715 = vst [vmem:[%s11664 + $0x190] sm:$0xff] %v11650
        %11716 = vst [vmem:[%s11664 + $0x198] sm:$0xff] %v11651
        %11717 = vst [vmem:[%s11664 + $0x1a0] sm:$0xff] %v11652
        %11718 = vst [vmem:[%s11664 + $0x1a8] sm:$0xff] %v11653
        %11719 = vst [vmem:[%s11664 + $0x1b0] sm:$0xff] %v11654
        %11720 = vst [vmem:[%s11664 + $0x1b8] sm:$0xff] %v11655
        %11721 = vst [vmem:[%s11664 + $0x1c0] sm:$0xff] %v11656
        %11722 = vst [vmem:[%s11664 + $0x1c8] sm:$0xff] %v11657
        %11723 = vst [vmem:[%s11664 + $0x1d0] sm:$0xff] %v11658
        %11724 = vst [vmem:[%s11664 + $0x1d8] sm:$0xff] %v11659
        %11725 = vst [vmem:[%s11664 + $0x1e0] sm:$0xff] %v11660
        %11726 = vst [vmem:[%s11664 + $0x1e8] sm:$0xff] %v11661
        %11727 = vst [vmem:[%s11664 + $0x1f0] sm:$0xff] %v11662
        %11728 = vst [vmem:[%s11664 + $0x1f8] sm:$0xff] %v11663
        %s11729 = sand.u32 %s373, 1
        %s11730 = scalar_lea.sflag [#allocation7], %s11729
        %s11731 = sand.u32 %s373, 1
        %s11732 = smul.addr %s11731, 1024
        %s11733 = scalar_lea.vmem [#allocation17], %s11732
        %s11734 = sand.u32 %s399, 1
        %s11735 = scalar_lea.sflag [#allocation19], %s11734
        %s11736 = sand.u32 %s399, 1
        %s11737 = smul.addr %s11736, 256
        %s11738 = scalar_lea.vmem [#allocation18], %s11737
        // Predicated region
        $region109: #{tpu_custom_call.1} parent=79 // pred_check
          %p11739 = pneg %p383
        $region110: #{tpu_custom_call.1} parent=79 // pred_check_branch
          %11741 = sbr.rel (%p11739) target = $region112
        $region111: #{tpu_custom_call.1} parent=79 // pred_region
          %s11743 = ssub.s32 16384, 16384
          %11744 = vsyncadd %s11730, %s11743
          %s11745 = smul.addr %s40, 128
          %s11746 = smul.addr %s11745, 128
          %s11747 = scalar_lea.hbm %s15, %s11746
          %s11748 = sshll.u32 %s11733, 4
          %s11749 = int_to_ptr.vmem [resolvable:$true] %s11748
          %11754 = dma.vmem_to_hbm [thread:$0]  %s11749, 16384, %s11747, %s11730, 128, 128, 8
        $region112: #{tpu_custom_call.1} parent=79 // pred_fallthru
          _
        // Predicated region
        $region113: #{tpu_custom_call.1} parent=79 // pred_check
          %p11755 = pneg %p409
        $region114: #{tpu_custom_call.1} parent=79 // pred_check_branch
          %11757 = sbr.rel (%p11755) target = $region116
        $region115: #{tpu_custom_call.1} parent=79 // pred_region
          %s11759 = ssub.s32 4096, 4096
          %11760 = vsyncadd %s11735, %s11759
          %s11761 = smul.addr %s40, 32
          %s11762 = smul.addr %s11761, 128
          %s11763 = scalar_lea.hbm %s16, %s11762
          %s11764 = sshll.u32 %s11738, 4
          %s11765 = int_to_ptr.vmem [resolvable:$true] %s11764
          %11770 = dma.vmem_to_hbm [thread:$0]  %s11765, 4096, %s11763, %s11735, 128, 128, 8
        $region116: #{tpu_custom_call.1} parent=79 // pred_fallthru
          _
      $region80: #{tpu_custom_call.1} parent=5 // pred_fallthru
        _
      %p11771 = scmp.le.s32.totalorder 2, %s35
      // Predicated region
      $region117: #{tpu_custom_call.1} parent=5 // pred_check
        %p11772 = pneg %p11771
      $region118: #{tpu_custom_call.1} parent=5 // pred_check_branch
        %11774 = sbr.rel (%p11772) target = $region120
      $region119: #{tpu_custom_call.1} parent=5 // pred_region
        %s11775 = ssub.s32 %s35, 2
        // Predicated region
        $region121: #{tpu_custom_call.1} parent=119 // pred_check
          %p11776 = pneg %p389
        $region122: #{tpu_custom_call.1} parent=119 // pred_check_branch
          %11778 = sbr.rel (%p11776) target = $region124
        $region123: #{tpu_custom_call.1} parent=119 // pred_region
          %s11779 = sand.u32 %s374, 1
          %s11780 = scalar_lea.sflag [#allocation7], %s11779
          %s11781 = sand.u32 %s374, 1
          %s11782 = smul.addr %s11781, 1024
          %s11783 = scalar_lea.vmem [#allocation17], %s11782
          %11784 = dma.done %s11780, 16384
        $region124: #{tpu_custom_call.1} parent=119 // pred_fallthru
          _
        // Predicated region
        $region125: #{tpu_custom_call.1} parent=119 // pred_check
          %p11785 = pneg %p415
        $region126: #{tpu_custom_call.1} parent=119 // pred_check_branch
          %11787 = sbr.rel (%p11785) target = $region128
        $region127: #{tpu_custom_call.1} parent=119 // pred_region
          %s11788 = sand.u32 %s400, 1
          %s11789 = scalar_lea.sflag [#allocation19], %s11788
          %s11790 = sand.u32 %s400, 1
          %s11791 = smul.addr %s11790, 256
          %s11792 = scalar_lea.vmem [#allocation18], %s11791
          %11793 = dma.done %s11789, 4096
        $region128: #{tpu_custom_call.1} parent=119 // pred_fallthru
          _
      $region120: #{tpu_custom_call.1} parent=5 // pred_fallthru
        _
    $region6: #{tpu_custom_call.1} parent=1 // loop_footer
      %s39 = sadd.s32 1, %s35
    $region7: #{tpu_custom_call.1} parent=1 // loop_footer_branch
      %34 = sbr.rel target = $region3
    $region8: #{tpu_custom_call.1} parent=1 // loop_exit
      _
    %11794 = vsyncpa [#allocation6], 1
    %s11795 = scalar_lea.sflag [#allocation6], 1
    %11796 = vsyncpa %s11795, 1
    %11797 = vsyncpa [#allocation9], 1
    %11798 = vsyncpa [#allocation12], 1
    %11799 = vsyncpa [#allocation15], 1
    %11800 = vsyncpa [#allocation7], 1
    %s11801 = scalar_lea.sflag [#allocation7], 1
    %11802 = vsyncpa %s11801, 1
    %11803 = vsyncpa [#allocation19], 1
    %s11804 = scalar_lea.sflag [#allocation19], 1
    %11805 = vsyncpa %s11804, 1

</llo_original>
